<compile_context>
chip_gen: v7x
topology: tpu7x:2x2x1
jax: 0.10.0
libtpu: 0.0.40
codegen_flags: <defaults>
</compile_context>

<pallas_src>
import functools
import numpy as np

import jax
import jax.numpy as jnp
from jax.experimental import pallas as pl
from jax.experimental.pallas import tpu as pltpu

# sizes fixed by the module (MNIST-like 28x28 single-channel input)
H0, W0 = 28, 28          # input spatial
H1, W1 = 24, 24          # after 5x5 valid conv
HP, WP = 12, 12          # after first 2x2 maxpool
HO, WO = 6, 6            # after second 2x2 maxpool
C1 = 32                  # conv1 out channels
CE = 128                 # CSC expanded channels (32 * expansion 4)
CP = 64                  # CSC planes
NCLS = 10
KP = 32                  # im2col K padded 25 -> 32 (aligned MXU operand)
R = HP * WP              # 144 spatial positions per image
FC1_IN = HO * WO * CP    # 2304
FC1_OUT = 512
FC1_BLOCK_N = 256        # fc1 N-tile (wider tile -> fewer HBM-bound grid steps)
MAX_TILE_B = 16          # images per feature-kernel grid step (fits v5e/v7x VMEM)


# ----------------------------- Pallas kernels ------------------------------ #

def feature_kernel(p_ref, wc_ref, bc_ref, w0_ref, b0_ref, w1s_ref, b1_ref,
                   wd_ref, bd_ref, m_ref, o_ref, *, shifts, tile_b):
    """conv1(5x5)+ReLU+pool2x2 + full CSC block, TILE_B images per grid step.

    p_ref : (4*TR, 32) bf16 im2col patches, rows (corner, b, i, j), TR = tile_b*144
    m_ref : (S, 144, 1) per-shift spatial validity masks (per image)
    o_ref : (TR, 64)   CSC output, rows ordered (b, i, j)
    """
    TR = tile_b * R
    # 5x5 conv as im2col matmul (bf16 operands, f32 acc) + bias + ReLU
    z = jnp.dot(p_ref[...], wc_ref[...], preferred_element_type=jnp.float32)
    z = jnp.maximum(z + bc_ref[...], 0.0)                            # (4*TR, 32)
    # first 2x2 max-pool == elementwise max of the four contiguous corner slabs
    y = jnp.maximum(jnp.maximum(z[0:TR], z[TR:2 * TR]),
                    jnp.maximum(z[2 * TR:3 * TR], z[3 * TR:4 * TR]))  # (TR, 32)
    yb = y.astype(jnp.bfloat16)

    # CSC conv0 (1x1, 32->128) + folded BN + ReLU
    h = jnp.dot(yb, w0_ref[...], preferred_element_type=jnp.float32)
    h = jnp.maximum(h + b0_ref[...], 0.0)                            # (TR, 128)

    # Shift + conv1 (1x1, 128->64): per distinct (dx, dy) roll rows of h on the
    # XLU, matmul against the channel-masked BN-folded weight, mask rows whose
    # shifted source is out of bounds (also covers cross-image rows in the tile).
    acc = jnp.zeros((tile_b, R, CP), jnp.float32)
    for s, (dx, dy) in enumerate(shifts):
        k = dy * WP + dx
        hs = h if k == 0 else pltpu.roll(h, shift=(-k) % TR, axis=0)
        c = jnp.dot(hs.astype(jnp.bfloat16), w1s_ref[s],
                    preferred_element_type=jnp.float32)              # (TR, 64)
        acc = acc + c.reshape(tile_b, R, CP) * m_ref[s]
    # PyTorch order: ReLU is inside conv1's Sequential, residual added after.
    out = jnp.maximum(acc.reshape(TR, CP) + b1_ref[...], 0.0)

    # downsample (1x1 32->64, no conv bias) + folded BN, then residual add
    res = jnp.dot(yb, wd_ref[...], preferred_element_type=jnp.float32) + bd_ref[...]
    o_ref[...] = out + res


def fc_head_kernel(x4_ref, w1_ref, b1_ref, w2_ref, b2_ref, o_ref, x_scr, acc_ref):
    """2x2 maxpool (4 corner slabs, done once) + fc1(bf16 W)+ReLU + fc2 + log_softmax.

    Grid is over fc1's N in 256-wide chunks; fc2 logits accumulate in scratch.
    """
    j = pl.program_id(0)

    @pl.when(j == 0)
    def _init():
        # second 2x2 maxpool + bf16 cast, computed once and reused by every chunk
        x = jnp.maximum(jnp.maximum(x4_ref[0], x4_ref[1]),
                        jnp.maximum(x4_ref[2], x4_ref[3]))           # (B, 2304)
        x_scr[...] = x.astype(jnp.bfloat16)
        acc_ref[...] = jnp.zeros_like(acc_ref)

    h = jnp.dot(x_scr[...], w1_ref[...],
                preferred_element_type=jnp.float32) + b1_ref[...]
    h = jnp.maximum(h, 0.0)                                          # (B, 256)
    acc_ref[...] += jnp.dot(h, w2_ref[...], preferred_element_type=jnp.float32)

    @pl.when(j == pl.num_programs(0) - 1)
    def _finalize():
        logits = acc_ref[...] + b2_ref[...]
        m = jnp.max(logits, axis=-1, keepdims=True)
        lse = m + jnp.log(jnp.sum(jnp.exp(logits - m), axis=-1, keepdims=True))
        o_ref[...] = logits - lse


# ------------------------------ kernel wrappers ----------------------------- #

def csc_features(patches, params, shifts, tile_b):
    """patches: (Bp*4*144, 32) bf16 -> CSC output (Bp*144, 64) f32, rows (b, i, j)."""
    n_tiles = patches.shape[0] // (tile_b * 4 * R)
    S = params['w1s'].shape[0]
    z2 = lambda t: (0, 0)
    z3 = lambda t: (0, 0, 0)
    return pl.pallas_call(
        functools.partial(feature_kernel, shifts=shifts, tile_b=tile_b),
        out_shape=jax.ShapeDtypeStruct((n_tiles * tile_b * R, CP), jnp.float32),
        grid=(n_tiles,),
        in_specs=[
            pl.BlockSpec((tile_b * 4 * R, KP), lambda t: (t, 0)),  # patches (per tile)
            pl.BlockSpec((KP, C1), z2),                            # conv1 weight (bf16)
            pl.BlockSpec((1, C1), z2),                             # conv1 bias
            pl.BlockSpec((C1, CE), z2),                            # csc conv0 (BN folded, bf16)
            pl.BlockSpec((1, CE), z2),
            pl.BlockSpec((S, CE, CP), z3),                         # per-shift masked conv1 W (bf16)
            pl.BlockSpec((1, CP), z2),
            pl.BlockSpec((C1, CP), z2),                            # downsample (BN folded, bf16)
            pl.BlockSpec((1, CP), z2),
            pl.BlockSpec((S, R, 1), z3),                           # per-shift validity masks
        ],
        out_specs=pl.BlockSpec((tile_b * R, CP), lambda t: (t, 0)),
        compiler_params=pltpu.CompilerParams(
            dimension_semantics=("parallel",)),
    )(patches, params['conv1_w'], params['conv1_b'],
      params['csc_w0'], params['csc_b0'],
      params['w1s'], params['csc_b1'],
      params['csc_wd'], params['csc_bd'],
      params['shift_masks'])


def fc_head(x4, params):
    """x4: (4, B, 2304) corner slabs -> log-probabilities (B, 10)."""
    B = x4.shape[1]
    n_blocks = FC1_OUT // FC1_BLOCK_N
    return pl.pallas_call(
        fc_head_kernel,
        out_shape=jax.ShapeDtypeStruct((B, NCLS), jnp.float32),
        grid=(n_blocks,),
        in_specs=[
            pl.BlockSpec((4, B, FC1_IN), lambda j: (0, 0, 0)),
            pl.BlockSpec((FC1_IN, FC1_BLOCK_N), lambda j: (0, j)),   # bf16 fc1 weight tile
            pl.BlockSpec((1, FC1_BLOCK_N), lambda j: (0, j)),
            pl.BlockSpec((FC1_BLOCK_N, NCLS), lambda j: (j, 0)),
            pl.BlockSpec((1, NCLS), lambda j: (0, 0)),
        ],
        out_specs=pl.BlockSpec((B, NCLS), lambda j: (0, 0)),
        scratch_shapes=[pltpu.VMEM((B, FC1_IN), jnp.bfloat16),       # pooled activations
                        pltpu.VMEM((B, NCLS), jnp.float32)],         # logit accumulator
        compiler_params=pltpu.CompilerParams(
            dimension_semantics=("arbitrary",)),
    )(x4, params['fc1_w'], params['fc1_b'], params['fc2_w'], params['fc2_b'])


# ------------------------------ parameters ---------------------------------- #

def make_bn(key, c, eps=1e-5):
    """Inference-mode BatchNorm with deterministic synthetic running stats,
    returned already folded as (scale, shift)."""
    k1, k2, k3, k4 = jax.random.split(key, 4)
    gamma = 1.0 + 0.1 * jax.random.normal(k1, (c,), jnp.float32)
    beta = 0.1 * jax.random.normal(k2, (c,), jnp.float32)
    mean = 0.1 * jax.random.normal(k3, (c,), jnp.float32)
    var = 1.0 + 0.1 * jax.random.uniform(k4, (c,), jnp.float32)
    scale = gamma / jnp.sqrt(var + eps)
    shift = beta - mean * scale
    return scale, shift


def init_params(key):
    ks = jax.random.split(key, 16)

    def w_init(k, shape, fan_in):
        return jax.random.normal(k, shape, jnp.float32) / np.sqrt(fan_in)

    # conv1: Conv2d(1, 32, 5) as an im2col matmul weight; K zero-padded 25->32
    conv1_w = jnp.zeros((KP, C1), jnp.float32).at[:25].set(w_init(ks[0], (25, C1), 25))
    conv1_b = 0.01 * jax.random.normal(ks[1], (C1,), jnp.float32)

    # CSC block (inplanes=32, planes=64, ksize=5, expansion=4); fold BN into W/b
    w0 = w_init(ks[2], (C1, CE), C1)
    b0 = 0.01 * jax.random.normal(ks[3], (CE,), jnp.float32)
    s0, t0 = make_bn(ks[4], CE)
    w0f = w0 * s0[None, :]
    b0f = b0 * s0 + t0

    w1 = w_init(ks[5], (CE, CP), CE)
    b1 = 0.01 * jax.random.normal(ks[6], (CP,), jnp.float32)
    s1, t1 = make_bn(ks[7], CP)
    w1f = np.asarray(w1 * s1[None, :])
    b1f = b1 * s1 + t1

    wd = w_init(ks[8], (C1, CP), C1)
    sd, td = make_bn(ks[9], CP)
    wdf = wd * sd[None, :]
    bdf = td                                   # downsample conv has no bias

    # Shift offsets: 5 random groups of 25 channels + final (0,0) group (3 ch).
    # TODO(synk): offsets drawn from numpy RandomState(0), not torch's RNG stream
    # (same distribution as torch.randint(-2, 3, (2,)), values differ).
    rng = np.random.RandomState(0)
    group_shifts = [tuple(int(v) for v in rng.randint(-2, 3, size=2)) for _ in range(5)]
    group_shifts.append((0, 0))
    dk2 = 25
    uniq, chan_masks = [], []
    for g, sh in enumerate(group_shifts):
        if sh not in uniq:
            uniq.append(sh)
            chan_masks.append(np.zeros((CE,), np.float32))
        idx = uniq.index(sh)
        st, en = g * dk2, min(CE, (g + 1) * dk2)
        chan_masks[idx][st:en] = 1.0
    S = len(uniq)
    # per-distinct-shift channel-masked, BN-folded conv1 weights (S, 128, 64)
    w1s = np.stack([w1f * cm[:, None] for cm in chan_masks], axis=0)
    # per-distinct-shift spatial validity masks over the 12x12 map, (S, 144, 1)
    ii, jj = np.meshgrid(np.arange(HP), np.arange(WP), indexing='ij')
    masks = np.zeros((S, R, 1), np.float32)
    for s_idx, (dx, dy) in enumerate(uniq):
        valid = (ii + dy >= 0) & (ii + dy < HP) & (jj + dx >= 0) & (jj + dx < WP)
        masks[s_idx, :, 0] = valid.reshape(-1).astype(np.float32)

    # FC layers.  fc1 rows are permuted from PyTorch's NCHW flatten order
    # (c, h, w) to the NHWC flatten order (h, w, c) produced by the kernels,
    # and stored in bf16 to halve the dominant HBM transfer.
    fc1_w_nchw = w_init(ks[10], (FC1_IN, FC1_OUT), FC1_IN)
    perm = np.arange(FC1_IN).reshape(CP, HO, WO).transpose(1, 2, 0).reshape(-1)
    fc1_w = jnp.asarray(fc1_w_nchw)[perm, :].astype(jnp.bfloat16)
    fc1_b = 0.01 * jax.random.normal(ks[11], (FC1_OUT,), jnp.float32)
    fc2_w = w_init(ks[12], (FC1_OUT, NCLS), FC1_OUT)
    fc2_b = 0.01 * jax.random.normal(ks[13], (NCLS,), jnp.float32)

    params = dict(
        conv1_w=conv1_w.astype(jnp.bfloat16), conv1_b=conv1_b.reshape(1, -1),
        csc_w0=w0f.astype(jnp.bfloat16), csc_b0=b0f.reshape(1, -1),
        w1s=jnp.asarray(w1s).astype(jnp.bfloat16), csc_b1=b1f.reshape(1, -1),
        csc_wd=wdf.astype(jnp.bfloat16), csc_bd=bdf.reshape(1, -1),
        shift_masks=jnp.asarray(masks),
        fc1_w=fc1_w, fc1_b=fc1_b.reshape(1, -1),
        fc2_w=fc2_w, fc2_b=fc2_b.reshape(1, -1),
    )
    return params, tuple(uniq)


# ------------------------------ forward pass -------------------------------- #

def shiftnet_forward(params, x_nchw, *, shifts):
    B = x_nchw.shape[0]
    tile_b = min(MAX_TILE_B, B)
    Bp = ((B + tile_b - 1) // tile_b) * tile_b      # pad batch to a tile multiple
    x = x_nchw[:, 0, :, :]                          # (B, 28, 28), Cin = 1
    if Bp != B:
        x = jnp.concatenate([x, jnp.zeros((Bp - B, H0, W0), x.dtype)], axis=0)

    # im2col for the 5x5 conv (K padded to 32), rows reordered so that within a
    # batch tile the four 2x2-pool corners are contiguous (tile_b*144)-row slabs:
    # (tile, corner_i, corner_j, b, i, j, k).  Cheap XLA glue on small tensors.
    cols = [x[:, di:di + H1, dj:dj + W1] for di in range(5) for dj in range(5)]
    pat = jnp.stack(cols, axis=-1)                        # (Bp, 24, 24, 25)
    pat = jnp.pad(pat, ((0, 0), (0, 0), (0, 0), (0, KP - 25)))
    pat = pat.reshape(Bp // tile_b, tile_b, HP, 2, WP, 2, KP)
    pat = jnp.transpose(pat, (0, 3, 5, 1, 2, 4, 6))       # (nt, 2, 2, tb, 12, 12, KP)
    patches = pat.reshape(Bp * 4 * R, KP).astype(jnp.bfloat16)

    # fused conv1 + ReLU + maxpool + CSC block (one pallas_call, grid over tiles)
    csc = csc_features(patches, params, shifts, tile_b)   # (Bp*144, 64), rows (b, i, j)

    # second 2x2 maxpool presented as four corner slabs; the max (computed once),
    # fc1+ReLU, fc2 and log_softmax all run inside one pallas_call.
    c4 = csc.reshape(Bp, HP, WP, CP)[:B]
    corners = [c4[:, pi::2, pj::2, :].reshape(B, FC1_IN)
               for pi in range(2) for pj in range(2)]
    x4 = jnp.stack(corners, axis=0)                       # (4, B, 2304), NHWC flatten order
    return fc_head(x4, params)


# ------------------------- pure-JAX reference (check) ------------------------ #

def reference_forward(params, x_nchw, shifts):
    f32 = lambda a: jnp.asarray(a, jnp.float32)
    hi = jax.lax.Precision.HIGHEST
    B = x_nchw.shape[0]
    x = x_nchw[:, 0, :, :]
    cols = [x[:, di:di + H1, dj:dj + W1] for di in range(5) for dj in range(5)]
    pat = jnp.stack(cols, axis=-1)                                   # (B,24,24,25)
    z = jnp.einsum('bhwk,kc->bhwc', pat, f32(params['conv1_w'])[:25], precision=hi)
    z = jnp.maximum(z + params['conv1_b'][0], 0.0)
    y = z.reshape(B, HP, 2, WP, 2, C1).max(axis=(2, 4))              # (B,12,12,32)
    h = jnp.einsum('bhwc,cd->bhwd', y, f32(params['csc_w0']), precision=hi)
    h = jnp.maximum(h + params['csc_b0'][0], 0.0)
    hp = jnp.pad(h, ((0, 0), (2, 2), (2, 2), (0, 0)))
    acc = jnp.zeros((B, HP, WP, CP), jnp.float32)
    for s, (dx, dy) in enumerate(shifts):
        hs = hp[:, 2 + dy:2 + dy + HP, 2 + dx:2 + dx + WP, :]
        acc = acc + jnp.einsum('bhwc,cd->bhwd', hs, f32(params['w1s'][s]), precision=hi)
    out = jnp.maximum(acc + params['csc_b1'][0], 0.0)
    res = jnp.einsum('bhwc,cd->bhwd', y, f32(params['csc_wd']), precision=hi) + params['csc_bd'][0]
    o = out + res
    o = o.reshape(B, HO, 2, WO, 2, CP).max(axis=(2, 4)).reshape(B, FC1_IN)
    h1 = jnp.maximum(jnp.dot(o, f32(params['fc1_w']), precision=hi) + params['fc1_b'][0], 0.0)
    logits = jnp.dot(h1, params['fc2_w'], precision=hi) + params['fc2_b'][0]
    return jax.nn.log_softmax(logits, axis=-1)


if __name__ == "__main__":
    key = jax.random.PRNGKey(0)
    pkey, xkey = jax.random.split(key)
    params, shifts = init_params(pkey)
    x = jax.random.normal(xkey, (2, 1, 28, 28), jnp.float32)   # MNIST-like NCHW input
    fwd = jax.jit(functools.partial(shiftnet_forward, shifts=shifts))
    out = jax.block_until_ready(fwd(params, x))
    assert out.shape == (2, NCLS)
    assert bool(jnp.all(jnp.isfinite(out)))
    ref = reference_forward(params, x, shifts)
    max_err = float(jnp.max(jnp.abs(out - ref)))
    assert max_err < 1e-1, f"kernel vs reference max abs diff too large: {max_err}"
    print("KERNEL_OK")
</pallas_src>

<mosaic_0001>
module attributes {stable_mosaic.version = 11 : i64} {
  func.func @feature_kernel(%arg0: i32, %arg1: memref<1152x32xbf16, #tpu.memory_space<vmem>>, %arg2: memref<32x32xbf16, #tpu.memory_space<vmem>>, %arg3: memref<1x32xf32, #tpu.memory_space<vmem>>, %arg4: memref<32x128xbf16, #tpu.memory_space<vmem>>, %arg5: memref<1x128xf32, #tpu.memory_space<vmem>>, %arg6: memref<5x128x64xbf16, #tpu.memory_space<vmem>>, %arg7: memref<1x64xf32, #tpu.memory_space<vmem>>, %arg8: memref<32x64xbf16, #tpu.memory_space<vmem>>, %arg9: memref<1x64xf32, #tpu.memory_space<vmem>>, %arg10: memref<5x144x1xf32, #tpu.memory_space<vmem>>, %arg11: memref<288x64xf32, #tpu.memory_space<vmem>>) attributes {dimension_semantics = [#tpu.dimension_semantics<parallel>], iteration_bounds = array<i64: 1>, scalar_prefetch = 0 : i64, scratch_operands = 0 : i64, tpu.core_type = #tpu.core_type<tc>, window_params = [{transform_indices = @transform_0, window_bounds = array<i64: 1152, 32>}, {pipeline_mode = #tpu.pipeline_mode<synchronous>, transform_indices = @transform_1, window_bounds = array<i64: 32, 32>}, {pipeline_mode = #tpu.pipeline_mode<synchronous>, transform_indices = @transform_2, window_bounds = array<i64: 1, 32>}, {pipeline_mode = #tpu.pipeline_mode<synchronous>, transform_indices = @transform_3, window_bounds = array<i64: 32, 128>}, {pipeline_mode = #tpu.pipeline_mode<synchronous>, transform_indices = @transform_4, window_bounds = array<i64: 1, 128>}, {pipeline_mode = #tpu.pipeline_mode<synchronous>, transform_indices = @transform_5, window_bounds = array<i64: 5, 128, 64>}, {pipeline_mode = #tpu.pipeline_mode<synchronous>, transform_indices = @transform_6, window_bounds = array<i64: 1, 64>}, {pipeline_mode = #tpu.pipeline_mode<synchronous>, transform_indices = @transform_7, window_bounds = array<i64: 32, 64>}, {pipeline_mode = #tpu.pipeline_mode<synchronous>, transform_indices = @transform_8, window_bounds = array<i64: 1, 64>}, {pipeline_mode = #tpu.pipeline_mode<synchronous>, transform_indices = @transform_9, window_bounds = array<i64: 5, 144, 1>}, {transform_indices = @transform_10, window_bounds = array<i64: 288, 64>}]} {
    %c0 = arith.constant 0 : index
    %c0_0 = arith.constant 0 : index
    %0 = vector.load %arg1[%c0, %c0_0] : memref<1152x32xbf16, #tpu.memory_space<vmem>>, vector<1152x32xbf16>
    %c0_1 = arith.constant 0 : index
    %c0_2 = arith.constant 0 : index
    %1 = vector.load %arg2[%c0_1, %c0_2] : memref<32x32xbf16, #tpu.memory_space<vmem>>, vector<32x32xbf16>
    %cst = arith.constant dense<0.000000e+00> : vector<1152x32xf32>
    %2 = tpu.matmul %0, %1, %cst {dimension_numbers = #tpu.dot_dimension_numbers<[1], [0], [0], [1], [0, 0, 1, 1], [], []>} : vector<1152x32xbf16>, vector<32x32xbf16>, vector<1152x32xf32> -> vector<1152x32xf32>
    %c0_3 = arith.constant 0 : index
    %c0_4 = arith.constant 0 : index
    %3 = vector.load %arg3[%c0_3, %c0_4] : memref<1x32xf32, #tpu.memory_space<vmem>>, vector<1x32xf32>
    %4 = vector.broadcast %3 : vector<1x32xf32> to vector<1152x32xf32>
    %5 = arith.addf %2, %4 : vector<1152x32xf32>
    %cst_5 = arith.constant 0.000000e+00 : f32
    %6 = vector.broadcast %cst_5 : f32 to vector<1152x32xf32>
    %7 = arith.maximumf %5, %6 : vector<1152x32xf32>
    %8 = vector.extract_strided_slice %7 {offsets = [0, 0], sizes = [288, 32], strides = [1, 1]} : vector<1152x32xf32> to vector<288x32xf32>
    %9 = vector.extract_strided_slice %7 {offsets = [288, 0], sizes = [288, 32], strides = [1, 1]} : vector<1152x32xf32> to vector<288x32xf32>
    %10 = arith.maximumf %8, %9 : vector<288x32xf32>
    %11 = vector.extract_strided_slice %7 {offsets = [576, 0], sizes = [288, 32], strides = [1, 1]} : vector<1152x32xf32> to vector<288x32xf32>
    %12 = vector.extract_strided_slice %7 {offsets = [864, 0], sizes = [288, 32], strides = [1, 1]} : vector<1152x32xf32> to vector<288x32xf32>
    %13 = arith.maximumf %11, %12 : vector<288x32xf32>
    %14 = arith.maximumf %10, %13 : vector<288x32xf32>
    %15 = arith.truncf %14 : vector<288x32xf32> to vector<288x32xbf16>
    %c0_6 = arith.constant 0 : index
    %c0_7 = arith.constant 0 : index
    %16 = vector.load %arg4[%c0_6, %c0_7] : memref<32x128xbf16, #tpu.memory_space<vmem>>, vector<32x128xbf16>
    %cst_8 = arith.constant dense<0.000000e+00> : vector<288x128xf32>
    %17 = tpu.matmul %15, %16, %cst_8 {dimension_numbers = #tpu.dot_dimension_numbers<[1], [0], [0], [1], [0, 0, 1, 1], [], []>} : vector<288x32xbf16>, vector<32x128xbf16>, vector<288x128xf32> -> vector<288x128xf32>
    %c0_9 = arith.constant 0 : index
    %c0_10 = arith.constant 0 : index
    %18 = vector.load %arg5[%c0_9, %c0_10] : memref<1x128xf32, #tpu.memory_space<vmem>>, vector<1x128xf32>
    %19 = vector.broadcast %18 : vector<1x128xf32> to vector<288x128xf32>
    %20 = arith.addf %17, %19 : vector<288x128xf32>
    %cst_11 = arith.constant 0.000000e+00 : f32
    %21 = vector.broadcast %cst_11 : f32 to vector<288x128xf32>
    %22 = arith.maximumf %20, %21 : vector<288x128xf32>
    %cst_12 = arith.constant 0.000000e+00 : f32
    %23 = vector.broadcast %cst_12 : f32 to vector<2x144x64xf32>
    %c22_i32 = arith.constant 22 : i32
    %24 = tpu.dynamic_rotate %22 by %c22_i32 dim 0 : vector<288x128xf32>, i32 -> vector<288x128xf32>
    %25 = arith.truncf %24 : vector<288x128xf32> to vector<288x128xbf16>
    %c0_13 = arith.constant 0 : index
    %c0_14 = arith.constant 0 : index
    %c0_15 = arith.constant 0 : index
    %26 = vector.load %arg6[%c0_13, %c0_14, %c0_15] : memref<5x128x64xbf16, #tpu.memory_space<vmem>>, vector<1x128x64xbf16>
    %27 = vector.shape_cast %26 : vector<1x128x64xbf16> to vector<128x64xbf16>
    %cst_16 = arith.constant dense<0.000000e+00> : vector<288x64xf32>
    %28 = tpu.matmul %25, %27, %cst_16 {dimension_numbers = #tpu.dot_dimension_numbers<[1], [0], [0], [1], [0, 0, 1, 1], [], []>} : vector<288x128xbf16>, vector<128x64xbf16>, vector<288x64xf32> -> vector<288x64xf32>
    %29 = vector.shape_cast %28 : vector<288x64xf32> to vector<2x144x64xf32>
    %c0_17 = arith.constant 0 : index
    %c0_18 = arith.constant 0 : index
    %c0_19 = arith.constant 0 : index
    %30 = vector.load %arg10[%c0_17, %c0_18, %c0_19] : memref<5x144x1xf32, #tpu.memory_space<vmem>>, vector<1x144x1xf32>
    %31 = vector.shape_cast %30 : vector<1x144x1xf32> to vector<144x1xf32>
    %32 = vector.shape_cast %31 : vector<144x1xf32> to vector<1x144x1xf32>
    %33 = vector.broadcast %32 : vector<1x144x1xf32> to vector<2x144x64xf32>
    %34 = arith.mulf %29, %33 : vector<2x144x64xf32>
    %35 = arith.addf %23, %34 : vector<2x144x64xf32>
    %c275_i32 = arith.constant 275 : i32
    %36 = tpu.dynamic_rotate %22 by %c275_i32 dim 0 : vector<288x128xf32>, i32 -> vector<288x128xf32>
    %37 = arith.truncf %36 : vector<288x128xf32> to vector<288x128xbf16>
    %c1 = arith.constant 1 : index
    %c0_20 = arith.constant 0 : index
    %c0_21 = arith.constant 0 : index
    %38 = vector.load %arg6[%c1, %c0_20, %c0_21] : memref<5x128x64xbf16, #tpu.memory_space<vmem>>, vector<1x128x64xbf16>
    %39 = vector.shape_cast %38 : vector<1x128x64xbf16> to vector<128x64xbf16>
    %cst_22 = arith.constant dense<0.000000e+00> : vector<288x64xf32>
    %40 = tpu.matmul %37, %39, %cst_22 {dimension_numbers = #tpu.dot_dimension_numbers<[1], [0], [0], [1], [0, 0, 1, 1], [], []>} : vector<288x128xbf16>, vector<128x64xbf16>, vector<288x64xf32> -> vector<288x64xf32>
    %41 = vector.shape_cast %40 : vector<288x64xf32> to vector<2x144x64xf32>
    %c1_23 = arith.constant 1 : index
    %c0_24 = arith.constant 0 : index
    %c0_25 = arith.constant 0 : index
    %42 = vector.load %arg10[%c1_23, %c0_24, %c0_25] : memref<5x144x1xf32, #tpu.memory_space<vmem>>, vector<1x144x1xf32>
    %43 = vector.shape_cast %42 : vector<1x144x1xf32> to vector<144x1xf32>
    %44 = vector.shape_cast %43 : vector<144x1xf32> to vector<1x144x1xf32>
    %45 = vector.broadcast %44 : vector<1x144x1xf32> to vector<2x144x64xf32>
    %46 = arith.mulf %41, %45 : vector<2x144x64xf32>
    %47 = arith.addf %35, %46 : vector<2x144x64xf32>
    %c11_i32 = arith.constant 11 : i32
    %48 = tpu.dynamic_rotate %22 by %c11_i32 dim 0 : vector<288x128xf32>, i32 -> vector<288x128xf32>
    %49 = arith.truncf %48 : vector<288x128xf32> to vector<288x128xbf16>
    %c2 = arith.constant 2 : index
    %c0_26 = arith.constant 0 : index
    %c0_27 = arith.constant 0 : index
    %50 = vector.load %arg6[%c2, %c0_26, %c0_27] : memref<5x128x64xbf16, #tpu.memory_space<vmem>>, vector<1x128x64xbf16>
    %51 = vector.shape_cast %50 : vector<1x128x64xbf16> to vector<128x64xbf16>
    %cst_28 = arith.constant dense<0.000000e+00> : vector<288x64xf32>
    %52 = tpu.matmul %49, %51, %cst_28 {dimension_numbers = #tpu.dot_dimension_numbers<[1], [0], [0], [1], [0, 0, 1, 1], [], []>} : vector<288x128xbf16>, vector<128x64xbf16>, vector<288x64xf32> -> vector<288x64xf32>
    %53 = vector.shape_cast %52 : vector<288x64xf32> to vector<2x144x64xf32>
    %c2_29 = arith.constant 2 : index
    %c0_30 = arith.constant 0 : index
    %c0_31 = arith.constant 0 : index
    %54 = vector.load %arg10[%c2_29, %c0_30, %c0_31] : memref<5x144x1xf32, #tpu.memory_space<vmem>>, vector<1x144x1xf32>
    %55 = vector.shape_cast %54 : vector<1x144x1xf32> to vector<144x1xf32>
    %56 = vector.shape_cast %55 : vector<144x1xf32> to vector<1x144x1xf32>
    %57 = vector.broadcast %56 : vector<1x144x1xf32> to vector<2x144x64xf32>
    %58 = arith.mulf %53, %57 : vector<2x144x64xf32>
    %59 = arith.addf %47, %58 : vector<2x144x64xf32>
    %c287_i32 = arith.constant 287 : i32
    %60 = tpu.dynamic_rotate %22 by %c287_i32 dim 0 : vector<288x128xf32>, i32 -> vector<288x128xf32>
    %61 = arith.truncf %60 : vector<288x128xf32> to vector<288x128xbf16>
    %c3 = arith.constant 3 : index
    %c0_32 = arith.constant 0 : index
    %c0_33 = arith.constant 0 : index
    %62 = vector.load %arg6[%c3, %c0_32, %c0_33] : memref<5x128x64xbf16, #tpu.memory_space<vmem>>, vector<1x128x64xbf16>
    %63 = vector.shape_cast %62 : vector<1x128x64xbf16> to vector<128x64xbf16>
    %cst_34 = arith.constant dense<0.000000e+00> : vector<288x64xf32>
    %64 = tpu.matmul %61, %63, %cst_34 {dimension_numbers = #tpu.dot_dimension_numbers<[1], [0], [0], [1], [0, 0, 1, 1], [], []>} : vector<288x128xbf16>, vector<128x64xbf16>, vector<288x64xf32> -> vector<288x64xf32>
    %65 = vector.shape_cast %64 : vector<288x64xf32> to vector<2x144x64xf32>
    %c3_35 = arith.constant 3 : index
    %c0_36 = arith.constant 0 : index
    %c0_37 = arith.constant 0 : index
    %66 = vector.load %arg10[%c3_35, %c0_36, %c0_37] : memref<5x144x1xf32, #tpu.memory_space<vmem>>, vector<1x144x1xf32>
    %67 = vector.shape_cast %66 : vector<1x144x1xf32> to vector<144x1xf32>
    %68 = vector.shape_cast %67 : vector<144x1xf32> to vector<1x144x1xf32>
    %69 = vector.broadcast %68 : vector<1x144x1xf32> to vector<2x144x64xf32>
    %70 = arith.mulf %65, %69 : vector<2x144x64xf32>
    %71 = arith.addf %59, %70 : vector<2x144x64xf32>
    %72 = arith.truncf %22 : vector<288x128xf32> to vector<288x128xbf16>
    %c4 = arith.constant 4 : index
    %c0_38 = arith.constant 0 : index
    %c0_39 = arith.constant 0 : index
    %73 = vector.load %arg6[%c4, %c0_38, %c0_39] : memref<5x128x64xbf16, #tpu.memory_space<vmem>>, vector<1x128x64xbf16>
    %74 = vector.shape_cast %73 : vector<1x128x64xbf16> to vector<128x64xbf16>
    %cst_40 = arith.constant dense<0.000000e+00> : vector<288x64xf32>
    %75 = tpu.matmul %72, %74, %cst_40 {dimension_numbers = #tpu.dot_dimension_numbers<[1], [0], [0], [1], [0, 0, 1, 1], [], []>} : vector<288x128xbf16>, vector<128x64xbf16>, vector<288x64xf32> -> vector<288x64xf32>
    %76 = vector.shape_cast %75 : vector<288x64xf32> to vector<2x144x64xf32>
    %c4_41 = arith.constant 4 : index
    %c0_42 = arith.constant 0 : index
    %c0_43 = arith.constant 0 : index
    %77 = vector.load %arg10[%c4_41, %c0_42, %c0_43] : memref<5x144x1xf32, #tpu.memory_space<vmem>>, vector<1x144x1xf32>
    %78 = vector.shape_cast %77 : vector<1x144x1xf32> to vector<144x1xf32>
    %79 = vector.shape_cast %78 : vector<144x1xf32> to vector<1x144x1xf32>
    %80 = vector.broadcast %79 : vector<1x144x1xf32> to vector<2x144x64xf32>
    %81 = arith.mulf %76, %80 : vector<2x144x64xf32>
    %82 = arith.addf %71, %81 : vector<2x144x64xf32>
    %83 = vector.shape_cast %82 : vector<2x144x64xf32> to vector<288x64xf32>
    %c0_44 = arith.constant 0 : index
    %c0_45 = arith.constant 0 : index
    %84 = vector.load %arg7[%c0_44, %c0_45] : memref<1x64xf32, #tpu.memory_space<vmem>>, vector<1x64xf32>
    %85 = vector.broadcast %84 : vector<1x64xf32> to vector<288x64xf32>
    %86 = arith.addf %83, %85 : vector<288x64xf32>
    %cst_46 = arith.constant 0.000000e+00 : f32
    %87 = vector.broadcast %cst_46 : f32 to vector<288x64xf32>
    %88 = arith.maximumf %86, %87 : vector<288x64xf32>
    %c0_47 = arith.constant 0 : index
    %c0_48 = arith.constant 0 : index
    %89 = vector.load %arg8[%c0_47, %c0_48] : memref<32x64xbf16, #tpu.memory_space<vmem>>, vector<32x64xbf16>
    %cst_49 = arith.constant dense<0.000000e+00> : vector<288x64xf32>
    %90 = tpu.matmul %15, %89, %cst_49 {dimension_numbers = #tpu.dot_dimension_numbers<[1], [0], [0], [1], [0, 0, 1, 1], [], []>} : vector<288x32xbf16>, vector<32x64xbf16>, vector<288x64xf32> -> vector<288x64xf32>
    %c0_50 = arith.constant 0 : index
    %c0_51 = arith.constant 0 : index
    %91 = vector.load %arg9[%c0_50, %c0_51] : memref<1x64xf32, #tpu.memory_space<vmem>>, vector<1x64xf32>
    %92 = vector.broadcast %91 : vector<1x64xf32> to vector<288x64xf32>
    %93 = arith.addf %90, %92 : vector<288x64xf32>
    %94 = arith.addf %88, %93 : vector<288x64xf32>
    %c0_52 = arith.constant 0 : index
    %c0_53 = arith.constant 0 : index
    %95 = vector.load %arg11[%c0_52, %c0_53] : memref<288x64xf32, #tpu.memory_space<vmem>>, vector<288x64xf32>
    tpu.vector_store %arg11[%c0_52, %c0_53], %94 {strides = array<i32>} : memref<288x64xf32, #tpu.memory_space<vmem>>, vector<288x64xf32>,
    return
  }
  func.func @transform_0(%arg0: i32) -> (i32, i32) {
    %c0_i32 = arith.constant 0 : i32
    %c0_i32_0 = arith.constant 0 : i32
    return %arg0, %c0_i32 : i32, i32
  }
  func.func @transform_1(%arg0: i32) -> (i32, i32) {
    %c0_i32 = arith.constant 0 : i32
    %c0_i32_0 = arith.constant 0 : i32
    %c0_i32_1 = arith.constant 0 : i32
    return %c0_i32, %c0_i32_0 : i32, i32
  }
  func.func @transform_2(%arg0: i32) -> (i32, i32) {
    %c0_i32 = arith.constant 0 : i32
    %c0_i32_0 = arith.constant 0 : i32
    %c0_i32_1 = arith.constant 0 : i32
    return %c0_i32, %c0_i32_0 : i32, i32
  }
  func.func @transform_3(%arg0: i32) -> (i32, i32) {
    %c0_i32 = arith.constant 0 : i32
    %c0_i32_0 = arith.constant 0 : i32
    %c0_i32_1 = arith.constant 0 : i32
    return %c0_i32, %c0_i32_0 : i32, i32
  }
  func.func @transform_4(%arg0: i32) -> (i32, i32) {
    %c0_i32 = arith.constant 0 : i32
    %c0_i32_0 = arith.constant 0 : i32
    %c0_i32_1 = arith.constant 0 : i32
    return %c0_i32, %c0_i32_0 : i32, i32
  }
  func.func @transform_5(%arg0: i32) -> (i32, i32, i32) {
    %c0_i32 = arith.constant 0 : i32
    %c0_i32_0 = arith.constant 0 : i32
    %c0_i32_1 = arith.constant 0 : i32
    %c0_i32_2 = arith.constant 0 : i32
    return %c0_i32, %c0_i32_0, %c0_i32_1 : i32, i32, i32
  }
  func.func @transform_6(%arg0: i32) -> (i32, i32) {
    %c0_i32 = arith.constant 0 : i32
    %c0_i32_0 = arith.constant 0 : i32
    %c0_i32_1 = arith.constant 0 : i32
    return %c0_i32, %c0_i32_0 : i32, i32
  }
  func.func @transform_7(%arg0: i32) -> (i32, i32) {
    %c0_i32 = arith.constant 0 : i32
    %c0_i32_0 = arith.constant 0 : i32
    %c0_i32_1 = arith.constant 0 : i32
    return %c0_i32, %c0_i32_0 : i32, i32
  }
  func.func @transform_8(%arg0: i32) -> (i32, i32) {
    %c0_i32 = arith.constant 0 : i32
    %c0_i32_0 = arith.constant 0 : i32
    %c0_i32_1 = arith.constant 0 : i32
    return %c0_i32, %c0_i32_0 : i32, i32
  }
  func.func @transform_9(%arg0: i32) -> (i32, i32, i32) {
    %c0_i32 = arith.constant 0 : i32
    %c0_i32_0 = arith.constant 0 : i32
    %c0_i32_1 = arith.constant 0 : i32
    %c0_i32_2 = arith.constant 0 : i32
    return %c0_i32, %c0_i32_0, %c0_i32_1 : i32, i32, i32
  }
  func.func @transform_10(%arg0: i32) -> (i32, i32) {
    %c0_i32 = arith.constant 0 : i32
    %c0_i32_0 = arith.constant 0 : i32
    return %arg0, %c0_i32 : i32, i32
  }
}

module attributes {stable_mosaic.version = 11 : i64} {
  func.func @fc_head_kernel(%arg0: i32, %arg1: memref<4x2x2304xf32, #tpu.memory_space<vmem>>, %arg2: memref<2304x256xbf16, #tpu.memory_space<vmem>>, %arg3: memref<1x256xf32, #tpu.memory_space<vmem>>, %arg4: memref<256x10xf32, #tpu.memory_space<vmem>>, %arg5: memref<1x10xf32, #tpu.memory_space<vmem>>, %arg6: memref<2x10xf32, #tpu.memory_space<vmem>>, %arg7: memref<2x2304xbf16, #tpu.memory_space<vmem>>, %arg8: memref<2x10xf32, #tpu.memory_space<vmem>>) attributes {dimension_semantics = [#tpu.dimension_semantics<arbitrary>], iteration_bounds = array<i64: 2>, scalar_prefetch = 0 : i64, scratch_operands = 2 : i64, tpu.core_type = #tpu.core_type<tc>, window_params = [{pipeline_mode = #tpu.pipeline_mode<synchronous>, transform_indices = @transform_0, window_bounds = array<i64: 4, 2, 2304>}, {transform_indices = @transform_1, window_bounds = array<i64: 2304, 256>}, {transform_indices = @transform_2, window_bounds = array<i64: 1, 256>}, {transform_indices = @transform_3, window_bounds = array<i64: 256, 10>}, {pipeline_mode = #tpu.pipeline_mode<synchronous>, transform_indices = @transform_4, window_bounds = array<i64: 1, 10>}, {pipeline_mode = #tpu.pipeline_mode<synchronous>, transform_indices = @transform_5, window_bounds = array<i64: 2, 10>}]} {
    %c0_i32 = arith.constant 0 : i32
    %0 = arith.cmpi eq, %arg0, %c0_i32 : i32
    %1 = arith.extui %0 : i1 to i32
    %c0_i32_0 = arith.constant 0 : i32
    %2 = arith.cmpi ne, %1, %c0_i32_0 : i32
    scf.if %2 {
      %c0_15 = arith.constant 0 : index
      %c0_16 = arith.constant 0 : index
      %c0_17 = arith.constant 0 : index
      %19 = vector.load %arg1[%c0_15, %c0_16, %c0_17] : memref<4x2x2304xf32, #tpu.memory_space<vmem>>, vector<1x2x2304xf32>
      %20 = vector.shape_cast %19 : vector<1x2x2304xf32> to vector<2x2304xf32>
      %c1 = arith.constant 1 : index
      %c0_18 = arith.constant 0 : index
      %c0_19 = arith.constant 0 : index
      %21 = vector.load %arg1[%c1, %c0_18, %c0_19] : memref<4x2x2304xf32, #tpu.memory_space<vmem>>, vector<1x2x2304xf32>
      %22 = vector.shape_cast %21 : vector<1x2x2304xf32> to vector<2x2304xf32>
      %23 = arith.maximumf %20, %22 : vector<2x2304xf32>
      %c2 = arith.constant 2 : index
      %c0_20 = arith.constant 0 : index
      %c0_21 = arith.constant 0 : index
      %24 = vector.load %arg1[%c2, %c0_20, %c0_21] : memref<4x2x2304xf32, #tpu.memory_space<vmem>>, vector<1x2x2304xf32>
      %25 = vector.shape_cast %24 : vector<1x2x2304xf32> to vector<2x2304xf32>
      %c3 = arith.constant 3 : index
      %c0_22 = arith.constant 0 : index
      %c0_23 = arith.constant 0 : index
      %26 = vector.load %arg1[%c3, %c0_22, %c0_23] : memref<4x2x2304xf32, #tpu.memory_space<vmem>>, vector<1x2x2304xf32>
      %27 = vector.shape_cast %26 : vector<1x2x2304xf32> to vector<2x2304xf32>
      %28 = arith.maximumf %25, %27 : vector<2x2304xf32>
      %29 = arith.maximumf %23, %28 : vector<2x2304xf32>
      %30 = arith.truncf %29 : vector<2x2304xf32> to vector<2x2304xbf16>
      %c0_24 = arith.constant 0 : index
      %c0_25 = arith.constant 0 : index
      %31 = vector.load %arg7[%c0_24, %c0_25] : memref<2x2304xbf16, #tpu.memory_space<vmem>>, vector<2x2304xbf16>
      tpu.vector_store %arg7[%c0_24, %c0_25], %30 {strides = array<i32>} : memref<2x2304xbf16, #tpu.memory_space<vmem>>, vector<2x2304xbf16>,
      %cst_26 = arith.constant 0.000000e+00 : f32
      %32 = vector.broadcast %cst_26 : f32 to vector<2x10xf32>
      %c0_27 = arith.constant 0 : index
      %c0_28 = arith.constant 0 : index
      %33 = vector.load %arg8[%c0_27, %c0_28] : memref<2x10xf32, #tpu.memory_space<vmem>>, vector<2x10xf32>
      tpu.vector_store %arg8[%c0_27, %c0_28], %32 {strides = array<i32>} : memref<2x10xf32, #tpu.memory_space<vmem>>, vector<2x10xf32>,
    } else {
    }
    %c0 = arith.constant 0 : index
    %c0_1 = arith.constant 0 : index
    %3 = vector.load %arg7[%c0, %c0_1] : memref<2x2304xbf16, #tpu.memory_space<vmem>>, vector<2x2304xbf16>
    %c0_2 = arith.constant 0 : index
    %c0_3 = arith.constant 0 : index
    %4 = vector.load %arg2[%c0_2, %c0_3] : memref<2304x256xbf16, #tpu.memory_space<vmem>>, vector<2304x256xbf16>
    %cst = arith.constant dense<0.000000e+00> : vector<2x256xf32>
    %5 = tpu.matmul %3, %4, %cst {dimension_numbers = #tpu.dot_dimension_numbers<[1], [0], [0], [1], [0, 0, 1, 1], [], []>} : vector<2x2304xbf16>, vector<2304x256xbf16>, vector<2x256xf32> -> vector<2x256xf32>
    %c0_4 = arith.constant 0 : index
    %c0_5 = arith.constant 0 : index
    %6 = vector.load %arg3[%c0_4, %c0_5] : memref<1x256xf32, #tpu.memory_space<vmem>>, vector<1x256xf32>
    %7 = vector.broadcast %6 : vector<1x256xf32> to vector<2x256xf32>
    %8 = arith.addf %5, %7 : vector<2x256xf32>
    %cst_6 = arith.constant 0.000000e+00 : f32
    %9 = vector.broadcast %cst_6 : f32 to vector<2x256xf32>
    %10 = arith.maximumf %8, %9 : vector<2x256xf32>
    %c0_7 = arith.constant 0 : index
    %c0_8 = arith.constant 0 : index
    %11 = vector.load %arg8[%c0_7, %c0_8] : memref<2x10xf32, #tpu.memory_space<vmem>>, vector<2x10xf32>
    %c0_9 = arith.constant 0 : index
    %c0_10 = arith.constant 0 : index
    %12 = vector.load %arg4[%c0_9, %c0_10] : memref<256x10xf32, #tpu.memory_space<vmem>>, vector<256x10xf32>
    %cst_11 = arith.constant dense<0.000000e+00> : vector<2x10xf32>
    %13 = tpu.matmul %10, %12, %cst_11 {dimension_numbers = #tpu.dot_dimension_numbers<[1], [0], [0], [1], [0, 0, 1, 1], [], []>} : vector<2x256xf32>, vector<256x10xf32>, vector<2x10xf32> -> vector<2x10xf32>
    %14 = arith.addf %11, %13 : vector<2x10xf32>
    %c0_12 = arith.constant 0 : index
    %c0_13 = arith.constant 0 : index
    %15 = vector.load %arg8[%c0_12, %c0_13] : memref<2x10xf32, #tpu.memory_space<vmem>>, vector<2x10xf32>
    tpu.vector_store %arg8[%c0_12, %c0_13], %14 {strides = array<i32>} : memref<2x10xf32, #tpu.memory_space<vmem>>, vector<2x10xf32>,
    %c1_i32 = arith.constant 1 : i32
    %16 = arith.cmpi eq, %arg0, %c1_i32 : i32
    %17 = arith.extui %16 : i1 to i32
    %c0_i32_14 = arith.constant 0 : i32
    %18 = arith.cmpi ne, %17, %c0_i32_14 : i32
    scf.if %18 {
      %c0_15 = arith.constant 0 : index
      %c0_16 = arith.constant 0 : index
      %19 = vector.load %arg8[%c0_15, %c0_16] : memref<2x10xf32, #tpu.memory_space<vmem>>, vector<2x10xf32>
      %c0_17 = arith.constant 0 : index
      %c0_18 = arith.constant 0 : index
      %20 = vector.load %arg5[%c0_17, %c0_18] : memref<1x10xf32, #tpu.memory_space<vmem>>, vector<1x10xf32>
      %21 = vector.broadcast %20 : vector<1x10xf32> to vector<2x10xf32>
      %22 = arith.addf %19, %21 : vector<2x10xf32>
      %cst_19 = arith.constant dense<0xFF800000> : vector<2xf32>
      %23 = vector.multi_reduction <maximumf>, %22, %cst_19 [1] : vector<2x10xf32> to vector<2xf32>
      %24 = vector.shape_cast %23 : vector<2xf32> to vector<2x1xf32>
      %25 = vector.broadcast %24 : vector<2x1xf32> to vector<2x10xf32>
      %26 = arith.subf %22, %25 : vector<2x10xf32>
      %27 = math.exp %26 : vector<2x10xf32>
      %cst_20 = arith.constant dense<0.000000e+00> : vector<2xf32>
      %28 = vector.multi_reduction <add>, %27, %cst_20 [1] : vector<2x10xf32> to vector<2xf32>
      %29 = vector.shape_cast %28 : vector<2xf32> to vector<2x1xf32>
      %30 = math.log %29 : vector<2x1xf32>
      %31 = arith.addf %24, %30 : vector<2x1xf32>
      %32 = vector.broadcast %31 : vector<2x1xf32> to vector<2x10xf32>
      %33 = arith.subf %22, %32 : vector<2x10xf32>
      %c0_21 = arith.constant 0 : index
      %c0_22 = arith.constant 0 : index
      %34 = vector.load %arg6[%c0_21, %c0_22] : memref<2x10xf32, #tpu.memory_space<vmem>>, vector<2x10xf32>
      tpu.vector_store %arg6[%c0_21, %c0_22], %33 {strides = array<i32>} : memref<2x10xf32, #tpu.memory_space<vmem>>, vector<2x10xf32>,
    } else {
    }
    return
  }
  func.func @transform_0(%arg0: i32) -> (i32, i32, i32) {
    %c0_i32 = arith.constant 0 : i32
    %c0_i32_0 = arith.constant 0 : i32
    %c0_i32_1 = arith.constant 0 : i32
    %c0_i32_2 = arith.constant 0 : i32
    return %c0_i32, %c0_i32_0, %c0_i32_1 : i32, i32, i32
  }
  func.func @transform_1(%arg0: i32) -> (i32, i32) {
    %c0_i32 = arith.constant 0 : i32
    %c0_i32_0 = arith.constant 0 : i32
    return %c0_i32, %arg0 : i32, i32
  }
  func.func @transform_2(%arg0: i32) -> (i32, i32) {
    %c0_i32 = arith.constant 0 : i32
    %c0_i32_0 = arith.constant 0 : i32
    return %c0_i32, %arg0 : i32, i32
  }
  func.func @transform_3(%arg0: i32) -> (i32, i32) {
    %c0_i32 = arith.constant 0 : i32
    %c0_i32_0 = arith.constant 0 : i32
    return %arg0, %c0_i32 : i32, i32
  }
  func.func @transform_4(%arg0: i32) -> (i32, i32) {
    %c0_i32 = arith.constant 0 : i32
    %c0_i32_0 = arith.constant 0 : i32
    %c0_i32_1 = arith.constant 0 : i32
    return %c0_i32, %c0_i32_0 : i32, i32
  }
  func.func @transform_5(%arg0: i32) -> (i32, i32) {
    %c0_i32 = arith.constant 0 : i32
    %c0_i32_0 = arith.constant 0 : i32
    %c0_i32_1 = arith.constant 0 : i32
    return %c0_i32, %c0_i32_0 : i32, i32
  }
}

</mosaic_0001>

<llo_original>
// kernel: shiftnet_forward.3
$region0: #{shiftnet_forward.3}
  #allocation0 [shape = 'u32[]', space=smem, size = 0x4, offset = 0x4, fixed_abs, tag = 'smem constant byte address 0x4 - core index']
  #allocation1 [shape = 'u32[144,128]{1,0:T(1,128)}', space=vmem, size = 0x12000, scoped, tag = 'internal scratch']
  #allocation2 [shape = 'bf16[2,2304]{1,0:T(2,128)(2,1)}', space=vmem, size = 0x2400, scoped, tag = 'scratch operand']
  #allocation3 [shape = 'f32[2,10]{1,0:T(2,128)}', space=vmem, size = 0x400, scoped, tag = 'scratch operand']
  %s0 = inlined_call_operand.vmem [shape: f32[4,2,2304], index: 0, kind: input, shape index: {}]
  %s1 = inlined_call_operand.vmem [shape: bf16[2304,512], index: 1, kind: input, shape index: {}]
  %s2 = inlined_call_operand.vmem [shape: f32[1,512], index: 2, kind: input, shape index: {}]
  %s3 = inlined_call_operand.vmem [shape: f32[512,10], index: 3, kind: input, shape index: {}]
  %s4 = inlined_call_operand.vmem [shape: f32[1,10], index: 4, kind: input, shape index: {}]
  %s5 = inlined_call_operand.hbm [shape: f32[2,10], index: 5, kind: output, shape index: {}]
  %s6 = sld [smem:[#allocation0]]
  $region99: #{shiftnet_forward.3} parent=0
    _
  %s8 = ssub.s32 1, %s6
  %s9 = scalar_select 0, %s8, %s6
  $region1: #{shiftnet_forward.3} parent=0
    #allocation4 [shape = 'u8[2359296]{0}', space=vmem, size = 0x240000, scoped, tag = 'input window, operand 1']
    #allocation5 [shape = 'u8[1024]{0}', space=vmem, size = 0x400, scoped, tag = 'output window, operand 0, single buffered']
    #allocation6 [shape = 's32[2]{0}', space=sflag, size = 0x8, scoped, tag = 'scoped memory for shiftnet_forward.3']
    %10 = vsyncpa [#allocation6], 0
    loop: start=0, step=1, limit=4
    $region2: #{shiftnet_forward.3} parent=1 // loop_pre_header
      _
    $region3: #{shiftnet_forward.3} parent=1 // loop_header
      %s12 = sphi 0, %s16
      %p13 = scmp.ge.s32.totalorder %s12, 4
      %s20 = sphi 0, %s20
      %s22 = sphi 0, %s20
      %s23 = sphi 0, %s22
      %s37 = sphi 0, %s23
      %s43 = sphi 0, %s45
      %s46 = sphi 0, %s43
      %s47 = sphi 0, %s46
      %s63 = sphi 0, %s47
      %s69 = sphi 0, %s71
      %s72 = sphi 0, %s69
      %s73 = sphi 0, %s72
      %s89 = sphi 0, %s73
      %s95 = sphi 0, %s97
      %s98 = sphi 0, %s95
      %s99 = sphi 0, %s98
      %s115 = sphi 0, %s99
      %s119 = sphi 0, %s119
      %s121 = sphi 0, %s119
      %s122 = sphi 0, %s121
      %s136 = sphi 0, %s122
      %s140 = sphi 0, %s140
      %s142 = sphi 0, %s140
      %s143 = sphi 0, %s142
      %s157 = sphi 0, %s143
    $region4: #{shiftnet_forward.3} parent=1 // loop_header_branch
      %15 = sbr.rel (%p13) target = $region8
    $region5: #{shiftnet_forward.3} parent=1 // loop_body
      %s17 = ssub.s32 %s12, 1
      %s18 = ssub.s32 %s12, 2
      %s19 = sadd.s32 %s12, 1
      %s21 = sadd.s32 %s20, 1
      %p24 = scmp.eq.s32.totalorder %s12, 1
      %p25 = scmp.ne.s32.totalorder %s20, %s22
      %p26 = scmp.eq.s32.totalorder %s12, 0
      %p27 = por %p25, %p26
      %p28 = scmp.ne.s32.totalorder %s20, %s22
      %p29 = scmp.eq.s32.totalorder %s17, 1
      %p30 = por %p28, %p29
      %p31 = scmp.ne.s32.totalorder %s22, %s23
      %p32 = scmp.eq.s32.totalorder %s17, 0
      %p33 = por %p31, %p32
      %p34 = scmp.ne.s32.totalorder %s22, %s23
      %p35 = scmp.eq.s32.totalorder %s18, 1
      %p36 = por %p34, %p35
      %p38 = scmp.ne.s32.totalorder %s23, %s37
      %p39 = scmp.eq.s32.totalorder %s18, 0
      %p40 = por %p38, %p39
      %s41 = ssub.s32 %s12, %s19
      %p42 = scmp.eq.s32.totalorder %s41, 0
      %s44 = sadd.s32 %s43, 1
      %s45 = scalar_select %p42, %s43, %s44
      %p48 = pneg %p42
      %p49 = scmp.eq.s32.totalorder %s12, 1
      %p50 = por %p48, %p49
      %p51 = scmp.ne.s32.totalorder %s43, %s46
      %p52 = scmp.eq.s32.totalorder %s12, 0
      %p53 = por %p51, %p52
      %p54 = scmp.ne.s32.totalorder %s43, %s46
      %p55 = scmp.eq.s32.totalorder %s17, 1
      %p56 = por %p54, %p55
      %p57 = scmp.ne.s32.totalorder %s46, %s47
      %p58 = scmp.eq.s32.totalorder %s17, 0
      %p59 = por %p57, %p58
      %p60 = scmp.ne.s32.totalorder %s46, %s47
      %p61 = scmp.eq.s32.totalorder %s18, 1
      %p62 = por %p60, %p61
      %p64 = scmp.ne.s32.totalorder %s47, %s63
      %p65 = scmp.eq.s32.totalorder %s18, 0
      %p66 = por %p64, %p65
      %s67 = ssub.s32 %s12, %s19
      %p68 = scmp.eq.s32.totalorder %s67, 0
      %s70 = sadd.s32 %s69, 1
      %s71 = scalar_select %p68, %s69, %s70
      %p74 = pneg %p68
      %p75 = scmp.eq.s32.totalorder %s12, 1
      %p76 = por %p74, %p75
      %p77 = scmp.ne.s32.totalorder %s69, %s72
      %p78 = scmp.eq.s32.totalorder %s12, 0
      %p79 = por %p77, %p78
      %p80 = scmp.ne.s32.totalorder %s69, %s72
      %p81 = scmp.eq.s32.totalorder %s17, 1
      %p82 = por %p80, %p81
      %p83 = scmp.ne.s32.totalorder %s72, %s73
      %p84 = scmp.eq.s32.totalorder %s17, 0
      %p85 = por %p83, %p84
      %p86 = scmp.ne.s32.totalorder %s72, %s73
      %p87 = scmp.eq.s32.totalorder %s18, 1
      %p88 = por %p86, %p87
      %p90 = scmp.ne.s32.totalorder %s73, %s89
      %p91 = scmp.eq.s32.totalorder %s18, 0
      %p92 = por %p90, %p91
      %s93 = ssub.s32 %s12, %s19
      %p94 = scmp.eq.s32.totalorder %s93, 0
      %s96 = sadd.s32 %s95, 1
      %s97 = scalar_select %p94, %s95, %s96
      %p100 = pneg %p94
      %p101 = scmp.eq.s32.totalorder %s12, 1
      %p102 = por %p100, %p101
      %p103 = scmp.ne.s32.totalorder %s95, %s98
      %p104 = scmp.eq.s32.totalorder %s12, 0
      %p105 = por %p103, %p104
      %p106 = scmp.ne.s32.totalorder %s95, %s98
      %p107 = scmp.eq.s32.totalorder %s17, 1
      %p108 = por %p106, %p107
      %p109 = scmp.ne.s32.totalorder %s98, %s99
      %p110 = scmp.eq.s32.totalorder %s17, 0
      %p111 = por %p109, %p110
      %p112 = scmp.ne.s32.totalorder %s98, %s99
      %p113 = scmp.eq.s32.totalorder %s18, 1
      %p114 = por %p112, %p113
      %p116 = scmp.ne.s32.totalorder %s99, %s115
      %p117 = scmp.eq.s32.totalorder %s18, 0
      %p118 = por %p116, %p117
      %s120 = sadd.s32 %s119, 1
      %p123 = scmp.eq.s32.totalorder %s12, 1
      %p124 = scmp.ne.s32.totalorder %s119, %s121
      %p125 = scmp.eq.s32.totalorder %s12, 0
      %p126 = por %p124, %p125
      %p127 = scmp.ne.s32.totalorder %s119, %s121
      %p128 = scmp.eq.s32.totalorder %s17, 1
      %p129 = por %p127, %p128
      %p130 = scmp.ne.s32.totalorder %s121, %s122
      %p131 = scmp.eq.s32.totalorder %s17, 0
      %p132 = por %p130, %p131
      %p133 = scmp.ne.s32.totalorder %s121, %s122
      %p134 = scmp.eq.s32.totalorder %s18, 1
      %p135 = por %p133, %p134
      %p137 = scmp.ne.s32.totalorder %s122, %s136
      %p138 = scmp.eq.s32.totalorder %s18, 0
      %p139 = por %p137, %p138
      %s141 = sadd.s32 %s140, 1
      %p144 = scmp.eq.s32.totalorder %s12, 1
      %p145 = scmp.ne.s32.totalorder %s140, %s142
      %p146 = scmp.eq.s32.totalorder %s12, 0
      %p147 = por %p145, %p146
      %p148 = scmp.ne.s32.totalorder %s140, %s142
      %p149 = scmp.eq.s32.totalorder %s17, 1
      %p150 = por %p148, %p149
      %p151 = scmp.ne.s32.totalorder %s142, %s143
      %p152 = scmp.eq.s32.totalorder %s17, 0
      %p153 = por %p151, %p152
      %p154 = scmp.ne.s32.totalorder %s142, %s143
      %p155 = scmp.eq.s32.totalorder %s18, 1
      %p156 = por %p154, %p155
      %p158 = scmp.ne.s32.totalorder %s143, %s157
      %p159 = scmp.eq.s32.totalorder %s18, 0
      %p160 = por %p158, %p159
      %p161 = scmp.le.s32.totalorder 1, %s12
      %p162 = scmp.lt.s32.totalorder %s12, 3
      %p163 = pnand %p161, %p162
      %p164 = pneg %p163
      // Predicated region
      $region9: #{shiftnet_forward.3} parent=5 // pred_check
        _
      $region10: #{shiftnet_forward.3} parent=5 // pred_check_branch
        %166 = sbr.rel (%p163) target = $region12
      $region11: #{shiftnet_forward.3} parent=5 // pred_region
        %s167 = ssub.s32 %s12, 1
        // Predicated region
        $region13: #{shiftnet_forward.3} parent=11 // pred_check
          %p168 = pneg %p33
        $region14: #{shiftnet_forward.3} parent=11 // pred_check_branch
          %170 = sbr.rel (%p168) target = $region16
        $region15: #{shiftnet_forward.3} parent=11 // pred_region
          _
        $region16: #{shiftnet_forward.3} parent=11 // pred_fallthru
          _
        // Predicated region
        $region17: #{shiftnet_forward.3} parent=11 // pred_check
          %p171 = pneg %p132
        $region18: #{shiftnet_forward.3} parent=11 // pred_check_branch
          %173 = sbr.rel (%p171) target = $region20
        $region19: #{shiftnet_forward.3} parent=11 // pred_region
          _
        $region20: #{shiftnet_forward.3} parent=11 // pred_fallthru
          _
      $region12: #{shiftnet_forward.3} parent=5 // pred_fallthru
        _
      %p174 = scmp.lt.s32.totalorder %s12, 2
      // Predicated region
      $region21: #{shiftnet_forward.3} parent=5 // pred_check
        %p175 = pneg %p174
      $region22: #{shiftnet_forward.3} parent=5 // pred_check_branch
        %177 = sbr.rel (%p175) target = $region24
      $region23: #{shiftnet_forward.3} parent=5 // pred_region
        // Predicated region
        $region25: #{shiftnet_forward.3} parent=23 // pred_check
          %p178 = pneg %p53
        $region26: #{shiftnet_forward.3} parent=23 // pred_check_branch
          %180 = sbr.rel (%p178) target = $region28
        $region27: #{shiftnet_forward.3} parent=23 // pred_region
          %s181 = sand.u32 %s43, 1
          %s182 = sand.u32 %s43, 1
          %s183 = smul.addr %s182, 2304
          %s184 = scalar_lea.vmem [#allocation4], %s183
          %s185 = smul.u32 2, %s12
          %s186 = smul.addr %s185, 4
          %s187 = scalar_lea.vmem %s1, %s186
          // Predicated region
          $region29: #{shiftnet_forward.3} parent=27 // pred_check
            _
          $region30: #{shiftnet_forward.3} parent=27 // pred_check_branch
            %189 = sbr.rel (0) target = $region32
          $region31: #{shiftnet_forward.3} parent=27 // pred_region
            // Predicated region
            $region33: #{shiftnet_forward.3} parent=31 // pred_check
              _
            $region34: #{shiftnet_forward.3} parent=31 // pred_check_branch
              %191 = sbr.rel (0) target = $region36
            $region35: #{shiftnet_forward.3} parent=31 // pred_region
              // Predicated region
              $region48: #{shiftnet_forward.3} parent=35 // pred_check
                _
              $region49: #{shiftnet_forward.3} parent=35 // pred_check_branch
                %780 = sbr.rel (0) target = $region51
              $region50: #{shiftnet_forward.3} parent=35 // pred_region
                loop: start=0, step=1, limit=1
                $region52: #{shiftnet_forward.3} parent=50 // loop_pre_header
                  _
                $region53: #{shiftnet_forward.3} parent=50 // loop_header
                  %s782 = sphi 0, %s786
                  %p783 = scmp.ge.s32.totalorder %s782, 1
                  %s787 = sphi %s187, %s187
                  %s788 = sphi %s184, %s184
                $region54: #{shiftnet_forward.3} parent=50 // loop_header_branch
                  %785 = sbr.rel (%p783) target = $region58
                $region55: #{shiftnet_forward.3} parent=50 // loop_body
                  %v789 = vld [vmem:[%s787] sm:$0xff]
                  %790 = vst [vmem:[%s788] sm:$0xff] %v789
                  %v791 = vld [vmem:[%s787 + $0x10] sm:$0xff]
                  %792 = vst [vmem:[%s788 + $0x8] sm:$0xff] %v791
                  %v793 = vld [vmem:[%s787 + $0x20] sm:$0xff]
                  %794 = vst [vmem:[%s788 + $0x10] sm:$0xff] %v793
                  %v795 = vld [vmem:[%s787 + $0x30] sm:$0xff]
                  %796 = vst [vmem:[%s788 + $0x18] sm:$0xff] %v795
                  %v797 = vld [vmem:[%s787 + $0x40] sm:$0xff]
                  %798 = vst [vmem:[%s788 + $0x20] sm:$0xff] %v797
                  %v799 = vld [vmem:[%s787 + $0x50] sm:$0xff]
                  %800 = vst [vmem:[%s788 + $0x28] sm:$0xff] %v799
                  %v801 = vld [vmem:[%s787 + $0x60] sm:$0xff]
                  %802 = vst [vmem:[%s788 + $0x30] sm:$0xff] %v801
                  %v803 = vld [vmem:[%s787 + $0x70] sm:$0xff]
                  %804 = vst [vmem:[%s788 + $0x38] sm:$0xff] %v803
                  %v805 = vld [vmem:[%s787 + $0x80] sm:$0xff]
                  %806 = vst [vmem:[%s788 + $0x40] sm:$0xff] %v805
                  %v807 = vld [vmem:[%s787 + $0x90] sm:$0xff]
                  %808 = vst [vmem:[%s788 + $0x48] sm:$0xff] %v807
                  %v809 = vld [vmem:[%s787 + $0xa0] sm:$0xff]
                  %810 = vst [vmem:[%s788 + $0x50] sm:$0xff] %v809
                  %v811 = vld [vmem:[%s787 + $0xb0] sm:$0xff]
                  %812 = vst [vmem:[%s788 + $0x58] sm:$0xff] %v811
                  %v813 = vld [vmem:[%s787 + $0xc0] sm:$0xff]
                  %814 = vst [vmem:[%s788 + $0x60] sm:$0xff] %v813
                  %v815 = vld [vmem:[%s787 + $0xd0] sm:$0xff]
                  %816 = vst [vmem:[%s788 + $0x68] sm:$0xff] %v815
                  %v817 = vld [vmem:[%s787 + $0xe0] sm:$0xff]
                  %818 = vst [vmem:[%s788 + $0x70] sm:$0xff] %v817
                  %v819 = vld [vmem:[%s787 + $0xf0] sm:$0xff]
                  %820 = vst [vmem:[%s788 + $0x78] sm:$0xff] %v819
                  %v821 = vld [vmem:[%s787 + $0x100] sm:$0xff]
                  %822 = vst [vmem:[%s788 + $0x80] sm:$0xff] %v821
                  %v823 = vld [vmem:[%s787 + $0x110] sm:$0xff]
                  %824 = vst [vmem:[%s788 + $0x88] sm:$0xff] %v823
                  %v825 = vld [vmem:[%s787 + $0x120] sm:$0xff]
                  %826 = vst [vmem:[%s788 + $0x90] sm:$0xff] %v825
                  %v827 = vld [vmem:[%s787 + $0x130] sm:$0xff]
                  %828 = vst [vmem:[%s788 + $0x98] sm:$0xff] %v827
                  %v829 = vld [vmem:[%s787 + $0x140] sm:$0xff]
                  %830 = vst [vmem:[%s788 + $0xa0] sm:$0xff] %v829
                  %v831 = vld [vmem:[%s787 + $0x150] sm:$0xff]
                  %832 = vst [vmem:[%s788 + $0xa8] sm:$0xff] %v831
                  %v833 = vld [vmem:[%s787 + $0x160] sm:$0xff]
                  %834 = vst [vmem:[%s788 + $0xb0] sm:$0xff] %v833
                  %v835 = vld [vmem:[%s787 + $0x170] sm:$0xff]
                  %836 = vst [vmem:[%s788 + $0xb8] sm:$0xff] %v835
                  %v837 = vld [vmem:[%s787 + $0x180] sm:$0xff]
                  %838 = vst [vmem:[%s788 + $0xc0] sm:$0xff] %v837
                  %v839 = vld [vmem:[%s787 + $0x190] sm:$0xff]
                  %840 = vst [vmem:[%s788 + $0xc8] sm:$0xff] %v839
                  %v841 = vld [vmem:[%s787 + $0x1a0] sm:$0xff]
                  %842 = vst [vmem:[%s788 + $0xd0] sm:$0xff] %v841
                  %v843 = vld [vmem:[%s787 + $0x1b0] sm:$0xff]
                  %844 = vst [vmem:[%s788 + $0xd8] sm:$0xff] %v843
                  %v845 = vld [vmem:[%s787 + $0x1c0] sm:$0xff]
                  %846 = vst [vmem:[%s788 + $0xe0] sm:$0xff] %v845
                  %v847 = vld [vmem:[%s787 + $0x1d0] sm:$0xff]
                  %848 = vst [vmem:[%s788 + $0xe8] sm:$0xff] %v847
                  %v849 = vld [vmem:[%s787 + $0x1e0] sm:$0xff]
                  %850 = vst [vmem:[%s788 + $0xf0] sm:$0xff] %v849
                  %v851 = vld [vmem:[%s787 + $0x1f0] sm:$0xff]
                  %852 = vst [vmem:[%s788 + $0xf8] sm:$0xff] %v851
                  %v853 = vld [vmem:[%s787 + $0x200] sm:$0xff]
                  %854 = vst [vmem:[%s788 + $0x100] sm:$0xff] %v853
                  %v855 = vld [vmem:[%s787 + $0x210] sm:$0xff]
                  %856 = vst [vmem:[%s788 + $0x108] sm:$0xff] %v855
                  %v857 = vld [vmem:[%s787 + $0x220] sm:$0xff]
                  %858 = vst [vmem:[%s788 + $0x110] sm:$0xff] %v857
                  %v859 = vld [vmem:[%s787 + $0x230] sm:$0xff]
                  %860 = vst [vmem:[%s788 + $0x118] sm:$0xff] %v859
                  %v861 = vld [vmem:[%s787 + $0x240] sm:$0xff]
                  %862 = vst [vmem:[%s788 + $0x120] sm:$0xff] %v861
                  %v863 = vld [vmem:[%s787 + $0x250] sm:$0xff]
                  %864 = vst [vmem:[%s788 + $0x128] sm:$0xff] %v863
                  %v865 = vld [vmem:[%s787 + $0x260] sm:$0xff]
                  %866 = vst [vmem:[%s788 + $0x130] sm:$0xff] %v865
                  %v867 = vld [vmem:[%s787 + $0x270] sm:$0xff]
                  %868 = vst [vmem:[%s788 + $0x138] sm:$0xff] %v867
                  %v869 = vld [vmem:[%s787 + $0x280] sm:$0xff]
                  %870 = vst [vmem:[%s788 + $0x140] sm:$0xff] %v869
                  %v871 = vld [vmem:[%s787 + $0x290] sm:$0xff]
                  %872 = vst [vmem:[%s788 + $0x148] sm:$0xff] %v871
                  %v873 = vld [vmem:[%s787 + $0x2a0] sm:$0xff]
                  %874 = vst [vmem:[%s788 + $0x150] sm:$0xff] %v873
                  %v875 = vld [vmem:[%s787 + $0x2b0] sm:$0xff]
                  %876 = vst [vmem:[%s788 + $0x158] sm:$0xff] %v875
                  %v877 = vld [vmem:[%s787 + $0x2c0] sm:$0xff]
                  %878 = vst [vmem:[%s788 + $0x160] sm:$0xff] %v877
                  %v879 = vld [vmem:[%s787 + $0x2d0] sm:$0xff]
                  %880 = vst [vmem:[%s788 + $0x168] sm:$0xff] %v879
                  %v881 = vld [vmem:[%s787 + $0x2e0] sm:$0xff]
                  %882 = vst [vmem:[%s788 + $0x170] sm:$0xff] %v881
                  %v883 = vld [vmem:[%s787 + $0x2f0] sm:$0xff]
                  %884 = vst [vmem:[%s788 + $0x178] sm:$0xff] %v883
                  %v885 = vld [vmem:[%s787 + $0x300] sm:$0xff]
                  %886 = vst [vmem:[%s788 + $0x180] sm:$0xff] %v885
                  %v887 = vld [vmem:[%s787 + $0x310] sm:$0xff]
                  %888 = vst [vmem:[%s788 + $0x188] sm:$0xff] %v887
                  %v889 = vld [vmem:[%s787 + $0x320] sm:$0xff]
                  %890 = vst [vmem:[%s788 + $0x190] sm:$0xff] %v889
                  %v891 = vld [vmem:[%s787 + $0x330] sm:$0xff]
                  %892 = vst [vmem:[%s788 + $0x198] sm:$0xff] %v891
                  %v893 = vld [vmem:[%s787 + $0x340] sm:$0xff]
                  %894 = vst [vmem:[%s788 + $0x1a0] sm:$0xff] %v893
                  %v895 = vld [vmem:[%s787 + $0x350] sm:$0xff]
                  %896 = vst [vmem:[%s788 + $0x1a8] sm:$0xff] %v895
                  %v897 = vld [vmem:[%s787 + $0x360] sm:$0xff]
                  %898 = vst [vmem:[%s788 + $0x1b0] sm:$0xff] %v897
                  %v899 = vld [vmem:[%s787 + $0x370] sm:$0xff]
                  %900 = vst [vmem:[%s788 + $0x1b8] sm:$0xff] %v899
                  %v901 = vld [vmem:[%s787 + $0x380] sm:$0xff]
                  %902 = vst [vmem:[%s788 + $0x1c0] sm:$0xff] %v901
                  %v903 = vld [vmem:[%s787 + $0x390] sm:$0xff]
                  %904 = vst [vmem:[%s788 + $0x1c8] sm:$0xff] %v903
                  %v905 = vld [vmem:[%s787 + $0x3a0] sm:$0xff]
                  %906 = vst [vmem:[%s788 + $0x1d0] sm:$0xff] %v905
                  %v907 = vld [vmem:[%s787 + $0x3b0] sm:$0xff]
                  %908 = vst [vmem:[%s788 + $0x1d8] sm:$0xff] %v907
                  %v909 = vld [vmem:[%s787 + $0x3c0] sm:$0xff]
                  %910 = vst [vmem:[%s788 + $0x1e0] sm:$0xff] %v909
                  %v911 = vld [vmem:[%s787 + $0x3d0] sm:$0xff]
                  %912 = vst [vmem:[%s788 + $0x1e8] sm:$0xff] %v911
                  %v913 = vld [vmem:[%s787 + $0x3e0] sm:$0xff]
                  %914 = vst [vmem:[%s788 + $0x1f0] sm:$0xff] %v913
                  %v915 = vld [vmem:[%s787 + $0x3f0] sm:$0xff]
                  %916 = vst [vmem:[%s788 + $0x1f8] sm:$0xff] %v915
                  %v917 = vld [vmem:[%s787 + $0x400] sm:$0xff]
                  %918 = vst [vmem:[%s788 + $0x200] sm:$0xff] %v917
                  %v919 = vld [vmem:[%s787 + $0x410] sm:$0xff]
                  %920 = vst [vmem:[%s788 + $0x208] sm:$0xff] %v919
                  %v921 = vld [vmem:[%s787 + $0x420] sm:$0xff]
                  %922 = vst [vmem:[%s788 + $0x210] sm:$0xff] %v921
                  %v923 = vld [vmem:[%s787 + $0x430] sm:$0xff]
                  %924 = vst [vmem:[%s788 + $0x218] sm:$0xff] %v923
                  %v925 = vld [vmem:[%s787 + $0x440] sm:$0xff]
                  %926 = vst [vmem:[%s788 + $0x220] sm:$0xff] %v925
                  %v927 = vld [vmem:[%s787 + $0x450] sm:$0xff]
                  %928 = vst [vmem:[%s788 + $0x228] sm:$0xff] %v927
                  %v929 = vld [vmem:[%s787 + $0x460] sm:$0xff]
                  %930 = vst [vmem:[%s788 + $0x230] sm:$0xff] %v929
                  %v931 = vld [vmem:[%s787 + $0x470] sm:$0xff]
                  %932 = vst [vmem:[%s788 + $0x238] sm:$0xff] %v931
                  %v933 = vld [vmem:[%s787 + $0x480] sm:$0xff]
                  %934 = vst [vmem:[%s788 + $0x240] sm:$0xff] %v933
                  %v935 = vld [vmem:[%s787 + $0x490] sm:$0xff]
                  %936 = vst [vmem:[%s788 + $0x248] sm:$0xff] %v935
                  %v937 = vld [vmem:[%s787 + $0x4a0] sm:$0xff]
                  %938 = vst [vmem:[%s788 + $0x250] sm:$0xff] %v937
                  %v939 = vld [vmem:[%s787 + $0x4b0] sm:$0xff]
                  %940 = vst [vmem:[%s788 + $0x258] sm:$0xff] %v939
                  %v941 = vld [vmem:[%s787 + $0x4c0] sm:$0xff]
                  %942 = vst [vmem:[%s788 + $0x260] sm:$0xff] %v941
                  %v943 = vld [vmem:[%s787 + $0x4d0] sm:$0xff]
                  %944 = vst [vmem:[%s788 + $0x268] sm:$0xff] %v943
                  %v945 = vld [vmem:[%s787 + $0x4e0] sm:$0xff]
                  %946 = vst [vmem:[%s788 + $0x270] sm:$0xff] %v945
                  %v947 = vld [vmem:[%s787 + $0x4f0] sm:$0xff]
                  %948 = vst [vmem:[%s788 + $0x278] sm:$0xff] %v947
                  %v949 = vld [vmem:[%s787 + $0x500] sm:$0xff]
                  %950 = vst [vmem:[%s788 + $0x280] sm:$0xff] %v949
                  %v951 = vld [vmem:[%s787 + $0x510] sm:$0xff]
                  %952 = vst [vmem:[%s788 + $0x288] sm:$0xff] %v951
                  %v953 = vld [vmem:[%s787 + $0x520] sm:$0xff]
                  %954 = vst [vmem:[%s788 + $0x290] sm:$0xff] %v953
                  %v955 = vld [vmem:[%s787 + $0x530] sm:$0xff]
                  %956 = vst [vmem:[%s788 + $0x298] sm:$0xff] %v955
                  %v957 = vld [vmem:[%s787 + $0x540] sm:$0xff]
                  %958 = vst [vmem:[%s788 + $0x2a0] sm:$0xff] %v957
                  %v959 = vld [vmem:[%s787 + $0x550] sm:$0xff]
                  %960 = vst [vmem:[%s788 + $0x2a8] sm:$0xff] %v959
                  %v961 = vld [vmem:[%s787 + $0x560] sm:$0xff]
                  %962 = vst [vmem:[%s788 + $0x2b0] sm:$0xff] %v961
                  %v963 = vld [vmem:[%s787 + $0x570] sm:$0xff]
                  %964 = vst [vmem:[%s788 + $0x2b8] sm:$0xff] %v963
                  %v965 = vld [vmem:[%s787 + $0x580] sm:$0xff]
                  %966 = vst [vmem:[%s788 + $0x2c0] sm:$0xff] %v965
                  %v967 = vld [vmem:[%s787 + $0x590] sm:$0xff]
                  %968 = vst [vmem:[%s788 + $0x2c8] sm:$0xff] %v967
                  %v969 = vld [vmem:[%s787 + $0x5a0] sm:$0xff]
                  %970 = vst [vmem:[%s788 + $0x2d0] sm:$0xff] %v969
                  %v971 = vld [vmem:[%s787 + $0x5b0] sm:$0xff]
                  %972 = vst [vmem:[%s788 + $0x2d8] sm:$0xff] %v971
                  %v973 = vld [vmem:[%s787 + $0x5c0] sm:$0xff]
                  %974 = vst [vmem:[%s788 + $0x2e0] sm:$0xff] %v973
                  %v975 = vld [vmem:[%s787 + $0x5d0] sm:$0xff]
                  %976 = vst [vmem:[%s788 + $0x2e8] sm:$0xff] %v975
                  %v977 = vld [vmem:[%s787 + $0x5e0] sm:$0xff]
                  %978 = vst [vmem:[%s788 + $0x2f0] sm:$0xff] %v977
                  %v979 = vld [vmem:[%s787 + $0x5f0] sm:$0xff]
                  %980 = vst [vmem:[%s788 + $0x2f8] sm:$0xff] %v979
                  %v981 = vld [vmem:[%s787 + $0x600] sm:$0xff]
                  %982 = vst [vmem:[%s788 + $0x300] sm:$0xff] %v981
                  %v983 = vld [vmem:[%s787 + $0x610] sm:$0xff]
                  %984 = vst [vmem:[%s788 + $0x308] sm:$0xff] %v983
                  %v985 = vld [vmem:[%s787 + $0x620] sm:$0xff]
                  %986 = vst [vmem:[%s788 + $0x310] sm:$0xff] %v985
                  %v987 = vld [vmem:[%s787 + $0x630] sm:$0xff]
                  %988 = vst [vmem:[%s788 + $0x318] sm:$0xff] %v987
                  %v989 = vld [vmem:[%s787 + $0x640] sm:$0xff]
                  %990 = vst [vmem:[%s788 + $0x320] sm:$0xff] %v989
                  %v991 = vld [vmem:[%s787 + $0x650] sm:$0xff]
                  %992 = vst [vmem:[%s788 + $0x328] sm:$0xff] %v991
                  %v993 = vld [vmem:[%s787 + $0x660] sm:$0xff]
                  %994 = vst [vmem:[%s788 + $0x330] sm:$0xff] %v993
                  %v995 = vld [vmem:[%s787 + $0x670] sm:$0xff]
                  %996 = vst [vmem:[%s788 + $0x338] sm:$0xff] %v995
                  %v997 = vld [vmem:[%s787 + $0x680] sm:$0xff]
                  %998 = vst [vmem:[%s788 + $0x340] sm:$0xff] %v997
                  %v999 = vld [vmem:[%s787 + $0x690] sm:$0xff]
                  %1000 = vst [vmem:[%s788 + $0x348] sm:$0xff] %v999
                  %v1001 = vld [vmem:[%s787 + $0x6a0] sm:$0xff]
                  %1002 = vst [vmem:[%s788 + $0x350] sm:$0xff] %v1001
                  %v1003 = vld [vmem:[%s787 + $0x6b0] sm:$0xff]
                  %1004 = vst [vmem:[%s788 + $0x358] sm:$0xff] %v1003
                  %v1005 = vld [vmem:[%s787 + $0x6c0] sm:$0xff]
                  %1006 = vst [vmem:[%s788 + $0x360] sm:$0xff] %v1005
                  %v1007 = vld [vmem:[%s787 + $0x6d0] sm:$0xff]
                  %1008 = vst [vmem:[%s788 + $0x368] sm:$0xff] %v1007
                  %v1009 = vld [vmem:[%s787 + $0x6e0] sm:$0xff]
                  %1010 = vst [vmem:[%s788 + $0x370] sm:$0xff] %v1009
                  %v1011 = vld [vmem:[%s787 + $0x6f0] sm:$0xff]
                  %1012 = vst [vmem:[%s788 + $0x378] sm:$0xff] %v1011
                  %v1013 = vld [vmem:[%s787 + $0x700] sm:$0xff]
                  %1014 = vst [vmem:[%s788 + $0x380] sm:$0xff] %v1013
                  %v1015 = vld [vmem:[%s787 + $0x710] sm:$0xff]
                  %1016 = vst [vmem:[%s788 + $0x388] sm:$0xff] %v1015
                  %v1017 = vld [vmem:[%s787 + $0x720] sm:$0xff]
                  %1018 = vst [vmem:[%s788 + $0x390] sm:$0xff] %v1017
                  %v1019 = vld [vmem:[%s787 + $0x730] sm:$0xff]
                  %1020 = vst [vmem:[%s788 + $0x398] sm:$0xff] %v1019
                  %v1021 = vld [vmem:[%s787 + $0x740] sm:$0xff]
                  %1022 = vst [vmem:[%s788 + $0x3a0] sm:$0xff] %v1021
                  %v1023 = vld [vmem:[%s787 + $0x750] sm:$0xff]
                  %1024 = vst [vmem:[%s788 + $0x3a8] sm:$0xff] %v1023
                  %v1025 = vld [vmem:[%s787 + $0x760] sm:$0xff]
                  %1026 = vst [vmem:[%s788 + $0x3b0] sm:$0xff] %v1025
                  %v1027 = vld [vmem:[%s787 + $0x770] sm:$0xff]
                  %1028 = vst [vmem:[%s788 + $0x3b8] sm:$0xff] %v1027
                  %v1029 = vld [vmem:[%s787 + $0x780] sm:$0xff]
                  %1030 = vst [vmem:[%s788 + $0x3c0] sm:$0xff] %v1029
                  %v1031 = vld [vmem:[%s787 + $0x790] sm:$0xff]
                  %1032 = vst [vmem:[%s788 + $0x3c8] sm:$0xff] %v1031
                  %v1033 = vld [vmem:[%s787 + $0x7a0] sm:$0xff]
                  %1034 = vst [vmem:[%s788 + $0x3d0] sm:$0xff] %v1033
                  %v1035 = vld [vmem:[%s787 + $0x7b0] sm:$0xff]
                  %1036 = vst [vmem:[%s788 + $0x3d8] sm:$0xff] %v1035
                  %v1037 = vld [vmem:[%s787 + $0x7c0] sm:$0xff]
                  %1038 = vst [vmem:[%s788 + $0x3e0] sm:$0xff] %v1037
                  %v1039 = vld [vmem:[%s787 + $0x7d0] sm:$0xff]
                  %1040 = vst [vmem:[%s788 + $0x3e8] sm:$0xff] %v1039
                  %v1041 = vld [vmem:[%s787 + $0x7e0] sm:$0xff]
                  %1042 = vst [vmem:[%s788 + $0x3f0] sm:$0xff] %v1041
                  %v1043 = vld [vmem:[%s787 + $0x7f0] sm:$0xff]
                  %1044 = vst [vmem:[%s788 + $0x3f8] sm:$0xff] %v1043
                  %v1045 = vld [vmem:[%s787 + $0x800] sm:$0xff]
                  %1046 = vst [vmem:[%s788 + $0x400] sm:$0xff] %v1045
                  %v1047 = vld [vmem:[%s787 + $0x810] sm:$0xff]
                  %1048 = vst [vmem:[%s788 + $0x408] sm:$0xff] %v1047
                  %v1049 = vld [vmem:[%s787 + $0x820] sm:$0xff]
                  %1050 = vst [vmem:[%s788 + $0x410] sm:$0xff] %v1049
                  %v1051 = vld [vmem:[%s787 + $0x830] sm:$0xff]
                  %1052 = vst [vmem:[%s788 + $0x418] sm:$0xff] %v1051
                  %v1053 = vld [vmem:[%s787 + $0x840] sm:$0xff]
                  %1054 = vst [vmem:[%s788 + $0x420] sm:$0xff] %v1053
                  %v1055 = vld [vmem:[%s787 + $0x850] sm:$0xff]
                  %1056 = vst [vmem:[%s788 + $0x428] sm:$0xff] %v1055
                  %v1057 = vld [vmem:[%s787 + $0x860] sm:$0xff]
                  %1058 = vst [vmem:[%s788 + $0x430] sm:$0xff] %v1057
                  %v1059 = vld [vmem:[%s787 + $0x870] sm:$0xff]
                  %1060 = vst [vmem:[%s788 + $0x438] sm:$0xff] %v1059
                  %v1061 = vld [vmem:[%s787 + $0x880] sm:$0xff]
                  %1062 = vst [vmem:[%s788 + $0x440] sm:$0xff] %v1061
                  %v1063 = vld [vmem:[%s787 + $0x890] sm:$0xff]
                  %1064 = vst [vmem:[%s788 + $0x448] sm:$0xff] %v1063
                  %v1065 = vld [vmem:[%s787 + $0x8a0] sm:$0xff]
                  %1066 = vst [vmem:[%s788 + $0x450] sm:$0xff] %v1065
                  %v1067 = vld [vmem:[%s787 + $0x8b0] sm:$0xff]
                  %1068 = vst [vmem:[%s788 + $0x458] sm:$0xff] %v1067
                  %v1069 = vld [vmem:[%s787 + $0x8c0] sm:$0xff]
                  %1070 = vst [vmem:[%s788 + $0x460] sm:$0xff] %v1069
                  %v1071 = vld [vmem:[%s787 + $0x8d0] sm:$0xff]
                  %1072 = vst [vmem:[%s788 + $0x468] sm:$0xff] %v1071
                  %v1073 = vld [vmem:[%s787 + $0x8e0] sm:$0xff]
                  %1074 = vst [vmem:[%s788 + $0x470] sm:$0xff] %v1073
                  %v1075 = vld [vmem:[%s787 + $0x8f0] sm:$0xff]
                  %1076 = vst [vmem:[%s788 + $0x478] sm:$0xff] %v1075
                  %v1077 = vld [vmem:[%s787 + $0x900] sm:$0xff]
                  %1078 = vst [vmem:[%s788 + $0x480] sm:$0xff] %v1077
                  %v1079 = vld [vmem:[%s787 + $0x910] sm:$0xff]
                  %1080 = vst [vmem:[%s788 + $0x488] sm:$0xff] %v1079
                  %v1081 = vld [vmem:[%s787 + $0x920] sm:$0xff]
                  %1082 = vst [vmem:[%s788 + $0x490] sm:$0xff] %v1081
                  %v1083 = vld [vmem:[%s787 + $0x930] sm:$0xff]
                  %1084 = vst [vmem:[%s788 + $0x498] sm:$0xff] %v1083
                  %v1085 = vld [vmem:[%s787 + $0x940] sm:$0xff]
                  %1086 = vst [vmem:[%s788 + $0x4a0] sm:$0xff] %v1085
                  %v1087 = vld [vmem:[%s787 + $0x950] sm:$0xff]
                  %1088 = vst [vmem:[%s788 + $0x4a8] sm:$0xff] %v1087
                  %v1089 = vld [vmem:[%s787 + $0x960] sm:$0xff]
                  %1090 = vst [vmem:[%s788 + $0x4b0] sm:$0xff] %v1089
                  %v1091 = vld [vmem:[%s787 + $0x970] sm:$0xff]
                  %1092 = vst [vmem:[%s788 + $0x4b8] sm:$0xff] %v1091
                  %v1093 = vld [vmem:[%s787 + $0x980] sm:$0xff]
                  %1094 = vst [vmem:[%s788 + $0x4c0] sm:$0xff] %v1093
                  %v1095 = vld [vmem:[%s787 + $0x990] sm:$0xff]
                  %1096 = vst [vmem:[%s788 + $0x4c8] sm:$0xff] %v1095
                  %v1097 = vld [vmem:[%s787 + $0x9a0] sm:$0xff]
                  %1098 = vst [vmem:[%s788 + $0x4d0] sm:$0xff] %v1097
                  %v1099 = vld [vmem:[%s787 + $0x9b0] sm:$0xff]
                  %1100 = vst [vmem:[%s788 + $0x4d8] sm:$0xff] %v1099
                  %v1101 = vld [vmem:[%s787 + $0x9c0] sm:$0xff]
                  %1102 = vst [vmem:[%s788 + $0x4e0] sm:$0xff] %v1101
                  %v1103 = vld [vmem:[%s787 + $0x9d0] sm:$0xff]
                  %1104 = vst [vmem:[%s788 + $0x4e8] sm:$0xff] %v1103
                  %v1105 = vld [vmem:[%s787 + $0x9e0] sm:$0xff]
                  %1106 = vst [vmem:[%s788 + $0x4f0] sm:$0xff] %v1105
                  %v1107 = vld [vmem:[%s787 + $0x9f0] sm:$0xff]
                  %1108 = vst [vmem:[%s788 + $0x4f8] sm:$0xff] %v1107
                  %v1109 = vld [vmem:[%s787 + $0xa00] sm:$0xff]
                  %1110 = vst [vmem:[%s788 + $0x500] sm:$0xff] %v1109
                  %v1111 = vld [vmem:[%s787 + $0xa10] sm:$0xff]
                  %1112 = vst [vmem:[%s788 + $0x508] sm:$0xff] %v1111
                  %v1113 = vld [vmem:[%s787 + $0xa20] sm:$0xff]
                  %1114 = vst [vmem:[%s788 + $0x510] sm:$0xff] %v1113
                  %v1115 = vld [vmem:[%s787 + $0xa30] sm:$0xff]
                  %1116 = vst [vmem:[%s788 + $0x518] sm:$0xff] %v1115
                  %v1117 = vld [vmem:[%s787 + $0xa40] sm:$0xff]
                  %1118 = vst [vmem:[%s788 + $0x520] sm:$0xff] %v1117
                  %v1119 = vld [vmem:[%s787 + $0xa50] sm:$0xff]
                  %1120 = vst [vmem:[%s788 + $0x528] sm:$0xff] %v1119
                  %v1121 = vld [vmem:[%s787 + $0xa60] sm:$0xff]
                  %1122 = vst [vmem:[%s788 + $0x530] sm:$0xff] %v1121
                  %v1123 = vld [vmem:[%s787 + $0xa70] sm:$0xff]
                  %1124 = vst [vmem:[%s788 + $0x538] sm:$0xff] %v1123
                  %v1125 = vld [vmem:[%s787 + $0xa80] sm:$0xff]
                  %1126 = vst [vmem:[%s788 + $0x540] sm:$0xff] %v1125
                  %v1127 = vld [vmem:[%s787 + $0xa90] sm:$0xff]
                  %1128 = vst [vmem:[%s788 + $0x548] sm:$0xff] %v1127
                  %v1129 = vld [vmem:[%s787 + $0xaa0] sm:$0xff]
                  %1130 = vst [vmem:[%s788 + $0x550] sm:$0xff] %v1129
                  %v1131 = vld [vmem:[%s787 + $0xab0] sm:$0xff]
                  %1132 = vst [vmem:[%s788 + $0x558] sm:$0xff] %v1131
                  %v1133 = vld [vmem:[%s787 + $0xac0] sm:$0xff]
                  %1134 = vst [vmem:[%s788 + $0x560] sm:$0xff] %v1133
                  %v1135 = vld [vmem:[%s787 + $0xad0] sm:$0xff]
                  %1136 = vst [vmem:[%s788 + $0x568] sm:$0xff] %v1135
                  %v1137 = vld [vmem:[%s787 + $0xae0] sm:$0xff]
                  %1138 = vst [vmem:[%s788 + $0x570] sm:$0xff] %v1137
                  %v1139 = vld [vmem:[%s787 + $0xaf0] sm:$0xff]
                  %1140 = vst [vmem:[%s788 + $0x578] sm:$0xff] %v1139
                  %v1141 = vld [vmem:[%s787 + $0xb00] sm:$0xff]
                  %1142 = vst [vmem:[%s788 + $0x580] sm:$0xff] %v1141
                  %v1143 = vld [vmem:[%s787 + $0xb10] sm:$0xff]
                  %1144 = vst [vmem:[%s788 + $0x588] sm:$0xff] %v1143
                  %v1145 = vld [vmem:[%s787 + $0xb20] sm:$0xff]
                  %1146 = vst [vmem:[%s788 + $0x590] sm:$0xff] %v1145
                  %v1147 = vld [vmem:[%s787 + $0xb30] sm:$0xff]
                  %1148 = vst [vmem:[%s788 + $0x598] sm:$0xff] %v1147
                  %v1149 = vld [vmem:[%s787 + $0xb40] sm:$0xff]
                  %1150 = vst [vmem:[%s788 + $0x5a0] sm:$0xff] %v1149
                  %v1151 = vld [vmem:[%s787 + $0xb50] sm:$0xff]
                  %1152 = vst [vmem:[%s788 + $0x5a8] sm:$0xff] %v1151
                  %v1153 = vld [vmem:[%s787 + $0xb60] sm:$0xff]
                  %1154 = vst [vmem:[%s788 + $0x5b0] sm:$0xff] %v1153
                  %v1155 = vld [vmem:[%s787 + $0xb70] sm:$0xff]
                  %1156 = vst [vmem:[%s788 + $0x5b8] sm:$0xff] %v1155
                  %v1157 = vld [vmem:[%s787 + $0xb80] sm:$0xff]
                  %1158 = vst [vmem:[%s788 + $0x5c0] sm:$0xff] %v1157
                  %v1159 = vld [vmem:[%s787 + $0xb90] sm:$0xff]
                  %1160 = vst [vmem:[%s788 + $0x5c8] sm:$0xff] %v1159
                  %v1161 = vld [vmem:[%s787 + $0xba0] sm:$0xff]
                  %1162 = vst [vmem:[%s788 + $0x5d0] sm:$0xff] %v1161
                  %v1163 = vld [vmem:[%s787 + $0xbb0] sm:$0xff]
                  %1164 = vst [vmem:[%s788 + $0x5d8] sm:$0xff] %v1163
                  %v1165 = vld [vmem:[%s787 + $0xbc0] sm:$0xff]
                  %1166 = vst [vmem:[%s788 + $0x5e0] sm:$0xff] %v1165
                  %v1167 = vld [vmem:[%s787 + $0xbd0] sm:$0xff]
                  %1168 = vst [vmem:[%s788 + $0x5e8] sm:$0xff] %v1167
                  %v1169 = vld [vmem:[%s787 + $0xbe0] sm:$0xff]
                  %1170 = vst [vmem:[%s788 + $0x5f0] sm:$0xff] %v1169
                  %v1171 = vld [vmem:[%s787 + $0xbf0] sm:$0xff]
                  %1172 = vst [vmem:[%s788 + $0x5f8] sm:$0xff] %v1171
                  %v1173 = vld [vmem:[%s787 + $0xc00] sm:$0xff]
                  %1174 = vst [vmem:[%s788 + $0x600] sm:$0xff] %v1173
                  %v1175 = vld [vmem:[%s787 + $0xc10] sm:$0xff]
                  %1176 = vst [vmem:[%s788 + $0x608] sm:$0xff] %v1175
                  %v1177 = vld [vmem:[%s787 + $0xc20] sm:$0xff]
                  %1178 = vst [vmem:[%s788 + $0x610] sm:$0xff] %v1177
                  %v1179 = vld [vmem:[%s787 + $0xc30] sm:$0xff]
                  %1180 = vst [vmem:[%s788 + $0x618] sm:$0xff] %v1179
                  %v1181 = vld [vmem:[%s787 + $0xc40] sm:$0xff]
                  %1182 = vst [vmem:[%s788 + $0x620] sm:$0xff] %v1181
                  %v1183 = vld [vmem:[%s787 + $0xc50] sm:$0xff]
                  %1184 = vst [vmem:[%s788 + $0x628] sm:$0xff] %v1183
                  %v1185 = vld [vmem:[%s787 + $0xc60] sm:$0xff]
                  %1186 = vst [vmem:[%s788 + $0x630] sm:$0xff] %v1185
                  %v1187 = vld [vmem:[%s787 + $0xc70] sm:$0xff]
                  %1188 = vst [vmem:[%s788 + $0x638] sm:$0xff] %v1187
                  %v1189 = vld [vmem:[%s787 + $0xc80] sm:$0xff]
                  %1190 = vst [vmem:[%s788 + $0x640] sm:$0xff] %v1189
                  %v1191 = vld [vmem:[%s787 + $0xc90] sm:$0xff]
                  %1192 = vst [vmem:[%s788 + $0x648] sm:$0xff] %v1191
                  %v1193 = vld [vmem:[%s787 + $0xca0] sm:$0xff]
                  %1194 = vst [vmem:[%s788 + $0x650] sm:$0xff] %v1193
                  %v1195 = vld [vmem:[%s787 + $0xcb0] sm:$0xff]
                  %1196 = vst [vmem:[%s788 + $0x658] sm:$0xff] %v1195
                  %v1197 = vld [vmem:[%s787 + $0xcc0] sm:$0xff]
                  %1198 = vst [vmem:[%s788 + $0x660] sm:$0xff] %v1197
                  %v1199 = vld [vmem:[%s787 + $0xcd0] sm:$0xff]
                  %1200 = vst [vmem:[%s788 + $0x668] sm:$0xff] %v1199
                  %v1201 = vld [vmem:[%s787 + $0xce0] sm:$0xff]
                  %1202 = vst [vmem:[%s788 + $0x670] sm:$0xff] %v1201
                  %v1203 = vld [vmem:[%s787 + $0xcf0] sm:$0xff]
                  %1204 = vst [vmem:[%s788 + $0x678] sm:$0xff] %v1203
                  %v1205 = vld [vmem:[%s787 + $0xd00] sm:$0xff]
                  %1206 = vst [vmem:[%s788 + $0x680] sm:$0xff] %v1205
                  %v1207 = vld [vmem:[%s787 + $0xd10] sm:$0xff]
                  %1208 = vst [vmem:[%s788 + $0x688] sm:$0xff] %v1207
                  %v1209 = vld [vmem:[%s787 + $0xd20] sm:$0xff]
                  %1210 = vst [vmem:[%s788 + $0x690] sm:$0xff] %v1209
                  %v1211 = vld [vmem:[%s787 + $0xd30] sm:$0xff]
                  %1212 = vst [vmem:[%s788 + $0x698] sm:$0xff] %v1211
                  %v1213 = vld [vmem:[%s787 + $0xd40] sm:$0xff]
                  %1214 = vst [vmem:[%s788 + $0x6a0] sm:$0xff] %v1213
                  %v1215 = vld [vmem:[%s787 + $0xd50] sm:$0xff]
                  %1216 = vst [vmem:[%s788 + $0x6a8] sm:$0xff] %v1215
                  %v1217 = vld [vmem:[%s787 + $0xd60] sm:$0xff]
                  %1218 = vst [vmem:[%s788 + $0x6b0] sm:$0xff] %v1217
                  %v1219 = vld [vmem:[%s787 + $0xd70] sm:$0xff]
                  %1220 = vst [vmem:[%s788 + $0x6b8] sm:$0xff] %v1219
                  %v1221 = vld [vmem:[%s787 + $0xd80] sm:$0xff]
                  %1222 = vst [vmem:[%s788 + $0x6c0] sm:$0xff] %v1221
                  %v1223 = vld [vmem:[%s787 + $0xd90] sm:$0xff]
                  %1224 = vst [vmem:[%s788 + $0x6c8] sm:$0xff] %v1223
                  %v1225 = vld [vmem:[%s787 + $0xda0] sm:$0xff]
                  %1226 = vst [vmem:[%s788 + $0x6d0] sm:$0xff] %v1225
                  %v1227 = vld [vmem:[%s787 + $0xdb0] sm:$0xff]
                  %1228 = vst [vmem:[%s788 + $0x6d8] sm:$0xff] %v1227
                  %v1229 = vld [vmem:[%s787 + $0xdc0] sm:$0xff]
                  %1230 = vst [vmem:[%s788 + $0x6e0] sm:$0xff] %v1229
                  %v1231 = vld [vmem:[%s787 + $0xdd0] sm:$0xff]
                  %1232 = vst [vmem:[%s788 + $0x6e8] sm:$0xff] %v1231
                  %v1233 = vld [vmem:[%s787 + $0xde0] sm:$0xff]
                  %1234 = vst [vmem:[%s788 + $0x6f0] sm:$0xff] %v1233
                  %v1235 = vld [vmem:[%s787 + $0xdf0] sm:$0xff]
                  %1236 = vst [vmem:[%s788 + $0x6f8] sm:$0xff] %v1235
                  %v1237 = vld [vmem:[%s787 + $0xe00] sm:$0xff]
                  %1238 = vst [vmem:[%s788 + $0x700] sm:$0xff] %v1237
                  %v1239 = vld [vmem:[%s787 + $0xe10] sm:$0xff]
                  %1240 = vst [vmem:[%s788 + $0x708] sm:$0xff] %v1239
                  %v1241 = vld [vmem:[%s787 + $0xe20] sm:$0xff]
                  %1242 = vst [vmem:[%s788 + $0x710] sm:$0xff] %v1241
                  %v1243 = vld [vmem:[%s787 + $0xe30] sm:$0xff]
                  %1244 = vst [vmem:[%s788 + $0x718] sm:$0xff] %v1243
                  %v1245 = vld [vmem:[%s787 + $0xe40] sm:$0xff]
                  %1246 = vst [vmem:[%s788 + $0x720] sm:$0xff] %v1245
                  %v1247 = vld [vmem:[%s787 + $0xe50] sm:$0xff]
                  %1248 = vst [vmem:[%s788 + $0x728] sm:$0xff] %v1247
                  %v1249 = vld [vmem:[%s787 + $0xe60] sm:$0xff]
                  %1250 = vst [vmem:[%s788 + $0x730] sm:$0xff] %v1249
                  %v1251 = vld [vmem:[%s787 + $0xe70] sm:$0xff]
                  %1252 = vst [vmem:[%s788 + $0x738] sm:$0xff] %v1251
                  %v1253 = vld [vmem:[%s787 + $0xe80] sm:$0xff]
                  %1254 = vst [vmem:[%s788 + $0x740] sm:$0xff] %v1253
                  %v1255 = vld [vmem:[%s787 + $0xe90] sm:$0xff]
                  %1256 = vst [vmem:[%s788 + $0x748] sm:$0xff] %v1255
                  %v1257 = vld [vmem:[%s787 + $0xea0] sm:$0xff]
                  %1258 = vst [vmem:[%s788 + $0x750] sm:$0xff] %v1257
                  %v1259 = vld [vmem:[%s787 + $0xeb0] sm:$0xff]
                  %1260 = vst [vmem:[%s788 + $0x758] sm:$0xff] %v1259
                  %v1261 = vld [vmem:[%s787 + $0xec0] sm:$0xff]
                  %1262 = vst [vmem:[%s788 + $0x760] sm:$0xff] %v1261
                  %v1263 = vld [vmem:[%s787 + $0xed0] sm:$0xff]
                  %1264 = vst [vmem:[%s788 + $0x768] sm:$0xff] %v1263
                  %v1265 = vld [vmem:[%s787 + $0xee0] sm:$0xff]
                  %1266 = vst [vmem:[%s788 + $0x770] sm:$0xff] %v1265
                  %v1267 = vld [vmem:[%s787 + $0xef0] sm:$0xff]
                  %1268 = vst [vmem:[%s788 + $0x778] sm:$0xff] %v1267
                  %v1269 = vld [vmem:[%s787 + $0xf00] sm:$0xff]
                  %1270 = vst [vmem:[%s788 + $0x780] sm:$0xff] %v1269
                  %v1271 = vld [vmem:[%s787 + $0xf10] sm:$0xff]
                  %1272 = vst [vmem:[%s788 + $0x788] sm:$0xff] %v1271
                  %v1273 = vld [vmem:[%s787 + $0xf20] sm:$0xff]
                  %1274 = vst [vmem:[%s788 + $0x790] sm:$0xff] %v1273
                  %v1275 = vld [vmem:[%s787 + $0xf30] sm:$0xff]
                  %1276 = vst [vmem:[%s788 + $0x798] sm:$0xff] %v1275
                  %v1277 = vld [vmem:[%s787 + $0xf40] sm:$0xff]
                  %1278 = vst [vmem:[%s788 + $0x7a0] sm:$0xff] %v1277
                  %v1279 = vld [vmem:[%s787 + $0xf50] sm:$0xff]
                  %1280 = vst [vmem:[%s788 + $0x7a8] sm:$0xff] %v1279
                  %v1281 = vld [vmem:[%s787 + $0xf60] sm:$0xff]
                  %1282 = vst [vmem:[%s788 + $0x7b0] sm:$0xff] %v1281
                  %v1283 = vld [vmem:[%s787 + $0xf70] sm:$0xff]
                  %1284 = vst [vmem:[%s788 + $0x7b8] sm:$0xff] %v1283
                  %v1285 = vld [vmem:[%s787 + $0xf80] sm:$0xff]
                  %1286 = vst [vmem:[%s788 + $0x7c0] sm:$0xff] %v1285
                  %v1287 = vld [vmem:[%s787 + $0xf90] sm:$0xff]
                  %1288 = vst [vmem:[%s788 + $0x7c8] sm:$0xff] %v1287
                  %v1289 = vld [vmem:[%s787 + $0xfa0] sm:$0xff]
                  %1290 = vst [vmem:[%s788 + $0x7d0] sm:$0xff] %v1289
                  %v1291 = vld [vmem:[%s787 + $0xfb0] sm:$0xff]
                  %1292 = vst [vmem:[%s788 + $0x7d8] sm:$0xff] %v1291
                  %v1293 = vld [vmem:[%s787 + $0xfc0] sm:$0xff]
                  %1294 = vst [vmem:[%s788 + $0x7e0] sm:$0xff] %v1293
                  %v1295 = vld [vmem:[%s787 + $0xfd0] sm:$0xff]
                  %1296 = vst [vmem:[%s788 + $0x7e8] sm:$0xff] %v1295
                  %v1297 = vld [vmem:[%s787 + $0xfe0] sm:$0xff]
                  %1298 = vst [vmem:[%s788 + $0x7f0] sm:$0xff] %v1297
                  %v1299 = vld [vmem:[%s787 + $0xff0] sm:$0xff]
                  %1300 = vst [vmem:[%s788 + $0x7f8] sm:$0xff] %v1299
                  %v1301 = vld [vmem:[%s787 + $0x1000] sm:$0xff]
                  %1302 = vst [vmem:[%s788 + $0x800] sm:$0xff] %v1301
                  %v1303 = vld [vmem:[%s787 + $0x1010] sm:$0xff]
                  %1304 = vst [vmem:[%s788 + $0x808] sm:$0xff] %v1303
                  %v1305 = vld [vmem:[%s787 + $0x1020] sm:$0xff]
                  %1306 = vst [vmem:[%s788 + $0x810] sm:$0xff] %v1305
                  %v1307 = vld [vmem:[%s787 + $0x1030] sm:$0xff]
                  %1308 = vst [vmem:[%s788 + $0x818] sm:$0xff] %v1307
                  %v1309 = vld [vmem:[%s787 + $0x1040] sm:$0xff]
                  %1310 = vst [vmem:[%s788 + $0x820] sm:$0xff] %v1309
                  %v1311 = vld [vmem:[%s787 + $0x1050] sm:$0xff]
                  %1312 = vst [vmem:[%s788 + $0x828] sm:$0xff] %v1311
                  %v1313 = vld [vmem:[%s787 + $0x1060] sm:$0xff]
                  %1314 = vst [vmem:[%s788 + $0x830] sm:$0xff] %v1313
                  %v1315 = vld [vmem:[%s787 + $0x1070] sm:$0xff]
                  %1316 = vst [vmem:[%s788 + $0x838] sm:$0xff] %v1315
                  %v1317 = vld [vmem:[%s787 + $0x1080] sm:$0xff]
                  %1318 = vst [vmem:[%s788 + $0x840] sm:$0xff] %v1317
                  %v1319 = vld [vmem:[%s787 + $0x1090] sm:$0xff]
                  %1320 = vst [vmem:[%s788 + $0x848] sm:$0xff] %v1319
                  %v1321 = vld [vmem:[%s787 + $0x10a0] sm:$0xff]
                  %1322 = vst [vmem:[%s788 + $0x850] sm:$0xff] %v1321
                  %v1323 = vld [vmem:[%s787 + $0x10b0] sm:$0xff]
                  %1324 = vst [vmem:[%s788 + $0x858] sm:$0xff] %v1323
                  %v1325 = vld [vmem:[%s787 + $0x10c0] sm:$0xff]
                  %1326 = vst [vmem:[%s788 + $0x860] sm:$0xff] %v1325
                  %v1327 = vld [vmem:[%s787 + $0x10d0] sm:$0xff]
                  %1328 = vst [vmem:[%s788 + $0x868] sm:$0xff] %v1327
                  %v1329 = vld [vmem:[%s787 + $0x10e0] sm:$0xff]
                  %1330 = vst [vmem:[%s788 + $0x870] sm:$0xff] %v1329
                  %v1331 = vld [vmem:[%s787 + $0x10f0] sm:$0xff]
                  %1332 = vst [vmem:[%s788 + $0x878] sm:$0xff] %v1331
                  %v1333 = vld [vmem:[%s787 + $0x1100] sm:$0xff]
                  %1334 = vst [vmem:[%s788 + $0x880] sm:$0xff] %v1333
                  %v1335 = vld [vmem:[%s787 + $0x1110] sm:$0xff]
                  %1336 = vst [vmem:[%s788 + $0x888] sm:$0xff] %v1335
                  %v1337 = vld [vmem:[%s787 + $0x1120] sm:$0xff]
                  %1338 = vst [vmem:[%s788 + $0x890] sm:$0xff] %v1337
                  %v1339 = vld [vmem:[%s787 + $0x1130] sm:$0xff]
                  %1340 = vst [vmem:[%s788 + $0x898] sm:$0xff] %v1339
                  %v1341 = vld [vmem:[%s787 + $0x1140] sm:$0xff]
                  %1342 = vst [vmem:[%s788 + $0x8a0] sm:$0xff] %v1341
                  %v1343 = vld [vmem:[%s787 + $0x1150] sm:$0xff]
                  %1344 = vst [vmem:[%s788 + $0x8a8] sm:$0xff] %v1343
                  %v1345 = vld [vmem:[%s787 + $0x1160] sm:$0xff]
                  %1346 = vst [vmem:[%s788 + $0x8b0] sm:$0xff] %v1345
                  %v1347 = vld [vmem:[%s787 + $0x1170] sm:$0xff]
                  %1348 = vst [vmem:[%s788 + $0x8b8] sm:$0xff] %v1347
                  %v1349 = vld [vmem:[%s787 + $0x1180] sm:$0xff]
                  %1350 = vst [vmem:[%s788 + $0x8c0] sm:$0xff] %v1349
                  %v1351 = vld [vmem:[%s787 + $0x1190] sm:$0xff]
                  %1352 = vst [vmem:[%s788 + $0x8c8] sm:$0xff] %v1351
                  %v1353 = vld [vmem:[%s787 + $0x11a0] sm:$0xff]
                  %1354 = vst [vmem:[%s788 + $0x8d0] sm:$0xff] %v1353
                  %v1355 = vld [vmem:[%s787 + $0x11b0] sm:$0xff]
                  %1356 = vst [vmem:[%s788 + $0x8d8] sm:$0xff] %v1355
                  %v1357 = vld [vmem:[%s787 + $0x11c0] sm:$0xff]
                  %1358 = vst [vmem:[%s788 + $0x8e0] sm:$0xff] %v1357
                  %v1359 = vld [vmem:[%s787 + $0x11d0] sm:$0xff]
                  %1360 = vst [vmem:[%s788 + $0x8e8] sm:$0xff] %v1359
                  %v1361 = vld [vmem:[%s787 + $0x11e0] sm:$0xff]
                  %1362 = vst [vmem:[%s788 + $0x8f0] sm:$0xff] %v1361
                  %v1363 = vld [vmem:[%s787 + $0x11f0] sm:$0xff]
                  %1364 = vst [vmem:[%s788 + $0x8f8] sm:$0xff] %v1363
                $region56: #{shiftnet_forward.3} parent=50 // loop_footer
                  %s786 = sadd.s32 1, %s782
                $region57: #{shiftnet_forward.3} parent=50 // loop_footer_branch
                  %781 = sbr.rel target = $region53
                $region58: #{shiftnet_forward.3} parent=50 // loop_exit
                  _
              $region51: #{shiftnet_forward.3} parent=35 // pred_fallthru
                _
              // Predicated region
              $region59: #{shiftnet_forward.3} parent=35 // pred_check
                _
              $region60: #{shiftnet_forward.3} parent=35 // pred_check_branch
                %1366 = sbr.rel target = $region62
              $region61: #{shiftnet_forward.3} parent=35 // pred_region
                _
              $region62: #{shiftnet_forward.3} parent=35 // pred_fallthru
                _
            $region36: #{shiftnet_forward.3} parent=31 // pred_fallthru
              _
            // Predicated region
            $region37: #{shiftnet_forward.3} parent=31 // pred_check
              _
            $region38: #{shiftnet_forward.3} parent=31 // pred_check_branch
              %193 = sbr.rel target = $region40
            $region39: #{shiftnet_forward.3} parent=31 // pred_region
              loop: start=0, step=1, limit=1
              $region41: #{shiftnet_forward.3} parent=39 // loop_pre_header
                _
              $region42: #{shiftnet_forward.3} parent=39 // loop_header
                %s196 = sphi 0, %s200
                %p197 = scmp.ge.s32.totalorder %s196, 1
                %s201 = sphi %s187, %s187
                %s202 = sphi %s184, %s184
              $region43: #{shiftnet_forward.3} parent=39 // loop_header_branch
                %199 = sbr.rel (%p197) target = $region47
              $region44: #{shiftnet_forward.3} parent=39 // loop_body
                %v203 = vld [vmem:[%s201] sm:$0xff]
                %204 = vst [vmem:[%s202] sm:$0xff] %v203
                %v205 = vld [vmem:[%s201 + $0x10] sm:$0xff]
                %206 = vst [vmem:[%s202 + $0x8] sm:$0xff] %v205
                %v207 = vld [vmem:[%s201 + $0x20] sm:$0xff]
                %208 = vst [vmem:[%s202 + $0x10] sm:$0xff] %v207
                %v209 = vld [vmem:[%s201 + $0x30] sm:$0xff]
                %210 = vst [vmem:[%s202 + $0x18] sm:$0xff] %v209
                %v211 = vld [vmem:[%s201 + $0x40] sm:$0xff]
                %212 = vst [vmem:[%s202 + $0x20] sm:$0xff] %v211
                %v213 = vld [vmem:[%s201 + $0x50] sm:$0xff]
                %214 = vst [vmem:[%s202 + $0x28] sm:$0xff] %v213
                %v215 = vld [vmem:[%s201 + $0x60] sm:$0xff]
                %216 = vst [vmem:[%s202 + $0x30] sm:$0xff] %v215
                %v217 = vld [vmem:[%s201 + $0x70] sm:$0xff]
                %218 = vst [vmem:[%s202 + $0x38] sm:$0xff] %v217
                %v219 = vld [vmem:[%s201 + $0x80] sm:$0xff]
                %220 = vst [vmem:[%s202 + $0x40] sm:$0xff] %v219
                %v221 = vld [vmem:[%s201 + $0x90] sm:$0xff]
                %222 = vst [vmem:[%s202 + $0x48] sm:$0xff] %v221
                %v223 = vld [vmem:[%s201 + $0xa0] sm:$0xff]
                %224 = vst [vmem:[%s202 + $0x50] sm:$0xff] %v223
                %v225 = vld [vmem:[%s201 + $0xb0] sm:$0xff]
                %226 = vst [vmem:[%s202 + $0x58] sm:$0xff] %v225
                %v227 = vld [vmem:[%s201 + $0xc0] sm:$0xff]
                %228 = vst [vmem:[%s202 + $0x60] sm:$0xff] %v227
                %v229 = vld [vmem:[%s201 + $0xd0] sm:$0xff]
                %230 = vst [vmem:[%s202 + $0x68] sm:$0xff] %v229
                %v231 = vld [vmem:[%s201 + $0xe0] sm:$0xff]
                %232 = vst [vmem:[%s202 + $0x70] sm:$0xff] %v231
                %v233 = vld [vmem:[%s201 + $0xf0] sm:$0xff]
                %234 = vst [vmem:[%s202 + $0x78] sm:$0xff] %v233
                %v235 = vld [vmem:[%s201 + $0x100] sm:$0xff]
                %236 = vst [vmem:[%s202 + $0x80] sm:$0xff] %v235
                %v237 = vld [vmem:[%s201 + $0x110] sm:$0xff]
                %238 = vst [vmem:[%s202 + $0x88] sm:$0xff] %v237
                %v239 = vld [vmem:[%s201 + $0x120] sm:$0xff]
                %240 = vst [vmem:[%s202 + $0x90] sm:$0xff] %v239
                %v241 = vld [vmem:[%s201 + $0x130] sm:$0xff]
                %242 = vst [vmem:[%s202 + $0x98] sm:$0xff] %v241
                %v243 = vld [vmem:[%s201 + $0x140] sm:$0xff]
                %244 = vst [vmem:[%s202 + $0xa0] sm:$0xff] %v243
                %v245 = vld [vmem:[%s201 + $0x150] sm:$0xff]
                %246 = vst [vmem:[%s202 + $0xa8] sm:$0xff] %v245
                %v247 = vld [vmem:[%s201 + $0x160] sm:$0xff]
                %248 = vst [vmem:[%s202 + $0xb0] sm:$0xff] %v247
                %v249 = vld [vmem:[%s201 + $0x170] sm:$0xff]
                %250 = vst [vmem:[%s202 + $0xb8] sm:$0xff] %v249
                %v251 = vld [vmem:[%s201 + $0x180] sm:$0xff]
                %252 = vst [vmem:[%s202 + $0xc0] sm:$0xff] %v251
                %v253 = vld [vmem:[%s201 + $0x190] sm:$0xff]
                %254 = vst [vmem:[%s202 + $0xc8] sm:$0xff] %v253
                %v255 = vld [vmem:[%s201 + $0x1a0] sm:$0xff]
                %256 = vst [vmem:[%s202 + $0xd0] sm:$0xff] %v255
                %v257 = vld [vmem:[%s201 + $0x1b0] sm:$0xff]
                %258 = vst [vmem:[%s202 + $0xd8] sm:$0xff] %v257
                %v259 = vld [vmem:[%s201 + $0x1c0] sm:$0xff]
                %260 = vst [vmem:[%s202 + $0xe0] sm:$0xff] %v259
                %v261 = vld [vmem:[%s201 + $0x1d0] sm:$0xff]
                %262 = vst [vmem:[%s202 + $0xe8] sm:$0xff] %v261
                %v263 = vld [vmem:[%s201 + $0x1e0] sm:$0xff]
                %264 = vst [vmem:[%s202 + $0xf0] sm:$0xff] %v263
                %v265 = vld [vmem:[%s201 + $0x1f0] sm:$0xff]
                %266 = vst [vmem:[%s202 + $0xf8] sm:$0xff] %v265
                %v267 = vld [vmem:[%s201 + $0x200] sm:$0xff]
                %268 = vst [vmem:[%s202 + $0x100] sm:$0xff] %v267
                %v269 = vld [vmem:[%s201 + $0x210] sm:$0xff]
                %270 = vst [vmem:[%s202 + $0x108] sm:$0xff] %v269
                %v271 = vld [vmem:[%s201 + $0x220] sm:$0xff]
                %272 = vst [vmem:[%s202 + $0x110] sm:$0xff] %v271
                %v273 = vld [vmem:[%s201 + $0x230] sm:$0xff]
                %274 = vst [vmem:[%s202 + $0x118] sm:$0xff] %v273
                %v275 = vld [vmem:[%s201 + $0x240] sm:$0xff]
                %276 = vst [vmem:[%s202 + $0x120] sm:$0xff] %v275
                %v277 = vld [vmem:[%s201 + $0x250] sm:$0xff]
                %278 = vst [vmem:[%s202 + $0x128] sm:$0xff] %v277
                %v279 = vld [vmem:[%s201 + $0x260] sm:$0xff]
                %280 = vst [vmem:[%s202 + $0x130] sm:$0xff] %v279
                %v281 = vld [vmem:[%s201 + $0x270] sm:$0xff]
                %282 = vst [vmem:[%s202 + $0x138] sm:$0xff] %v281
                %v283 = vld [vmem:[%s201 + $0x280] sm:$0xff]
                %284 = vst [vmem:[%s202 + $0x140] sm:$0xff] %v283
                %v285 = vld [vmem:[%s201 + $0x290] sm:$0xff]
                %286 = vst [vmem:[%s202 + $0x148] sm:$0xff] %v285
                %v287 = vld [vmem:[%s201 + $0x2a0] sm:$0xff]
                %288 = vst [vmem:[%s202 + $0x150] sm:$0xff] %v287
                %v289 = vld [vmem:[%s201 + $0x2b0] sm:$0xff]
                %290 = vst [vmem:[%s202 + $0x158] sm:$0xff] %v289
                %v291 = vld [vmem:[%s201 + $0x2c0] sm:$0xff]
                %292 = vst [vmem:[%s202 + $0x160] sm:$0xff] %v291
                %v293 = vld [vmem:[%s201 + $0x2d0] sm:$0xff]
                %294 = vst [vmem:[%s202 + $0x168] sm:$0xff] %v293
                %v295 = vld [vmem:[%s201 + $0x2e0] sm:$0xff]
                %296 = vst [vmem:[%s202 + $0x170] sm:$0xff] %v295
                %v297 = vld [vmem:[%s201 + $0x2f0] sm:$0xff]
                %298 = vst [vmem:[%s202 + $0x178] sm:$0xff] %v297
                %v299 = vld [vmem:[%s201 + $0x300] sm:$0xff]
                %300 = vst [vmem:[%s202 + $0x180] sm:$0xff] %v299
                %v301 = vld [vmem:[%s201 + $0x310] sm:$0xff]
                %302 = vst [vmem:[%s202 + $0x188] sm:$0xff] %v301
                %v303 = vld [vmem:[%s201 + $0x320] sm:$0xff]
                %304 = vst [vmem:[%s202 + $0x190] sm:$0xff] %v303
                %v305 = vld [vmem:[%s201 + $0x330] sm:$0xff]
                %306 = vst [vmem:[%s202 + $0x198] sm:$0xff] %v305
                %v307 = vld [vmem:[%s201 + $0x340] sm:$0xff]
                %308 = vst [vmem:[%s202 + $0x1a0] sm:$0xff] %v307
                %v309 = vld [vmem:[%s201 + $0x350] sm:$0xff]
                %310 = vst [vmem:[%s202 + $0x1a8] sm:$0xff] %v309
                %v311 = vld [vmem:[%s201 + $0x360] sm:$0xff]
                %312 = vst [vmem:[%s202 + $0x1b0] sm:$0xff] %v311
                %v313 = vld [vmem:[%s201 + $0x370] sm:$0xff]
                %314 = vst [vmem:[%s202 + $0x1b8] sm:$0xff] %v313
                %v315 = vld [vmem:[%s201 + $0x380] sm:$0xff]
                %316 = vst [vmem:[%s202 + $0x1c0] sm:$0xff] %v315
                %v317 = vld [vmem:[%s201 + $0x390] sm:$0xff]
                %318 = vst [vmem:[%s202 + $0x1c8] sm:$0xff] %v317
                %v319 = vld [vmem:[%s201 + $0x3a0] sm:$0xff]
                %320 = vst [vmem:[%s202 + $0x1d0] sm:$0xff] %v319
                %v321 = vld [vmem:[%s201 + $0x3b0] sm:$0xff]
                %322 = vst [vmem:[%s202 + $0x1d8] sm:$0xff] %v321
                %v323 = vld [vmem:[%s201 + $0x3c0] sm:$0xff]
                %324 = vst [vmem:[%s202 + $0x1e0] sm:$0xff] %v323
                %v325 = vld [vmem:[%s201 + $0x3d0] sm:$0xff]
                %326 = vst [vmem:[%s202 + $0x1e8] sm:$0xff] %v325
                %v327 = vld [vmem:[%s201 + $0x3e0] sm:$0xff]
                %328 = vst [vmem:[%s202 + $0x1f0] sm:$0xff] %v327
                %v329 = vld [vmem:[%s201 + $0x3f0] sm:$0xff]
                %330 = vst [vmem:[%s202 + $0x1f8] sm:$0xff] %v329
                %v331 = vld [vmem:[%s201 + $0x400] sm:$0xff]
                %332 = vst [vmem:[%s202 + $0x200] sm:$0xff] %v331
                %v333 = vld [vmem:[%s201 + $0x410] sm:$0xff]
                %334 = vst [vmem:[%s202 + $0x208] sm:$0xff] %v333
                %v335 = vld [vmem:[%s201 + $0x420] sm:$0xff]
                %336 = vst [vmem:[%s202 + $0x210] sm:$0xff] %v335
                %v337 = vld [vmem:[%s201 + $0x430] sm:$0xff]
                %338 = vst [vmem:[%s202 + $0x218] sm:$0xff] %v337
                %v339 = vld [vmem:[%s201 + $0x440] sm:$0xff]
                %340 = vst [vmem:[%s202 + $0x220] sm:$0xff] %v339
                %v341 = vld [vmem:[%s201 + $0x450] sm:$0xff]
                %342 = vst [vmem:[%s202 + $0x228] sm:$0xff] %v341
                %v343 = vld [vmem:[%s201 + $0x460] sm:$0xff]
                %344 = vst [vmem:[%s202 + $0x230] sm:$0xff] %v343
                %v345 = vld [vmem:[%s201 + $0x470] sm:$0xff]
                %346 = vst [vmem:[%s202 + $0x238] sm:$0xff] %v345
                %v347 = vld [vmem:[%s201 + $0x480] sm:$0xff]
                %348 = vst [vmem:[%s202 + $0x240] sm:$0xff] %v347
                %v349 = vld [vmem:[%s201 + $0x490] sm:$0xff]
                %350 = vst [vmem:[%s202 + $0x248] sm:$0xff] %v349
                %v351 = vld [vmem:[%s201 + $0x4a0] sm:$0xff]
                %352 = vst [vmem:[%s202 + $0x250] sm:$0xff] %v351
                %v353 = vld [vmem:[%s201 + $0x4b0] sm:$0xff]
                %354 = vst [vmem:[%s202 + $0x258] sm:$0xff] %v353
                %v355 = vld [vmem:[%s201 + $0x4c0] sm:$0xff]
                %356 = vst [vmem:[%s202 + $0x260] sm:$0xff] %v355
                %v357 = vld [vmem:[%s201 + $0x4d0] sm:$0xff]
                %358 = vst [vmem:[%s202 + $0x268] sm:$0xff] %v357
                %v359 = vld [vmem:[%s201 + $0x4e0] sm:$0xff]
                %360 = vst [vmem:[%s202 + $0x270] sm:$0xff] %v359
                %v361 = vld [vmem:[%s201 + $0x4f0] sm:$0xff]
                %362 = vst [vmem:[%s202 + $0x278] sm:$0xff] %v361
                %v363 = vld [vmem:[%s201 + $0x500] sm:$0xff]
                %364 = vst [vmem:[%s202 + $0x280] sm:$0xff] %v363
                %v365 = vld [vmem:[%s201 + $0x510] sm:$0xff]
                %366 = vst [vmem:[%s202 + $0x288] sm:$0xff] %v365
                %v367 = vld [vmem:[%s201 + $0x520] sm:$0xff]
                %368 = vst [vmem:[%s202 + $0x290] sm:$0xff] %v367
                %v369 = vld [vmem:[%s201 + $0x530] sm:$0xff]
                %370 = vst [vmem:[%s202 + $0x298] sm:$0xff] %v369
                %v371 = vld [vmem:[%s201 + $0x540] sm:$0xff]
                %372 = vst [vmem:[%s202 + $0x2a0] sm:$0xff] %v371
                %v373 = vld [vmem:[%s201 + $0x550] sm:$0xff]
                %374 = vst [vmem:[%s202 + $0x2a8] sm:$0xff] %v373
                %v375 = vld [vmem:[%s201 + $0x560] sm:$0xff]
                %376 = vst [vmem:[%s202 + $0x2b0] sm:$0xff] %v375
                %v377 = vld [vmem:[%s201 + $0x570] sm:$0xff]
                %378 = vst [vmem:[%s202 + $0x2b8] sm:$0xff] %v377
                %v379 = vld [vmem:[%s201 + $0x580] sm:$0xff]
                %380 = vst [vmem:[%s202 + $0x2c0] sm:$0xff] %v379
                %v381 = vld [vmem:[%s201 + $0x590] sm:$0xff]
                %382 = vst [vmem:[%s202 + $0x2c8] sm:$0xff] %v381
                %v383 = vld [vmem:[%s201 + $0x5a0] sm:$0xff]
                %384 = vst [vmem:[%s202 + $0x2d0] sm:$0xff] %v383
                %v385 = vld [vmem:[%s201 + $0x5b0] sm:$0xff]
                %386 = vst [vmem:[%s202 + $0x2d8] sm:$0xff] %v385
                %v387 = vld [vmem:[%s201 + $0x5c0] sm:$0xff]
                %388 = vst [vmem:[%s202 + $0x2e0] sm:$0xff] %v387
                %v389 = vld [vmem:[%s201 + $0x5d0] sm:$0xff]
                %390 = vst [vmem:[%s202 + $0x2e8] sm:$0xff] %v389
                %v391 = vld [vmem:[%s201 + $0x5e0] sm:$0xff]
                %392 = vst [vmem:[%s202 + $0x2f0] sm:$0xff] %v391
                %v393 = vld [vmem:[%s201 + $0x5f0] sm:$0xff]
                %394 = vst [vmem:[%s202 + $0x2f8] sm:$0xff] %v393
                %v395 = vld [vmem:[%s201 + $0x600] sm:$0xff]
                %396 = vst [vmem:[%s202 + $0x300] sm:$0xff] %v395
                %v397 = vld [vmem:[%s201 + $0x610] sm:$0xff]
                %398 = vst [vmem:[%s202 + $0x308] sm:$0xff] %v397
                %v399 = vld [vmem:[%s201 + $0x620] sm:$0xff]
                %400 = vst [vmem:[%s202 + $0x310] sm:$0xff] %v399
                %v401 = vld [vmem:[%s201 + $0x630] sm:$0xff]
                %402 = vst [vmem:[%s202 + $0x318] sm:$0xff] %v401
                %v403 = vld [vmem:[%s201 + $0x640] sm:$0xff]
                %404 = vst [vmem:[%s202 + $0x320] sm:$0xff] %v403
                %v405 = vld [vmem:[%s201 + $0x650] sm:$0xff]
                %406 = vst [vmem:[%s202 + $0x328] sm:$0xff] %v405
                %v407 = vld [vmem:[%s201 + $0x660] sm:$0xff]
                %408 = vst [vmem:[%s202 + $0x330] sm:$0xff] %v407
                %v409 = vld [vmem:[%s201 + $0x670] sm:$0xff]
                %410 = vst [vmem:[%s202 + $0x338] sm:$0xff] %v409
                %v411 = vld [vmem:[%s201 + $0x680] sm:$0xff]
                %412 = vst [vmem:[%s202 + $0x340] sm:$0xff] %v411
                %v413 = vld [vmem:[%s201 + $0x690] sm:$0xff]
                %414 = vst [vmem:[%s202 + $0x348] sm:$0xff] %v413
                %v415 = vld [vmem:[%s201 + $0x6a0] sm:$0xff]
                %416 = vst [vmem:[%s202 + $0x350] sm:$0xff] %v415
                %v417 = vld [vmem:[%s201 + $0x6b0] sm:$0xff]
                %418 = vst [vmem:[%s202 + $0x358] sm:$0xff] %v417
                %v419 = vld [vmem:[%s201 + $0x6c0] sm:$0xff]
                %420 = vst [vmem:[%s202 + $0x360] sm:$0xff] %v419
                %v421 = vld [vmem:[%s201 + $0x6d0] sm:$0xff]
                %422 = vst [vmem:[%s202 + $0x368] sm:$0xff] %v421
                %v423 = vld [vmem:[%s201 + $0x6e0] sm:$0xff]
                %424 = vst [vmem:[%s202 + $0x370] sm:$0xff] %v423
                %v425 = vld [vmem:[%s201 + $0x6f0] sm:$0xff]
                %426 = vst [vmem:[%s202 + $0x378] sm:$0xff] %v425
                %v427 = vld [vmem:[%s201 + $0x700] sm:$0xff]
                %428 = vst [vmem:[%s202 + $0x380] sm:$0xff] %v427
                %v429 = vld [vmem:[%s201 + $0x710] sm:$0xff]
                %430 = vst [vmem:[%s202 + $0x388] sm:$0xff] %v429
                %v431 = vld [vmem:[%s201 + $0x720] sm:$0xff]
                %432 = vst [vmem:[%s202 + $0x390] sm:$0xff] %v431
                %v433 = vld [vmem:[%s201 + $0x730] sm:$0xff]
                %434 = vst [vmem:[%s202 + $0x398] sm:$0xff] %v433
                %v435 = vld [vmem:[%s201 + $0x740] sm:$0xff]
                %436 = vst [vmem:[%s202 + $0x3a0] sm:$0xff] %v435
                %v437 = vld [vmem:[%s201 + $0x750] sm:$0xff]
                %438 = vst [vmem:[%s202 + $0x3a8] sm:$0xff] %v437
                %v439 = vld [vmem:[%s201 + $0x760] sm:$0xff]
                %440 = vst [vmem:[%s202 + $0x3b0] sm:$0xff] %v439
                %v441 = vld [vmem:[%s201 + $0x770] sm:$0xff]
                %442 = vst [vmem:[%s202 + $0x3b8] sm:$0xff] %v441
                %v443 = vld [vmem:[%s201 + $0x780] sm:$0xff]
                %444 = vst [vmem:[%s202 + $0x3c0] sm:$0xff] %v443
                %v445 = vld [vmem:[%s201 + $0x790] sm:$0xff]
                %446 = vst [vmem:[%s202 + $0x3c8] sm:$0xff] %v445
                %v447 = vld [vmem:[%s201 + $0x7a0] sm:$0xff]
                %448 = vst [vmem:[%s202 + $0x3d0] sm:$0xff] %v447
                %v449 = vld [vmem:[%s201 + $0x7b0] sm:$0xff]
                %450 = vst [vmem:[%s202 + $0x3d8] sm:$0xff] %v449
                %v451 = vld [vmem:[%s201 + $0x7c0] sm:$0xff]
                %452 = vst [vmem:[%s202 + $0x3e0] sm:$0xff] %v451
                %v453 = vld [vmem:[%s201 + $0x7d0] sm:$0xff]
                %454 = vst [vmem:[%s202 + $0x3e8] sm:$0xff] %v453
                %v455 = vld [vmem:[%s201 + $0x7e0] sm:$0xff]
                %456 = vst [vmem:[%s202 + $0x3f0] sm:$0xff] %v455
                %v457 = vld [vmem:[%s201 + $0x7f0] sm:$0xff]
                %458 = vst [vmem:[%s202 + $0x3f8] sm:$0xff] %v457
                %v459 = vld [vmem:[%s201 + $0x800] sm:$0xff]
                %460 = vst [vmem:[%s202 + $0x400] sm:$0xff] %v459
                %v461 = vld [vmem:[%s201 + $0x810] sm:$0xff]
                %462 = vst [vmem:[%s202 + $0x408] sm:$0xff] %v461
                %v463 = vld [vmem:[%s201 + $0x820] sm:$0xff]
                %464 = vst [vmem:[%s202 + $0x410] sm:$0xff] %v463
                %v465 = vld [vmem:[%s201 + $0x830] sm:$0xff]
                %466 = vst [vmem:[%s202 + $0x418] sm:$0xff] %v465
                %v467 = vld [vmem:[%s201 + $0x840] sm:$0xff]
                %468 = vst [vmem:[%s202 + $0x420] sm:$0xff] %v467
                %v469 = vld [vmem:[%s201 + $0x850] sm:$0xff]
                %470 = vst [vmem:[%s202 + $0x428] sm:$0xff] %v469
                %v471 = vld [vmem:[%s201 + $0x860] sm:$0xff]
                %472 = vst [vmem:[%s202 + $0x430] sm:$0xff] %v471
                %v473 = vld [vmem:[%s201 + $0x870] sm:$0xff]
                %474 = vst [vmem:[%s202 + $0x438] sm:$0xff] %v473
                %v475 = vld [vmem:[%s201 + $0x880] sm:$0xff]
                %476 = vst [vmem:[%s202 + $0x440] sm:$0xff] %v475
                %v477 = vld [vmem:[%s201 + $0x890] sm:$0xff]
                %478 = vst [vmem:[%s202 + $0x448] sm:$0xff] %v477
                %v479 = vld [vmem:[%s201 + $0x8a0] sm:$0xff]
                %480 = vst [vmem:[%s202 + $0x450] sm:$0xff] %v479
                %v481 = vld [vmem:[%s201 + $0x8b0] sm:$0xff]
                %482 = vst [vmem:[%s202 + $0x458] sm:$0xff] %v481
                %v483 = vld [vmem:[%s201 + $0x8c0] sm:$0xff]
                %484 = vst [vmem:[%s202 + $0x460] sm:$0xff] %v483
                %v485 = vld [vmem:[%s201 + $0x8d0] sm:$0xff]
                %486 = vst [vmem:[%s202 + $0x468] sm:$0xff] %v485
                %v487 = vld [vmem:[%s201 + $0x8e0] sm:$0xff]
                %488 = vst [vmem:[%s202 + $0x470] sm:$0xff] %v487
                %v489 = vld [vmem:[%s201 + $0x8f0] sm:$0xff]
                %490 = vst [vmem:[%s202 + $0x478] sm:$0xff] %v489
                %v491 = vld [vmem:[%s201 + $0x900] sm:$0xff]
                %492 = vst [vmem:[%s202 + $0x480] sm:$0xff] %v491
                %v493 = vld [vmem:[%s201 + $0x910] sm:$0xff]
                %494 = vst [vmem:[%s202 + $0x488] sm:$0xff] %v493
                %v495 = vld [vmem:[%s201 + $0x920] sm:$0xff]
                %496 = vst [vmem:[%s202 + $0x490] sm:$0xff] %v495
                %v497 = vld [vmem:[%s201 + $0x930] sm:$0xff]
                %498 = vst [vmem:[%s202 + $0x498] sm:$0xff] %v497
                %v499 = vld [vmem:[%s201 + $0x940] sm:$0xff]
                %500 = vst [vmem:[%s202 + $0x4a0] sm:$0xff] %v499
                %v501 = vld [vmem:[%s201 + $0x950] sm:$0xff]
                %502 = vst [vmem:[%s202 + $0x4a8] sm:$0xff] %v501
                %v503 = vld [vmem:[%s201 + $0x960] sm:$0xff]
                %504 = vst [vmem:[%s202 + $0x4b0] sm:$0xff] %v503
                %v505 = vld [vmem:[%s201 + $0x970] sm:$0xff]
                %506 = vst [vmem:[%s202 + $0x4b8] sm:$0xff] %v505
                %v507 = vld [vmem:[%s201 + $0x980] sm:$0xff]
                %508 = vst [vmem:[%s202 + $0x4c0] sm:$0xff] %v507
                %v509 = vld [vmem:[%s201 + $0x990] sm:$0xff]
                %510 = vst [vmem:[%s202 + $0x4c8] sm:$0xff] %v509
                %v511 = vld [vmem:[%s201 + $0x9a0] sm:$0xff]
                %512 = vst [vmem:[%s202 + $0x4d0] sm:$0xff] %v511
                %v513 = vld [vmem:[%s201 + $0x9b0] sm:$0xff]
                %514 = vst [vmem:[%s202 + $0x4d8] sm:$0xff] %v513
                %v515 = vld [vmem:[%s201 + $0x9c0] sm:$0xff]
                %516 = vst [vmem:[%s202 + $0x4e0] sm:$0xff] %v515
                %v517 = vld [vmem:[%s201 + $0x9d0] sm:$0xff]
                %518 = vst [vmem:[%s202 + $0x4e8] sm:$0xff] %v517
                %v519 = vld [vmem:[%s201 + $0x9e0] sm:$0xff]
                %520 = vst [vmem:[%s202 + $0x4f0] sm:$0xff] %v519
                %v521 = vld [vmem:[%s201 + $0x9f0] sm:$0xff]
                %522 = vst [vmem:[%s202 + $0x4f8] sm:$0xff] %v521
                %v523 = vld [vmem:[%s201 + $0xa00] sm:$0xff]
                %524 = vst [vmem:[%s202 + $0x500] sm:$0xff] %v523
                %v525 = vld [vmem:[%s201 + $0xa10] sm:$0xff]
                %526 = vst [vmem:[%s202 + $0x508] sm:$0xff] %v525
                %v527 = vld [vmem:[%s201 + $0xa20] sm:$0xff]
                %528 = vst [vmem:[%s202 + $0x510] sm:$0xff] %v527
                %v529 = vld [vmem:[%s201 + $0xa30] sm:$0xff]
                %530 = vst [vmem:[%s202 + $0x518] sm:$0xff] %v529
                %v531 = vld [vmem:[%s201 + $0xa40] sm:$0xff]
                %532 = vst [vmem:[%s202 + $0x520] sm:$0xff] %v531
                %v533 = vld [vmem:[%s201 + $0xa50] sm:$0xff]
                %534 = vst [vmem:[%s202 + $0x528] sm:$0xff] %v533
                %v535 = vld [vmem:[%s201 + $0xa60] sm:$0xff]
                %536 = vst [vmem:[%s202 + $0x530] sm:$0xff] %v535
                %v537 = vld [vmem:[%s201 + $0xa70] sm:$0xff]
                %538 = vst [vmem:[%s202 + $0x538] sm:$0xff] %v537
                %v539 = vld [vmem:[%s201 + $0xa80] sm:$0xff]
                %540 = vst [vmem:[%s202 + $0x540] sm:$0xff] %v539
                %v541 = vld [vmem:[%s201 + $0xa90] sm:$0xff]
                %542 = vst [vmem:[%s202 + $0x548] sm:$0xff] %v541
                %v543 = vld [vmem:[%s201 + $0xaa0] sm:$0xff]
                %544 = vst [vmem:[%s202 + $0x550] sm:$0xff] %v543
                %v545 = vld [vmem:[%s201 + $0xab0] sm:$0xff]
                %546 = vst [vmem:[%s202 + $0x558] sm:$0xff] %v545
                %v547 = vld [vmem:[%s201 + $0xac0] sm:$0xff]
                %548 = vst [vmem:[%s202 + $0x560] sm:$0xff] %v547
                %v549 = vld [vmem:[%s201 + $0xad0] sm:$0xff]
                %550 = vst [vmem:[%s202 + $0x568] sm:$0xff] %v549
                %v551 = vld [vmem:[%s201 + $0xae0] sm:$0xff]
                %552 = vst [vmem:[%s202 + $0x570] sm:$0xff] %v551
                %v553 = vld [vmem:[%s201 + $0xaf0] sm:$0xff]
                %554 = vst [vmem:[%s202 + $0x578] sm:$0xff] %v553
                %v555 = vld [vmem:[%s201 + $0xb00] sm:$0xff]
                %556 = vst [vmem:[%s202 + $0x580] sm:$0xff] %v555
                %v557 = vld [vmem:[%s201 + $0xb10] sm:$0xff]
                %558 = vst [vmem:[%s202 + $0x588] sm:$0xff] %v557
                %v559 = vld [vmem:[%s201 + $0xb20] sm:$0xff]
                %560 = vst [vmem:[%s202 + $0x590] sm:$0xff] %v559
                %v561 = vld [vmem:[%s201 + $0xb30] sm:$0xff]
                %562 = vst [vmem:[%s202 + $0x598] sm:$0xff] %v561
                %v563 = vld [vmem:[%s201 + $0xb40] sm:$0xff]
                %564 = vst [vmem:[%s202 + $0x5a0] sm:$0xff] %v563
                %v565 = vld [vmem:[%s201 + $0xb50] sm:$0xff]
                %566 = vst [vmem:[%s202 + $0x5a8] sm:$0xff] %v565
                %v567 = vld [vmem:[%s201 + $0xb60] sm:$0xff]
                %568 = vst [vmem:[%s202 + $0x5b0] sm:$0xff] %v567
                %v569 = vld [vmem:[%s201 + $0xb70] sm:$0xff]
                %570 = vst [vmem:[%s202 + $0x5b8] sm:$0xff] %v569
                %v571 = vld [vmem:[%s201 + $0xb80] sm:$0xff]
                %572 = vst [vmem:[%s202 + $0x5c0] sm:$0xff] %v571
                %v573 = vld [vmem:[%s201 + $0xb90] sm:$0xff]
                %574 = vst [vmem:[%s202 + $0x5c8] sm:$0xff] %v573
                %v575 = vld [vmem:[%s201 + $0xba0] sm:$0xff]
                %576 = vst [vmem:[%s202 + $0x5d0] sm:$0xff] %v575
                %v577 = vld [vmem:[%s201 + $0xbb0] sm:$0xff]
                %578 = vst [vmem:[%s202 + $0x5d8] sm:$0xff] %v577
                %v579 = vld [vmem:[%s201 + $0xbc0] sm:$0xff]
                %580 = vst [vmem:[%s202 + $0x5e0] sm:$0xff] %v579
                %v581 = vld [vmem:[%s201 + $0xbd0] sm:$0xff]
                %582 = vst [vmem:[%s202 + $0x5e8] sm:$0xff] %v581
                %v583 = vld [vmem:[%s201 + $0xbe0] sm:$0xff]
                %584 = vst [vmem:[%s202 + $0x5f0] sm:$0xff] %v583
                %v585 = vld [vmem:[%s201 + $0xbf0] sm:$0xff]
                %586 = vst [vmem:[%s202 + $0x5f8] sm:$0xff] %v585
                %v587 = vld [vmem:[%s201 + $0xc00] sm:$0xff]
                %588 = vst [vmem:[%s202 + $0x600] sm:$0xff] %v587
                %v589 = vld [vmem:[%s201 + $0xc10] sm:$0xff]
                %590 = vst [vmem:[%s202 + $0x608] sm:$0xff] %v589
                %v591 = vld [vmem:[%s201 + $0xc20] sm:$0xff]
                %592 = vst [vmem:[%s202 + $0x610] sm:$0xff] %v591
                %v593 = vld [vmem:[%s201 + $0xc30] sm:$0xff]
                %594 = vst [vmem:[%s202 + $0x618] sm:$0xff] %v593
                %v595 = vld [vmem:[%s201 + $0xc40] sm:$0xff]
                %596 = vst [vmem:[%s202 + $0x620] sm:$0xff] %v595
                %v597 = vld [vmem:[%s201 + $0xc50] sm:$0xff]
                %598 = vst [vmem:[%s202 + $0x628] sm:$0xff] %v597
                %v599 = vld [vmem:[%s201 + $0xc60] sm:$0xff]
                %600 = vst [vmem:[%s202 + $0x630] sm:$0xff] %v599
                %v601 = vld [vmem:[%s201 + $0xc70] sm:$0xff]
                %602 = vst [vmem:[%s202 + $0x638] sm:$0xff] %v601
                %v603 = vld [vmem:[%s201 + $0xc80] sm:$0xff]
                %604 = vst [vmem:[%s202 + $0x640] sm:$0xff] %v603
                %v605 = vld [vmem:[%s201 + $0xc90] sm:$0xff]
                %606 = vst [vmem:[%s202 + $0x648] sm:$0xff] %v605
                %v607 = vld [vmem:[%s201 + $0xca0] sm:$0xff]
                %608 = vst [vmem:[%s202 + $0x650] sm:$0xff] %v607
                %v609 = vld [vmem:[%s201 + $0xcb0] sm:$0xff]
                %610 = vst [vmem:[%s202 + $0x658] sm:$0xff] %v609
                %v611 = vld [vmem:[%s201 + $0xcc0] sm:$0xff]
                %612 = vst [vmem:[%s202 + $0x660] sm:$0xff] %v611
                %v613 = vld [vmem:[%s201 + $0xcd0] sm:$0xff]
                %614 = vst [vmem:[%s202 + $0x668] sm:$0xff] %v613
                %v615 = vld [vmem:[%s201 + $0xce0] sm:$0xff]
                %616 = vst [vmem:[%s202 + $0x670] sm:$0xff] %v615
                %v617 = vld [vmem:[%s201 + $0xcf0] sm:$0xff]
                %618 = vst [vmem:[%s202 + $0x678] sm:$0xff] %v617
                %v619 = vld [vmem:[%s201 + $0xd00] sm:$0xff]
                %620 = vst [vmem:[%s202 + $0x680] sm:$0xff] %v619
                %v621 = vld [vmem:[%s201 + $0xd10] sm:$0xff]
                %622 = vst [vmem:[%s202 + $0x688] sm:$0xff] %v621
                %v623 = vld [vmem:[%s201 + $0xd20] sm:$0xff]
                %624 = vst [vmem:[%s202 + $0x690] sm:$0xff] %v623
                %v625 = vld [vmem:[%s201 + $0xd30] sm:$0xff]
                %626 = vst [vmem:[%s202 + $0x698] sm:$0xff] %v625
                %v627 = vld [vmem:[%s201 + $0xd40] sm:$0xff]
                %628 = vst [vmem:[%s202 + $0x6a0] sm:$0xff] %v627
                %v629 = vld [vmem:[%s201 + $0xd50] sm:$0xff]
                %630 = vst [vmem:[%s202 + $0x6a8] sm:$0xff] %v629
                %v631 = vld [vmem:[%s201 + $0xd60] sm:$0xff]
                %632 = vst [vmem:[%s202 + $0x6b0] sm:$0xff] %v631
                %v633 = vld [vmem:[%s201 + $0xd70] sm:$0xff]
                %634 = vst [vmem:[%s202 + $0x6b8] sm:$0xff] %v633
                %v635 = vld [vmem:[%s201 + $0xd80] sm:$0xff]
                %636 = vst [vmem:[%s202 + $0x6c0] sm:$0xff] %v635
                %v637 = vld [vmem:[%s201 + $0xd90] sm:$0xff]
                %638 = vst [vmem:[%s202 + $0x6c8] sm:$0xff] %v637
                %v639 = vld [vmem:[%s201 + $0xda0] sm:$0xff]
                %640 = vst [vmem:[%s202 + $0x6d0] sm:$0xff] %v639
                %v641 = vld [vmem:[%s201 + $0xdb0] sm:$0xff]
                %642 = vst [vmem:[%s202 + $0x6d8] sm:$0xff] %v641
                %v643 = vld [vmem:[%s201 + $0xdc0] sm:$0xff]
                %644 = vst [vmem:[%s202 + $0x6e0] sm:$0xff] %v643
                %v645 = vld [vmem:[%s201 + $0xdd0] sm:$0xff]
                %646 = vst [vmem:[%s202 + $0x6e8] sm:$0xff] %v645
                %v647 = vld [vmem:[%s201 + $0xde0] sm:$0xff]
                %648 = vst [vmem:[%s202 + $0x6f0] sm:$0xff] %v647
                %v649 = vld [vmem:[%s201 + $0xdf0] sm:$0xff]
                %650 = vst [vmem:[%s202 + $0x6f8] sm:$0xff] %v649
                %v651 = vld [vmem:[%s201 + $0xe00] sm:$0xff]
                %652 = vst [vmem:[%s202 + $0x700] sm:$0xff] %v651
                %v653 = vld [vmem:[%s201 + $0xe10] sm:$0xff]
                %654 = vst [vmem:[%s202 + $0x708] sm:$0xff] %v653
                %v655 = vld [vmem:[%s201 + $0xe20] sm:$0xff]
                %656 = vst [vmem:[%s202 + $0x710] sm:$0xff] %v655
                %v657 = vld [vmem:[%s201 + $0xe30] sm:$0xff]
                %658 = vst [vmem:[%s202 + $0x718] sm:$0xff] %v657
                %v659 = vld [vmem:[%s201 + $0xe40] sm:$0xff]
                %660 = vst [vmem:[%s202 + $0x720] sm:$0xff] %v659
                %v661 = vld [vmem:[%s201 + $0xe50] sm:$0xff]
                %662 = vst [vmem:[%s202 + $0x728] sm:$0xff] %v661
                %v663 = vld [vmem:[%s201 + $0xe60] sm:$0xff]
                %664 = vst [vmem:[%s202 + $0x730] sm:$0xff] %v663
                %v665 = vld [vmem:[%s201 + $0xe70] sm:$0xff]
                %666 = vst [vmem:[%s202 + $0x738] sm:$0xff] %v665
                %v667 = vld [vmem:[%s201 + $0xe80] sm:$0xff]
                %668 = vst [vmem:[%s202 + $0x740] sm:$0xff] %v667
                %v669 = vld [vmem:[%s201 + $0xe90] sm:$0xff]
                %670 = vst [vmem:[%s202 + $0x748] sm:$0xff] %v669
                %v671 = vld [vmem:[%s201 + $0xea0] sm:$0xff]
                %672 = vst [vmem:[%s202 + $0x750] sm:$0xff] %v671
                %v673 = vld [vmem:[%s201 + $0xeb0] sm:$0xff]
                %674 = vst [vmem:[%s202 + $0x758] sm:$0xff] %v673
                %v675 = vld [vmem:[%s201 + $0xec0] sm:$0xff]
                %676 = vst [vmem:[%s202 + $0x760] sm:$0xff] %v675
                %v677 = vld [vmem:[%s201 + $0xed0] sm:$0xff]
                %678 = vst [vmem:[%s202 + $0x768] sm:$0xff] %v677
                %v679 = vld [vmem:[%s201 + $0xee0] sm:$0xff]
                %680 = vst [vmem:[%s202 + $0x770] sm:$0xff] %v679
                %v681 = vld [vmem:[%s201 + $0xef0] sm:$0xff]
                %682 = vst [vmem:[%s202 + $0x778] sm:$0xff] %v681
                %v683 = vld [vmem:[%s201 + $0xf00] sm:$0xff]
                %684 = vst [vmem:[%s202 + $0x780] sm:$0xff] %v683
                %v685 = vld [vmem:[%s201 + $0xf10] sm:$0xff]
                %686 = vst [vmem:[%s202 + $0x788] sm:$0xff] %v685
                %v687 = vld [vmem:[%s201 + $0xf20] sm:$0xff]
                %688 = vst [vmem:[%s202 + $0x790] sm:$0xff] %v687
                %v689 = vld [vmem:[%s201 + $0xf30] sm:$0xff]
                %690 = vst [vmem:[%s202 + $0x798] sm:$0xff] %v689
                %v691 = vld [vmem:[%s201 + $0xf40] sm:$0xff]
                %692 = vst [vmem:[%s202 + $0x7a0] sm:$0xff] %v691
                %v693 = vld [vmem:[%s201 + $0xf50] sm:$0xff]
                %694 = vst [vmem:[%s202 + $0x7a8] sm:$0xff] %v693
                %v695 = vld [vmem:[%s201 + $0xf60] sm:$0xff]
                %696 = vst [vmem:[%s202 + $0x7b0] sm:$0xff] %v695
                %v697 = vld [vmem:[%s201 + $0xf70] sm:$0xff]
                %698 = vst [vmem:[%s202 + $0x7b8] sm:$0xff] %v697
                %v699 = vld [vmem:[%s201 + $0xf80] sm:$0xff]
                %700 = vst [vmem:[%s202 + $0x7c0] sm:$0xff] %v699
                %v701 = vld [vmem:[%s201 + $0xf90] sm:$0xff]
                %702 = vst [vmem:[%s202 + $0x7c8] sm:$0xff] %v701
                %v703 = vld [vmem:[%s201 + $0xfa0] sm:$0xff]
                %704 = vst [vmem:[%s202 + $0x7d0] sm:$0xff] %v703
                %v705 = vld [vmem:[%s201 + $0xfb0] sm:$0xff]
                %706 = vst [vmem:[%s202 + $0x7d8] sm:$0xff] %v705
                %v707 = vld [vmem:[%s201 + $0xfc0] sm:$0xff]
                %708 = vst [vmem:[%s202 + $0x7e0] sm:$0xff] %v707
                %v709 = vld [vmem:[%s201 + $0xfd0] sm:$0xff]
                %710 = vst [vmem:[%s202 + $0x7e8] sm:$0xff] %v709
                %v711 = vld [vmem:[%s201 + $0xfe0] sm:$0xff]
                %712 = vst [vmem:[%s202 + $0x7f0] sm:$0xff] %v711
                %v713 = vld [vmem:[%s201 + $0xff0] sm:$0xff]
                %714 = vst [vmem:[%s202 + $0x7f8] sm:$0xff] %v713
                %v715 = vld [vmem:[%s201 + $0x1000] sm:$0xff]
                %716 = vst [vmem:[%s202 + $0x800] sm:$0xff] %v715
                %v717 = vld [vmem:[%s201 + $0x1010] sm:$0xff]
                %718 = vst [vmem:[%s202 + $0x808] sm:$0xff] %v717
                %v719 = vld [vmem:[%s201 + $0x1020] sm:$0xff]
                %720 = vst [vmem:[%s202 + $0x810] sm:$0xff] %v719
                %v721 = vld [vmem:[%s201 + $0x1030] sm:$0xff]
                %722 = vst [vmem:[%s202 + $0x818] sm:$0xff] %v721
                %v723 = vld [vmem:[%s201 + $0x1040] sm:$0xff]
                %724 = vst [vmem:[%s202 + $0x820] sm:$0xff] %v723
                %v725 = vld [vmem:[%s201 + $0x1050] sm:$0xff]
                %726 = vst [vmem:[%s202 + $0x828] sm:$0xff] %v725
                %v727 = vld [vmem:[%s201 + $0x1060] sm:$0xff]
                %728 = vst [vmem:[%s202 + $0x830] sm:$0xff] %v727
                %v729 = vld [vmem:[%s201 + $0x1070] sm:$0xff]
                %730 = vst [vmem:[%s202 + $0x838] sm:$0xff] %v729
                %v731 = vld [vmem:[%s201 + $0x1080] sm:$0xff]
                %732 = vst [vmem:[%s202 + $0x840] sm:$0xff] %v731
                %v733 = vld [vmem:[%s201 + $0x1090] sm:$0xff]
                %734 = vst [vmem:[%s202 + $0x848] sm:$0xff] %v733
                %v735 = vld [vmem:[%s201 + $0x10a0] sm:$0xff]
                %736 = vst [vmem:[%s202 + $0x850] sm:$0xff] %v735
                %v737 = vld [vmem:[%s201 + $0x10b0] sm:$0xff]
                %738 = vst [vmem:[%s202 + $0x858] sm:$0xff] %v737
                %v739 = vld [vmem:[%s201 + $0x10c0] sm:$0xff]
                %740 = vst [vmem:[%s202 + $0x860] sm:$0xff] %v739
                %v741 = vld [vmem:[%s201 + $0x10d0] sm:$0xff]
                %742 = vst [vmem:[%s202 + $0x868] sm:$0xff] %v741
                %v743 = vld [vmem:[%s201 + $0x10e0] sm:$0xff]
                %744 = vst [vmem:[%s202 + $0x870] sm:$0xff] %v743
                %v745 = vld [vmem:[%s201 + $0x10f0] sm:$0xff]
                %746 = vst [vmem:[%s202 + $0x878] sm:$0xff] %v745
                %v747 = vld [vmem:[%s201 + $0x1100] sm:$0xff]
                %748 = vst [vmem:[%s202 + $0x880] sm:$0xff] %v747
                %v749 = vld [vmem:[%s201 + $0x1110] sm:$0xff]
                %750 = vst [vmem:[%s202 + $0x888] sm:$0xff] %v749
                %v751 = vld [vmem:[%s201 + $0x1120] sm:$0xff]
                %752 = vst [vmem:[%s202 + $0x890] sm:$0xff] %v751
                %v753 = vld [vmem:[%s201 + $0x1130] sm:$0xff]
                %754 = vst [vmem:[%s202 + $0x898] sm:$0xff] %v753
                %v755 = vld [vmem:[%s201 + $0x1140] sm:$0xff]
                %756 = vst [vmem:[%s202 + $0x8a0] sm:$0xff] %v755
                %v757 = vld [vmem:[%s201 + $0x1150] sm:$0xff]
                %758 = vst [vmem:[%s202 + $0x8a8] sm:$0xff] %v757
                %v759 = vld [vmem:[%s201 + $0x1160] sm:$0xff]
                %760 = vst [vmem:[%s202 + $0x8b0] sm:$0xff] %v759
                %v761 = vld [vmem:[%s201 + $0x1170] sm:$0xff]
                %762 = vst [vmem:[%s202 + $0x8b8] sm:$0xff] %v761
                %v763 = vld [vmem:[%s201 + $0x1180] sm:$0xff]
                %764 = vst [vmem:[%s202 + $0x8c0] sm:$0xff] %v763
                %v765 = vld [vmem:[%s201 + $0x1190] sm:$0xff]
                %766 = vst [vmem:[%s202 + $0x8c8] sm:$0xff] %v765
                %v767 = vld [vmem:[%s201 + $0x11a0] sm:$0xff]
                %768 = vst [vmem:[%s202 + $0x8d0] sm:$0xff] %v767
                %v769 = vld [vmem:[%s201 + $0x11b0] sm:$0xff]
                %770 = vst [vmem:[%s202 + $0x8d8] sm:$0xff] %v769
                %v771 = vld [vmem:[%s201 + $0x11c0] sm:$0xff]
                %772 = vst [vmem:[%s202 + $0x8e0] sm:$0xff] %v771
                %v773 = vld [vmem:[%s201 + $0x11d0] sm:$0xff]
                %774 = vst [vmem:[%s202 + $0x8e8] sm:$0xff] %v773
                %v775 = vld [vmem:[%s201 + $0x11e0] sm:$0xff]
                %776 = vst [vmem:[%s202 + $0x8f0] sm:$0xff] %v775
                %v777 = vld [vmem:[%s201 + $0x11f0] sm:$0xff]
                %778 = vst [vmem:[%s202 + $0x8f8] sm:$0xff] %v777
              $region45: #{shiftnet_forward.3} parent=39 // loop_footer
                %s200 = sadd.s32 1, %s196
              $region46: #{shiftnet_forward.3} parent=39 // loop_footer_branch
                %195 = sbr.rel target = $region42
              $region47: #{shiftnet_forward.3} parent=39 // loop_exit
                _
            $region40: #{shiftnet_forward.3} parent=31 // pred_fallthru
              _
          $region32: #{shiftnet_forward.3} parent=27 // pred_fallthru
            _
          %1367 = vnop
        $region28: #{shiftnet_forward.3} parent=23 // pred_fallthru
          _
        // Predicated region
        $region63: #{shiftnet_forward.3} parent=23 // pred_check
          %p1368 = pneg %p79
        $region64: #{shiftnet_forward.3} parent=23 // pred_check_branch
          %1370 = sbr.rel (%p1368) target = $region66
        $region65: #{shiftnet_forward.3} parent=23 // pred_region
          %s1371 = smul.u32 2, %s12
          %p1372 = scmp.lt.s32.totalorder %s1371, 3
          %s1373 = scalar_select %p1372, %s1371, 3
          %s1374 = scalar_lea.vmem %s2, %s1373
          %s1375 = smul.u32 2, %s12
        $region66: #{shiftnet_forward.3} parent=23 // pred_fallthru
          _
        // Predicated region
        $region67: #{shiftnet_forward.3} parent=23 // pred_check
          %p1376 = pneg %p105
        $region68: #{shiftnet_forward.3} parent=23 // pred_check_branch
          %1378 = sbr.rel (%p1376) target = $region70
        $region69: #{shiftnet_forward.3} parent=23 // pred_region
          %s1379 = smul.u32 32, %s12
          %p1380 = scmp.lt.s32.totalorder %s1379, 63
          %s1381 = scalar_select %p1380, %s1379, 63
          %s1382 = smul.addr %s1381, 8
          %s1383 = scalar_lea.vmem %s3, %s1382
          %s1384 = smul.u32 32, %s12
        $region70: #{shiftnet_forward.3} parent=23 // pred_fallthru
          _
      $region24: #{shiftnet_forward.3} parent=5 // pred_fallthru
        _
      %p1385 = scmp.le.s32.totalorder 1, %s12
      %p1386 = scmp.lt.s32.totalorder %s12, 3
      %p1387 = pnand %p1385, %p1386
      %p1388 = pneg %p1387
      // Predicated region
      $region71: #{shiftnet_forward.3} parent=5 // pred_check
        _
      $region72: #{shiftnet_forward.3} parent=5 // pred_check_branch
        %1390 = sbr.rel (%p1387) target = $region74
      $region73: #{shiftnet_forward.3} parent=5 // pred_region
        %s1391 = ssub.s32 %s12, 1
        %s1392 = sand.u32 %s46, 1
        %s1393 = sand.u32 %s46, 1
        %s1394 = smul.addr %s1393, 2304
        %s1395 = scalar_lea.vmem [#allocation4], %s1394
        // Predicated region
        $region75: #{shiftnet_forward.3} parent=73 // pred_check
          %p1396 = pneg %p59
        $region76: #{shiftnet_forward.3} parent=73 // pred_check_branch
          %1398 = sbr.rel (%p1396) target = $region78
        $region77: #{shiftnet_forward.3} parent=73 // pred_region
          _
        $region78: #{shiftnet_forward.3} parent=73 // pred_fallthru
          _
        %p1399 = pneg %p33
        %p1400 = pneg %p30
        %s1401 = sand.u32 %s46, 1
        %s1402 = sand.u32 %s46, 1
        %s1403 = smul.addr %s1402, 2304
        %s1404 = scalar_lea.vmem [#allocation4], %s1403
        %p1405 = pneg %p59
        %p1406 = pneg %p56
        %s1407 = smul.u32 2, %s17
        %p1408 = scmp.lt.s32.totalorder %s1407, 3
        %s1409 = scalar_select %p1408, %s1407, 3
        %s1410 = scalar_lea.vmem %s2, %s1409
        %p1411 = pneg %p85
        %p1412 = pneg %p82
        %s1413 = smul.u32 32, %s17
        %p1414 = scmp.lt.s32.totalorder %s1413, 63
        %s1415 = scalar_select %p1414, %s1413, 63
        %s1416 = smul.addr %s1415, 8
        %s1417 = scalar_lea.vmem %s3, %s1416
        %p1418 = pneg %p111
        %p1419 = pneg %p108
        %p1420 = pneg %p132
        %p1421 = pneg %p129
        %p1422 = pneg %p153
        %p1423 = pneg %p150
        %s1424 = smul.u32 2, %s17
        %s1425 = smul.u32 2, %s17
        %p1426 = scmp.lt.s32.totalorder %s1425, 3
        %s1427 = scalar_select %p1426, %s1425, 3
        %s1428 = scalar_lea.vmem %s2, %s1427
        %s1429 = smul.u32 2, %s17
        %s1430 = smul.u32 32, %s17
        %p1431 = scmp.lt.s32.totalorder %s1430, 63
        %s1432 = scalar_select %p1431, %s1430, 63
        %s1433 = smul.addr %s1432, 8
        %s1434 = scalar_lea.vmem %s3, %s1433
        %s1435 = smul.u32 32, %s17
        %p1436 = scmp.eq.s32.totalorder %s17, 0
        // Predicated region
        $region79: #{shiftnet_forward.3} parent=73 // pred_check
          %p1437 = pneg %p1436
        $region80: #{shiftnet_forward.3} parent=73 // pred_check_branch
          %1439 = sbr.rel (%p1437) target = $region82
        $region81: #{shiftnet_forward.3} parent=73 // pred_region
          %v1440 = vld [vmem:[%s0] sm:$0xff]
          %v1441 = vld [vmem:[%s0 + $0x8] sm:$0xff]
          %v1442 = vld [vmem:[%s0 + $0x10] sm:$0xff]
          %v1443 = vld [vmem:[%s0 + $0x18] sm:$0xff]
          %v1444 = vld [vmem:[%s0 + $0x20] sm:$0xf]
          %s1445 = scalar_lea.vmem %s0, 36
          %v1446 = vld [vmem:[%s1445] sm:$0xff]
          %v1447 = vld [vmem:[%s1445 + $0x8] sm:$0xff]
          %v1448 = vld [vmem:[%s1445 + $0x10] sm:$0xff]
          %v1449 = vld [vmem:[%s1445 + $0x18] sm:$0xff]
          %v1450 = vld [vmem:[%s1445 + $0x20] sm:$0xf]
          %v1451 = vmax.f32 %v1440, %v1446
          %v1452 = vmax.f32 %v1441, %v1447
          %v1453 = vmax.f32 %v1442, %v1448
          %v1454 = vmax.f32 %v1443, %v1449
          %v1455 = vmax.f32 %v1444, %v1450
          %s1456 = scalar_lea.vmem %s0, 72
          %v1457 = vld [vmem:[%s1456] sm:$0xff]
          %v1458 = vld [vmem:[%s1456 + $0x8] sm:$0xff]
          %v1459 = vld [vmem:[%s1456 + $0x10] sm:$0xff]
          %v1460 = vld [vmem:[%s1456 + $0x18] sm:$0xff]
          %v1461 = vld [vmem:[%s1456 + $0x20] sm:$0xf]
          %s1462 = scalar_lea.vmem %s0, 108
          %v1463 = vld [vmem:[%s1462] sm:$0xff]
          %v1464 = vld [vmem:[%s1462 + $0x8] sm:$0xff]
          %v1465 = vld [vmem:[%s1462 + $0x10] sm:$0xff]
          %v1466 = vld [vmem:[%s1462 + $0x18] sm:$0xff]
          %v1467 = vld [vmem:[%s1462 + $0x20] sm:$0xf]
          %v1468 = vmax.f32 %v1457, %v1463
          %v1469 = vmax.f32 %v1458, %v1464
          %v1470 = vmax.f32 %v1459, %v1465
          %v1471 = vmax.f32 %v1460, %v1466
          %v1472 = vmax.f32 %v1461, %v1467
          %v1473 = vmax.f32 %v1451, %v1468
          %v1474 = vmax.f32 %v1452, %v1469
          %v1475 = vmax.f32 %v1453, %v1470
          %v1476 = vmax.f32 %v1454, %v1471
          %v1477 = vmax.f32 %v1455, %v1472
          %v1483 = vcombine.high %v1473, %v1473
          %v1485 = vunpack.c.l.s4 1983009808
          %v1486 = vunpack.c.0.s8 %v1485
          %v1487 = vlaneseq
          %v1488 = vshrl.u32 %v1487, 7
          %v1489 = vsub.s32 %v1486, %v1488
          %v1490 = vrot.slane %v1473, %v1489
          %v1492 = vunpack.c.l.s4 1983009808
          %v1493 = vunpack.c.0.s8 %v1492
          %v1494 = vlaneseq
          %v1495 = vshrl.u32 %v1494, 7
          %v1496 = vsub.s32 %v1493, %v1495
          %v1497 = vrot.slane %v1483, %v1496
          %v1498 = vcombine.high %v1490, %v1490
          %v1499 = vcombine.high %v1497, %v1497
          %v1500 = vcombine.high %v1474, %v1474
          %v1502 = vunpack.c.l.s4 1983009808
          %v1503 = vunpack.c.0.s8 %v1502
          %v1504 = vlaneseq
          %v1505 = vshrl.u32 %v1504, 7
          %v1506 = vsub.s32 %v1503, %v1505
          %v1507 = vrot.slane %v1474, %v1506
          %v1509 = vunpack.c.l.s4 1983009808
          %v1510 = vunpack.c.0.s8 %v1509
          %v1511 = vlaneseq
          %v1512 = vshrl.u32 %v1511, 7
          %v1513 = vsub.s32 %v1510, %v1512
          %v1514 = vrot.slane %v1500, %v1513
          %v1515 = vcombine.high %v1507, %v1507
          %v1516 = vcombine.high %v1514, %v1514
          %v1517 = vcombine.high %v1475, %v1475
          %v1519 = vunpack.c.l.s4 1983009808
          %v1520 = vunpack.c.0.s8 %v1519
          %v1521 = vlaneseq
          %v1522 = vshrl.u32 %v1521, 7
          %v1523 = vsub.s32 %v1520, %v1522
          %v1524 = vrot.slane %v1475, %v1523
          %v1526 = vunpack.c.l.s4 1983009808
          %v1527 = vunpack.c.0.s8 %v1526
          %v1528 = vlaneseq
          %v1529 = vshrl.u32 %v1528, 7
          %v1530 = vsub.s32 %v1527, %v1529
          %v1531 = vrot.slane %v1517, %v1530
          %v1532 = vcombine.high %v1524, %v1524
          %v1533 = vcombine.high %v1531, %v1531
          %v1534 = vcombine.high %v1476, %v1476
          %v1536 = vunpack.c.l.s4 1983009808
          %v1537 = vunpack.c.0.s8 %v1536
          %v1538 = vlaneseq
          %v1539 = vshrl.u32 %v1538, 7
          %v1540 = vsub.s32 %v1537, %v1539
          %v1541 = vrot.slane %v1476, %v1540
          %v1543 = vunpack.c.l.s4 1983009808
          %v1544 = vunpack.c.0.s8 %v1543
          %v1545 = vlaneseq
          %v1546 = vshrl.u32 %v1545, 7
          %v1547 = vsub.s32 %v1544, %v1546
          %v1548 = vrot.slane %v1534, %v1547
          %v1549 = vcombine.high %v1541, %v1541
          %v1550 = vcombine.high %v1548, %v1548
          %v1552 = vunpack.c.l.s4 1983009808
          %v1553 = vunpack.c.0.s8 %v1552
          %v1554 = vlaneseq
          %v1555 = vshrl.u32 %v1554, 7
          %v1556 = vsub.s32 %v1553, %v1555
          %v1557 = vrot.slane %v1477, %v1556
          %v1558 = vcombine.high %v1557, %v1557
          %v1577 = vpack.c.bf16 %v1490, %v1490
          %v1578 = vpack.c.bf16 %v1498, %v1498
          %v1579 = vpack.c.bf16 %v1497, %v1497
          %v1580 = vpack.c.bf16 %v1499, %v1499
          %v1581 = vpack.c.bf16 %v1507, %v1507
          %v1582 = vpack.c.bf16 %v1515, %v1515
          %v1583 = vpack.c.bf16 %v1514, %v1514
          %v1584 = vpack.c.bf16 %v1516, %v1516
          %v1585 = vpack.c.bf16 %v1524, %v1524
          %v1586 = vpack.c.bf16 %v1532, %v1532
          %v1587 = vpack.c.bf16 %v1531, %v1531
          %v1588 = vpack.c.bf16 %v1533, %v1533
          %v1589 = vpack.c.bf16 %v1541, %v1541
          %v1590 = vpack.c.bf16 %v1549, %v1549
          %v1591 = vpack.c.bf16 %v1548, %v1548
          %v1592 = vpack.c.bf16 %v1550, %v1550
          %v1593 = vpack.c.bf16 %v1557, %v1557
          %v1594 = vpack.c.bf16 %v1558, %v1558
          %v1613 = vcombine.low %v1577, %v1578
          %v1614 = vcombine.low %v1579, %v1580
          %v1615 = vcombine.low %v1581, %v1582
          %v1616 = vcombine.low %v1583, %v1584
          %v1618 = vunpack.c.l.s4 1966171168
          %v1619 = vunpack.c.0.s8 %v1618
          %v1620 = vlaneseq
          %v1621 = vshrl.u32 %v1620, 7
          %v1622 = vsub.s32 %v1619, %v1621
          %v1623 = vrot.slane %v1613, %v1622
          %v1625 = vunpack.c.l.s4 1966171168
          %v1626 = vunpack.c.0.s8 %v1625
          %v1627 = vlaneseq
          %v1628 = vshrl.u32 %v1627, 7
          %v1629 = vsub.s32 %v1626, %v1628
          %v1630 = vrot.slane %v1614, %v1629
          %v1632 = vunpack.c.l.s4 1966171168
          %v1633 = vunpack.c.0.s8 %v1632
          %v1634 = vlaneseq
          %v1635 = vshrl.u32 %v1634, 7
          %v1636 = vsub.s32 %v1633, %v1635
          %v1637 = vrot.slane %v1615, %v1636
          %v1639 = vunpack.c.l.s4 1966171168
          %v1640 = vunpack.c.0.s8 %v1639
          %v1641 = vlaneseq
          %v1642 = vshrl.u32 %v1641, 7
          %v1643 = vsub.s32 %v1640, %v1642
          %v1644 = vrot.slane %v1616, %v1643
          %v1645 = vcombine.low %v1623, %v1630
          %v1646 = vcombine.low %v1637, %v1644
          %v1648 = vunpack.c.l.s4 1966171168
          %v1649 = vunpack.c.0.s8 %v1648
          %v1650 = vlaneseq
          %v1651 = vshrl.u32 %v1650, 7
          %v1652 = vsub.s32 %v1649, %v1651
          %v1653 = vrot.slane %v1645, %v1652
          %v1655 = vunpack.c.l.s4 1966171168
          %v1656 = vunpack.c.0.s8 %v1655
          %v1657 = vlaneseq
          %v1658 = vshrl.u32 %v1657, 7
          %v1659 = vsub.s32 %v1656, %v1658
          %v1660 = vrot.slane %v1646, %v1659
          %v1661 = vcombine.low %v1653, %v1660
          %v1662 = vcombine.low %v1585, %v1586
          %v1663 = vcombine.low %v1587, %v1588
          %v1664 = vcombine.low %v1589, %v1590
          %v1665 = vcombine.low %v1591, %v1592
          %v1667 = vunpack.c.l.s4 1966171168
          %v1668 = vunpack.c.0.s8 %v1667
          %v1669 = vlaneseq
          %v1670 = vshrl.u32 %v1669, 7
          %v1671 = vsub.s32 %v1668, %v1670
          %v1672 = vrot.slane %v1662, %v1671
          %v1674 = vunpack.c.l.s4 1966171168
          %v1675 = vunpack.c.0.s8 %v1674
          %v1676 = vlaneseq
          %v1677 = vshrl.u32 %v1676, 7
          %v1678 = vsub.s32 %v1675, %v1677
          %v1679 = vrot.slane %v1663, %v1678
          %v1681 = vunpack.c.l.s4 1966171168
          %v1682 = vunpack.c.0.s8 %v1681
          %v1683 = vlaneseq
          %v1684 = vshrl.u32 %v1683, 7
          %v1685 = vsub.s32 %v1682, %v1684
          %v1686 = vrot.slane %v1664, %v1685
          %v1688 = vunpack.c.l.s4 1966171168
          %v1689 = vunpack.c.0.s8 %v1688
          %v1690 = vlaneseq
          %v1691 = vshrl.u32 %v1690, 7
          %v1692 = vsub.s32 %v1689, %v1691
          %v1693 = vrot.slane %v1665, %v1692
          %v1694 = vcombine.low %v1672, %v1679
          %v1695 = vcombine.low %v1686, %v1693
          %v1697 = vunpack.c.l.s4 1966171168
          %v1698 = vunpack.c.0.s8 %v1697
          %v1699 = vlaneseq
          %v1700 = vshrl.u32 %v1699, 7
          %v1701 = vsub.s32 %v1698, %v1700
          %v1702 = vrot.slane %v1694, %v1701
          %v1704 = vunpack.c.l.s4 1966171168
          %v1705 = vunpack.c.0.s8 %v1704
          %v1706 = vlaneseq
          %v1707 = vshrl.u32 %v1706, 7
          %v1708 = vsub.s32 %v1705, %v1707
          %v1709 = vrot.slane %v1695, %v1708
          %v1710 = vcombine.low %v1702, %v1709
          %v1711 = vcombine.low %v1593, %v1594
          %v1713 = vunpack.c.l.s4 1966171168
          %v1714 = vunpack.c.0.s8 %v1713
          %v1715 = vlaneseq
          %v1716 = vshrl.u32 %v1715, 7
          %v1717 = vsub.s32 %v1714, %v1716
          %v1718 = vrot.slane %v1711, %v1717
          %v1720 = vunpack.c.l.s4 1966171168
          %v1721 = vunpack.c.0.s8 %v1720
          %v1722 = vlaneseq
          %v1723 = vshrl.u32 %v1722, 7
          %v1724 = vsub.s32 %v1721, %v1723
          %v1725 = vrot.slane %v1718, %v1724
          %1729 = vst [vmem:[#allocation2] sm:$0xff] %v1661
          %1730 = vst [vmem:[#allocation2 + $0x8] sm:$0xff] %v1710
          %1731 = vst [vmem:[#allocation2 + $0x10] sm:$0x3] %v1725
          %vm1732 = vcmask 74752
          %1733 = vst.msk [vmem:[#allocation3] sm:$0x3] %vm1732, 0.0
        $region82: #{shiftnet_forward.3} parent=73 // pred_fallthru
          _
        %v1734 = vld [vmem:[#allocation2] sm:$0xff]
        %v1735 = vld [vmem:[#allocation2 + $0x8] sm:$0xff]
        %v1736 = vld [vmem:[#allocation2 + $0x10] sm:$0x3]
        %v1737 = vld [vmem:[%s1395] sm:$0xff]
        %v1738 = vld [vmem:[%s1395 + $0x8] sm:$0xff]
        %v1739 = vld [vmem:[%s1395 + $0x10] sm:$0xff]
        %v1740 = vld [vmem:[%s1395 + $0x18] sm:$0xff]
        %v1741 = vld [vmem:[%s1395 + $0x20] sm:$0xff]
        %v1742 = vld [vmem:[%s1395 + $0x28] sm:$0xff]
        %v1743 = vld [vmem:[%s1395 + $0x30] sm:$0xff]
        %v1744 = vld [vmem:[%s1395 + $0x38] sm:$0xff]
        %v1745 = vld [vmem:[%s1395 + $0x40] sm:$0xff]
        %v1746 = vld [vmem:[%s1395 + $0x48] sm:$0xff]
        %v1747 = vld [vmem:[%s1395 + $0x50] sm:$0xff]
        %v1748 = vld [vmem:[%s1395 + $0x58] sm:$0xff]
        %v1749 = vld [vmem:[%s1395 + $0x60] sm:$0xff]
        %v1750 = vld [vmem:[%s1395 + $0x68] sm:$0xff]
        %v1751 = vld [vmem:[%s1395 + $0x70] sm:$0xff]
        %v1752 = vld [vmem:[%s1395 + $0x78] sm:$0xff]
        %v1753 = vld [vmem:[%s1395 + $0x80] sm:$0xff]
        %v1754 = vld [vmem:[%s1395 + $0x88] sm:$0xff]
        %v1755 = vld [vmem:[%s1395 + $0x90] sm:$0xff]
        %v1756 = vld [vmem:[%s1395 + $0x98] sm:$0xff]
        %v1757 = vld [vmem:[%s1395 + $0xa0] sm:$0xff]
        %v1758 = vld [vmem:[%s1395 + $0xa8] sm:$0xff]
        %v1759 = vld [vmem:[%s1395 + $0xb0] sm:$0xff]
        %v1760 = vld [vmem:[%s1395 + $0xb8] sm:$0xff]
        %v1761 = vld [vmem:[%s1395 + $0xc0] sm:$0xff]
        %v1762 = vld [vmem:[%s1395 + $0xc8] sm:$0xff]
        %v1763 = vld [vmem:[%s1395 + $0xd0] sm:$0xff]
        %v1764 = vld [vmem:[%s1395 + $0xd8] sm:$0xff]
        %v1765 = vld [vmem:[%s1395 + $0xe0] sm:$0xff]
        %v1766 = vld [vmem:[%s1395 + $0xe8] sm:$0xff]
        %v1767 = vld [vmem:[%s1395 + $0xf0] sm:$0xff]
        %v1768 = vld [vmem:[%s1395 + $0xf8] sm:$0xff]
        %v1769 = vld [vmem:[%s1395 + $0x100] sm:$0xff]
        %v1770 = vld [vmem:[%s1395 + $0x108] sm:$0xff]
        %v1771 = vld [vmem:[%s1395 + $0x110] sm:$0xff]
        %v1772 = vld [vmem:[%s1395 + $0x118] sm:$0xff]
        %v1773 = vld [vmem:[%s1395 + $0x120] sm:$0xff]
        %v1774 = vld [vmem:[%s1395 + $0x128] sm:$0xff]
        %v1775 = vld [vmem:[%s1395 + $0x130] sm:$0xff]
        %v1776 = vld [vmem:[%s1395 + $0x138] sm:$0xff]
        %v1777 = vld [vmem:[%s1395 + $0x140] sm:$0xff]
        %v1778 = vld [vmem:[%s1395 + $0x148] sm:$0xff]
        %v1779 = vld [vmem:[%s1395 + $0x150] sm:$0xff]
        %v1780 = vld [vmem:[%s1395 + $0x158] sm:$0xff]
        %v1781 = vld [vmem:[%s1395 + $0x160] sm:$0xff]
        %v1782 = vld [vmem:[%s1395 + $0x168] sm:$0xff]
        %v1783 = vld [vmem:[%s1395 + $0x170] sm:$0xff]
        %v1784 = vld [vmem:[%s1395 + $0x178] sm:$0xff]
        %v1785 = vld [vmem:[%s1395 + $0x180] sm:$0xff]
        %v1786 = vld [vmem:[%s1395 + $0x188] sm:$0xff]
        %v1787 = vld [vmem:[%s1395 + $0x190] sm:$0xff]
        %v1788 = vld [vmem:[%s1395 + $0x198] sm:$0xff]
        %v1789 = vld [vmem:[%s1395 + $0x1a0] sm:$0xff]
        %v1790 = vld [vmem:[%s1395 + $0x1a8] sm:$0xff]
        %v1791 = vld [vmem:[%s1395 + $0x1b0] sm:$0xff]
        %v1792 = vld [vmem:[%s1395 + $0x1b8] sm:$0xff]
        %v1793 = vld [vmem:[%s1395 + $0x1c0] sm:$0xff]
        %v1794 = vld [vmem:[%s1395 + $0x1c8] sm:$0xff]
        %v1795 = vld [vmem:[%s1395 + $0x1d0] sm:$0xff]
        %v1796 = vld [vmem:[%s1395 + $0x1d8] sm:$0xff]
        %v1797 = vld [vmem:[%s1395 + $0x1e0] sm:$0xff]
        %v1798 = vld [vmem:[%s1395 + $0x1e8] sm:$0xff]
        %v1799 = vld [vmem:[%s1395 + $0x1f0] sm:$0xff]
        %v1800 = vld [vmem:[%s1395 + $0x1f8] sm:$0xff]
        %v1801 = vld [vmem:[%s1395 + $0x200] sm:$0xff]
        %v1802 = vld [vmem:[%s1395 + $0x208] sm:$0xff]
        %v1803 = vld [vmem:[%s1395 + $0x210] sm:$0xff]
        %v1804 = vld [vmem:[%s1395 + $0x218] sm:$0xff]
        %v1805 = vld [vmem:[%s1395 + $0x220] sm:$0xff]
        %v1806 = vld [vmem:[%s1395 + $0x228] sm:$0xff]
        %v1807 = vld [vmem:[%s1395 + $0x230] sm:$0xff]
        %v1808 = vld [vmem:[%s1395 + $0x238] sm:$0xff]
        %v1809 = vld [vmem:[%s1395 + $0x240] sm:$0xff]
        %v1810 = vld [vmem:[%s1395 + $0x248] sm:$0xff]
        %v1811 = vld [vmem:[%s1395 + $0x250] sm:$0xff]
        %v1812 = vld [vmem:[%s1395 + $0x258] sm:$0xff]
        %v1813 = vld [vmem:[%s1395 + $0x260] sm:$0xff]
        %v1814 = vld [vmem:[%s1395 + $0x268] sm:$0xff]
        %v1815 = vld [vmem:[%s1395 + $0x270] sm:$0xff]
        %v1816 = vld [vmem:[%s1395 + $0x278] sm:$0xff]
        %v1817 = vld [vmem:[%s1395 + $0x280] sm:$0xff]
        %v1818 = vld [vmem:[%s1395 + $0x288] sm:$0xff]
        %v1819 = vld [vmem:[%s1395 + $0x290] sm:$0xff]
        %v1820 = vld [vmem:[%s1395 + $0x298] sm:$0xff]
        %v1821 = vld [vmem:[%s1395 + $0x2a0] sm:$0xff]
        %v1822 = vld [vmem:[%s1395 + $0x2a8] sm:$0xff]
        %v1823 = vld [vmem:[%s1395 + $0x2b0] sm:$0xff]
        %v1824 = vld [vmem:[%s1395 + $0x2b8] sm:$0xff]
        %v1825 = vld [vmem:[%s1395 + $0x2c0] sm:$0xff]
        %v1826 = vld [vmem:[%s1395 + $0x2c8] sm:$0xff]
        %v1827 = vld [vmem:[%s1395 + $0x2d0] sm:$0xff]
        %v1828 = vld [vmem:[%s1395 + $0x2d8] sm:$0xff]
        %v1829 = vld [vmem:[%s1395 + $0x2e0] sm:$0xff]
        %v1830 = vld [vmem:[%s1395 + $0x2e8] sm:$0xff]
        %v1831 = vld [vmem:[%s1395 + $0x2f0] sm:$0xff]
        %v1832 = vld [vmem:[%s1395 + $0x2f8] sm:$0xff]
        %v1833 = vld [vmem:[%s1395 + $0x300] sm:$0xff]
        %v1834 = vld [vmem:[%s1395 + $0x308] sm:$0xff]
        %v1835 = vld [vmem:[%s1395 + $0x310] sm:$0xff]
        %v1836 = vld [vmem:[%s1395 + $0x318] sm:$0xff]
        %v1837 = vld [vmem:[%s1395 + $0x320] sm:$0xff]
        %v1838 = vld [vmem:[%s1395 + $0x328] sm:$0xff]
        %v1839 = vld [vmem:[%s1395 + $0x330] sm:$0xff]
        %v1840 = vld [vmem:[%s1395 + $0x338] sm:$0xff]
        %v1841 = vld [vmem:[%s1395 + $0x340] sm:$0xff]
        %v1842 = vld [vmem:[%s1395 + $0x348] sm:$0xff]
        %v1843 = vld [vmem:[%s1395 + $0x350] sm:$0xff]
        %v1844 = vld [vmem:[%s1395 + $0x358] sm:$0xff]
        %v1845 = vld [vmem:[%s1395 + $0x360] sm:$0xff]
        %v1846 = vld [vmem:[%s1395 + $0x368] sm:$0xff]
        %v1847 = vld [vmem:[%s1395 + $0x370] sm:$0xff]
        %v1848 = vld [vmem:[%s1395 + $0x378] sm:$0xff]
        %v1849 = vld [vmem:[%s1395 + $0x380] sm:$0xff]
        %v1850 = vld [vmem:[%s1395 + $0x388] sm:$0xff]
        %v1851 = vld [vmem:[%s1395 + $0x390] sm:$0xff]
        %v1852 = vld [vmem:[%s1395 + $0x398] sm:$0xff]
        %v1853 = vld [vmem:[%s1395 + $0x3a0] sm:$0xff]
        %v1854 = vld [vmem:[%s1395 + $0x3a8] sm:$0xff]
        %v1855 = vld [vmem:[%s1395 + $0x3b0] sm:$0xff]
        %v1856 = vld [vmem:[%s1395 + $0x3b8] sm:$0xff]
        %v1857 = vld [vmem:[%s1395 + $0x3c0] sm:$0xff]
        %v1858 = vld [vmem:[%s1395 + $0x3c8] sm:$0xff]
        %v1859 = vld [vmem:[%s1395 + $0x3d0] sm:$0xff]
        %v1860 = vld [vmem:[%s1395 + $0x3d8] sm:$0xff]
        %v1861 = vld [vmem:[%s1395 + $0x3e0] sm:$0xff]
        %v1862 = vld [vmem:[%s1395 + $0x3e8] sm:$0xff]
        %v1863 = vld [vmem:[%s1395 + $0x3f0] sm:$0xff]
        %v1864 = vld [vmem:[%s1395 + $0x3f8] sm:$0xff]
        %v1865 = vld [vmem:[%s1395 + $0x400] sm:$0xff]
        %v1866 = vld [vmem:[%s1395 + $0x408] sm:$0xff]
        %v1867 = vld [vmem:[%s1395 + $0x410] sm:$0xff]
        %v1868 = vld [vmem:[%s1395 + $0x418] sm:$0xff]
        %v1869 = vld [vmem:[%s1395 + $0x420] sm:$0xff]
        %v1870 = vld [vmem:[%s1395 + $0x428] sm:$0xff]
        %v1871 = vld [vmem:[%s1395 + $0x430] sm:$0xff]
        %v1872 = vld [vmem:[%s1395 + $0x438] sm:$0xff]
        %v1873 = vld [vmem:[%s1395 + $0x440] sm:$0xff]
        %v1874 = vld [vmem:[%s1395 + $0x448] sm:$0xff]
        %v1875 = vld [vmem:[%s1395 + $0x450] sm:$0xff]
        %v1876 = vld [vmem:[%s1395 + $0x458] sm:$0xff]
        %v1877 = vld [vmem:[%s1395 + $0x460] sm:$0xff]
        %v1878 = vld [vmem:[%s1395 + $0x468] sm:$0xff]
        %v1879 = vld [vmem:[%s1395 + $0x470] sm:$0xff]
        %v1880 = vld [vmem:[%s1395 + $0x478] sm:$0xff]
        %v1881 = vld [vmem:[%s1395 + $0x480] sm:$0xff]
        %v1882 = vld [vmem:[%s1395 + $0x488] sm:$0xff]
        %v1883 = vld [vmem:[%s1395 + $0x490] sm:$0xff]
        %v1884 = vld [vmem:[%s1395 + $0x498] sm:$0xff]
        %v1885 = vld [vmem:[%s1395 + $0x4a0] sm:$0xff]
        %v1886 = vld [vmem:[%s1395 + $0x4a8] sm:$0xff]
        %v1887 = vld [vmem:[%s1395 + $0x4b0] sm:$0xff]
        %v1888 = vld [vmem:[%s1395 + $0x4b8] sm:$0xff]
        %v1889 = vld [vmem:[%s1395 + $0x4c0] sm:$0xff]
        %v1890 = vld [vmem:[%s1395 + $0x4c8] sm:$0xff]
        %v1891 = vld [vmem:[%s1395 + $0x4d0] sm:$0xff]
        %v1892 = vld [vmem:[%s1395 + $0x4d8] sm:$0xff]
        %v1893 = vld [vmem:[%s1395 + $0x4e0] sm:$0xff]
        %v1894 = vld [vmem:[%s1395 + $0x4e8] sm:$0xff]
        %v1895 = vld [vmem:[%s1395 + $0x4f0] sm:$0xff]
        %v1896 = vld [vmem:[%s1395 + $0x4f8] sm:$0xff]
        %v1897 = vld [vmem:[%s1395 + $0x500] sm:$0xff]
        %v1898 = vld [vmem:[%s1395 + $0x508] sm:$0xff]
        %v1899 = vld [vmem:[%s1395 + $0x510] sm:$0xff]
        %v1900 = vld [vmem:[%s1395 + $0x518] sm:$0xff]
        %v1901 = vld [vmem:[%s1395 + $0x520] sm:$0xff]
        %v1902 = vld [vmem:[%s1395 + $0x528] sm:$0xff]
        %v1903 = vld [vmem:[%s1395 + $0x530] sm:$0xff]
        %v1904 = vld [vmem:[%s1395 + $0x538] sm:$0xff]
        %v1905 = vld [vmem:[%s1395 + $0x540] sm:$0xff]
        %v1906 = vld [vmem:[%s1395 + $0x548] sm:$0xff]
        %v1907 = vld [vmem:[%s1395 + $0x550] sm:$0xff]
        %v1908 = vld [vmem:[%s1395 + $0x558] sm:$0xff]
        %v1909 = vld [vmem:[%s1395 + $0x560] sm:$0xff]
        %v1910 = vld [vmem:[%s1395 + $0x568] sm:$0xff]
        %v1911 = vld [vmem:[%s1395 + $0x570] sm:$0xff]
        %v1912 = vld [vmem:[%s1395 + $0x578] sm:$0xff]
        %v1913 = vld [vmem:[%s1395 + $0x580] sm:$0xff]
        %v1914 = vld [vmem:[%s1395 + $0x588] sm:$0xff]
        %v1915 = vld [vmem:[%s1395 + $0x590] sm:$0xff]
        %v1916 = vld [vmem:[%s1395 + $0x598] sm:$0xff]
        %v1917 = vld [vmem:[%s1395 + $0x5a0] sm:$0xff]
        %v1918 = vld [vmem:[%s1395 + $0x5a8] sm:$0xff]
        %v1919 = vld [vmem:[%s1395 + $0x5b0] sm:$0xff]
        %v1920 = vld [vmem:[%s1395 + $0x5b8] sm:$0xff]
        %v1921 = vld [vmem:[%s1395 + $0x5c0] sm:$0xff]
        %v1922 = vld [vmem:[%s1395 + $0x5c8] sm:$0xff]
        %v1923 = vld [vmem:[%s1395 + $0x5d0] sm:$0xff]
        %v1924 = vld [vmem:[%s1395 + $0x5d8] sm:$0xff]
        %v1925 = vld [vmem:[%s1395 + $0x5e0] sm:$0xff]
        %v1926 = vld [vmem:[%s1395 + $0x5e8] sm:$0xff]
        %v1927 = vld [vmem:[%s1395 + $0x5f0] sm:$0xff]
        %v1928 = vld [vmem:[%s1395 + $0x5f8] sm:$0xff]
        %v1929 = vld [vmem:[%s1395 + $0x600] sm:$0xff]
        %v1930 = vld [vmem:[%s1395 + $0x608] sm:$0xff]
        %v1931 = vld [vmem:[%s1395 + $0x610] sm:$0xff]
        %v1932 = vld [vmem:[%s1395 + $0x618] sm:$0xff]
        %v1933 = vld [vmem:[%s1395 + $0x620] sm:$0xff]
        %v1934 = vld [vmem:[%s1395 + $0x628] sm:$0xff]
        %v1935 = vld [vmem:[%s1395 + $0x630] sm:$0xff]
        %v1936 = vld [vmem:[%s1395 + $0x638] sm:$0xff]
        %v1937 = vld [vmem:[%s1395 + $0x640] sm:$0xff]
        %v1938 = vld [vmem:[%s1395 + $0x648] sm:$0xff]
        %v1939 = vld [vmem:[%s1395 + $0x650] sm:$0xff]
        %v1940 = vld [vmem:[%s1395 + $0x658] sm:$0xff]
        %v1941 = vld [vmem:[%s1395 + $0x660] sm:$0xff]
        %v1942 = vld [vmem:[%s1395 + $0x668] sm:$0xff]
        %v1943 = vld [vmem:[%s1395 + $0x670] sm:$0xff]
        %v1944 = vld [vmem:[%s1395 + $0x678] sm:$0xff]
        %v1945 = vld [vmem:[%s1395 + $0x680] sm:$0xff]
        %v1946 = vld [vmem:[%s1395 + $0x688] sm:$0xff]
        %v1947 = vld [vmem:[%s1395 + $0x690] sm:$0xff]
        %v1948 = vld [vmem:[%s1395 + $0x698] sm:$0xff]
        %v1949 = vld [vmem:[%s1395 + $0x6a0] sm:$0xff]
        %v1950 = vld [vmem:[%s1395 + $0x6a8] sm:$0xff]
        %v1951 = vld [vmem:[%s1395 + $0x6b0] sm:$0xff]
        %v1952 = vld [vmem:[%s1395 + $0x6b8] sm:$0xff]
        %v1953 = vld [vmem:[%s1395 + $0x6c0] sm:$0xff]
        %v1954 = vld [vmem:[%s1395 + $0x6c8] sm:$0xff]
        %v1955 = vld [vmem:[%s1395 + $0x6d0] sm:$0xff]
        %v1956 = vld [vmem:[%s1395 + $0x6d8] sm:$0xff]
        %v1957 = vld [vmem:[%s1395 + $0x6e0] sm:$0xff]
        %v1958 = vld [vmem:[%s1395 + $0x6e8] sm:$0xff]
        %v1959 = vld [vmem:[%s1395 + $0x6f0] sm:$0xff]
        %v1960 = vld [vmem:[%s1395 + $0x6f8] sm:$0xff]
        %v1961 = vld [vmem:[%s1395 + $0x700] sm:$0xff]
        %v1962 = vld [vmem:[%s1395 + $0x708] sm:$0xff]
        %v1963 = vld [vmem:[%s1395 + $0x710] sm:$0xff]
        %v1964 = vld [vmem:[%s1395 + $0x718] sm:$0xff]
        %v1965 = vld [vmem:[%s1395 + $0x720] sm:$0xff]
        %v1966 = vld [vmem:[%s1395 + $0x728] sm:$0xff]
        %v1967 = vld [vmem:[%s1395 + $0x730] sm:$0xff]
        %v1968 = vld [vmem:[%s1395 + $0x738] sm:$0xff]
        %v1969 = vld [vmem:[%s1395 + $0x740] sm:$0xff]
        %v1970 = vld [vmem:[%s1395 + $0x748] sm:$0xff]
        %v1971 = vld [vmem:[%s1395 + $0x750] sm:$0xff]
        %v1972 = vld [vmem:[%s1395 + $0x758] sm:$0xff]
        %v1973 = vld [vmem:[%s1395 + $0x760] sm:$0xff]
        %v1974 = vld [vmem:[%s1395 + $0x768] sm:$0xff]
        %v1975 = vld [vmem:[%s1395 + $0x770] sm:$0xff]
        %v1976 = vld [vmem:[%s1395 + $0x778] sm:$0xff]
        %v1977 = vld [vmem:[%s1395 + $0x780] sm:$0xff]
        %v1978 = vld [vmem:[%s1395 + $0x788] sm:$0xff]
        %v1979 = vld [vmem:[%s1395 + $0x790] sm:$0xff]
        %v1980 = vld [vmem:[%s1395 + $0x798] sm:$0xff]
        %v1981 = vld [vmem:[%s1395 + $0x7a0] sm:$0xff]
        %v1982 = vld [vmem:[%s1395 + $0x7a8] sm:$0xff]
        %v1983 = vld [vmem:[%s1395 + $0x7b0] sm:$0xff]
        %v1984 = vld [vmem:[%s1395 + $0x7b8] sm:$0xff]
        %v1985 = vld [vmem:[%s1395 + $0x7c0] sm:$0xff]
        %v1986 = vld [vmem:[%s1395 + $0x7c8] sm:$0xff]
        %v1987 = vld [vmem:[%s1395 + $0x7d0] sm:$0xff]
        %v1988 = vld [vmem:[%s1395 + $0x7d8] sm:$0xff]
        %v1989 = vld [vmem:[%s1395 + $0x7e0] sm:$0xff]
        %v1990 = vld [vmem:[%s1395 + $0x7e8] sm:$0xff]
        %v1991 = vld [vmem:[%s1395 + $0x7f0] sm:$0xff]
        %v1992 = vld [vmem:[%s1395 + $0x7f8] sm:$0xff]
        %v1993 = vld [vmem:[%s1395 + $0x800] sm:$0xff]
        %v1994 = vld [vmem:[%s1395 + $0x808] sm:$0xff]
        %v1995 = vld [vmem:[%s1395 + $0x810] sm:$0xff]
        %v1996 = vld [vmem:[%s1395 + $0x818] sm:$0xff]
        %v1997 = vld [vmem:[%s1395 + $0x820] sm:$0xff]
        %v1998 = vld [vmem:[%s1395 + $0x828] sm:$0xff]
        %v1999 = vld [vmem:[%s1395 + $0x830] sm:$0xff]
        %v2000 = vld [vmem:[%s1395 + $0x838] sm:$0xff]
        %v2001 = vld [vmem:[%s1395 + $0x840] sm:$0xff]
        %v2002 = vld [vmem:[%s1395 + $0x848] sm:$0xff]
        %v2003 = vld [vmem:[%s1395 + $0x850] sm:$0xff]
        %v2004 = vld [vmem:[%s1395 + $0x858] sm:$0xff]
        %v2005 = vld [vmem:[%s1395 + $0x860] sm:$0xff]
        %v2006 = vld [vmem:[%s1395 + $0x868] sm:$0xff]
        %v2007 = vld [vmem:[%s1395 + $0x870] sm:$0xff]
        %v2008 = vld [vmem:[%s1395 + $0x878] sm:$0xff]
        %v2009 = vld [vmem:[%s1395 + $0x880] sm:$0xff]
        %v2010 = vld [vmem:[%s1395 + $0x888] sm:$0xff]
        %v2011 = vld [vmem:[%s1395 + $0x890] sm:$0xff]
        %v2012 = vld [vmem:[%s1395 + $0x898] sm:$0xff]
        %v2013 = vld [vmem:[%s1395 + $0x8a0] sm:$0xff]
        %v2014 = vld [vmem:[%s1395 + $0x8a8] sm:$0xff]
        %v2015 = vld [vmem:[%s1395 + $0x8b0] sm:$0xff]
        %v2016 = vld [vmem:[%s1395 + $0x8b8] sm:$0xff]
        %v2017 = vld [vmem:[%s1395 + $0x8c0] sm:$0xff]
        %v2018 = vld [vmem:[%s1395 + $0x8c8] sm:$0xff]
        %v2019 = vld [vmem:[%s1395 + $0x8d0] sm:$0xff]
        %v2020 = vld [vmem:[%s1395 + $0x8d8] sm:$0xff]
        %v2021 = vld [vmem:[%s1395 + $0x8e0] sm:$0xff]
        %v2022 = vld [vmem:[%s1395 + $0x8e8] sm:$0xff]
        %v2023 = vld [vmem:[%s1395 + $0x8f0] sm:$0xff]
        %v2024 = vld [vmem:[%s1395 + $0x8f8] sm:$0xff]
        %v2025 = vld [vmem:[%s1428] sm:$0x3]
        %v2027 = vlaneseq
        %v2028 = vshrl.u32 %v2027, 7
        %v2029 = vsub.s32 0, %v2028
        %v2030 = vrot.slane %v2025, %v2029
        %v2031 = vlaneseq
        %v2032 = vshrl.u32 %v2031, 7
        %v2033 = vsub.s32 1, %v2032
        %v2034 = vrot.slane %v2025, %v2033
        %v2040 = vcombine.high %v1734, %v1734
        %v2042 = vunpack.c.l.s4 1966171168
        %v2043 = vunpack.c.0.s8 %v2042
        %v2044 = vlaneseq
        %v2045 = vshrl.u32 %v2044, 7
        %v2046 = vsub.s32 %v2043, %v2045
        %v2047 = vrot.slane %v1734, %v2046
        %v2049 = vunpack.c.l.s4 1966171168
        %v2050 = vunpack.c.0.s8 %v2049
        %v2051 = vlaneseq
        %v2052 = vshrl.u32 %v2051, 7
        %v2053 = vsub.s32 %v2050, %v2052
        %v2054 = vrot.slane %v2040, %v2053
        %v2055 = vcombine.high %v2047, %v2047
        %v2056 = vcombine.high %v2054, %v2054
        %v2058 = vunpack.c.l.s4 1966171168
        %v2059 = vunpack.c.0.s8 %v2058
        %v2060 = vlaneseq
        %v2061 = vshrl.u32 %v2060, 7
        %v2062 = vsub.s32 %v2059, %v2061
        %v2063 = vrot.slane %v2047, %v2062
        %v2065 = vunpack.c.l.s4 1966171168
        %v2066 = vunpack.c.0.s8 %v2065
        %v2067 = vlaneseq
        %v2068 = vshrl.u32 %v2067, 7
        %v2069 = vsub.s32 %v2066, %v2068
        %v2070 = vrot.slane %v2054, %v2069
        %v2072 = vunpack.c.l.s4 1966171168
        %v2073 = vunpack.c.0.s8 %v2072
        %v2074 = vlaneseq
        %v2075 = vshrl.u32 %v2074, 7
        %v2076 = vsub.s32 %v2073, %v2075
        %v2077 = vrot.slane %v2055, %v2076
        %v2079 = vunpack.c.l.s4 1966171168
        %v2080 = vunpack.c.0.s8 %v2079
        %v2081 = vlaneseq
        %v2082 = vshrl.u32 %v2081, 7
        %v2083 = vsub.s32 %v2080, %v2082
        %v2084 = vrot.slane %v2056, %v2083
        %v2085 = vcombine.high %v2063, %v2063
        %v2086 = vcombine.high %v2070, %v2070
        %v2087 = vcombine.high %v2077, %v2077
        %v2088 = vcombine.high %v2084, %v2084
        %v2089 = vcombine.high %v1735, %v1735
        %v2091 = vunpack.c.l.s4 1966171168
        %v2092 = vunpack.c.0.s8 %v2091
        %v2093 = vlaneseq
        %v2094 = vshrl.u32 %v2093, 7
        %v2095 = vsub.s32 %v2092, %v2094
        %v2096 = vrot.slane %v1735, %v2095
        %v2098 = vunpack.c.l.s4 1966171168
        %v2099 = vunpack.c.0.s8 %v2098
        %v2100 = vlaneseq
        %v2101 = vshrl.u32 %v2100, 7
        %v2102 = vsub.s32 %v2099, %v2101
        %v2103 = vrot.slane %v2089, %v2102
        %v2104 = vcombine.high %v2096, %v2096
        %v2105 = vcombine.high %v2103, %v2103
        %v2107 = vunpack.c.l.s4 1966171168
        %v2108 = vunpack.c.0.s8 %v2107
        %v2109 = vlaneseq
        %v2110 = vshrl.u32 %v2109, 7
        %v2111 = vsub.s32 %v2108, %v2110
        %v2112 = vrot.slane %v2096, %v2111
        %v2114 = vunpack.c.l.s4 1966171168
        %v2115 = vunpack.c.0.s8 %v2114
        %v2116 = vlaneseq
        %v2117 = vshrl.u32 %v2116, 7
        %v2118 = vsub.s32 %v2115, %v2117
        %v2119 = vrot.slane %v2103, %v2118
        %v2121 = vunpack.c.l.s4 1966171168
        %v2122 = vunpack.c.0.s8 %v2121
        %v2123 = vlaneseq
        %v2124 = vshrl.u32 %v2123, 7
        %v2125 = vsub.s32 %v2122, %v2124
        %v2126 = vrot.slane %v2104, %v2125
        %v2128 = vunpack.c.l.s4 1966171168
        %v2129 = vunpack.c.0.s8 %v2128
        %v2130 = vlaneseq
        %v2131 = vshrl.u32 %v2130, 7
        %v2132 = vsub.s32 %v2129, %v2131
        %v2133 = vrot.slane %v2105, %v2132
        %v2134 = vcombine.high %v2112, %v2112
        %v2135 = vcombine.high %v2119, %v2119
        %v2136 = vcombine.high %v2126, %v2126
        %v2137 = vcombine.high %v2133, %v2133
        %v2139 = vunpack.c.l.s4 1966171168
        %v2140 = vunpack.c.0.s8 %v2139
        %v2141 = vlaneseq
        %v2142 = vshrl.u32 %v2141, 7
        %v2143 = vsub.s32 %v2140, %v2142
        %v2144 = vrot.slane %v1736, %v2143
        %v2145 = vcombine.high %v2144, %v2144
        %v2147 = vunpack.c.l.s4 1966171168
        %v2148 = vunpack.c.0.s8 %v2147
        %v2149 = vlaneseq
        %v2150 = vshrl.u32 %v2149, 7
        %v2151 = vsub.s32 %v2148, %v2150
        %v2152 = vrot.slane %v2144, %v2151
        %v2154 = vunpack.c.l.s4 1966171168
        %v2155 = vunpack.c.0.s8 %v2154
        %v2156 = vlaneseq
        %v2157 = vshrl.u32 %v2156, 7
        %v2158 = vsub.s32 %v2155, %v2157
        %v2159 = vrot.slane %v2145, %v2158
        %v2466 = vunpack.c.l.b16 %v1737
        %v2467 = vunpack.c.h.b16 %v1737
        %v2468 = vunpack.c.l.b16 %v1738
        %v2469 = vunpack.c.h.b16 %v1738
        %v2470 = vunpack.c.l.b16 %v1739
        %v2471 = vunpack.c.h.b16 %v1739
        %v2472 = vunpack.c.l.b16 %v1740
        %v2473 = vunpack.c.h.b16 %v1740
        %v2474 = vunpack.c.l.b16 %v1741
        %v2475 = vunpack.c.h.b16 %v1741
        %v2476 = vunpack.c.l.b16 %v1742
        %v2477 = vunpack.c.h.b16 %v1742
        %v2478 = vunpack.c.l.b16 %v1743
        %v2479 = vunpack.c.h.b16 %v1743
        %v2480 = vunpack.c.l.b16 %v1744
        %v2481 = vunpack.c.h.b16 %v1744
        %v2482 = vunpack.c.l.b16 %v1745
        %v2483 = vunpack.c.h.b16 %v1745
        %v2484 = vunpack.c.l.b16 %v1746
        %v2485 = vunpack.c.h.b16 %v1746
        %v2486 = vunpack.c.l.b16 %v1747
        %v2487 = vunpack.c.h.b16 %v1747
        %v2488 = vunpack.c.l.b16 %v1748
        %v2489 = vunpack.c.h.b16 %v1748
        %v2490 = vunpack.c.l.b16 %v1749
        %v2491 = vunpack.c.h.b16 %v1749
        %v2492 = vunpack.c.l.b16 %v1750
        %v2493 = vunpack.c.h.b16 %v1750
        %v2494 = vunpack.c.l.b16 %v1751
        %v2495 = vunpack.c.h.b16 %v1751
        %v2496 = vunpack.c.l.b16 %v1752
        %v2497 = vunpack.c.h.b16 %v1752
        %v2498 = vunpack.c.l.b16 %v1753
        %v2499 = vunpack.c.h.b16 %v1753
        %v2500 = vunpack.c.l.b16 %v1754
        %v2501 = vunpack.c.h.b16 %v1754
        %v2502 = vunpack.c.l.b16 %v1755
        %v2503 = vunpack.c.h.b16 %v1755
        %v2504 = vunpack.c.l.b16 %v1756
        %v2505 = vunpack.c.h.b16 %v1756
        %v2506 = vunpack.c.l.b16 %v1757
        %v2507 = vunpack.c.h.b16 %v1757
        %v2508 = vunpack.c.l.b16 %v1758
        %v2509 = vunpack.c.h.b16 %v1758
        %v2510 = vunpack.c.l.b16 %v1759
        %v2511 = vunpack.c.h.b16 %v1759
        %v2512 = vunpack.c.l.b16 %v1760
        %v2513 = vunpack.c.h.b16 %v1760
        %v2514 = vunpack.c.l.b16 %v1761
        %v2515 = vunpack.c.h.b16 %v1761
        %v2516 = vunpack.c.l.b16 %v1762
        %v2517 = vunpack.c.h.b16 %v1762
        %v2518 = vunpack.c.l.b16 %v1763
        %v2519 = vunpack.c.h.b16 %v1763
        %v2520 = vunpack.c.l.b16 %v1764
        %v2521 = vunpack.c.h.b16 %v1764
        %v2522 = vunpack.c.l.b16 %v1765
        %v2523 = vunpack.c.h.b16 %v1765
        %v2524 = vunpack.c.l.b16 %v1766
        %v2525 = vunpack.c.h.b16 %v1766
        %v2526 = vunpack.c.l.b16 %v1767
        %v2527 = vunpack.c.h.b16 %v1767
        %v2528 = vunpack.c.l.b16 %v1768
        %v2529 = vunpack.c.h.b16 %v1768
        %v2530 = vunpack.c.l.b16 %v1769
        %v2531 = vunpack.c.h.b16 %v1769
        %v2532 = vunpack.c.l.b16 %v1770
        %v2533 = vunpack.c.h.b16 %v1770
        %v2534 = vunpack.c.l.b16 %v1771
        %v2535 = vunpack.c.h.b16 %v1771
        %v2536 = vunpack.c.l.b16 %v1772
        %v2537 = vunpack.c.h.b16 %v1772
        %v2538 = vunpack.c.l.b16 %v1773
        %v2539 = vunpack.c.h.b16 %v1773
        %v2540 = vunpack.c.l.b16 %v1774
        %v2541 = vunpack.c.h.b16 %v1774
        %v2542 = vunpack.c.l.b16 %v1775
        %v2543 = vunpack.c.h.b16 %v1775
        %v2544 = vunpack.c.l.b16 %v1776
        %v2545 = vunpack.c.h.b16 %v1776
        %v2546 = vunpack.c.l.b16 %v1777
        %v2547 = vunpack.c.h.b16 %v1777
        %v2548 = vunpack.c.l.b16 %v1778
        %v2549 = vunpack.c.h.b16 %v1778
        %v2550 = vunpack.c.l.b16 %v1779
        %v2551 = vunpack.c.h.b16 %v1779
        %v2552 = vunpack.c.l.b16 %v1780
        %v2553 = vunpack.c.h.b16 %v1780
        %v2554 = vunpack.c.l.b16 %v1781
        %v2555 = vunpack.c.h.b16 %v1781
        %v2556 = vunpack.c.l.b16 %v1782
        %v2557 = vunpack.c.h.b16 %v1782
        %v2558 = vunpack.c.l.b16 %v1783
        %v2559 = vunpack.c.h.b16 %v1783
        %v2560 = vunpack.c.l.b16 %v1784
        %v2561 = vunpack.c.h.b16 %v1784
        %v2562 = vunpack.c.l.b16 %v1785
        %v2563 = vunpack.c.h.b16 %v1785
        %v2564 = vunpack.c.l.b16 %v1786
        %v2565 = vunpack.c.h.b16 %v1786
        %v2566 = vunpack.c.l.b16 %v1787
        %v2567 = vunpack.c.h.b16 %v1787
        %v2568 = vunpack.c.l.b16 %v1788
        %v2569 = vunpack.c.h.b16 %v1788
        %v2570 = vunpack.c.l.b16 %v1789
        %v2571 = vunpack.c.h.b16 %v1789
        %v2572 = vunpack.c.l.b16 %v1790
        %v2573 = vunpack.c.h.b16 %v1790
        %v2574 = vunpack.c.l.b16 %v1791
        %v2575 = vunpack.c.h.b16 %v1791
        %v2576 = vunpack.c.l.b16 %v1792
        %v2577 = vunpack.c.h.b16 %v1792
        %v2578 = vunpack.c.l.b16 %v1793
        %v2579 = vunpack.c.h.b16 %v1793
        %v2580 = vunpack.c.l.b16 %v1794
        %v2581 = vunpack.c.h.b16 %v1794
        %v2582 = vunpack.c.l.b16 %v1795
        %v2583 = vunpack.c.h.b16 %v1795
        %v2584 = vunpack.c.l.b16 %v1796
        %v2585 = vunpack.c.h.b16 %v1796
        %v2586 = vunpack.c.l.b16 %v1797
        %v2587 = vunpack.c.h.b16 %v1797
        %v2588 = vunpack.c.l.b16 %v1798
        %v2589 = vunpack.c.h.b16 %v1798
        %v2590 = vunpack.c.l.b16 %v1799
        %v2591 = vunpack.c.h.b16 %v1799
        %v2592 = vunpack.c.l.b16 %v1800
        %v2593 = vunpack.c.h.b16 %v1800
        %v2594 = vunpack.c.l.b16 %v1801
        %v2595 = vunpack.c.h.b16 %v1801
        %v2596 = vunpack.c.l.b16 %v1802
        %v2597 = vunpack.c.h.b16 %v1802
        %v2598 = vunpack.c.l.b16 %v1803
        %v2599 = vunpack.c.h.b16 %v1803
        %v2600 = vunpack.c.l.b16 %v1804
        %v2601 = vunpack.c.h.b16 %v1804
        %v2602 = vunpack.c.l.b16 %v1805
        %v2603 = vunpack.c.h.b16 %v1805
        %v2604 = vunpack.c.l.b16 %v1806
        %v2605 = vunpack.c.h.b16 %v1806
        %v2606 = vunpack.c.l.b16 %v1807
        %v2607 = vunpack.c.h.b16 %v1807
        %v2608 = vunpack.c.l.b16 %v1808
        %v2609 = vunpack.c.h.b16 %v1808
        %v2610 = vunpack.c.l.b16 %v1809
        %v2611 = vunpack.c.h.b16 %v1809
        %v2612 = vunpack.c.l.b16 %v1810
        %v2613 = vunpack.c.h.b16 %v1810
        %v2614 = vunpack.c.l.b16 %v1811
        %v2615 = vunpack.c.h.b16 %v1811
        %v2616 = vunpack.c.l.b16 %v1812
        %v2617 = vunpack.c.h.b16 %v1812
        %v2618 = vunpack.c.l.b16 %v1813
        %v2619 = vunpack.c.h.b16 %v1813
        %v2620 = vunpack.c.l.b16 %v1814
        %v2621 = vunpack.c.h.b16 %v1814
        %v2622 = vunpack.c.l.b16 %v1815
        %v2623 = vunpack.c.h.b16 %v1815
        %v2624 = vunpack.c.l.b16 %v1816
        %v2625 = vunpack.c.h.b16 %v1816
        %v2626 = vunpack.c.l.b16 %v1817
        %v2627 = vunpack.c.h.b16 %v1817
        %v2628 = vunpack.c.l.b16 %v1818
        %v2629 = vunpack.c.h.b16 %v1818
        %v2630 = vunpack.c.l.b16 %v1819
        %v2631 = vunpack.c.h.b16 %v1819
        %v2632 = vunpack.c.l.b16 %v1820
        %v2633 = vunpack.c.h.b16 %v1820
        %v2634 = vunpack.c.l.b16 %v1821
        %v2635 = vunpack.c.h.b16 %v1821
        %v2636 = vunpack.c.l.b16 %v1822
        %v2637 = vunpack.c.h.b16 %v1822
        %v2638 = vunpack.c.l.b16 %v1823
        %v2639 = vunpack.c.h.b16 %v1823
        %v2640 = vunpack.c.l.b16 %v1824
        %v2641 = vunpack.c.h.b16 %v1824
        %v2642 = vunpack.c.l.b16 %v1825
        %v2643 = vunpack.c.h.b16 %v1825
        %v2644 = vunpack.c.l.b16 %v1826
        %v2645 = vunpack.c.h.b16 %v1826
        %v2646 = vunpack.c.l.b16 %v1827
        %v2647 = vunpack.c.h.b16 %v1827
        %v2648 = vunpack.c.l.b16 %v1828
        %v2649 = vunpack.c.h.b16 %v1828
        %v2650 = vunpack.c.l.b16 %v1829
        %v2651 = vunpack.c.h.b16 %v1829
        %v2652 = vunpack.c.l.b16 %v1830
        %v2653 = vunpack.c.h.b16 %v1830
        %v2654 = vunpack.c.l.b16 %v1831
        %v2655 = vunpack.c.h.b16 %v1831
        %v2656 = vunpack.c.l.b16 %v1832
        %v2657 = vunpack.c.h.b16 %v1832
        %v2658 = vunpack.c.l.b16 %v1833
        %v2659 = vunpack.c.h.b16 %v1833
        %v2660 = vunpack.c.l.b16 %v1834
        %v2661 = vunpack.c.h.b16 %v1834
        %v2662 = vunpack.c.l.b16 %v1835
        %v2663 = vunpack.c.h.b16 %v1835
        %v2664 = vunpack.c.l.b16 %v1836
        %v2665 = vunpack.c.h.b16 %v1836
        %v2666 = vunpack.c.l.b16 %v1837
        %v2667 = vunpack.c.h.b16 %v1837
        %v2668 = vunpack.c.l.b16 %v1838
        %v2669 = vunpack.c.h.b16 %v1838
        %v2670 = vunpack.c.l.b16 %v1839
        %v2671 = vunpack.c.h.b16 %v1839
        %v2672 = vunpack.c.l.b16 %v1840
        %v2673 = vunpack.c.h.b16 %v1840
        %v2674 = vunpack.c.l.b16 %v1841
        %v2675 = vunpack.c.h.b16 %v1841
        %v2676 = vunpack.c.l.b16 %v1842
        %v2677 = vunpack.c.h.b16 %v1842
        %v2678 = vunpack.c.l.b16 %v1843
        %v2679 = vunpack.c.h.b16 %v1843
        %v2680 = vunpack.c.l.b16 %v1844
        %v2681 = vunpack.c.h.b16 %v1844
        %v2682 = vunpack.c.l.b16 %v1845
        %v2683 = vunpack.c.h.b16 %v1845
        %v2684 = vunpack.c.l.b16 %v1846
        %v2685 = vunpack.c.h.b16 %v1846
        %v2686 = vunpack.c.l.b16 %v1847
        %v2687 = vunpack.c.h.b16 %v1847
        %v2688 = vunpack.c.l.b16 %v1848
        %v2689 = vunpack.c.h.b16 %v1848
        %v2690 = vunpack.c.l.b16 %v1849
        %v2691 = vunpack.c.h.b16 %v1849
        %v2692 = vunpack.c.l.b16 %v1850
        %v2693 = vunpack.c.h.b16 %v1850
        %v2694 = vunpack.c.l.b16 %v1851
        %v2695 = vunpack.c.h.b16 %v1851
        %v2696 = vunpack.c.l.b16 %v1852
        %v2697 = vunpack.c.h.b16 %v1852
        %v2698 = vunpack.c.l.b16 %v1853
        %v2699 = vunpack.c.h.b16 %v1853
        %v2700 = vunpack.c.l.b16 %v1854
        %v2701 = vunpack.c.h.b16 %v1854
        %v2702 = vunpack.c.l.b16 %v1855
        %v2703 = vunpack.c.h.b16 %v1855
        %v2704 = vunpack.c.l.b16 %v1856
        %v2705 = vunpack.c.h.b16 %v1856
        %v2706 = vunpack.c.l.b16 %v1857
        %v2707 = vunpack.c.h.b16 %v1857
        %v2708 = vunpack.c.l.b16 %v1858
        %v2709 = vunpack.c.h.b16 %v1858
        %v2710 = vunpack.c.l.b16 %v1859
        %v2711 = vunpack.c.h.b16 %v1859
        %v2712 = vunpack.c.l.b16 %v1860
        %v2713 = vunpack.c.h.b16 %v1860
        %v2714 = vunpack.c.l.b16 %v1861
        %v2715 = vunpack.c.h.b16 %v1861
        %v2716 = vunpack.c.l.b16 %v1862
        %v2717 = vunpack.c.h.b16 %v1862
        %v2718 = vunpack.c.l.b16 %v1863
        %v2719 = vunpack.c.h.b16 %v1863
        %v2720 = vunpack.c.l.b16 %v1864
        %v2721 = vunpack.c.h.b16 %v1864
        %v2722 = vunpack.c.l.b16 %v1865
        %v2723 = vunpack.c.h.b16 %v1865
        %v2724 = vunpack.c.l.b16 %v1866
        %v2725 = vunpack.c.h.b16 %v1866
        %v2726 = vunpack.c.l.b16 %v1867
        %v2727 = vunpack.c.h.b16 %v1867
        %v2728 = vunpack.c.l.b16 %v1868
        %v2729 = vunpack.c.h.b16 %v1868
        %v2730 = vunpack.c.l.b16 %v1869
        %v2731 = vunpack.c.h.b16 %v1869
        %v2732 = vunpack.c.l.b16 %v1870
        %v2733 = vunpack.c.h.b16 %v1870
        %v2734 = vunpack.c.l.b16 %v1871
        %v2735 = vunpack.c.h.b16 %v1871
        %v2736 = vunpack.c.l.b16 %v1872
        %v2737 = vunpack.c.h.b16 %v1872
        %v2738 = vunpack.c.l.b16 %v1873
        %v2739 = vunpack.c.h.b16 %v1873
        %v2740 = vunpack.c.l.b16 %v1874
        %v2741 = vunpack.c.h.b16 %v1874
        %v2742 = vunpack.c.l.b16 %v1875
        %v2743 = vunpack.c.h.b16 %v1875
        %v2744 = vunpack.c.l.b16 %v1876
        %v2745 = vunpack.c.h.b16 %v1876
        %v2746 = vunpack.c.l.b16 %v1877
        %v2747 = vunpack.c.h.b16 %v1877
        %v2748 = vunpack.c.l.b16 %v1878
        %v2749 = vunpack.c.h.b16 %v1878
        %v2750 = vunpack.c.l.b16 %v1879
        %v2751 = vunpack.c.h.b16 %v1879
        %v2752 = vunpack.c.l.b16 %v1880
        %v2753 = vunpack.c.h.b16 %v1880
        %v2754 = vunpack.c.l.b16 %v1881
        %v2755 = vunpack.c.h.b16 %v1881
        %v2756 = vunpack.c.l.b16 %v1882
        %v2757 = vunpack.c.h.b16 %v1882
        %v2758 = vunpack.c.l.b16 %v1883
        %v2759 = vunpack.c.h.b16 %v1883
        %v2760 = vunpack.c.l.b16 %v1884
        %v2761 = vunpack.c.h.b16 %v1884
        %v2762 = vunpack.c.l.b16 %v1885
        %v2763 = vunpack.c.h.b16 %v1885
        %v2764 = vunpack.c.l.b16 %v1886
        %v2765 = vunpack.c.h.b16 %v1886
        %v2766 = vunpack.c.l.b16 %v1887
        %v2767 = vunpack.c.h.b16 %v1887
        %v2768 = vunpack.c.l.b16 %v1888
        %v2769 = vunpack.c.h.b16 %v1888
        %v2770 = vunpack.c.l.b16 %v1889
        %v2771 = vunpack.c.h.b16 %v1889
        %v2772 = vunpack.c.l.b16 %v1890
        %v2773 = vunpack.c.h.b16 %v1890
        %v2774 = vunpack.c.l.b16 %v1891
        %v2775 = vunpack.c.h.b16 %v1891
        %v2776 = vunpack.c.l.b16 %v1892
        %v2777 = vunpack.c.h.b16 %v1892
        %v2778 = vunpack.c.l.b16 %v1893
        %v2779 = vunpack.c.h.b16 %v1893
        %v2780 = vunpack.c.l.b16 %v1894
        %v2781 = vunpack.c.h.b16 %v1894
        %v2782 = vunpack.c.l.b16 %v1895
        %v2783 = vunpack.c.h.b16 %v1895
        %v2784 = vunpack.c.l.b16 %v1896
        %v2785 = vunpack.c.h.b16 %v1896
        %v2786 = vunpack.c.l.b16 %v1897
        %v2787 = vunpack.c.h.b16 %v1897
        %v2788 = vunpack.c.l.b16 %v1898
        %v2789 = vunpack.c.h.b16 %v1898
        %v2790 = vunpack.c.l.b16 %v1899
        %v2791 = vunpack.c.h.b16 %v1899
        %v2792 = vunpack.c.l.b16 %v1900
        %v2793 = vunpack.c.h.b16 %v1900
        %v2794 = vunpack.c.l.b16 %v1901
        %v2795 = vunpack.c.h.b16 %v1901
        %v2796 = vunpack.c.l.b16 %v1902
        %v2797 = vunpack.c.h.b16 %v1902
        %v2798 = vunpack.c.l.b16 %v1903
        %v2799 = vunpack.c.h.b16 %v1903
        %v2800 = vunpack.c.l.b16 %v1904
        %v2801 = vunpack.c.h.b16 %v1904
        %v2802 = vunpack.c.l.b16 %v1905
        %v2803 = vunpack.c.h.b16 %v1905
        %v2804 = vunpack.c.l.b16 %v1906
        %v2805 = vunpack.c.h.b16 %v1906
        %v2806 = vunpack.c.l.b16 %v1907
        %v2807 = vunpack.c.h.b16 %v1907
        %v2808 = vunpack.c.l.b16 %v1908
        %v2809 = vunpack.c.h.b16 %v1908
        %v2810 = vunpack.c.l.b16 %v1909
        %v2811 = vunpack.c.h.b16 %v1909
        %v2812 = vunpack.c.l.b16 %v1910
        %v2813 = vunpack.c.h.b16 %v1910
        %v2814 = vunpack.c.l.b16 %v1911
        %v2815 = vunpack.c.h.b16 %v1911
        %v2816 = vunpack.c.l.b16 %v1912
        %v2817 = vunpack.c.h.b16 %v1912
        %v2818 = vunpack.c.l.b16 %v1913
        %v2819 = vunpack.c.h.b16 %v1913
        %v2820 = vunpack.c.l.b16 %v1914
        %v2821 = vunpack.c.h.b16 %v1914
        %v2822 = vunpack.c.l.b16 %v1915
        %v2823 = vunpack.c.h.b16 %v1915
        %v2824 = vunpack.c.l.b16 %v1916
        %v2825 = vunpack.c.h.b16 %v1916
        %v2826 = vunpack.c.l.b16 %v1917
        %v2827 = vunpack.c.h.b16 %v1917
        %v2828 = vunpack.c.l.b16 %v1918
        %v2829 = vunpack.c.h.b16 %v1918
        %v2830 = vunpack.c.l.b16 %v1919
        %v2831 = vunpack.c.h.b16 %v1919
        %v2832 = vunpack.c.l.b16 %v1920
        %v2833 = vunpack.c.h.b16 %v1920
        %v2834 = vunpack.c.l.b16 %v1921
        %v2835 = vunpack.c.h.b16 %v1921
        %v2836 = vunpack.c.l.b16 %v1922
        %v2837 = vunpack.c.h.b16 %v1922
        %v2838 = vunpack.c.l.b16 %v1923
        %v2839 = vunpack.c.h.b16 %v1923
        %v2840 = vunpack.c.l.b16 %v1924
        %v2841 = vunpack.c.h.b16 %v1924
        %v2842 = vunpack.c.l.b16 %v1925
        %v2843 = vunpack.c.h.b16 %v1925
        %v2844 = vunpack.c.l.b16 %v1926
        %v2845 = vunpack.c.h.b16 %v1926
        %v2846 = vunpack.c.l.b16 %v1927
        %v2847 = vunpack.c.h.b16 %v1927
        %v2848 = vunpack.c.l.b16 %v1928
        %v2849 = vunpack.c.h.b16 %v1928
        %v2850 = vunpack.c.l.b16 %v1929
        %v2851 = vunpack.c.h.b16 %v1929
        %v2852 = vunpack.c.l.b16 %v1930
        %v2853 = vunpack.c.h.b16 %v1930
        %v2854 = vunpack.c.l.b16 %v1931
        %v2855 = vunpack.c.h.b16 %v1931
        %v2856 = vunpack.c.l.b16 %v1932
        %v2857 = vunpack.c.h.b16 %v1932
        %v2858 = vunpack.c.l.b16 %v1933
        %v2859 = vunpack.c.h.b16 %v1933
        %v2860 = vunpack.c.l.b16 %v1934
        %v2861 = vunpack.c.h.b16 %v1934
        %v2862 = vunpack.c.l.b16 %v1935
        %v2863 = vunpack.c.h.b16 %v1935
        %v2864 = vunpack.c.l.b16 %v1936
        %v2865 = vunpack.c.h.b16 %v1936
        %v2866 = vunpack.c.l.b16 %v1937
        %v2867 = vunpack.c.h.b16 %v1937
        %v2868 = vunpack.c.l.b16 %v1938
        %v2869 = vunpack.c.h.b16 %v1938
        %v2870 = vunpack.c.l.b16 %v1939
        %v2871 = vunpack.c.h.b16 %v1939
        %v2872 = vunpack.c.l.b16 %v1940
        %v2873 = vunpack.c.h.b16 %v1940
        %v2874 = vunpack.c.l.b16 %v1941
        %v2875 = vunpack.c.h.b16 %v1941
        %v2876 = vunpack.c.l.b16 %v1942
        %v2877 = vunpack.c.h.b16 %v1942
        %v2878 = vunpack.c.l.b16 %v1943
        %v2879 = vunpack.c.h.b16 %v1943
        %v2880 = vunpack.c.l.b16 %v1944
        %v2881 = vunpack.c.h.b16 %v1944
        %v2882 = vunpack.c.l.b16 %v1945
        %v2883 = vunpack.c.h.b16 %v1945
        %v2884 = vunpack.c.l.b16 %v1946
        %v2885 = vunpack.c.h.b16 %v1946
        %v2886 = vunpack.c.l.b16 %v1947
        %v2887 = vunpack.c.h.b16 %v1947
        %v2888 = vunpack.c.l.b16 %v1948
        %v2889 = vunpack.c.h.b16 %v1948
        %v2890 = vunpack.c.l.b16 %v1949
        %v2891 = vunpack.c.h.b16 %v1949
        %v2892 = vunpack.c.l.b16 %v1950
        %v2893 = vunpack.c.h.b16 %v1950
        %v2894 = vunpack.c.l.b16 %v1951
        %v2895 = vunpack.c.h.b16 %v1951
        %v2896 = vunpack.c.l.b16 %v1952
        %v2897 = vunpack.c.h.b16 %v1952
        %v2898 = vunpack.c.l.b16 %v1953
        %v2899 = vunpack.c.h.b16 %v1953
        %v2900 = vunpack.c.l.b16 %v1954
        %v2901 = vunpack.c.h.b16 %v1954
        %v2902 = vunpack.c.l.b16 %v1955
        %v2903 = vunpack.c.h.b16 %v1955
        %v2904 = vunpack.c.l.b16 %v1956
        %v2905 = vunpack.c.h.b16 %v1956
        %v2906 = vunpack.c.l.b16 %v1957
        %v2907 = vunpack.c.h.b16 %v1957
        %v2908 = vunpack.c.l.b16 %v1958
        %v2909 = vunpack.c.h.b16 %v1958
        %v2910 = vunpack.c.l.b16 %v1959
        %v2911 = vunpack.c.h.b16 %v1959
        %v2912 = vunpack.c.l.b16 %v1960
        %v2913 = vunpack.c.h.b16 %v1960
        %v2914 = vunpack.c.l.b16 %v1961
        %v2915 = vunpack.c.h.b16 %v1961
        %v2916 = vunpack.c.l.b16 %v1962
        %v2917 = vunpack.c.h.b16 %v1962
        %v2918 = vunpack.c.l.b16 %v1963
        %v2919 = vunpack.c.h.b16 %v1963
        %v2920 = vunpack.c.l.b16 %v1964
        %v2921 = vunpack.c.h.b16 %v1964
        %v2922 = vunpack.c.l.b16 %v1965
        %v2923 = vunpack.c.h.b16 %v1965
        %v2924 = vunpack.c.l.b16 %v1966
        %v2925 = vunpack.c.h.b16 %v1966
        %v2926 = vunpack.c.l.b16 %v1967
        %v2927 = vunpack.c.h.b16 %v1967
        %v2928 = vunpack.c.l.b16 %v1968
        %v2929 = vunpack.c.h.b16 %v1968
        %v2930 = vunpack.c.l.b16 %v1969
        %v2931 = vunpack.c.h.b16 %v1969
        %v2932 = vunpack.c.l.b16 %v1970
        %v2933 = vunpack.c.h.b16 %v1970
        %v2934 = vunpack.c.l.b16 %v1971
        %v2935 = vunpack.c.h.b16 %v1971
        %v2936 = vunpack.c.l.b16 %v1972
        %v2937 = vunpack.c.h.b16 %v1972
        %v2938 = vunpack.c.l.b16 %v1973
        %v2939 = vunpack.c.h.b16 %v1973
        %v2940 = vunpack.c.l.b16 %v1974
        %v2941 = vunpack.c.h.b16 %v1974
        %v2942 = vunpack.c.l.b16 %v1975
        %v2943 = vunpack.c.h.b16 %v1975
        %v2944 = vunpack.c.l.b16 %v1976
        %v2945 = vunpack.c.h.b16 %v1976
        %v2946 = vunpack.c.l.b16 %v1977
        %v2947 = vunpack.c.h.b16 %v1977
        %v2948 = vunpack.c.l.b16 %v1978
        %v2949 = vunpack.c.h.b16 %v1978
        %v2950 = vunpack.c.l.b16 %v1979
        %v2951 = vunpack.c.h.b16 %v1979
        %v2952 = vunpack.c.l.b16 %v1980
        %v2953 = vunpack.c.h.b16 %v1980
        %v2954 = vunpack.c.l.b16 %v1981
        %v2955 = vunpack.c.h.b16 %v1981
        %v2956 = vunpack.c.l.b16 %v1982
        %v2957 = vunpack.c.h.b16 %v1982
        %v2958 = vunpack.c.l.b16 %v1983
        %v2959 = vunpack.c.h.b16 %v1983
        %v2960 = vunpack.c.l.b16 %v1984
        %v2961 = vunpack.c.h.b16 %v1984
        %v2962 = vunpack.c.l.b16 %v1985
        %v2963 = vunpack.c.h.b16 %v1985
        %v2964 = vunpack.c.l.b16 %v1986
        %v2965 = vunpack.c.h.b16 %v1986
        %v2966 = vunpack.c.l.b16 %v1987
        %v2967 = vunpack.c.h.b16 %v1987
        %v2968 = vunpack.c.l.b16 %v1988
        %v2969 = vunpack.c.h.b16 %v1988
        %v2970 = vunpack.c.l.b16 %v1989
        %v2971 = vunpack.c.h.b16 %v1989
        %v2972 = vunpack.c.l.b16 %v1990
        %v2973 = vunpack.c.h.b16 %v1990
        %v2974 = vunpack.c.l.b16 %v1991
        %v2975 = vunpack.c.h.b16 %v1991
        %v2976 = vunpack.c.l.b16 %v1992
        %v2977 = vunpack.c.h.b16 %v1992
        %v2978 = vunpack.c.l.b16 %v1993
        %v2979 = vunpack.c.h.b16 %v1993
        %v2980 = vunpack.c.l.b16 %v1994
        %v2981 = vunpack.c.h.b16 %v1994
        %v2982 = vunpack.c.l.b16 %v1995
        %v2983 = vunpack.c.h.b16 %v1995
        %v2984 = vunpack.c.l.b16 %v1996
        %v2985 = vunpack.c.h.b16 %v1996
        %v2986 = vunpack.c.l.b16 %v1997
        %v2987 = vunpack.c.h.b16 %v1997
        %v2988 = vunpack.c.l.b16 %v1998
        %v2989 = vunpack.c.h.b16 %v1998
        %v2990 = vunpack.c.l.b16 %v1999
        %v2991 = vunpack.c.h.b16 %v1999
        %v2992 = vunpack.c.l.b16 %v2000
        %v2993 = vunpack.c.h.b16 %v2000
        %v2994 = vunpack.c.l.b16 %v2001
        %v2995 = vunpack.c.h.b16 %v2001
        %v2996 = vunpack.c.l.b16 %v2002
        %v2997 = vunpack.c.h.b16 %v2002
        %v2998 = vunpack.c.l.b16 %v2003
        %v2999 = vunpack.c.h.b16 %v2003
        %v3000 = vunpack.c.l.b16 %v2004
        %v3001 = vunpack.c.h.b16 %v2004
        %v3002 = vunpack.c.l.b16 %v2005
        %v3003 = vunpack.c.h.b16 %v2005
        %v3004 = vunpack.c.l.b16 %v2006
        %v3005 = vunpack.c.h.b16 %v2006
        %v3006 = vunpack.c.l.b16 %v2007
        %v3007 = vunpack.c.h.b16 %v2007
        %v3008 = vunpack.c.l.b16 %v2008
        %v3009 = vunpack.c.h.b16 %v2008
        %v3010 = vunpack.c.l.b16 %v2009
        %v3011 = vunpack.c.h.b16 %v2009
        %v3012 = vunpack.c.l.b16 %v2010
        %v3013 = vunpack.c.h.b16 %v2010
        %v3014 = vunpack.c.l.b16 %v2011
        %v3015 = vunpack.c.h.b16 %v2011
        %v3016 = vunpack.c.l.b16 %v2012
        %v3017 = vunpack.c.h.b16 %v2012
        %v3018 = vunpack.c.l.b16 %v2013
        %v3019 = vunpack.c.h.b16 %v2013
        %v3020 = vunpack.c.l.b16 %v2014
        %v3021 = vunpack.c.h.b16 %v2014
        %v3022 = vunpack.c.l.b16 %v2015
        %v3023 = vunpack.c.h.b16 %v2015
        %v3024 = vunpack.c.l.b16 %v2016
        %v3025 = vunpack.c.h.b16 %v2016
        %v3026 = vunpack.c.l.b16 %v2017
        %v3027 = vunpack.c.h.b16 %v2017
        %v3028 = vunpack.c.l.b16 %v2018
        %v3029 = vunpack.c.h.b16 %v2018
        %v3030 = vunpack.c.l.b16 %v2019
        %v3031 = vunpack.c.h.b16 %v2019
        %v3032 = vunpack.c.l.b16 %v2020
        %v3033 = vunpack.c.h.b16 %v2020
        %v3034 = vunpack.c.l.b16 %v2021
        %v3035 = vunpack.c.h.b16 %v2021
        %v3036 = vunpack.c.l.b16 %v2022
        %v3037 = vunpack.c.h.b16 %v2022
        %v3038 = vunpack.c.l.b16 %v2023
        %v3039 = vunpack.c.h.b16 %v2023
        %v3040 = vunpack.c.l.b16 %v2024
        %v3041 = vunpack.c.h.b16 %v2024
        %v3042 = vpack.c.b16 %v2468, %v2466
        %v3043 = vpack.c.b16 %v2469, %v2467
        %v3044 = vpack.c.b16 %v2472, %v2470
        %v3045 = vpack.c.b16 %v2473, %v2471
        %v3046 = vpack.c.b16 %v2476, %v2474
        %v3047 = vpack.c.b16 %v2477, %v2475
        %v3048 = vpack.c.b16 %v2480, %v2478
        %v3049 = vpack.c.b16 %v2481, %v2479
        %v3050 = vpack.c.b16 %v2484, %v2482
        %v3051 = vpack.c.b16 %v2485, %v2483
        %v3052 = vpack.c.b16 %v2488, %v2486
        %v3053 = vpack.c.b16 %v2489, %v2487
        %v3054 = vpack.c.b16 %v2492, %v2490
        %v3055 = vpack.c.b16 %v2493, %v2491
        %v3056 = vpack.c.b16 %v2496, %v2494
        %v3057 = vpack.c.b16 %v2497, %v2495
        %v3058 = vpack.c.b16 %v2500, %v2498
        %v3059 = vpack.c.b16 %v2501, %v2499
        %v3060 = vpack.c.b16 %v2504, %v2502
        %v3061 = vpack.c.b16 %v2505, %v2503
        %v3062 = vpack.c.b16 %v2508, %v2506
        %v3063 = vpack.c.b16 %v2509, %v2507
        %v3064 = vpack.c.b16 %v2512, %v2510
        %v3065 = vpack.c.b16 %v2513, %v2511
        %v3066 = vpack.c.b16 %v2516, %v2514
        %v3067 = vpack.c.b16 %v2517, %v2515
        %v3068 = vpack.c.b16 %v2520, %v2518
        %v3069 = vpack.c.b16 %v2521, %v2519
        %v3070 = vpack.c.b16 %v2524, %v2522
        %v3071 = vpack.c.b16 %v2525, %v2523
        %v3072 = vpack.c.b16 %v2528, %v2526
        %v3073 = vpack.c.b16 %v2529, %v2527
        %v3074 = vpack.c.b16 %v2532, %v2530
        %v3075 = vpack.c.b16 %v2533, %v2531
        %v3076 = vpack.c.b16 %v2536, %v2534
        %v3077 = vpack.c.b16 %v2537, %v2535
        %v3078 = vpack.c.b16 %v2540, %v2538
        %v3079 = vpack.c.b16 %v2541, %v2539
        %v3080 = vpack.c.b16 %v2544, %v2542
        %v3081 = vpack.c.b16 %v2545, %v2543
        %v3082 = vpack.c.b16 %v2548, %v2546
        %v3083 = vpack.c.b16 %v2549, %v2547
        %v3084 = vpack.c.b16 %v2552, %v2550
        %v3085 = vpack.c.b16 %v2553, %v2551
        %v3086 = vpack.c.b16 %v2556, %v2554
        %v3087 = vpack.c.b16 %v2557, %v2555
        %v3088 = vpack.c.b16 %v2560, %v2558
        %v3089 = vpack.c.b16 %v2561, %v2559
        %v3090 = vpack.c.b16 %v2564, %v2562
        %v3091 = vpack.c.b16 %v2565, %v2563
        %v3092 = vpack.c.b16 %v2568, %v2566
        %v3093 = vpack.c.b16 %v2569, %v2567
        %v3094 = vpack.c.b16 %v2572, %v2570
        %v3095 = vpack.c.b16 %v2573, %v2571
        %v3096 = vpack.c.b16 %v2576, %v2574
        %v3097 = vpack.c.b16 %v2577, %v2575
        %v3098 = vpack.c.b16 %v2580, %v2578
        %v3099 = vpack.c.b16 %v2581, %v2579
        %v3100 = vpack.c.b16 %v2584, %v2582
        %v3101 = vpack.c.b16 %v2585, %v2583
        %v3102 = vpack.c.b16 %v2588, %v2586
        %v3103 = vpack.c.b16 %v2589, %v2587
        %v3104 = vpack.c.b16 %v2592, %v2590
        %v3105 = vpack.c.b16 %v2593, %v2591
        %v3106 = vpack.c.b16 %v2596, %v2594
        %v3107 = vpack.c.b16 %v2597, %v2595
        %v3108 = vpack.c.b16 %v2600, %v2598
        %v3109 = vpack.c.b16 %v2601, %v2599
        %v3110 = vpack.c.b16 %v2604, %v2602
        %v3111 = vpack.c.b16 %v2605, %v2603
        %v3112 = vpack.c.b16 %v2608, %v2606
        %v3113 = vpack.c.b16 %v2609, %v2607
        %v3114 = vpack.c.b16 %v2612, %v2610
        %v3115 = vpack.c.b16 %v2613, %v2611
        %v3116 = vpack.c.b16 %v2616, %v2614
        %v3117 = vpack.c.b16 %v2617, %v2615
        %v3118 = vpack.c.b16 %v2620, %v2618
        %v3119 = vpack.c.b16 %v2621, %v2619
        %v3120 = vpack.c.b16 %v2624, %v2622
        %v3121 = vpack.c.b16 %v2625, %v2623
        %v3122 = vpack.c.b16 %v2628, %v2626
        %v3123 = vpack.c.b16 %v2629, %v2627
        %v3124 = vpack.c.b16 %v2632, %v2630
        %v3125 = vpack.c.b16 %v2633, %v2631
        %v3126 = vpack.c.b16 %v2636, %v2634
        %v3127 = vpack.c.b16 %v2637, %v2635
        %v3128 = vpack.c.b16 %v2640, %v2638
        %v3129 = vpack.c.b16 %v2641, %v2639
        %v3130 = vpack.c.b16 %v2644, %v2642
        %v3131 = vpack.c.b16 %v2645, %v2643
        %v3132 = vpack.c.b16 %v2648, %v2646
        %v3133 = vpack.c.b16 %v2649, %v2647
        %v3134 = vpack.c.b16 %v2652, %v2650
        %v3135 = vpack.c.b16 %v2653, %v2651
        %v3136 = vpack.c.b16 %v2656, %v2654
        %v3137 = vpack.c.b16 %v2657, %v2655
        %v3138 = vpack.c.b16 %v2660, %v2658
        %v3139 = vpack.c.b16 %v2661, %v2659
        %v3140 = vpack.c.b16 %v2664, %v2662
        %v3141 = vpack.c.b16 %v2665, %v2663
        %v3142 = vpack.c.b16 %v2668, %v2666
        %v3143 = vpack.c.b16 %v2669, %v2667
        %v3144 = vpack.c.b16 %v2672, %v2670
        %v3145 = vpack.c.b16 %v2673, %v2671
        %v3146 = vpack.c.b16 %v2676, %v2674
        %v3147 = vpack.c.b16 %v2677, %v2675
        %v3148 = vpack.c.b16 %v2680, %v2678
        %v3149 = vpack.c.b16 %v2681, %v2679
        %v3150 = vpack.c.b16 %v2684, %v2682
        %v3151 = vpack.c.b16 %v2685, %v2683
        %v3152 = vpack.c.b16 %v2688, %v2686
        %v3153 = vpack.c.b16 %v2689, %v2687
        %v3154 = vpack.c.b16 %v2692, %v2690
        %v3155 = vpack.c.b16 %v2693, %v2691
        %v3156 = vpack.c.b16 %v2696, %v2694
        %v3157 = vpack.c.b16 %v2697, %v2695
        %v3158 = vpack.c.b16 %v2700, %v2698
        %v3159 = vpack.c.b16 %v2701, %v2699
        %v3160 = vpack.c.b16 %v2704, %v2702
        %v3161 = vpack.c.b16 %v2705, %v2703
        %v3162 = vpack.c.b16 %v2708, %v2706
        %v3163 = vpack.c.b16 %v2709, %v2707
        %v3164 = vpack.c.b16 %v2712, %v2710
        %v3165 = vpack.c.b16 %v2713, %v2711
        %v3166 = vpack.c.b16 %v2716, %v2714
        %v3167 = vpack.c.b16 %v2717, %v2715
        %v3168 = vpack.c.b16 %v2720, %v2718
        %v3169 = vpack.c.b16 %v2721, %v2719
        %v3170 = vpack.c.b16 %v2724, %v2722
        %v3171 = vpack.c.b16 %v2725, %v2723
        %v3172 = vpack.c.b16 %v2728, %v2726
        %v3173 = vpack.c.b16 %v2729, %v2727
        %v3174 = vpack.c.b16 %v2732, %v2730
        %v3175 = vpack.c.b16 %v2733, %v2731
        %v3176 = vpack.c.b16 %v2736, %v2734
        %v3177 = vpack.c.b16 %v2737, %v2735
        %v3178 = vpack.c.b16 %v2740, %v2738
        %v3179 = vpack.c.b16 %v2741, %v2739
        %v3180 = vpack.c.b16 %v2744, %v2742
        %v3181 = vpack.c.b16 %v2745, %v2743
        %v3182 = vpack.c.b16 %v2748, %v2746
        %v3183 = vpack.c.b16 %v2749, %v2747
        %v3184 = vpack.c.b16 %v2752, %v2750
        %v3185 = vpack.c.b16 %v2753, %v2751
        %v3186 = vpack.c.b16 %v2756, %v2754
        %v3187 = vpack.c.b16 %v2757, %v2755
        %v3188 = vpack.c.b16 %v2760, %v2758
        %v3189 = vpack.c.b16 %v2761, %v2759
        %v3190 = vpack.c.b16 %v2764, %v2762
        %v3191 = vpack.c.b16 %v2765, %v2763
        %v3192 = vpack.c.b16 %v2768, %v2766
        %v3193 = vpack.c.b16 %v2769, %v2767
        %v3194 = vpack.c.b16 %v2772, %v2770
        %v3195 = vpack.c.b16 %v2773, %v2771
        %v3196 = vpack.c.b16 %v2776, %v2774
        %v3197 = vpack.c.b16 %v2777, %v2775
        %v3198 = vpack.c.b16 %v2780, %v2778
        %v3199 = vpack.c.b16 %v2781, %v2779
        %v3200 = vpack.c.b16 %v2784, %v2782
        %v3201 = vpack.c.b16 %v2785, %v2783
        %v3202 = vpack.c.b16 %v2788, %v2786
        %v3203 = vpack.c.b16 %v2789, %v2787
        %v3204 = vpack.c.b16 %v2792, %v2790
        %v3205 = vpack.c.b16 %v2793, %v2791
        %v3206 = vpack.c.b16 %v2796, %v2794
        %v3207 = vpack.c.b16 %v2797, %v2795
        %v3208 = vpack.c.b16 %v2800, %v2798
        %v3209 = vpack.c.b16 %v2801, %v2799
        %v3210 = vpack.c.b16 %v2804, %v2802
        %v3211 = vpack.c.b16 %v2805, %v2803
        %v3212 = vpack.c.b16 %v2808, %v2806
        %v3213 = vpack.c.b16 %v2809, %v2807
        %v3214 = vpack.c.b16 %v2812, %v2810
        %v3215 = vpack.c.b16 %v2813, %v2811
        %v3216 = vpack.c.b16 %v2816, %v2814
        %v3217 = vpack.c.b16 %v2817, %v2815
        %v3218 = vpack.c.b16 %v2820, %v2818
        %v3219 = vpack.c.b16 %v2821, %v2819
        %v3220 = vpack.c.b16 %v2824, %v2822
        %v3221 = vpack.c.b16 %v2825, %v2823
        %v3222 = vpack.c.b16 %v2828, %v2826
        %v3223 = vpack.c.b16 %v2829, %v2827
        %v3224 = vpack.c.b16 %v2832, %v2830
        %v3225 = vpack.c.b16 %v2833, %v2831
        %v3226 = vpack.c.b16 %v2836, %v2834
        %v3227 = vpack.c.b16 %v2837, %v2835
        %v3228 = vpack.c.b16 %v2840, %v2838
        %v3229 = vpack.c.b16 %v2841, %v2839
        %v3230 = vpack.c.b16 %v2844, %v2842
        %v3231 = vpack.c.b16 %v2845, %v2843
        %v3232 = vpack.c.b16 %v2848, %v2846
        %v3233 = vpack.c.b16 %v2849, %v2847
        %v3234 = vpack.c.b16 %v2852, %v2850
        %v3235 = vpack.c.b16 %v2853, %v2851
        %v3236 = vpack.c.b16 %v2856, %v2854
        %v3237 = vpack.c.b16 %v2857, %v2855
        %v3238 = vpack.c.b16 %v2860, %v2858
        %v3239 = vpack.c.b16 %v2861, %v2859
        %v3240 = vpack.c.b16 %v2864, %v2862
        %v3241 = vpack.c.b16 %v2865, %v2863
        %v3242 = vpack.c.b16 %v2868, %v2866
        %v3243 = vpack.c.b16 %v2869, %v2867
        %v3244 = vpack.c.b16 %v2872, %v2870
        %v3245 = vpack.c.b16 %v2873, %v2871
        %v3246 = vpack.c.b16 %v2876, %v2874
        %v3247 = vpack.c.b16 %v2877, %v2875
        %v3248 = vpack.c.b16 %v2880, %v2878
        %v3249 = vpack.c.b16 %v2881, %v2879
        %v3250 = vpack.c.b16 %v2884, %v2882
        %v3251 = vpack.c.b16 %v2885, %v2883
        %v3252 = vpack.c.b16 %v2888, %v2886
        %v3253 = vpack.c.b16 %v2889, %v2887
        %v3254 = vpack.c.b16 %v2892, %v2890
        %v3255 = vpack.c.b16 %v2893, %v2891
        %v3256 = vpack.c.b16 %v2896, %v2894
        %v3257 = vpack.c.b16 %v2897, %v2895
        %v3258 = vpack.c.b16 %v2900, %v2898
        %v3259 = vpack.c.b16 %v2901, %v2899
        %v3260 = vpack.c.b16 %v2904, %v2902
        %v3261 = vpack.c.b16 %v2905, %v2903
        %v3262 = vpack.c.b16 %v2908, %v2906
        %v3263 = vpack.c.b16 %v2909, %v2907
        %v3264 = vpack.c.b16 %v2912, %v2910
        %v3265 = vpack.c.b16 %v2913, %v2911
        %v3266 = vpack.c.b16 %v2916, %v2914
        %v3267 = vpack.c.b16 %v2917, %v2915
        %v3268 = vpack.c.b16 %v2920, %v2918
        %v3269 = vpack.c.b16 %v2921, %v2919
        %v3270 = vpack.c.b16 %v2924, %v2922
        %v3271 = vpack.c.b16 %v2925, %v2923
        %v3272 = vpack.c.b16 %v2928, %v2926
        %v3273 = vpack.c.b16 %v2929, %v2927
        %v3274 = vpack.c.b16 %v2932, %v2930
        %v3275 = vpack.c.b16 %v2933, %v2931
        %v3276 = vpack.c.b16 %v2936, %v2934
        %v3277 = vpack.c.b16 %v2937, %v2935
        %v3278 = vpack.c.b16 %v2940, %v2938
        %v3279 = vpack.c.b16 %v2941, %v2939
        %v3280 = vpack.c.b16 %v2944, %v2942
        %v3281 = vpack.c.b16 %v2945, %v2943
        %v3282 = vpack.c.b16 %v2948, %v2946
        %v3283 = vpack.c.b16 %v2949, %v2947
        %v3284 = vpack.c.b16 %v2952, %v2950
        %v3285 = vpack.c.b16 %v2953, %v2951
        %v3286 = vpack.c.b16 %v2956, %v2954
        %v3287 = vpack.c.b16 %v2957, %v2955
        %v3288 = vpack.c.b16 %v2960, %v2958
        %v3289 = vpack.c.b16 %v2961, %v2959
        %v3290 = vpack.c.b16 %v2964, %v2962
        %v3291 = vpack.c.b16 %v2965, %v2963
        %v3292 = vpack.c.b16 %v2968, %v2966
        %v3293 = vpack.c.b16 %v2969, %v2967
        %v3294 = vpack.c.b16 %v2972, %v2970
        %v3295 = vpack.c.b16 %v2973, %v2971
        %v3296 = vpack.c.b16 %v2976, %v2974
        %v3297 = vpack.c.b16 %v2977, %v2975
        %v3298 = vpack.c.b16 %v2980, %v2978
        %v3299 = vpack.c.b16 %v2981, %v2979
        %v3300 = vpack.c.b16 %v2984, %v2982
        %v3301 = vpack.c.b16 %v2985, %v2983
        %v3302 = vpack.c.b16 %v2988, %v2986
        %v3303 = vpack.c.b16 %v2989, %v2987
        %v3304 = vpack.c.b16 %v2992, %v2990
        %v3305 = vpack.c.b16 %v2993, %v2991
        %v3306 = vpack.c.b16 %v2996, %v2994
        %v3307 = vpack.c.b16 %v2997, %v2995
        %v3308 = vpack.c.b16 %v3000, %v2998
        %v3309 = vpack.c.b16 %v3001, %v2999
        %v3310 = vpack.c.b16 %v3004, %v3002
        %v3311 = vpack.c.b16 %v3005, %v3003
        %v3312 = vpack.c.b16 %v3008, %v3006
        %v3313 = vpack.c.b16 %v3009, %v3007
        %v3314 = vpack.c.b16 %v3012, %v3010
        %v3315 = vpack.c.b16 %v3013, %v3011
        %v3316 = vpack.c.b16 %v3016, %v3014
        %v3317 = vpack.c.b16 %v3017, %v3015
        %v3318 = vpack.c.b16 %v3020, %v3018
        %v3319 = vpack.c.b16 %v3021, %v3019
        %v3320 = vpack.c.b16 %v3024, %v3022
        %v3321 = vpack.c.b16 %v3025, %v3023
        %v3322 = vpack.c.b16 %v3028, %v3026
        %v3323 = vpack.c.b16 %v3029, %v3027
        %v3324 = vpack.c.b16 %v3032, %v3030
        %v3325 = vpack.c.b16 %v3033, %v3031
        %v3326 = vpack.c.b16 %v3036, %v3034
        %v3327 = vpack.c.b16 %v3037, %v3035
        %v3328 = vpack.c.b16 %v3040, %v3038
        %v3329 = vpack.c.b16 %v3041, %v3039
        %3618 = vmatprep.subr.bf16.mxu0 %v3043
        %3619 = vmatpush1.bf16.msra.mxu0 %v3042
        %3620 = vmatprep.subr.bf16.mxu0 %v3045
        %3621 = vmatpush1.bf16.msra.mxu0 %v3044
        %3622 = vmatprep.subr.bf16.mxu0 %v3047
        %3623 = vmatpush1.bf16.msra.mxu0 %v3046
        %3624 = vmatprep.subr.bf16.mxu0 %v3049
        %3625 = vmatpush1.bf16.msra.mxu0 %v3048
        %3626 = vmatprep.subr.bf16.mxu0 %v3051
        %3627 = vmatpush1.bf16.msra.mxu0 %v3050
        %3628 = vmatprep.subr.bf16.mxu0 %v3053
        %3629 = vmatpush1.bf16.msra.mxu0 %v3052
        %3630 = vmatprep.subr.bf16.mxu0 %v3055
        %3631 = vmatpush1.bf16.msra.mxu0 %v3054
        %3632 = vmatprep.subr.bf16.mxu0 %v3057
        %3633 = vmatpush1.bf16.msra.mxu0 %v3056
        %3634 = vmatprep.subr.bf16.mxu0 %v3059
        %3635 = vmatpush1.bf16.msra.mxu0 %v3058
        %3636 = vmatprep.subr.bf16.mxu0 %v3061
        %3637 = vmatpush1.bf16.msra.mxu0 %v3060
        %3638 = vmatprep.subr.bf16.mxu0 %v3063
        %3639 = vmatpush1.bf16.msra.mxu0 %v3062
        %3640 = vmatprep.subr.bf16.mxu0 %v3065
        %3641 = vmatpush1.bf16.msra.mxu0 %v3064
        %3642 = vmatprep.subr.bf16.mxu0 %v3067
        %3643 = vmatpush1.bf16.msra.mxu0 %v3066
        %3644 = vmatprep.subr.bf16.mxu0 %v3069
        %3645 = vmatpush1.bf16.msra.mxu0 %v3068
        %3646 = vmatprep.subr.bf16.mxu0 %v3071
        %3647 = vmatpush1.bf16.msra.mxu0 %v3070
        %3648 = vmatprep.subr.bf16.mxu0 %v3073
        %3649 = vmatpush1.bf16.msra.mxu0 %v3072
        %3650 = vmatprep.mubr.bf16.mxu0 %v2077
        %3651 = vmatmul.mubr.bf16.gmra.mrb[0].mxu0 %v2063
        %v3652 = vpop.f32.mrb[0].mxu0
        %v3653 = vadd.f32 %v2030, %v3652
        %v3654 = vpop.f32.mrb[0].mxu0
        %v3655 = vadd.f32 %v2034, %v3654
        %v3656 = vpop.f32.mrb[0].mxu0
        %v3657 = vpop.f32.mrb[0].mxu0
        %3658 = vdwg.mxu0
        %3659 = vmatprep.subr.bf16.mxu0 %v3075
        %3660 = vmatpush1.bf16.msra.mxu0 %v3074
        %3661 = vmatprep.subr.bf16.mxu0 %v3077
        %3662 = vmatpush1.bf16.msra.mxu0 %v3076
        %3663 = vmatprep.subr.bf16.mxu0 %v3079
        %3664 = vmatpush1.bf16.msra.mxu0 %v3078
        %3665 = vmatprep.subr.bf16.mxu0 %v3081
        %3666 = vmatpush1.bf16.msra.mxu0 %v3080
        %3667 = vmatprep.subr.bf16.mxu0 %v3083
        %3668 = vmatpush1.bf16.msra.mxu0 %v3082
        %3669 = vmatprep.subr.bf16.mxu0 %v3085
        %3670 = vmatpush1.bf16.msra.mxu0 %v3084
        %3671 = vmatprep.subr.bf16.mxu0 %v3087
        %3672 = vmatpush1.bf16.msra.mxu0 %v3086
        %3673 = vmatprep.subr.bf16.mxu0 %v3089
        %3674 = vmatpush1.bf16.msra.mxu0 %v3088
        %3675 = vmatprep.subr.bf16.mxu0 %v3091
        %3676 = vmatpush1.bf16.msra.mxu0 %v3090
        %3677 = vmatprep.subr.bf16.mxu0 %v3093
        %3678 = vmatpush1.bf16.msra.mxu0 %v3092
        %3679 = vmatprep.subr.bf16.mxu0 %v3095
        %3680 = vmatpush1.bf16.msra.mxu0 %v3094
        %3681 = vmatprep.subr.bf16.mxu0 %v3097
        %3682 = vmatpush1.bf16.msra.mxu0 %v3096
        %3683 = vmatprep.subr.bf16.mxu0 %v3099
        %3684 = vmatpush1.bf16.msra.mxu0 %v3098
        %3685 = vmatprep.subr.bf16.mxu0 %v3101
        %3686 = vmatpush1.bf16.msra.mxu0 %v3100
        %3687 = vmatprep.subr.bf16.mxu0 %v3103
        %3688 = vmatpush1.bf16.msra.mxu0 %v3102
        %3689 = vmatprep.subr.bf16.mxu0 %v3105
        %3690 = vmatpush1.bf16.msra.mxu0 %v3104
        %3691 = vmatprep.mubr.bf16.mxu0 %v2087
        %3692 = vmatmul.mubr.bf16.gmra.mrb[0].mxu0 %v2085
        %v3693 = vpop.f32.mrb[0].mxu0
        %v3694 = vadd.f32 %v3653, %v3693
        %v3695 = vpop.f32.mrb[0].mxu0
        %v3696 = vadd.f32 %v3655, %v3695
        %v3697 = vpop.f32.mrb[0].mxu0
        %v3698 = vpop.f32.mrb[0].mxu0
        %3699 = vdwg.mxu0
        %3700 = vmatprep.subr.bf16.mxu0 %v3107
        %3701 = vmatpush1.bf16.msra.mxu0 %v3106
        %3702 = vmatprep.subr.bf16.mxu0 %v3109
        %3703 = vmatpush1.bf16.msra.mxu0 %v3108
        %3704 = vmatprep.subr.bf16.mxu0 %v3111
        %3705 = vmatpush1.bf16.msra.mxu0 %v3110
        %3706 = vmatprep.subr.bf16.mxu0 %v3113
        %3707 = vmatpush1.bf16.msra.mxu0 %v3112
        %3708 = vmatprep.subr.bf16.mxu0 %v3115
        %3709 = vmatpush1.bf16.msra.mxu0 %v3114
        %3710 = vmatprep.subr.bf16.mxu0 %v3117
        %3711 = vmatpush1.bf16.msra.mxu0 %v3116
        %3712 = vmatprep.subr.bf16.mxu0 %v3119
        %3713 = vmatpush1.bf16.msra.mxu0 %v3118
        %3714 = vmatprep.subr.bf16.mxu0 %v3121
        %3715 = vmatpush1.bf16.msra.mxu0 %v3120
        %3716 = vmatprep.subr.bf16.mxu0 %v3123
        %3717 = vmatpush1.bf16.msra.mxu0 %v3122
        %3718 = vmatprep.subr.bf16.mxu0 %v3125
        %3719 = vmatpush1.bf16.msra.mxu0 %v3124
        %3720 = vmatprep.subr.bf16.mxu0 %v3127
        %3721 = vmatpush1.bf16.msra.mxu0 %v3126
        %3722 = vmatprep.subr.bf16.mxu0 %v3129
        %3723 = vmatpush1.bf16.msra.mxu0 %v3128
        %3724 = vmatprep.subr.bf16.mxu0 %v3131
        %3725 = vmatpush1.bf16.msra.mxu0 %v3130
        %3726 = vmatprep.subr.bf16.mxu0 %v3133
        %3727 = vmatpush1.bf16.msra.mxu0 %v3132
        %3728 = vmatprep.subr.bf16.mxu0 %v3135
        %3729 = vmatpush1.bf16.msra.mxu0 %v3134
        %3730 = vmatprep.subr.bf16.mxu0 %v3137
        %3731 = vmatpush1.bf16.msra.mxu0 %v3136
        %3732 = vmatprep.mubr.bf16.mxu0 %v2084
        %3733 = vmatmul.mubr.bf16.gmra.mrb[0].mxu0 %v2070
        %v3734 = vpop.f32.mrb[0].mxu0
        %v3735 = vadd.f32 %v3694, %v3734
        %v3736 = vpop.f32.mrb[0].mxu0
        %v3737 = vadd.f32 %v3696, %v3736
        %v3738 = vpop.f32.mrb[0].mxu0
        %v3739 = vpop.f32.mrb[0].mxu0
        %3740 = vdwg.mxu0
        %3741 = vmatprep.subr.bf16.mxu0 %v3139
        %3742 = vmatpush1.bf16.msra.mxu0 %v3138
        %3743 = vmatprep.subr.bf16.mxu0 %v3141
        %3744 = vmatpush1.bf16.msra.mxu0 %v3140
        %3745 = vmatprep.subr.bf16.mxu0 %v3143
        %3746 = vmatpush1.bf16.msra.mxu0 %v3142
        %3747 = vmatprep.subr.bf16.mxu0 %v3145
        %3748 = vmatpush1.bf16.msra.mxu0 %v3144
        %3749 = vmatprep.subr.bf16.mxu0 %v3147
        %3750 = vmatpush1.bf16.msra.mxu0 %v3146
        %3751 = vmatprep.subr.bf16.mxu0 %v3149
        %3752 = vmatpush1.bf16.msra.mxu0 %v3148
        %3753 = vmatprep.subr.bf16.mxu0 %v3151
        %3754 = vmatpush1.bf16.msra.mxu0 %v3150
        %3755 = vmatprep.subr.bf16.mxu0 %v3153
        %3756 = vmatpush1.bf16.msra.mxu0 %v3152
        %3757 = vmatprep.subr.bf16.mxu0 %v3155
        %3758 = vmatpush1.bf16.msra.mxu0 %v3154
        %3759 = vmatprep.subr.bf16.mxu0 %v3157
        %3760 = vmatpush1.bf16.msra.mxu0 %v3156
        %3761 = vmatprep.subr.bf16.mxu0 %v3159
        %3762 = vmatpush1.bf16.msra.mxu0 %v3158
        %3763 = vmatprep.subr.bf16.mxu0 %v3161
        %3764 = vmatpush1.bf16.msra.mxu0 %v3160
        %3765 = vmatprep.subr.bf16.mxu0 %v3163
        %3766 = vmatpush1.bf16.msra.mxu0 %v3162
        %3767 = vmatprep.subr.bf16.mxu0 %v3165
        %3768 = vmatpush1.bf16.msra.mxu0 %v3164
        %3769 = vmatprep.subr.bf16.mxu0 %v3167
        %3770 = vmatpush1.bf16.msra.mxu0 %v3166
        %3771 = vmatprep.subr.bf16.mxu0 %v3169
        %3772 = vmatpush1.bf16.msra.mxu0 %v3168
        %3773 = vmatprep.mubr.bf16.mxu0 %v2088
        %3774 = vmatmul.mubr.bf16.gmra.mrb[0].mxu0 %v2086
        %v3775 = vpop.f32.mrb[0].mxu0
        %v3776 = vadd.f32 %v3735, %v3775
        %v3777 = vpop.f32.mrb[0].mxu0
        %v3778 = vadd.f32 %v3737, %v3777
        %v3779 = vpop.f32.mrb[0].mxu0
        %v3780 = vpop.f32.mrb[0].mxu0
        %3781 = vdwg.mxu0
        %3782 = vmatprep.subr.bf16.mxu0 %v3171
        %3783 = vmatpush1.bf16.msra.mxu0 %v3170
        %3784 = vmatprep.subr.bf16.mxu0 %v3173
        %3785 = vmatpush1.bf16.msra.mxu0 %v3172
        %3786 = vmatprep.subr.bf16.mxu0 %v3175
        %3787 = vmatpush1.bf16.msra.mxu0 %v3174
        %3788 = vmatprep.subr.bf16.mxu0 %v3177
        %3789 = vmatpush1.bf16.msra.mxu0 %v3176
        %3790 = vmatprep.subr.bf16.mxu0 %v3179
        %3791 = vmatpush1.bf16.msra.mxu0 %v3178
        %3792 = vmatprep.subr.bf16.mxu0 %v3181
        %3793 = vmatpush1.bf16.msra.mxu0 %v3180
        %3794 = vmatprep.subr.bf16.mxu0 %v3183
        %3795 = vmatpush1.bf16.msra.mxu0 %v3182
        %3796 = vmatprep.subr.bf16.mxu0 %v3185
        %3797 = vmatpush1.bf16.msra.mxu0 %v3184
        %3798 = vmatprep.subr.bf16.mxu0 %v3187
        %3799 = vmatpush1.bf16.msra.mxu0 %v3186
        %3800 = vmatprep.subr.bf16.mxu0 %v3189
        %3801 = vmatpush1.bf16.msra.mxu0 %v3188
        %3802 = vmatprep.subr.bf16.mxu0 %v3191
        %3803 = vmatpush1.bf16.msra.mxu0 %v3190
        %3804 = vmatprep.subr.bf16.mxu0 %v3193
        %3805 = vmatpush1.bf16.msra.mxu0 %v3192
        %3806 = vmatprep.subr.bf16.mxu0 %v3195
        %3807 = vmatpush1.bf16.msra.mxu0 %v3194
        %3808 = vmatprep.subr.bf16.mxu0 %v3197
        %3809 = vmatpush1.bf16.msra.mxu0 %v3196
        %3810 = vmatprep.subr.bf16.mxu0 %v3199
        %3811 = vmatpush1.bf16.msra.mxu0 %v3198
        %3812 = vmatprep.subr.bf16.mxu0 %v3201
        %3813 = vmatpush1.bf16.msra.mxu0 %v3200
        %3814 = vmatprep.mubr.bf16.mxu0 %v2126
        %3815 = vmatmul.mubr.bf16.gmra.mrb[0].mxu0 %v2112
        %v3816 = vpop.f32.mrb[0].mxu0
        %v3817 = vadd.f32 %v3776, %v3816
        %v3818 = vpop.f32.mrb[0].mxu0
        %v3819 = vadd.f32 %v3778, %v3818
        %v3820 = vpop.f32.mrb[0].mxu0
        %v3821 = vpop.f32.mrb[0].mxu0
        %3822 = vdwg.mxu0
        %3823 = vmatprep.subr.bf16.mxu0 %v3203
        %3824 = vmatpush1.bf16.msra.mxu0 %v3202
        %3825 = vmatprep.subr.bf16.mxu0 %v3205
        %3826 = vmatpush1.bf16.msra.mxu0 %v3204
        %3827 = vmatprep.subr.bf16.mxu0 %v3207
        %3828 = vmatpush1.bf16.msra.mxu0 %v3206
        %3829 = vmatprep.subr.bf16.mxu0 %v3209
        %3830 = vmatpush1.bf16.msra.mxu0 %v3208
        %3831 = vmatprep.subr.bf16.mxu0 %v3211
        %3832 = vmatpush1.bf16.msra.mxu0 %v3210
        %3833 = vmatprep.subr.bf16.mxu0 %v3213
        %3834 = vmatpush1.bf16.msra.mxu0 %v3212
        %3835 = vmatprep.subr.bf16.mxu0 %v3215
        %3836 = vmatpush1.bf16.msra.mxu0 %v3214
        %3837 = vmatprep.subr.bf16.mxu0 %v3217
        %3838 = vmatpush1.bf16.msra.mxu0 %v3216
        %3839 = vmatprep.subr.bf16.mxu0 %v3219
        %3840 = vmatpush1.bf16.msra.mxu0 %v3218
        %3841 = vmatprep.subr.bf16.mxu0 %v3221
        %3842 = vmatpush1.bf16.msra.mxu0 %v3220
        %3843 = vmatprep.subr.bf16.mxu0 %v3223
        %3844 = vmatpush1.bf16.msra.mxu0 %v3222
        %3845 = vmatprep.subr.bf16.mxu0 %v3225
        %3846 = vmatpush1.bf16.msra.mxu0 %v3224
        %3847 = vmatprep.subr.bf16.mxu0 %v3227
        %3848 = vmatpush1.bf16.msra.mxu0 %v3226
        %3849 = vmatprep.subr.bf16.mxu0 %v3229
        %3850 = vmatpush1.bf16.msra.mxu0 %v3228
        %3851 = vmatprep.subr.bf16.mxu0 %v3231
        %3852 = vmatpush1.bf16.msra.mxu0 %v3230
        %3853 = vmatprep.subr.bf16.mxu0 %v3233
        %3854 = vmatpush1.bf16.msra.mxu0 %v3232
        %3855 = vmatprep.mubr.bf16.mxu0 %v2136
        %3856 = vmatmul.mubr.bf16.gmra.mrb[0].mxu0 %v2134
        %v3857 = vpop.f32.mrb[0].mxu0
        %v3858 = vadd.f32 %v3817, %v3857
        %v3859 = vpop.f32.mrb[0].mxu0
        %v3860 = vadd.f32 %v3819, %v3859
        %v3861 = vpop.f32.mrb[0].mxu0
        %v3862 = vpop.f32.mrb[0].mxu0
        %3863 = vdwg.mxu0
        %3864 = vmatprep.subr.bf16.mxu0 %v3235
        %3865 = vmatpush1.bf16.msra.mxu0 %v3234
        %3866 = vmatprep.subr.bf16.mxu0 %v3237
        %3867 = vmatpush1.bf16.msra.mxu0 %v3236
        %3868 = vmatprep.subr.bf16.mxu0 %v3239
        %3869 = vmatpush1.bf16.msra.mxu0 %v3238
        %3870 = vmatprep.subr.bf16.mxu0 %v3241
        %3871 = vmatpush1.bf16.msra.mxu0 %v3240
        %3872 = vmatprep.subr.bf16.mxu0 %v3243
        %3873 = vmatpush1.bf16.msra.mxu0 %v3242
        %3874 = vmatprep.subr.bf16.mxu0 %v3245
        %3875 = vmatpush1.bf16.msra.mxu0 %v3244
        %3876 = vmatprep.subr.bf16.mxu0 %v3247
        %3877 = vmatpush1.bf16.msra.mxu0 %v3246
        %3878 = vmatprep.subr.bf16.mxu0 %v3249
        %3879 = vmatpush1.bf16.msra.mxu0 %v3248
        %3880 = vmatprep.subr.bf16.mxu0 %v3251
        %3881 = vmatpush1.bf16.msra.mxu0 %v3250
        %3882 = vmatprep.subr.bf16.mxu0 %v3253
        %3883 = vmatpush1.bf16.msra.mxu0 %v3252
        %3884 = vmatprep.subr.bf16.mxu0 %v3255
        %3885 = vmatpush1.bf16.msra.mxu0 %v3254
        %3886 = vmatprep.subr.bf16.mxu0 %v3257
        %3887 = vmatpush1.bf16.msra.mxu0 %v3256
        %3888 = vmatprep.subr.bf16.mxu0 %v3259
        %3889 = vmatpush1.bf16.msra.mxu0 %v3258
        %3890 = vmatprep.subr.bf16.mxu0 %v3261
        %3891 = vmatpush1.bf16.msra.mxu0 %v3260
        %3892 = vmatprep.subr.bf16.mxu0 %v3263
        %3893 = vmatpush1.bf16.msra.mxu0 %v3262
        %3894 = vmatprep.subr.bf16.mxu0 %v3265
        %3895 = vmatpush1.bf16.msra.mxu0 %v3264
        %3896 = vmatprep.mubr.bf16.mxu0 %v2133
        %3897 = vmatmul.mubr.bf16.gmra.mrb[0].mxu0 %v2119
        %v3898 = vpop.f32.mrb[0].mxu0
        %v3899 = vadd.f32 %v3858, %v3898
        %v3900 = vpop.f32.mrb[0].mxu0
        %v3901 = vadd.f32 %v3860, %v3900
        %v3902 = vpop.f32.mrb[0].mxu0
        %v3903 = vpop.f32.mrb[0].mxu0
        %3904 = vdwg.mxu0
        %3905 = vmatprep.subr.bf16.mxu0 %v3267
        %3906 = vmatpush1.bf16.msra.mxu0 %v3266
        %3907 = vmatprep.subr.bf16.mxu0 %v3269
        %3908 = vmatpush1.bf16.msra.mxu0 %v3268
        %3909 = vmatprep.subr.bf16.mxu0 %v3271
        %3910 = vmatpush1.bf16.msra.mxu0 %v3270
        %3911 = vmatprep.subr.bf16.mxu0 %v3273
        %3912 = vmatpush1.bf16.msra.mxu0 %v3272
        %3913 = vmatprep.subr.bf16.mxu0 %v3275
        %3914 = vmatpush1.bf16.msra.mxu0 %v3274
        %3915 = vmatprep.subr.bf16.mxu0 %v3277
        %3916 = vmatpush1.bf16.msra.mxu0 %v3276
        %3917 = vmatprep.subr.bf16.mxu0 %v3279
        %3918 = vmatpush1.bf16.msra.mxu0 %v3278
        %3919 = vmatprep.subr.bf16.mxu0 %v3281
        %3920 = vmatpush1.bf16.msra.mxu0 %v3280
        %3921 = vmatprep.subr.bf16.mxu0 %v3283
        %3922 = vmatpush1.bf16.msra.mxu0 %v3282
        %3923 = vmatprep.subr.bf16.mxu0 %v3285
        %3924 = vmatpush1.bf16.msra.mxu0 %v3284
        %3925 = vmatprep.subr.bf16.mxu0 %v3287
        %3926 = vmatpush1.bf16.msra.mxu0 %v3286
        %3927 = vmatprep.subr.bf16.mxu0 %v3289
        %3928 = vmatpush1.bf16.msra.mxu0 %v3288
        %3929 = vmatprep.subr.bf16.mxu0 %v3291
        %3930 = vmatpush1.bf16.msra.mxu0 %v3290
        %3931 = vmatprep.subr.bf16.mxu0 %v3293
        %3932 = vmatpush1.bf16.msra.mxu0 %v3292
        %3933 = vmatprep.subr.bf16.mxu0 %v3295
        %3934 = vmatpush1.bf16.msra.mxu0 %v3294
        %3935 = vmatprep.subr.bf16.mxu0 %v3297
        %3936 = vmatpush1.bf16.msra.mxu0 %v3296
        %3937 = vmatprep.mubr.bf16.mxu0 %v2137
        %3938 = vmatmul.mubr.bf16.gmra.mrb[0].mxu0 %v2135
        %v3939 = vpop.f32.mrb[0].mxu0
        %v3940 = vadd.f32 %v3899, %v3939
        %v3941 = vpop.f32.mrb[0].mxu0
        %v3942 = vadd.f32 %v3901, %v3941
        %v3943 = vpop.f32.mrb[0].mxu0
        %v3944 = vpop.f32.mrb[0].mxu0
        %3945 = vdwg.mxu0
        %3946 = vmatprep.subr.bf16.mxu0 %v3299
        %3947 = vmatpush1.bf16.msra.mxu0 %v3298
        %3948 = vmatprep.subr.bf16.mxu0 %v3301
        %3949 = vmatpush1.bf16.msra.mxu0 %v3300
        %3950 = vmatprep.subr.bf16.mxu0 %v3303
        %3951 = vmatpush1.bf16.msra.mxu0 %v3302
        %3952 = vmatprep.subr.bf16.mxu0 %v3305
        %3953 = vmatpush1.bf16.msra.mxu0 %v3304
        %3954 = vmatprep.subr.bf16.mxu0 %v3307
        %3955 = vmatpush1.bf16.msra.mxu0 %v3306
        %3956 = vmatprep.subr.bf16.mxu0 %v3309
        %3957 = vmatpush1.bf16.msra.mxu0 %v3308
        %3958 = vmatprep.subr.bf16.mxu0 %v3311
        %3959 = vmatpush1.bf16.msra.mxu0 %v3310
        %3960 = vmatprep.subr.bf16.mxu0 %v3313
        %3961 = vmatpush1.bf16.msra.mxu0 %v3312
        %3962 = vmatprep.subr.bf16.mxu0 %v3315
        %3963 = vmatpush1.bf16.msra.mxu0 %v3314
        %3964 = vmatprep.subr.bf16.mxu0 %v3317
        %3965 = vmatpush1.bf16.msra.mxu0 %v3316
        %3966 = vmatprep.subr.bf16.mxu0 %v3319
        %3967 = vmatpush1.bf16.msra.mxu0 %v3318
        %3968 = vmatprep.subr.bf16.mxu0 %v3321
        %3969 = vmatpush1.bf16.msra.mxu0 %v3320
        %3970 = vmatprep.subr.bf16.mxu0 %v3323
        %3971 = vmatpush1.bf16.msra.mxu0 %v3322
        %3972 = vmatprep.subr.bf16.mxu0 %v3325
        %3973 = vmatpush1.bf16.msra.mxu0 %v3324
        %3974 = vmatprep.subr.bf16.mxu0 %v3327
        %3975 = vmatpush1.bf16.msra.mxu0 %v3326
        %3976 = vmatprep.subr.bf16.mxu0 %v3329
        %3977 = vmatpush1.bf16.msra.mxu0 %v3328
        %3978 = vmatprep.mubr.bf16.mxu0 %v2159
        %3979 = vmatmul.mubr.bf16.gmra.mrb[0].mxu0 %v2152
        %v3980 = vpop.f32.mrb[0].mxu0
        %v3981 = vadd.f32 %v3940, %v3980
        %v3982 = vpop.f32.mrb[0].mxu0
        %v3983 = vadd.f32 %v3942, %v3982
        %v3984 = vpop.f32.mrb[0].mxu0
        %v3985 = vpop.f32.mrb[0].mxu0
        %3986 = vdwg.mxu0
        %v3987 = vmax.f32 %v3981, 0.0
        %v3988 = vmax.f32 %v3983, 0.0
        %v3989 = vld [vmem:[#allocation3] sm:$0x3]
        %v3990 = vld [vmem:[%s1434] sm:$0xff]
        %v3991 = vld [vmem:[%s1434 + $0x8] sm:$0xff]
        %v3992 = vld [vmem:[%s1434 + $0x10] sm:$0xff]
        %v3993 = vld [vmem:[%s1434 + $0x18] sm:$0xff]
        %v3994 = vld [vmem:[%s1434 + $0x20] sm:$0xff]
        %v3995 = vld [vmem:[%s1434 + $0x28] sm:$0xff]
        %v3996 = vld [vmem:[%s1434 + $0x30] sm:$0xff]
        %v3997 = vld [vmem:[%s1434 + $0x38] sm:$0xff]
        %v3998 = vld [vmem:[%s1434 + $0x40] sm:$0xff]
        %v3999 = vld [vmem:[%s1434 + $0x48] sm:$0xff]
        %v4000 = vld [vmem:[%s1434 + $0x50] sm:$0xff]
        %v4001 = vld [vmem:[%s1434 + $0x58] sm:$0xff]
        %v4002 = vld [vmem:[%s1434 + $0x60] sm:$0xff]
        %v4003 = vld [vmem:[%s1434 + $0x68] sm:$0xff]
        %v4004 = vld [vmem:[%s1434 + $0x70] sm:$0xff]
        %v4005 = vld [vmem:[%s1434 + $0x78] sm:$0xff]
        %v4006 = vld [vmem:[%s1434 + $0x80] sm:$0xff]
        %v4007 = vld [vmem:[%s1434 + $0x88] sm:$0xff]
        %v4008 = vld [vmem:[%s1434 + $0x90] sm:$0xff]
        %v4009 = vld [vmem:[%s1434 + $0x98] sm:$0xff]
        %v4010 = vld [vmem:[%s1434 + $0xa0] sm:$0xff]
        %v4011 = vld [vmem:[%s1434 + $0xa8] sm:$0xff]
        %v4012 = vld [vmem:[%s1434 + $0xb0] sm:$0xff]
        %v4013 = vld [vmem:[%s1434 + $0xb8] sm:$0xff]
        %v4014 = vld [vmem:[%s1434 + $0xc0] sm:$0xff]
        %v4015 = vld [vmem:[%s1434 + $0xc8] sm:$0xff]
        %v4016 = vld [vmem:[%s1434 + $0xd0] sm:$0xff]
        %v4017 = vld [vmem:[%s1434 + $0xd8] sm:$0xff]
        %v4018 = vld [vmem:[%s1434 + $0xe0] sm:$0xff]
        %v4019 = vld [vmem:[%s1434 + $0xe8] sm:$0xff]
        %v4020 = vld [vmem:[%s1434 + $0xf0] sm:$0xff]
        %v4021 = vld [vmem:[%s1434 + $0xf8] sm:$0xff]
        %4022 = vmatprep.subr.mxu0 0.0
        %4023 = vmatpush1.msra.mxu0 %v3990
        %4024 = vmatprep.subr.mxu0 0.0
        %4025 = vmatpush1.msra.mxu0 %v3991
        %4026 = vmatprep.subr.mxu0 0.0
        %4027 = vmatpush1.msra.mxu0 %v3992
        %4028 = vmatprep.subr.mxu0 0.0
        %4029 = vmatpush1.msra.mxu0 %v3993
        %4030 = vmatprep.subr.mxu0 0.0
        %4031 = vmatpush1.msra.mxu0 %v3994
        %4032 = vmatprep.subr.mxu0 0.0
        %4033 = vmatpush1.msra.mxu0 %v3995
        %4034 = vmatprep.subr.mxu0 0.0
        %4035 = vmatpush1.msra.mxu0 %v3996
        %4036 = vmatprep.subr.mxu0 0.0
        %4037 = vmatpush1.msra.mxu0 %v3997
        %4038 = vmatprep.subr.mxu0 0.0
        %4039 = vmatpush1.msra.mxu0 %v3998
        %4040 = vmatprep.subr.mxu0 0.0
        %4041 = vmatpush1.msra.mxu0 %v3999
        %4042 = vmatprep.subr.mxu0 0.0
        %4043 = vmatpush1.msra.mxu0 %v4000
        %4044 = vmatprep.subr.mxu0 0.0
        %4045 = vmatpush1.msra.mxu0 %v4001
        %4046 = vmatprep.subr.mxu0 0.0
        %4047 = vmatpush1.msra.mxu0 %v4002
        %4048 = vmatprep.subr.mxu0 0.0
        %4049 = vmatpush1.msra.mxu0 %v4003
        %4050 = vmatprep.subr.mxu0 0.0
        %4051 = vmatpush1.msra.mxu0 %v4004
        %4052 = vmatprep.subr.mxu0 0.0
        %4053 = vmatpush1.msra.mxu0 %v4005
        %4054 = vmatprep.subr.mxu0 0.0
        %4055 = vmatpush1.msra.mxu0 %v4006
        %4056 = vmatprep.subr.mxu0 0.0
        %4057 = vmatpush1.msra.mxu0 %v4007
        %4058 = vmatprep.subr.mxu0 0.0
        %4059 = vmatpush1.msra.mxu0 %v4008
        %4060 = vmatprep.subr.mxu0 0.0
        %4061 = vmatpush1.msra.mxu0 %v4009
        %4062 = vmatprep.subr.mxu0 0.0
        %4063 = vmatpush1.msra.mxu0 %v4010
        %4064 = vmatprep.subr.mxu0 0.0
        %4065 = vmatpush1.msra.mxu0 %v4011
        %4066 = vmatprep.subr.mxu0 0.0
        %4067 = vmatpush1.msra.mxu0 %v4012
        %4068 = vmatprep.subr.mxu0 0.0
        %4069 = vmatpush1.msra.mxu0 %v4013
        %4070 = vmatprep.subr.mxu0 0.0
        %4071 = vmatpush1.msra.mxu0 %v4014
        %4072 = vmatprep.subr.mxu0 0.0
        %4073 = vmatpush1.msra.mxu0 %v4015
        %4074 = vmatprep.subr.mxu0 0.0
        %4075 = vmatpush1.msra.mxu0 %v4016
        %4076 = vmatprep.subr.mxu0 0.0
        %4077 = vmatpush1.msra.mxu0 %v4017
        %4078 = vmatprep.subr.mxu0 0.0
        %4079 = vmatpush1.msra.mxu0 %v4018
        %4080 = vmatprep.subr.mxu0 0.0
        %4081 = vmatpush1.msra.mxu0 %v4019
        %4082 = vmatprep.subr.mxu0 0.0
        %4083 = vmatpush1.msra.mxu0 %v4020
        %4084 = vmatprep.subr.mxu0 0.0
        %4085 = vmatpush1.msra.mxu0 %v4021
        %4086 = vmatprep.mubr.f32.mxu0 %v3988
        %4087 = vmatmul.mubr.f32.gmra.mrb[0].mxu0 %v3987
        %v4088 = vpop.f32.mrb[0].mxu0
        %v4089 = vadd.f32 0.0, %v4088
        %v4090 = vpop.f32.mrb[0].mxu0
        %4091 = vdwg.mxu0
        %v4092 = vadd.f32 %v3989, %v4089
        %vm4093 = vcmask 74752
        %4094 = vst.msk [vmem:[#allocation3] sm:$0x3] %vm4093, %v4092
        %p4095 = scmp.eq.s32.totalorder %s17, 1
        // Predicated region
        $region83: #{shiftnet_forward.3} parent=73 // pred_check
          %p4096 = pneg %p4095
        $region84: #{shiftnet_forward.3} parent=73 // pred_check_branch
          %4098 = sbr.rel (%p4096) target = $region86
        $region85: #{shiftnet_forward.3} parent=73 // pred_region
          %v4099 = vld [vmem:[#allocation3] sm:$0x3]
          %v4100 = vld [vmem:[%s4] sm:$0x1]
          %v4102 = vlaneseq
          %v4103 = vshrl.u32 %v4102, 7
          %v4104 = vsub.s32 0, %v4103
          %v4105 = vrot.slane %v4100, %v4104
          %v4107 = vadd.f32 %v4099, %v4105
          %v4108 = vsel %vm4093, %v4107, -inf
          %4109 = vmax.xlane.f32.xlu0 %v4108
          %v4110 = vpop.xlane.xlu0 %4109
          %v4111 = vsub.f32 %v4107, %v4110
          %v4112 = vmul.f32 %v4111, 1.442695
          %v4113 = vpow.pop %v4112
          %v4114 = vsel %vm4093, %v4113, 0.0
          %4115 = vadd.xlane.f32.xlu0 %v4114
          %v4116 = vpop.xlane.xlu0 %4115
          %v4117 = vlog2.pop %v4116
          %v4118 = vmul.f32 %v4117, 0.6931472
          %v4119 = vadd.f32 %v4110, %v4118
          %v4120 = vsub.f32 %v4107, %v4119
          %4121 = vst.msk [vmem:[#allocation5] sm:$0x3] %vm4093, %v4120
        $region86: #{shiftnet_forward.3} parent=73 // pred_fallthru
          _
        // Predicated region
        $region87: #{shiftnet_forward.3} parent=73 // pred_check
          %p4122 = pneg %p150
        $region88: #{shiftnet_forward.3} parent=73 // pred_check_branch
          %4124 = sbr.rel (%p4122) target = $region90
        $region89: #{shiftnet_forward.3} parent=73 // pred_region
          %s4126 = ssub.s32 32, 32
          %4127 = vsyncadd [#allocation6], %s4126
          %s4129 = sshll.u32 [#allocation5], 4
          %s4130 = int_to_ptr.vmem [resolvable:$true] %s4129
          %4132 = dma.vmem_to_hbm [thread:$0]  %s4130, 32, %s5, [#allocation6]
        $region90: #{shiftnet_forward.3} parent=73 // pred_fallthru
          _
        // Predicated region
        $region91: #{shiftnet_forward.3} parent=73 // pred_check
          %p4133 = pneg %p150
        $region92: #{shiftnet_forward.3} parent=73 // pred_check_branch
          %4135 = sbr.rel (%p4133) target = $region94
        $region93: #{shiftnet_forward.3} parent=73 // pred_region
          %4136 = dma.done [#allocation6], 32
        $region94: #{shiftnet_forward.3} parent=73 // pred_fallthru
          _
      $region74: #{shiftnet_forward.3} parent=5 // pred_fallthru
        _
      %p4137 = scmp.le.s32.totalorder 2, %s12
      // Predicated region
      $region95: #{shiftnet_forward.3} parent=5 // pred_check
        %p4138 = pneg %p4137
      $region96: #{shiftnet_forward.3} parent=5 // pred_check_branch
        %4140 = sbr.rel (%p4138) target = $region98
      $region97: #{shiftnet_forward.3} parent=5 // pred_region
        %s4141 = ssub.s32 %s12, 2
      $region98: #{shiftnet_forward.3} parent=5 // pred_fallthru
        _
    $region6: #{shiftnet_forward.3} parent=1 // loop_footer
      %s16 = sadd.s32 1, %s12
    $region7: #{shiftnet_forward.3} parent=1 // loop_footer_branch
      %11 = sbr.rel target = $region3
    $region8: #{shiftnet_forward.3} parent=1 // loop_exit
      _
    %4142 = vsyncpa [#allocation6], 1
    %s4143 = scalar_lea.sflag [#allocation6], 1
    %4144 = vsyncpa %s4143, 1

// kernel: shiftnet_forward.2
$region0: #{shiftnet_forward.2}
  #allocation0 [shape = 'u32[]', space=smem, size = 0x4, offset = 0x4, fixed_abs, tag = 'smem constant byte address 0x4 - core index']
  #allocation1 [shape = 'u32[144,128]{1,0:T(1,128)}', space=vmem, size = 0x12000, scoped, tag = 'internal scratch']
  %s0 = inlined_call_operand.vmem [shape: bf16[1152,32], index: 0, kind: input, shape index: {}]
  %s1 = inlined_call_operand.vmem [shape: bf16[32,32], index: 1, kind: input, shape index: {}]
  %s2 = inlined_call_operand.vmem [shape: f32[1,32], index: 2, kind: input, shape index: {}]
  %s3 = inlined_call_operand.vmem [shape: bf16[32,128], index: 3, kind: input, shape index: {}]
  %s4 = inlined_call_operand.vmem [shape: f32[1,128], index: 4, kind: input, shape index: {}]
  %s5 = inlined_call_operand.vmem [shape: bf16[5,128,64], index: 5, kind: input, shape index: {}]
  %s6 = inlined_call_operand.vmem [shape: f32[1,64], index: 6, kind: input, shape index: {}]
  %s7 = inlined_call_operand.vmem [shape: bf16[32,64], index: 7, kind: input, shape index: {}]
  %s8 = inlined_call_operand.vmem [shape: f32[1,64], index: 8, kind: input, shape index: {}]
  %s9 = inlined_call_operand.vmem [shape: f32[5,144,1], index: 9, kind: input, shape index: {}]
  %s10 = inlined_call_operand.vmem [shape: f32[288,64], index: 10, kind: output, shape index: {}]
  %s11 = sld [smem:[#allocation0]]
  $region50: #{shiftnet_forward.2} parent=0
    _
  %s13 = ssub.s32 1, %s11
  %s14 = scalar_select 0, %s13, %s11
  // Predicated region
  $region2: #{shiftnet_forward.2} parent=0 // pred_check
    _
  $region3: #{shiftnet_forward.2} parent=0 // pred_check_branch
    %16 = sbr.rel (0) target = $region5
  $region4: #{shiftnet_forward.2} parent=0 // pred_region
    _
  $region5: #{shiftnet_forward.2} parent=0 // pred_fallthru
    _
  // Predicated region
  $region6: #{shiftnet_forward.2} parent=0 // pred_check
    _
  $region7: #{shiftnet_forward.2} parent=0 // pred_check_branch
    %18 = sbr.rel (0) target = $region9
  $region8: #{shiftnet_forward.2} parent=0 // pred_region
    _
  $region9: #{shiftnet_forward.2} parent=0 // pred_fallthru
    _
  // Predicated region
  $region10: #{shiftnet_forward.2} parent=0 // pred_check
    _
  $region11: #{shiftnet_forward.2} parent=0 // pred_check_branch
    %20 = sbr.rel (0) target = $region13
  $region12: #{shiftnet_forward.2} parent=0 // pred_region
    _
  $region13: #{shiftnet_forward.2} parent=0 // pred_fallthru
    _
  // Predicated region
  $region14: #{shiftnet_forward.2} parent=0 // pred_check
    _
  $region15: #{shiftnet_forward.2} parent=0 // pred_check_branch
    %22 = sbr.rel (0) target = $region17
  $region16: #{shiftnet_forward.2} parent=0 // pred_region
    _
  $region17: #{shiftnet_forward.2} parent=0 // pred_fallthru
    _
  // Predicated region
  $region18: #{shiftnet_forward.2} parent=0 // pred_check
    _
  $region19: #{shiftnet_forward.2} parent=0 // pred_check_branch
    %24 = sbr.rel (0) target = $region21
  $region20: #{shiftnet_forward.2} parent=0 // pred_region
    _
  $region21: #{shiftnet_forward.2} parent=0 // pred_fallthru
    _
  // Predicated region
  $region22: #{shiftnet_forward.2} parent=0 // pred_check
    _
  $region23: #{shiftnet_forward.2} parent=0 // pred_check_branch
    %26 = sbr.rel (0) target = $region25
  $region24: #{shiftnet_forward.2} parent=0 // pred_region
    _
  $region25: #{shiftnet_forward.2} parent=0 // pred_fallthru
    _
  // Predicated region
  $region26: #{shiftnet_forward.2} parent=0 // pred_check
    _
  $region27: #{shiftnet_forward.2} parent=0 // pred_check_branch
    %28 = sbr.rel (0) target = $region29
  $region28: #{shiftnet_forward.2} parent=0 // pred_region
    _
  $region29: #{shiftnet_forward.2} parent=0 // pred_fallthru
    _
  // Predicated region
  $region30: #{shiftnet_forward.2} parent=0 // pred_check
    _
  $region31: #{shiftnet_forward.2} parent=0 // pred_check_branch
    %30 = sbr.rel (0) target = $region33
  $region32: #{shiftnet_forward.2} parent=0 // pred_region
    _
  $region33: #{shiftnet_forward.2} parent=0 // pred_fallthru
    _
  // Predicated region
  $region34: #{shiftnet_forward.2} parent=0 // pred_check
    _
  $region35: #{shiftnet_forward.2} parent=0 // pred_check_branch
    %32 = sbr.rel (0) target = $region37
  $region36: #{shiftnet_forward.2} parent=0 // pred_region
    _
  $region37: #{shiftnet_forward.2} parent=0 // pred_fallthru
    _
  // Predicated region
  $region38: #{shiftnet_forward.2} parent=0 // pred_check
    _
  $region39: #{shiftnet_forward.2} parent=0 // pred_check_branch
    %34 = sbr.rel (0) target = $region41
  $region40: #{shiftnet_forward.2} parent=0 // pred_region
    _
  $region41: #{shiftnet_forward.2} parent=0 // pred_fallthru
    _
  %v36 = vld [vmem:[%s0] sm:$0xf]
  %v37 = vld [vmem:[%s0 + $0x4] sm:$0xf]
  %v38 = vld [vmem:[%s0 + $0x8] sm:$0xf]
  %v39 = vld [vmem:[%s0 + $0xc] sm:$0xf]
  %v40 = vld [vmem:[%s0 + $0x10] sm:$0xf]
  %v41 = vld [vmem:[%s0 + $0x14] sm:$0xf]
  %v42 = vld [vmem:[%s0 + $0x18] sm:$0xf]
  %v43 = vld [vmem:[%s0 + $0x1c] sm:$0xf]
  %v44 = vld [vmem:[%s0 + $0x20] sm:$0xf]
  %v45 = vld [vmem:[%s0 + $0x24] sm:$0xf]
  %v46 = vld [vmem:[%s0 + $0x28] sm:$0xf]
  %v47 = vld [vmem:[%s0 + $0x2c] sm:$0xf]
  %v48 = vld [vmem:[%s0 + $0x30] sm:$0xf]
  %v49 = vld [vmem:[%s0 + $0x34] sm:$0xf]
  %v50 = vld [vmem:[%s0 + $0x38] sm:$0xf]
  %v51 = vld [vmem:[%s0 + $0x3c] sm:$0xf]
  %v52 = vld [vmem:[%s0 + $0x40] sm:$0xf]
  %v53 = vld [vmem:[%s0 + $0x44] sm:$0xf]
  %v54 = vld [vmem:[%s0 + $0x48] sm:$0xf]
  %v55 = vld [vmem:[%s0 + $0x4c] sm:$0xf]
  %v56 = vld [vmem:[%s0 + $0x50] sm:$0xf]
  %v57 = vld [vmem:[%s0 + $0x54] sm:$0xf]
  %v58 = vld [vmem:[%s0 + $0x58] sm:$0xf]
  %v59 = vld [vmem:[%s0 + $0x5c] sm:$0xf]
  %v60 = vld [vmem:[%s0 + $0x60] sm:$0xf]
  %v61 = vld [vmem:[%s0 + $0x64] sm:$0xf]
  %v62 = vld [vmem:[%s0 + $0x68] sm:$0xf]
  %v63 = vld [vmem:[%s0 + $0x6c] sm:$0xf]
  %v64 = vld [vmem:[%s0 + $0x70] sm:$0xf]
  %v65 = vld [vmem:[%s0 + $0x74] sm:$0xf]
  %v66 = vld [vmem:[%s0 + $0x78] sm:$0xf]
  %v67 = vld [vmem:[%s0 + $0x7c] sm:$0xf]
  %v68 = vld [vmem:[%s0 + $0x80] sm:$0xf]
  %v69 = vld [vmem:[%s0 + $0x84] sm:$0xf]
  %v70 = vld [vmem:[%s0 + $0x88] sm:$0xf]
  %v71 = vld [vmem:[%s0 + $0x8c] sm:$0xf]
  %v72 = vld [vmem:[%s0 + $0x90] sm:$0xf]
  %v73 = vld [vmem:[%s0 + $0x94] sm:$0xf]
  %v74 = vld [vmem:[%s0 + $0x98] sm:$0xf]
  %v75 = vld [vmem:[%s0 + $0x9c] sm:$0xf]
  %v76 = vld [vmem:[%s0 + $0xa0] sm:$0xf]
  %v77 = vld [vmem:[%s0 + $0xa4] sm:$0xf]
  %v78 = vld [vmem:[%s0 + $0xa8] sm:$0xf]
  %v79 = vld [vmem:[%s0 + $0xac] sm:$0xf]
  %v80 = vld [vmem:[%s0 + $0xb0] sm:$0xf]
  %v81 = vld [vmem:[%s0 + $0xb4] sm:$0xf]
  %v82 = vld [vmem:[%s0 + $0xb8] sm:$0xf]
  %v83 = vld [vmem:[%s0 + $0xbc] sm:$0xf]
  %v84 = vld [vmem:[%s0 + $0xc0] sm:$0xf]
  %v85 = vld [vmem:[%s0 + $0xc4] sm:$0xf]
  %v86 = vld [vmem:[%s0 + $0xc8] sm:$0xf]
  %v87 = vld [vmem:[%s0 + $0xcc] sm:$0xf]
  %v88 = vld [vmem:[%s0 + $0xd0] sm:$0xf]
  %v89 = vld [vmem:[%s0 + $0xd4] sm:$0xf]
  %v90 = vld [vmem:[%s0 + $0xd8] sm:$0xf]
  %v91 = vld [vmem:[%s0 + $0xdc] sm:$0xf]
  %v92 = vld [vmem:[%s0 + $0xe0] sm:$0xf]
  %v93 = vld [vmem:[%s0 + $0xe4] sm:$0xf]
  %v94 = vld [vmem:[%s0 + $0xe8] sm:$0xf]
  %v95 = vld [vmem:[%s0 + $0xec] sm:$0xf]
  %v96 = vld [vmem:[%s0 + $0xf0] sm:$0xf]
  %v97 = vld [vmem:[%s0 + $0xf4] sm:$0xf]
  %v98 = vld [vmem:[%s0 + $0xf8] sm:$0xf]
  %v99 = vld [vmem:[%s0 + $0xfc] sm:$0xf]
  %v100 = vld [vmem:[%s0 + $0x100] sm:$0xf]
  %v101 = vld [vmem:[%s0 + $0x104] sm:$0xf]
  %v102 = vld [vmem:[%s0 + $0x108] sm:$0xf]
  %v103 = vld [vmem:[%s0 + $0x10c] sm:$0xf]
  %v104 = vld [vmem:[%s0 + $0x110] sm:$0xf]
  %v105 = vld [vmem:[%s0 + $0x114] sm:$0xf]
  %v106 = vld [vmem:[%s0 + $0x118] sm:$0xf]
  %v107 = vld [vmem:[%s0 + $0x11c] sm:$0xf]
  %v108 = vld [vmem:[%s0 + $0x120] sm:$0xf]
  %v109 = vld [vmem:[%s0 + $0x124] sm:$0xf]
  %v110 = vld [vmem:[%s0 + $0x128] sm:$0xf]
  %v111 = vld [vmem:[%s0 + $0x12c] sm:$0xf]
  %v112 = vld [vmem:[%s0 + $0x130] sm:$0xf]
  %v113 = vld [vmem:[%s0 + $0x134] sm:$0xf]
  %v114 = vld [vmem:[%s0 + $0x138] sm:$0xf]
  %v115 = vld [vmem:[%s0 + $0x13c] sm:$0xf]
  %v116 = vld [vmem:[%s0 + $0x140] sm:$0xf]
  %v117 = vld [vmem:[%s0 + $0x144] sm:$0xf]
  %v118 = vld [vmem:[%s0 + $0x148] sm:$0xf]
  %v119 = vld [vmem:[%s0 + $0x14c] sm:$0xf]
  %v120 = vld [vmem:[%s0 + $0x150] sm:$0xf]
  %v121 = vld [vmem:[%s0 + $0x154] sm:$0xf]
  %v122 = vld [vmem:[%s0 + $0x158] sm:$0xf]
  %v123 = vld [vmem:[%s0 + $0x15c] sm:$0xf]
  %v124 = vld [vmem:[%s0 + $0x160] sm:$0xf]
  %v125 = vld [vmem:[%s0 + $0x164] sm:$0xf]
  %v126 = vld [vmem:[%s0 + $0x168] sm:$0xf]
  %v127 = vld [vmem:[%s0 + $0x16c] sm:$0xf]
  %v128 = vld [vmem:[%s0 + $0x170] sm:$0xf]
  %v129 = vld [vmem:[%s0 + $0x174] sm:$0xf]
  %v130 = vld [vmem:[%s0 + $0x178] sm:$0xf]
  %v131 = vld [vmem:[%s0 + $0x17c] sm:$0xf]
  %v132 = vld [vmem:[%s0 + $0x180] sm:$0xf]
  %v133 = vld [vmem:[%s0 + $0x184] sm:$0xf]
  %v134 = vld [vmem:[%s0 + $0x188] sm:$0xf]
  %v135 = vld [vmem:[%s0 + $0x18c] sm:$0xf]
  %v136 = vld [vmem:[%s0 + $0x190] sm:$0xf]
  %v137 = vld [vmem:[%s0 + $0x194] sm:$0xf]
  %v138 = vld [vmem:[%s0 + $0x198] sm:$0xf]
  %v139 = vld [vmem:[%s0 + $0x19c] sm:$0xf]
  %v140 = vld [vmem:[%s0 + $0x1a0] sm:$0xf]
  %v141 = vld [vmem:[%s0 + $0x1a4] sm:$0xf]
  %v142 = vld [vmem:[%s0 + $0x1a8] sm:$0xf]
  %v143 = vld [vmem:[%s0 + $0x1ac] sm:$0xf]
  %v144 = vld [vmem:[%s0 + $0x1b0] sm:$0xf]
  %v145 = vld [vmem:[%s0 + $0x1b4] sm:$0xf]
  %v146 = vld [vmem:[%s0 + $0x1b8] sm:$0xf]
  %v147 = vld [vmem:[%s0 + $0x1bc] sm:$0xf]
  %v148 = vld [vmem:[%s0 + $0x1c0] sm:$0xf]
  %v149 = vld [vmem:[%s0 + $0x1c4] sm:$0xf]
  %v150 = vld [vmem:[%s0 + $0x1c8] sm:$0xf]
  %v151 = vld [vmem:[%s0 + $0x1cc] sm:$0xf]
  %v152 = vld [vmem:[%s0 + $0x1d0] sm:$0xf]
  %v153 = vld [vmem:[%s0 + $0x1d4] sm:$0xf]
  %v154 = vld [vmem:[%s0 + $0x1d8] sm:$0xf]
  %v155 = vld [vmem:[%s0 + $0x1dc] sm:$0xf]
  %v156 = vld [vmem:[%s0 + $0x1e0] sm:$0xf]
  %v157 = vld [vmem:[%s0 + $0x1e4] sm:$0xf]
  %v158 = vld [vmem:[%s0 + $0x1e8] sm:$0xf]
  %v159 = vld [vmem:[%s0 + $0x1ec] sm:$0xf]
  %v160 = vld [vmem:[%s0 + $0x1f0] sm:$0xf]
  %v161 = vld [vmem:[%s0 + $0x1f4] sm:$0xf]
  %v162 = vld [vmem:[%s0 + $0x1f8] sm:$0xf]
  %v163 = vld [vmem:[%s0 + $0x1fc] sm:$0xf]
  %v164 = vld [vmem:[%s0 + $0x200] sm:$0xf]
  %v165 = vld [vmem:[%s0 + $0x204] sm:$0xf]
  %v166 = vld [vmem:[%s0 + $0x208] sm:$0xf]
  %v167 = vld [vmem:[%s0 + $0x20c] sm:$0xf]
  %v168 = vld [vmem:[%s0 + $0x210] sm:$0xf]
  %v169 = vld [vmem:[%s0 + $0x214] sm:$0xf]
  %v170 = vld [vmem:[%s0 + $0x218] sm:$0xf]
  %v171 = vld [vmem:[%s0 + $0x21c] sm:$0xf]
  %v172 = vld [vmem:[%s0 + $0x220] sm:$0xf]
  %v173 = vld [vmem:[%s0 + $0x224] sm:$0xf]
  %v174 = vld [vmem:[%s0 + $0x228] sm:$0xf]
  %v175 = vld [vmem:[%s0 + $0x22c] sm:$0xf]
  %v176 = vld [vmem:[%s0 + $0x230] sm:$0xf]
  %v177 = vld [vmem:[%s0 + $0x234] sm:$0xf]
  %v178 = vld [vmem:[%s0 + $0x238] sm:$0xf]
  %v179 = vld [vmem:[%s0 + $0x23c] sm:$0xf]
  %v180 = vld [vmem:[%s1] sm:$0xf]
  %v181 = vld [vmem:[%s1 + $0x4] sm:$0xf]
  %v182 = vld [vmem:[%s1 + $0x8] sm:$0xf]
  %v183 = vld [vmem:[%s1 + $0xc] sm:$0xf]
  %v184 = vld [vmem:[%s2] sm:$0x1]
  %v186 = vlaneseq
  %v187 = vshrl.u32 %v186, 7
  %v188 = vsub.s32 0, %v187
  %v189 = vrot.slane %v184, %v188
  %v335 = vunpack.c.l.b16 %v36
  %v336 = vunpack.c.l.b16 %v37
  %v337 = vunpack.c.l.b16 %v38
  %v338 = vunpack.c.l.b16 %v39
  %v339 = vunpack.c.l.b16 %v40
  %v340 = vunpack.c.l.b16 %v41
  %v341 = vunpack.c.l.b16 %v42
  %v342 = vunpack.c.l.b16 %v43
  %v343 = vunpack.c.l.b16 %v44
  %v344 = vunpack.c.l.b16 %v45
  %v345 = vunpack.c.l.b16 %v46
  %v346 = vunpack.c.l.b16 %v47
  %v347 = vunpack.c.l.b16 %v48
  %v348 = vunpack.c.l.b16 %v49
  %v349 = vunpack.c.l.b16 %v50
  %v350 = vunpack.c.l.b16 %v51
  %v351 = vunpack.c.l.b16 %v52
  %v352 = vunpack.c.l.b16 %v53
  %v353 = vunpack.c.l.b16 %v54
  %v354 = vunpack.c.l.b16 %v55
  %v355 = vunpack.c.l.b16 %v56
  %v356 = vunpack.c.l.b16 %v57
  %v357 = vunpack.c.l.b16 %v58
  %v358 = vunpack.c.l.b16 %v59
  %v359 = vunpack.c.l.b16 %v60
  %v360 = vunpack.c.l.b16 %v61
  %v361 = vunpack.c.l.b16 %v62
  %v362 = vunpack.c.l.b16 %v63
  %v363 = vunpack.c.l.b16 %v64
  %v364 = vunpack.c.l.b16 %v65
  %v365 = vunpack.c.l.b16 %v66
  %v366 = vunpack.c.l.b16 %v67
  %v367 = vunpack.c.l.b16 %v68
  %v368 = vunpack.c.l.b16 %v69
  %v369 = vunpack.c.l.b16 %v70
  %v370 = vunpack.c.l.b16 %v71
  %v371 = vunpack.c.l.b16 %v72
  %v372 = vunpack.c.l.b16 %v73
  %v373 = vunpack.c.l.b16 %v74
  %v374 = vunpack.c.l.b16 %v75
  %v375 = vunpack.c.l.b16 %v76
  %v376 = vunpack.c.l.b16 %v77
  %v377 = vunpack.c.l.b16 %v78
  %v378 = vunpack.c.l.b16 %v79
  %v379 = vunpack.c.l.b16 %v80
  %v380 = vunpack.c.l.b16 %v81
  %v381 = vunpack.c.l.b16 %v82
  %v382 = vunpack.c.l.b16 %v83
  %v383 = vunpack.c.l.b16 %v84
  %v384 = vunpack.c.l.b16 %v85
  %v385 = vunpack.c.l.b16 %v86
  %v386 = vunpack.c.l.b16 %v87
  %v387 = vunpack.c.l.b16 %v88
  %v388 = vunpack.c.l.b16 %v89
  %v389 = vunpack.c.l.b16 %v90
  %v390 = vunpack.c.l.b16 %v91
  %v391 = vunpack.c.l.b16 %v92
  %v392 = vunpack.c.l.b16 %v93
  %v393 = vunpack.c.l.b16 %v94
  %v394 = vunpack.c.l.b16 %v95
  %v395 = vunpack.c.l.b16 %v96
  %v396 = vunpack.c.l.b16 %v97
  %v397 = vunpack.c.l.b16 %v98
  %v398 = vunpack.c.l.b16 %v99
  %v399 = vunpack.c.l.b16 %v100
  %v400 = vunpack.c.l.b16 %v101
  %v401 = vunpack.c.l.b16 %v102
  %v402 = vunpack.c.l.b16 %v103
  %v403 = vunpack.c.l.b16 %v104
  %v404 = vunpack.c.l.b16 %v105
  %v405 = vunpack.c.l.b16 %v106
  %v406 = vunpack.c.l.b16 %v107
  %v407 = vunpack.c.l.b16 %v108
  %v408 = vunpack.c.l.b16 %v109
  %v409 = vunpack.c.l.b16 %v110
  %v410 = vunpack.c.l.b16 %v111
  %v411 = vunpack.c.l.b16 %v112
  %v412 = vunpack.c.l.b16 %v113
  %v413 = vunpack.c.l.b16 %v114
  %v414 = vunpack.c.l.b16 %v115
  %v415 = vunpack.c.l.b16 %v116
  %v416 = vunpack.c.l.b16 %v117
  %v417 = vunpack.c.l.b16 %v118
  %v418 = vunpack.c.l.b16 %v119
  %v419 = vunpack.c.l.b16 %v120
  %v420 = vunpack.c.l.b16 %v121
  %v421 = vunpack.c.l.b16 %v122
  %v422 = vunpack.c.l.b16 %v123
  %v423 = vunpack.c.l.b16 %v124
  %v424 = vunpack.c.l.b16 %v125
  %v425 = vunpack.c.l.b16 %v126
  %v426 = vunpack.c.l.b16 %v127
  %v427 = vunpack.c.l.b16 %v128
  %v428 = vunpack.c.l.b16 %v129
  %v429 = vunpack.c.l.b16 %v130
  %v430 = vunpack.c.l.b16 %v131
  %v431 = vunpack.c.l.b16 %v132
  %v432 = vunpack.c.l.b16 %v133
  %v433 = vunpack.c.l.b16 %v134
  %v434 = vunpack.c.l.b16 %v135
  %v435 = vunpack.c.l.b16 %v136
  %v436 = vunpack.c.l.b16 %v137
  %v437 = vunpack.c.l.b16 %v138
  %v438 = vunpack.c.l.b16 %v139
  %v439 = vunpack.c.l.b16 %v140
  %v440 = vunpack.c.l.b16 %v141
  %v441 = vunpack.c.l.b16 %v142
  %v442 = vunpack.c.l.b16 %v143
  %v443 = vunpack.c.l.b16 %v144
  %v444 = vunpack.c.l.b16 %v145
  %v445 = vunpack.c.l.b16 %v146
  %v446 = vunpack.c.l.b16 %v147
  %v447 = vunpack.c.l.b16 %v148
  %v448 = vunpack.c.l.b16 %v149
  %v449 = vunpack.c.l.b16 %v150
  %v450 = vunpack.c.l.b16 %v151
  %v451 = vunpack.c.l.b16 %v152
  %v452 = vunpack.c.l.b16 %v153
  %v453 = vunpack.c.l.b16 %v154
  %v454 = vunpack.c.l.b16 %v155
  %v455 = vunpack.c.l.b16 %v156
  %v456 = vunpack.c.l.b16 %v157
  %v457 = vunpack.c.l.b16 %v158
  %v458 = vunpack.c.l.b16 %v159
  %v459 = vunpack.c.l.b16 %v160
  %v460 = vunpack.c.l.b16 %v161
  %v461 = vunpack.c.l.b16 %v162
  %v462 = vunpack.c.l.b16 %v163
  %v463 = vunpack.c.l.b16 %v164
  %v464 = vunpack.c.l.b16 %v165
  %v465 = vunpack.c.l.b16 %v166
  %v466 = vunpack.c.l.b16 %v167
  %v467 = vunpack.c.l.b16 %v168
  %v468 = vunpack.c.l.b16 %v169
  %v469 = vunpack.c.l.b16 %v170
  %v470 = vunpack.c.l.b16 %v171
  %v471 = vunpack.c.l.b16 %v172
  %v472 = vunpack.c.l.b16 %v173
  %v473 = vunpack.c.l.b16 %v174
  %v474 = vunpack.c.l.b16 %v175
  %v475 = vunpack.c.l.b16 %v176
  %v476 = vunpack.c.l.b16 %v177
  %v477 = vunpack.c.l.b16 %v178
  %v478 = vunpack.c.l.b16 %v179
  %v479 = vpack.c.b16 %v336, %v335
  %v480 = vpack.c.b16 %v338, %v337
  %v481 = vpack.c.b16 %v340, %v339
  %v482 = vpack.c.b16 %v342, %v341
  %v483 = vpack.c.b16 %v344, %v343
  %v484 = vpack.c.b16 %v346, %v345
  %v485 = vpack.c.b16 %v348, %v347
  %v486 = vpack.c.b16 %v350, %v349
  %v487 = vpack.c.b16 %v352, %v351
  %v488 = vpack.c.b16 %v354, %v353
  %v489 = vpack.c.b16 %v356, %v355
  %v490 = vpack.c.b16 %v358, %v357
  %v491 = vpack.c.b16 %v360, %v359
  %v492 = vpack.c.b16 %v362, %v361
  %v493 = vpack.c.b16 %v364, %v363
  %v494 = vpack.c.b16 %v366, %v365
  %v495 = vpack.c.b16 %v368, %v367
  %v496 = vpack.c.b16 %v370, %v369
  %v497 = vpack.c.b16 %v372, %v371
  %v498 = vpack.c.b16 %v374, %v373
  %v499 = vpack.c.b16 %v376, %v375
  %v500 = vpack.c.b16 %v378, %v377
  %v501 = vpack.c.b16 %v380, %v379
  %v502 = vpack.c.b16 %v382, %v381
  %v503 = vpack.c.b16 %v384, %v383
  %v504 = vpack.c.b16 %v386, %v385
  %v505 = vpack.c.b16 %v388, %v387
  %v506 = vpack.c.b16 %v390, %v389
  %v507 = vpack.c.b16 %v392, %v391
  %v508 = vpack.c.b16 %v394, %v393
  %v509 = vpack.c.b16 %v396, %v395
  %v510 = vpack.c.b16 %v398, %v397
  %v511 = vpack.c.b16 %v400, %v399
  %v512 = vpack.c.b16 %v402, %v401
  %v513 = vpack.c.b16 %v404, %v403
  %v514 = vpack.c.b16 %v406, %v405
  %v515 = vpack.c.b16 %v408, %v407
  %v516 = vpack.c.b16 %v410, %v409
  %v517 = vpack.c.b16 %v412, %v411
  %v518 = vpack.c.b16 %v414, %v413
  %v519 = vpack.c.b16 %v416, %v415
  %v520 = vpack.c.b16 %v418, %v417
  %v521 = vpack.c.b16 %v420, %v419
  %v522 = vpack.c.b16 %v422, %v421
  %v523 = vpack.c.b16 %v424, %v423
  %v524 = vpack.c.b16 %v426, %v425
  %v525 = vpack.c.b16 %v428, %v427
  %v526 = vpack.c.b16 %v430, %v429
  %v527 = vpack.c.b16 %v432, %v431
  %v528 = vpack.c.b16 %v434, %v433
  %v529 = vpack.c.b16 %v436, %v435
  %v530 = vpack.c.b16 %v438, %v437
  %v531 = vpack.c.b16 %v440, %v439
  %v532 = vpack.c.b16 %v442, %v441
  %v533 = vpack.c.b16 %v444, %v443
  %v534 = vpack.c.b16 %v446, %v445
  %v535 = vpack.c.b16 %v448, %v447
  %v536 = vpack.c.b16 %v450, %v449
  %v537 = vpack.c.b16 %v452, %v451
  %v538 = vpack.c.b16 %v454, %v453
  %v539 = vpack.c.b16 %v456, %v455
  %v540 = vpack.c.b16 %v458, %v457
  %v541 = vpack.c.b16 %v460, %v459
  %v542 = vpack.c.b16 %v462, %v461
  %v543 = vpack.c.b16 %v464, %v463
  %v544 = vpack.c.b16 %v466, %v465
  %v545 = vpack.c.b16 %v468, %v467
  %v546 = vpack.c.b16 %v470, %v469
  %v547 = vpack.c.b16 %v472, %v471
  %v548 = vpack.c.b16 %v474, %v473
  %v549 = vpack.c.b16 %v476, %v475
  %v550 = vpack.c.b16 %v478, %v477
  %v555 = vunpack.c.l.b16 %v180
  %v556 = vunpack.c.l.b16 %v181
  %v557 = vunpack.c.l.b16 %v182
  %v558 = vunpack.c.l.b16 %v183
  %v559 = vpack.c.b16 %v556, %v555
  %v560 = vpack.c.b16 %v558, %v557
  %vm563 = vcmask 261120
  %v565 = vsel %vm563, %v479, 0
  %v568 = vsel %vm563, %v480, 0
  %v571 = vsel %vm563, %v481, 0
  %v574 = vsel %vm563, %v482, 0
  %v577 = vsel %vm563, %v483, 0
  %v580 = vsel %vm563, %v484, 0
  %v583 = vsel %vm563, %v485, 0
  %v586 = vsel %vm563, %v486, 0
  %v589 = vsel %vm563, %v487, 0
  %v592 = vsel %vm563, %v488, 0
  %v595 = vsel %vm563, %v489, 0
  %v598 = vsel %vm563, %v490, 0
  %v601 = vsel %vm563, %v491, 0
  %v604 = vsel %vm563, %v492, 0
  %v607 = vsel %vm563, %v493, 0
  %v610 = vsel %vm563, %v494, 0
  %v613 = vsel %vm563, %v495, 0
  %v616 = vsel %vm563, %v496, 0
  %v619 = vsel %vm563, %v497, 0
  %v622 = vsel %vm563, %v498, 0
  %v625 = vsel %vm563, %v499, 0
  %v628 = vsel %vm563, %v500, 0
  %v631 = vsel %vm563, %v501, 0
  %v634 = vsel %vm563, %v502, 0
  %v637 = vsel %vm563, %v503, 0
  %v640 = vsel %vm563, %v504, 0
  %v643 = vsel %vm563, %v505, 0
  %v646 = vsel %vm563, %v506, 0
  %v649 = vsel %vm563, %v507, 0
  %v652 = vsel %vm563, %v508, 0
  %v655 = vsel %vm563, %v509, 0
  %v658 = vsel %vm563, %v510, 0
  %v661 = vsel %vm563, %v511, 0
  %v664 = vsel %vm563, %v512, 0
  %v667 = vsel %vm563, %v513, 0
  %v670 = vsel %vm563, %v514, 0
  %v673 = vsel %vm563, %v515, 0
  %v676 = vsel %vm563, %v516, 0
  %v679 = vsel %vm563, %v517, 0
  %v682 = vsel %vm563, %v518, 0
  %v685 = vsel %vm563, %v519, 0
  %v688 = vsel %vm563, %v520, 0
  %v691 = vsel %vm563, %v521, 0
  %v694 = vsel %vm563, %v522, 0
  %v697 = vsel %vm563, %v523, 0
  %v700 = vsel %vm563, %v524, 0
  %v703 = vsel %vm563, %v525, 0
  %v706 = vsel %vm563, %v526, 0
  %v709 = vsel %vm563, %v527, 0
  %v712 = vsel %vm563, %v528, 0
  %v715 = vsel %vm563, %v529, 0
  %v718 = vsel %vm563, %v530, 0
  %v721 = vsel %vm563, %v531, 0
  %v724 = vsel %vm563, %v532, 0
  %v727 = vsel %vm563, %v533, 0
  %v730 = vsel %vm563, %v534, 0
  %v733 = vsel %vm563, %v535, 0
  %v736 = vsel %vm563, %v536, 0
  %v739 = vsel %vm563, %v537, 0
  %v742 = vsel %vm563, %v538, 0
  %v745 = vsel %vm563, %v539, 0
  %v748 = vsel %vm563, %v540, 0
  %v751 = vsel %vm563, %v541, 0
  %v754 = vsel %vm563, %v542, 0
  %v757 = vsel %vm563, %v543, 0
  %v760 = vsel %vm563, %v544, 0
  %v763 = vsel %vm563, %v545, 0
  %v766 = vsel %vm563, %v546, 0
  %v769 = vsel %vm563, %v547, 0
  %v772 = vsel %vm563, %v548, 0
  %v775 = vsel %vm563, %v549, 0
  %v778 = vsel %vm563, %v550, 0
  %780 = vmatprep.subr.bf16.mxu0 0
  %781 = vmatpush1.bf16.msra.mxu0 %v559
  %782 = vmatprep.subr.bf16.mxu0 0
  %783 = vmatpush1.bf16.msra.mxu0 %v560
  %784 = vmatprep.subr.bf16.mxu0 0
  %785 = vmatpush1.bf16.msra.mxu0 0
  %786 = vmatprep.subr.bf16.mxu0 0
  %787 = vmatpush1.bf16.msra.mxu0 0
  %788 = vmatprep.subr.bf16.mxu0 0
  %789 = vmatpush1.bf16.msra.mxu0 0
  %790 = vmatprep.subr.bf16.mxu0 0
  %791 = vmatpush1.bf16.msra.mxu0 0
  %792 = vmatprep.subr.bf16.mxu0 0
  %793 = vmatpush1.bf16.msra.mxu0 0
  %794 = vmatprep.subr.bf16.mxu0 0
  %795 = vmatpush1.bf16.msra.mxu0 0
  %796 = vmatprep.subr.bf16.mxu0 0
  %797 = vmatpush1.bf16.msra.mxu0 0
  %798 = vmatprep.subr.bf16.mxu0 0
  %799 = vmatpush1.bf16.msra.mxu0 0
  %800 = vmatprep.subr.bf16.mxu0 0
  %801 = vmatpush1.bf16.msra.mxu0 0
  %802 = vmatprep.subr.bf16.mxu0 0
  %803 = vmatpush1.bf16.msra.mxu0 0
  %804 = vmatprep.subr.bf16.mxu0 0
  %805 = vmatpush1.bf16.msra.mxu0 0
  %806 = vmatprep.subr.bf16.mxu0 0
  %807 = vmatpush1.bf16.msra.mxu0 0
  %808 = vmatprep.subr.bf16.mxu0 0
  %809 = vmatpush1.bf16.msra.mxu0 0
  %810 = vmatprep.subr.bf16.mxu0 0
  %811 = vmatpush1.bf16.msra.mxu0 0
  %812 = vmatprep.mubr.bf16.mxu0 0
  %813 = vmatmul.mubr.bf16.gmra.mrb[0].mxu0 %v565
  %v814 = vpop.f32.mrb[0].mxu0
  %v815 = vadd.f32 %v189, %v814
  %v816 = vpop.f32.mrb[0].mxu0
  %v817 = vpop.f32.mrb[0].mxu0
  %v818 = vadd.f32 %v189, %v817
  %v819 = vpop.f32.mrb[0].mxu0
  %820 = vmatprep.mubr.bf16.mxu0 0
  %821 = vmatmul.mubr.bf16.gmra.mrb[0].mxu0 %v568
  %v822 = vpop.f32.mrb[0].mxu0
  %v823 = vadd.f32 %v189, %v822
  %v824 = vpop.f32.mrb[0].mxu0
  %v825 = vpop.f32.mrb[0].mxu0
  %v826 = vadd.f32 %v189, %v825
  %v827 = vpop.f32.mrb[0].mxu0
  %828 = vmatprep.mubr.bf16.mxu0 0
  %829 = vmatmul.mubr.bf16.gmra.mrb[0].mxu0 %v571
  %v830 = vpop.f32.mrb[0].mxu0
  %v831 = vadd.f32 %v189, %v830
  %v832 = vpop.f32.mrb[0].mxu0
  %v833 = vpop.f32.mrb[0].mxu0
  %v834 = vadd.f32 %v189, %v833
  %v835 = vpop.f32.mrb[0].mxu0
  %836 = vmatprep.mubr.bf16.mxu0 0
  %837 = vmatmul.mubr.bf16.gmra.mrb[0].mxu0 %v574
  %v838 = vpop.f32.mrb[0].mxu0
  %v839 = vadd.f32 %v189, %v838
  %v840 = vpop.f32.mrb[0].mxu0
  %v841 = vpop.f32.mrb[0].mxu0
  %v842 = vadd.f32 %v189, %v841
  %v843 = vpop.f32.mrb[0].mxu0
  %844 = vmatprep.mubr.bf16.mxu0 0
  %845 = vmatmul.mubr.bf16.gmra.mrb[0].mxu0 %v577
  %v846 = vpop.f32.mrb[0].mxu0
  %v847 = vadd.f32 %v189, %v846
  %v848 = vpop.f32.mrb[0].mxu0
  %v849 = vpop.f32.mrb[0].mxu0
  %v850 = vadd.f32 %v189, %v849
  %v851 = vpop.f32.mrb[0].mxu0
  %852 = vmatprep.mubr.bf16.mxu0 0
  %853 = vmatmul.mubr.bf16.gmra.mrb[0].mxu0 %v580
  %v854 = vpop.f32.mrb[0].mxu0
  %v855 = vadd.f32 %v189, %v854
  %v856 = vpop.f32.mrb[0].mxu0
  %v857 = vpop.f32.mrb[0].mxu0
  %v858 = vadd.f32 %v189, %v857
  %v859 = vpop.f32.mrb[0].mxu0
  %860 = vmatprep.mubr.bf16.mxu0 0
  %861 = vmatmul.mubr.bf16.gmra.mrb[0].mxu0 %v583
  %v862 = vpop.f32.mrb[0].mxu0
  %v863 = vadd.f32 %v189, %v862
  %v864 = vpop.f32.mrb[0].mxu0
  %v865 = vpop.f32.mrb[0].mxu0
  %v866 = vadd.f32 %v189, %v865
  %v867 = vpop.f32.mrb[0].mxu0
  %868 = vmatprep.mubr.bf16.mxu0 0
  %869 = vmatmul.mubr.bf16.gmra.mrb[0].mxu0 %v586
  %v870 = vpop.f32.mrb[0].mxu0
  %v871 = vadd.f32 %v189, %v870
  %v872 = vpop.f32.mrb[0].mxu0
  %v873 = vpop.f32.mrb[0].mxu0
  %v874 = vadd.f32 %v189, %v873
  %v875 = vpop.f32.mrb[0].mxu0
  %876 = vmatprep.mubr.bf16.mxu0 0
  %877 = vmatmul.mubr.bf16.gmra.mrb[0].mxu0 %v589
  %v878 = vpop.f32.mrb[0].mxu0
  %v879 = vadd.f32 %v189, %v878
  %v880 = vpop.f32.mrb[0].mxu0
  %v881 = vpop.f32.mrb[0].mxu0
  %v882 = vadd.f32 %v189, %v881
  %v883 = vpop.f32.mrb[0].mxu0
  %884 = vmatprep.mubr.bf16.mxu0 0
  %885 = vmatmul.mubr.bf16.gmra.mrb[0].mxu0 %v592
  %v886 = vpop.f32.mrb[0].mxu0
  %v887 = vadd.f32 %v189, %v886
  %v888 = vpop.f32.mrb[0].mxu0
  %v889 = vpop.f32.mrb[0].mxu0
  %v890 = vadd.f32 %v189, %v889
  %v891 = vpop.f32.mrb[0].mxu0
  %892 = vmatprep.mubr.bf16.mxu0 0
  %893 = vmatmul.mubr.bf16.gmra.mrb[0].mxu0 %v595
  %v894 = vpop.f32.mrb[0].mxu0
  %v895 = vadd.f32 %v189, %v894
  %v896 = vpop.f32.mrb[0].mxu0
  %v897 = vpop.f32.mrb[0].mxu0
  %v898 = vadd.f32 %v189, %v897
  %v899 = vpop.f32.mrb[0].mxu0
  %900 = vmatprep.mubr.bf16.mxu0 0
  %901 = vmatmul.mubr.bf16.gmra.mrb[0].mxu0 %v598
  %v902 = vpop.f32.mrb[0].mxu0
  %v903 = vadd.f32 %v189, %v902
  %v904 = vpop.f32.mrb[0].mxu0
  %v905 = vpop.f32.mrb[0].mxu0
  %v906 = vadd.f32 %v189, %v905
  %v907 = vpop.f32.mrb[0].mxu0
  %908 = vmatprep.mubr.bf16.mxu0 0
  %909 = vmatmul.mubr.bf16.gmra.mrb[0].mxu0 %v601
  %v910 = vpop.f32.mrb[0].mxu0
  %v911 = vadd.f32 %v189, %v910
  %v912 = vpop.f32.mrb[0].mxu0
  %v913 = vpop.f32.mrb[0].mxu0
  %v914 = vadd.f32 %v189, %v913
  %v915 = vpop.f32.mrb[0].mxu0
  %916 = vmatprep.mubr.bf16.mxu0 0
  %917 = vmatmul.mubr.bf16.gmra.mrb[0].mxu0 %v604
  %v918 = vpop.f32.mrb[0].mxu0
  %v919 = vadd.f32 %v189, %v918
  %v920 = vpop.f32.mrb[0].mxu0
  %v921 = vpop.f32.mrb[0].mxu0
  %v922 = vadd.f32 %v189, %v921
  %v923 = vpop.f32.mrb[0].mxu0
  %924 = vmatprep.mubr.bf16.mxu0 0
  %925 = vmatmul.mubr.bf16.gmra.mrb[0].mxu0 %v607
  %v926 = vpop.f32.mrb[0].mxu0
  %v927 = vadd.f32 %v189, %v926
  %v928 = vpop.f32.mrb[0].mxu0
  %v929 = vpop.f32.mrb[0].mxu0
  %v930 = vadd.f32 %v189, %v929
  %v931 = vpop.f32.mrb[0].mxu0
  %932 = vmatprep.mubr.bf16.mxu0 0
  %933 = vmatmul.mubr.bf16.gmra.mrb[0].mxu0 %v610
  %v934 = vpop.f32.mrb[0].mxu0
  %v935 = vadd.f32 %v189, %v934
  %v936 = vpop.f32.mrb[0].mxu0
  %v937 = vpop.f32.mrb[0].mxu0
  %v938 = vadd.f32 %v189, %v937
  %v939 = vpop.f32.mrb[0].mxu0
  %940 = vmatprep.mubr.bf16.mxu0 0
  %941 = vmatmul.mubr.bf16.gmra.mrb[0].mxu0 %v613
  %v942 = vpop.f32.mrb[0].mxu0
  %v943 = vadd.f32 %v189, %v942
  %v944 = vpop.f32.mrb[0].mxu0
  %v945 = vpop.f32.mrb[0].mxu0
  %v946 = vadd.f32 %v189, %v945
  %v947 = vpop.f32.mrb[0].mxu0
  %948 = vmatprep.mubr.bf16.mxu0 0
  %949 = vmatmul.mubr.bf16.gmra.mrb[0].mxu0 %v616
  %v950 = vpop.f32.mrb[0].mxu0
  %v951 = vadd.f32 %v189, %v950
  %v952 = vpop.f32.mrb[0].mxu0
  %v953 = vpop.f32.mrb[0].mxu0
  %v954 = vadd.f32 %v189, %v953
  %v955 = vpop.f32.mrb[0].mxu0
  %956 = vmatprep.mubr.bf16.mxu0 0
  %957 = vmatmul.mubr.bf16.gmra.mrb[0].mxu0 %v619
  %v958 = vpop.f32.mrb[0].mxu0
  %v959 = vadd.f32 %v189, %v958
  %v960 = vpop.f32.mrb[0].mxu0
  %v961 = vpop.f32.mrb[0].mxu0
  %v962 = vadd.f32 %v189, %v961
  %v963 = vpop.f32.mrb[0].mxu0
  %964 = vmatprep.mubr.bf16.mxu0 0
  %965 = vmatmul.mubr.bf16.gmra.mrb[0].mxu0 %v622
  %v966 = vpop.f32.mrb[0].mxu0
  %v967 = vadd.f32 %v189, %v966
  %v968 = vpop.f32.mrb[0].mxu0
  %v969 = vpop.f32.mrb[0].mxu0
  %v970 = vadd.f32 %v189, %v969
  %v971 = vpop.f32.mrb[0].mxu0
  %972 = vmatprep.mubr.bf16.mxu0 0
  %973 = vmatmul.mubr.bf16.gmra.mrb[0].mxu0 %v625
  %v974 = vpop.f32.mrb[0].mxu0
  %v975 = vadd.f32 %v189, %v974
  %v976 = vpop.f32.mrb[0].mxu0
  %v977 = vpop.f32.mrb[0].mxu0
  %v978 = vadd.f32 %v189, %v977
  %v979 = vpop.f32.mrb[0].mxu0
  %980 = vmatprep.mubr.bf16.mxu0 0
  %981 = vmatmul.mubr.bf16.gmra.mrb[0].mxu0 %v628
  %v982 = vpop.f32.mrb[0].mxu0
  %v983 = vadd.f32 %v189, %v982
  %v984 = vpop.f32.mrb[0].mxu0
  %v985 = vpop.f32.mrb[0].mxu0
  %v986 = vadd.f32 %v189, %v985
  %v987 = vpop.f32.mrb[0].mxu0
  %988 = vmatprep.mubr.bf16.mxu0 0
  %989 = vmatmul.mubr.bf16.gmra.mrb[0].mxu0 %v631
  %v990 = vpop.f32.mrb[0].mxu0
  %v991 = vadd.f32 %v189, %v990
  %v992 = vpop.f32.mrb[0].mxu0
  %v993 = vpop.f32.mrb[0].mxu0
  %v994 = vadd.f32 %v189, %v993
  %v995 = vpop.f32.mrb[0].mxu0
  %996 = vmatprep.mubr.bf16.mxu0 0
  %997 = vmatmul.mubr.bf16.gmra.mrb[0].mxu0 %v634
  %v998 = vpop.f32.mrb[0].mxu0
  %v999 = vadd.f32 %v189, %v998
  %v1000 = vpop.f32.mrb[0].mxu0
  %v1001 = vpop.f32.mrb[0].mxu0
  %v1002 = vadd.f32 %v189, %v1001
  %v1003 = vpop.f32.mrb[0].mxu0
  %1004 = vmatprep.mubr.bf16.mxu0 0
  %1005 = vmatmul.mubr.bf16.gmra.mrb[0].mxu0 %v637
  %v1006 = vpop.f32.mrb[0].mxu0
  %v1007 = vadd.f32 %v189, %v1006
  %v1008 = vpop.f32.mrb[0].mxu0
  %v1009 = vpop.f32.mrb[0].mxu0
  %v1010 = vadd.f32 %v189, %v1009
  %v1011 = vpop.f32.mrb[0].mxu0
  %1012 = vmatprep.mubr.bf16.mxu0 0
  %1013 = vmatmul.mubr.bf16.gmra.mrb[0].mxu0 %v640
  %v1014 = vpop.f32.mrb[0].mxu0
  %v1015 = vadd.f32 %v189, %v1014
  %v1016 = vpop.f32.mrb[0].mxu0
  %v1017 = vpop.f32.mrb[0].mxu0
  %v1018 = vadd.f32 %v189, %v1017
  %v1019 = vpop.f32.mrb[0].mxu0
  %1020 = vmatprep.mubr.bf16.mxu0 0
  %1021 = vmatmul.mubr.bf16.gmra.mrb[0].mxu0 %v643
  %v1022 = vpop.f32.mrb[0].mxu0
  %v1023 = vadd.f32 %v189, %v1022
  %v1024 = vpop.f32.mrb[0].mxu0
  %v1025 = vpop.f32.mrb[0].mxu0
  %v1026 = vadd.f32 %v189, %v1025
  %v1027 = vpop.f32.mrb[0].mxu0
  %1028 = vmatprep.mubr.bf16.mxu0 0
  %1029 = vmatmul.mubr.bf16.gmra.mrb[0].mxu0 %v646
  %v1030 = vpop.f32.mrb[0].mxu0
  %v1031 = vadd.f32 %v189, %v1030
  %v1032 = vpop.f32.mrb[0].mxu0
  %v1033 = vpop.f32.mrb[0].mxu0
  %v1034 = vadd.f32 %v189, %v1033
  %v1035 = vpop.f32.mrb[0].mxu0
  %1036 = vmatprep.mubr.bf16.mxu0 0
  %1037 = vmatmul.mubr.bf16.gmra.mrb[0].mxu0 %v649
  %v1038 = vpop.f32.mrb[0].mxu0
  %v1039 = vadd.f32 %v189, %v1038
  %v1040 = vpop.f32.mrb[0].mxu0
  %v1041 = vpop.f32.mrb[0].mxu0
  %v1042 = vadd.f32 %v189, %v1041
  %v1043 = vpop.f32.mrb[0].mxu0
  %1044 = vmatprep.mubr.bf16.mxu0 0
  %1045 = vmatmul.mubr.bf16.gmra.mrb[0].mxu0 %v652
  %v1046 = vpop.f32.mrb[0].mxu0
  %v1047 = vadd.f32 %v189, %v1046
  %v1048 = vpop.f32.mrb[0].mxu0
  %v1049 = vpop.f32.mrb[0].mxu0
  %v1050 = vadd.f32 %v189, %v1049
  %v1051 = vpop.f32.mrb[0].mxu0
  %1052 = vmatprep.mubr.bf16.mxu0 0
  %1053 = vmatmul.mubr.bf16.gmra.mrb[0].mxu0 %v655
  %v1054 = vpop.f32.mrb[0].mxu0
  %v1055 = vadd.f32 %v189, %v1054
  %v1056 = vpop.f32.mrb[0].mxu0
  %v1057 = vpop.f32.mrb[0].mxu0
  %v1058 = vadd.f32 %v189, %v1057
  %v1059 = vpop.f32.mrb[0].mxu0
  %1060 = vmatprep.mubr.bf16.mxu0 0
  %1061 = vmatmul.mubr.bf16.gmra.mrb[0].mxu0 %v658
  %v1062 = vpop.f32.mrb[0].mxu0
  %v1063 = vadd.f32 %v189, %v1062
  %v1064 = vpop.f32.mrb[0].mxu0
  %v1065 = vpop.f32.mrb[0].mxu0
  %v1066 = vadd.f32 %v189, %v1065
  %v1067 = vpop.f32.mrb[0].mxu0
  %1068 = vmatprep.mubr.bf16.mxu0 0
  %1069 = vmatmul.mubr.bf16.gmra.mrb[0].mxu0 %v661
  %v1070 = vpop.f32.mrb[0].mxu0
  %v1071 = vadd.f32 %v189, %v1070
  %v1072 = vpop.f32.mrb[0].mxu0
  %v1073 = vpop.f32.mrb[0].mxu0
  %v1074 = vadd.f32 %v189, %v1073
  %v1075 = vpop.f32.mrb[0].mxu0
  %1076 = vmatprep.mubr.bf16.mxu0 0
  %1077 = vmatmul.mubr.bf16.gmra.mrb[0].mxu0 %v664
  %v1078 = vpop.f32.mrb[0].mxu0
  %v1079 = vadd.f32 %v189, %v1078
  %v1080 = vpop.f32.mrb[0].mxu0
  %v1081 = vpop.f32.mrb[0].mxu0
  %v1082 = vadd.f32 %v189, %v1081
  %v1083 = vpop.f32.mrb[0].mxu0
  %1084 = vmatprep.mubr.bf16.mxu0 0
  %1085 = vmatmul.mubr.bf16.gmra.mrb[0].mxu0 %v667
  %v1086 = vpop.f32.mrb[0].mxu0
  %v1087 = vadd.f32 %v189, %v1086
  %v1088 = vpop.f32.mrb[0].mxu0
  %v1089 = vpop.f32.mrb[0].mxu0
  %v1090 = vadd.f32 %v189, %v1089
  %v1091 = vpop.f32.mrb[0].mxu0
  %1092 = vmatprep.mubr.bf16.mxu0 0
  %1093 = vmatmul.mubr.bf16.gmra.mrb[0].mxu0 %v670
  %v1094 = vpop.f32.mrb[0].mxu0
  %v1095 = vadd.f32 %v189, %v1094
  %v1096 = vpop.f32.mrb[0].mxu0
  %v1097 = vpop.f32.mrb[0].mxu0
  %v1098 = vadd.f32 %v189, %v1097
  %v1099 = vpop.f32.mrb[0].mxu0
  %1100 = vmatprep.mubr.bf16.mxu0 0
  %1101 = vmatmul.mubr.bf16.gmra.mrb[0].mxu0 %v673
  %v1102 = vpop.f32.mrb[0].mxu0
  %v1103 = vadd.f32 %v189, %v1102
  %v1104 = vpop.f32.mrb[0].mxu0
  %v1105 = vpop.f32.mrb[0].mxu0
  %v1106 = vadd.f32 %v189, %v1105
  %v1107 = vpop.f32.mrb[0].mxu0
  %1108 = vmatprep.mubr.bf16.mxu0 0
  %1109 = vmatmul.mubr.bf16.gmra.mrb[0].mxu0 %v676
  %v1110 = vpop.f32.mrb[0].mxu0
  %v1111 = vadd.f32 %v189, %v1110
  %v1112 = vpop.f32.mrb[0].mxu0
  %v1113 = vpop.f32.mrb[0].mxu0
  %v1114 = vadd.f32 %v189, %v1113
  %v1115 = vpop.f32.mrb[0].mxu0
  %1116 = vmatprep.mubr.bf16.mxu0 0
  %1117 = vmatmul.mubr.bf16.gmra.mrb[0].mxu0 %v679
  %v1118 = vpop.f32.mrb[0].mxu0
  %v1119 = vadd.f32 %v189, %v1118
  %v1120 = vpop.f32.mrb[0].mxu0
  %v1121 = vpop.f32.mrb[0].mxu0
  %v1122 = vadd.f32 %v189, %v1121
  %v1123 = vpop.f32.mrb[0].mxu0
  %1124 = vmatprep.mubr.bf16.mxu0 0
  %1125 = vmatmul.mubr.bf16.gmra.mrb[0].mxu0 %v682
  %v1126 = vpop.f32.mrb[0].mxu0
  %v1127 = vadd.f32 %v189, %v1126
  %v1128 = vpop.f32.mrb[0].mxu0
  %v1129 = vpop.f32.mrb[0].mxu0
  %v1130 = vadd.f32 %v189, %v1129
  %v1131 = vpop.f32.mrb[0].mxu0
  %1132 = vmatprep.mubr.bf16.mxu0 0
  %1133 = vmatmul.mubr.bf16.gmra.mrb[0].mxu0 %v685
  %v1134 = vpop.f32.mrb[0].mxu0
  %v1135 = vadd.f32 %v189, %v1134
  %v1136 = vpop.f32.mrb[0].mxu0
  %v1137 = vpop.f32.mrb[0].mxu0
  %v1138 = vadd.f32 %v189, %v1137
  %v1139 = vpop.f32.mrb[0].mxu0
  %1140 = vmatprep.mubr.bf16.mxu0 0
  %1141 = vmatmul.mubr.bf16.gmra.mrb[0].mxu0 %v688
  %v1142 = vpop.f32.mrb[0].mxu0
  %v1143 = vadd.f32 %v189, %v1142
  %v1144 = vpop.f32.mrb[0].mxu0
  %v1145 = vpop.f32.mrb[0].mxu0
  %v1146 = vadd.f32 %v189, %v1145
  %v1147 = vpop.f32.mrb[0].mxu0
  %1148 = vmatprep.mubr.bf16.mxu0 0
  %1149 = vmatmul.mubr.bf16.gmra.mrb[0].mxu0 %v691
  %v1150 = vpop.f32.mrb[0].mxu0
  %v1151 = vadd.f32 %v189, %v1150
  %v1152 = vpop.f32.mrb[0].mxu0
  %v1153 = vpop.f32.mrb[0].mxu0
  %v1154 = vadd.f32 %v189, %v1153
  %v1155 = vpop.f32.mrb[0].mxu0
  %1156 = vmatprep.mubr.bf16.mxu0 0
  %1157 = vmatmul.mubr.bf16.gmra.mrb[0].mxu0 %v694
  %v1158 = vpop.f32.mrb[0].mxu0
  %v1159 = vadd.f32 %v189, %v1158
  %v1160 = vpop.f32.mrb[0].mxu0
  %v1161 = vpop.f32.mrb[0].mxu0
  %v1162 = vadd.f32 %v189, %v1161
  %v1163 = vpop.f32.mrb[0].mxu0
  %1164 = vmatprep.mubr.bf16.mxu0 0
  %1165 = vmatmul.mubr.bf16.gmra.mrb[0].mxu0 %v697
  %v1166 = vpop.f32.mrb[0].mxu0
  %v1167 = vadd.f32 %v189, %v1166
  %v1168 = vpop.f32.mrb[0].mxu0
  %v1169 = vpop.f32.mrb[0].mxu0
  %v1170 = vadd.f32 %v189, %v1169
  %v1171 = vpop.f32.mrb[0].mxu0
  %1172 = vmatprep.mubr.bf16.mxu0 0
  %1173 = vmatmul.mubr.bf16.gmra.mrb[0].mxu0 %v700
  %v1174 = vpop.f32.mrb[0].mxu0
  %v1175 = vadd.f32 %v189, %v1174
  %v1176 = vpop.f32.mrb[0].mxu0
  %v1177 = vpop.f32.mrb[0].mxu0
  %v1178 = vadd.f32 %v189, %v1177
  %v1179 = vpop.f32.mrb[0].mxu0
  %1180 = vmatprep.mubr.bf16.mxu0 0
  %1181 = vmatmul.mubr.bf16.gmra.mrb[0].mxu0 %v703
  %v1182 = vpop.f32.mrb[0].mxu0
  %v1183 = vadd.f32 %v189, %v1182
  %v1184 = vpop.f32.mrb[0].mxu0
  %v1185 = vpop.f32.mrb[0].mxu0
  %v1186 = vadd.f32 %v189, %v1185
  %v1187 = vpop.f32.mrb[0].mxu0
  %1188 = vmatprep.mubr.bf16.mxu0 0
  %1189 = vmatmul.mubr.bf16.gmra.mrb[0].mxu0 %v706
  %v1190 = vpop.f32.mrb[0].mxu0
  %v1191 = vadd.f32 %v189, %v1190
  %v1192 = vpop.f32.mrb[0].mxu0
  %v1193 = vpop.f32.mrb[0].mxu0
  %v1194 = vadd.f32 %v189, %v1193
  %v1195 = vpop.f32.mrb[0].mxu0
  %1196 = vmatprep.mubr.bf16.mxu0 0
  %1197 = vmatmul.mubr.bf16.gmra.mrb[0].mxu0 %v709
  %v1198 = vpop.f32.mrb[0].mxu0
  %v1199 = vadd.f32 %v189, %v1198
  %v1200 = vpop.f32.mrb[0].mxu0
  %v1201 = vpop.f32.mrb[0].mxu0
  %v1202 = vadd.f32 %v189, %v1201
  %v1203 = vpop.f32.mrb[0].mxu0
  %1204 = vmatprep.mubr.bf16.mxu0 0
  %1205 = vmatmul.mubr.bf16.gmra.mrb[0].mxu0 %v712
  %v1206 = vpop.f32.mrb[0].mxu0
  %v1207 = vadd.f32 %v189, %v1206
  %v1208 = vpop.f32.mrb[0].mxu0
  %v1209 = vpop.f32.mrb[0].mxu0
  %v1210 = vadd.f32 %v189, %v1209
  %v1211 = vpop.f32.mrb[0].mxu0
  %1212 = vmatprep.mubr.bf16.mxu0 0
  %1213 = vmatmul.mubr.bf16.gmra.mrb[0].mxu0 %v715
  %v1214 = vpop.f32.mrb[0].mxu0
  %v1215 = vadd.f32 %v189, %v1214
  %v1216 = vpop.f32.mrb[0].mxu0
  %v1217 = vpop.f32.mrb[0].mxu0
  %v1218 = vadd.f32 %v189, %v1217
  %v1219 = vpop.f32.mrb[0].mxu0
  %1220 = vmatprep.mubr.bf16.mxu0 0
  %1221 = vmatmul.mubr.bf16.gmra.mrb[0].mxu0 %v718
  %v1222 = vpop.f32.mrb[0].mxu0
  %v1223 = vadd.f32 %v189, %v1222
  %v1224 = vpop.f32.mrb[0].mxu0
  %v1225 = vpop.f32.mrb[0].mxu0
  %v1226 = vadd.f32 %v189, %v1225
  %v1227 = vpop.f32.mrb[0].mxu0
  %1228 = vmatprep.mubr.bf16.mxu0 0
  %1229 = vmatmul.mubr.bf16.gmra.mrb[0].mxu0 %v721
  %v1230 = vpop.f32.mrb[0].mxu0
  %v1231 = vadd.f32 %v189, %v1230
  %v1232 = vpop.f32.mrb[0].mxu0
  %v1233 = vpop.f32.mrb[0].mxu0
  %v1234 = vadd.f32 %v189, %v1233
  %v1235 = vpop.f32.mrb[0].mxu0
  %1236 = vmatprep.mubr.bf16.mxu0 0
  %1237 = vmatmul.mubr.bf16.gmra.mrb[0].mxu0 %v724
  %v1238 = vpop.f32.mrb[0].mxu0
  %v1239 = vadd.f32 %v189, %v1238
  %v1240 = vpop.f32.mrb[0].mxu0
  %v1241 = vpop.f32.mrb[0].mxu0
  %v1242 = vadd.f32 %v189, %v1241
  %v1243 = vpop.f32.mrb[0].mxu0
  %1244 = vmatprep.mubr.bf16.mxu0 0
  %1245 = vmatmul.mubr.bf16.gmra.mrb[0].mxu0 %v727
  %v1246 = vpop.f32.mrb[0].mxu0
  %v1247 = vadd.f32 %v189, %v1246
  %v1248 = vpop.f32.mrb[0].mxu0
  %v1249 = vpop.f32.mrb[0].mxu0
  %v1250 = vadd.f32 %v189, %v1249
  %v1251 = vpop.f32.mrb[0].mxu0
  %1252 = vmatprep.mubr.bf16.mxu0 0
  %1253 = vmatmul.mubr.bf16.gmra.mrb[0].mxu0 %v730
  %v1254 = vpop.f32.mrb[0].mxu0
  %v1255 = vadd.f32 %v189, %v1254
  %v1256 = vpop.f32.mrb[0].mxu0
  %v1257 = vpop.f32.mrb[0].mxu0
  %v1258 = vadd.f32 %v189, %v1257
  %v1259 = vpop.f32.mrb[0].mxu0
  %1260 = vmatprep.mubr.bf16.mxu0 0
  %1261 = vmatmul.mubr.bf16.gmra.mrb[0].mxu0 %v733
  %v1262 = vpop.f32.mrb[0].mxu0
  %v1263 = vadd.f32 %v189, %v1262
  %v1264 = vpop.f32.mrb[0].mxu0
  %v1265 = vpop.f32.mrb[0].mxu0
  %v1266 = vadd.f32 %v189, %v1265
  %v1267 = vpop.f32.mrb[0].mxu0
  %1268 = vmatprep.mubr.bf16.mxu0 0
  %1269 = vmatmul.mubr.bf16.gmra.mrb[0].mxu0 %v736
  %v1270 = vpop.f32.mrb[0].mxu0
  %v1271 = vadd.f32 %v189, %v1270
  %v1272 = vpop.f32.mrb[0].mxu0
  %v1273 = vpop.f32.mrb[0].mxu0
  %v1274 = vadd.f32 %v189, %v1273
  %v1275 = vpop.f32.mrb[0].mxu0
  %1276 = vmatprep.mubr.bf16.mxu0 0
  %1277 = vmatmul.mubr.bf16.gmra.mrb[0].mxu0 %v739
  %v1278 = vpop.f32.mrb[0].mxu0
  %v1279 = vadd.f32 %v189, %v1278
  %v1280 = vpop.f32.mrb[0].mxu0
  %v1281 = vpop.f32.mrb[0].mxu0
  %v1282 = vadd.f32 %v189, %v1281
  %v1283 = vpop.f32.mrb[0].mxu0
  %1284 = vmatprep.mubr.bf16.mxu0 0
  %1285 = vmatmul.mubr.bf16.gmra.mrb[0].mxu0 %v742
  %v1286 = vpop.f32.mrb[0].mxu0
  %v1287 = vadd.f32 %v189, %v1286
  %v1288 = vpop.f32.mrb[0].mxu0
  %v1289 = vpop.f32.mrb[0].mxu0
  %v1290 = vadd.f32 %v189, %v1289
  %v1291 = vpop.f32.mrb[0].mxu0
  %1292 = vmatprep.mubr.bf16.mxu0 0
  %1293 = vmatmul.mubr.bf16.gmra.mrb[0].mxu0 %v745
  %v1294 = vpop.f32.mrb[0].mxu0
  %v1295 = vadd.f32 %v189, %v1294
  %v1296 = vpop.f32.mrb[0].mxu0
  %v1297 = vpop.f32.mrb[0].mxu0
  %v1298 = vadd.f32 %v189, %v1297
  %v1299 = vpop.f32.mrb[0].mxu0
  %1300 = vmatprep.mubr.bf16.mxu0 0
  %1301 = vmatmul.mubr.bf16.gmra.mrb[0].mxu0 %v748
  %v1302 = vpop.f32.mrb[0].mxu0
  %v1303 = vadd.f32 %v189, %v1302
  %v1304 = vpop.f32.mrb[0].mxu0
  %v1305 = vpop.f32.mrb[0].mxu0
  %v1306 = vadd.f32 %v189, %v1305
  %v1307 = vpop.f32.mrb[0].mxu0
  %1308 = vmatprep.mubr.bf16.mxu0 0
  %1309 = vmatmul.mubr.bf16.gmra.mrb[0].mxu0 %v751
  %v1310 = vpop.f32.mrb[0].mxu0
  %v1311 = vadd.f32 %v189, %v1310
  %v1312 = vpop.f32.mrb[0].mxu0
  %v1313 = vpop.f32.mrb[0].mxu0
  %v1314 = vadd.f32 %v189, %v1313
  %v1315 = vpop.f32.mrb[0].mxu0
  %1316 = vmatprep.mubr.bf16.mxu0 0
  %1317 = vmatmul.mubr.bf16.gmra.mrb[0].mxu0 %v754
  %v1318 = vpop.f32.mrb[0].mxu0
  %v1319 = vadd.f32 %v189, %v1318
  %v1320 = vpop.f32.mrb[0].mxu0
  %v1321 = vpop.f32.mrb[0].mxu0
  %v1322 = vadd.f32 %v189, %v1321
  %v1323 = vpop.f32.mrb[0].mxu0
  %1324 = vmatprep.mubr.bf16.mxu0 0
  %1325 = vmatmul.mubr.bf16.gmra.mrb[0].mxu0 %v757
  %v1326 = vpop.f32.mrb[0].mxu0
  %v1327 = vadd.f32 %v189, %v1326
  %v1328 = vpop.f32.mrb[0].mxu0
  %v1329 = vpop.f32.mrb[0].mxu0
  %v1330 = vadd.f32 %v189, %v1329
  %v1331 = vpop.f32.mrb[0].mxu0
  %1332 = vmatprep.mubr.bf16.mxu0 0
  %1333 = vmatmul.mubr.bf16.gmra.mrb[0].mxu0 %v760
  %v1334 = vpop.f32.mrb[0].mxu0
  %v1335 = vadd.f32 %v189, %v1334
  %v1336 = vpop.f32.mrb[0].mxu0
  %v1337 = vpop.f32.mrb[0].mxu0
  %v1338 = vadd.f32 %v189, %v1337
  %v1339 = vpop.f32.mrb[0].mxu0
  %1340 = vmatprep.mubr.bf16.mxu0 0
  %1341 = vmatmul.mubr.bf16.gmra.mrb[0].mxu0 %v763
  %v1342 = vpop.f32.mrb[0].mxu0
  %v1343 = vadd.f32 %v189, %v1342
  %v1344 = vpop.f32.mrb[0].mxu0
  %v1345 = vpop.f32.mrb[0].mxu0
  %v1346 = vadd.f32 %v189, %v1345
  %v1347 = vpop.f32.mrb[0].mxu0
  %1348 = vmatprep.mubr.bf16.mxu0 0
  %1349 = vmatmul.mubr.bf16.gmra.mrb[0].mxu0 %v766
  %v1350 = vpop.f32.mrb[0].mxu0
  %v1351 = vadd.f32 %v189, %v1350
  %v1352 = vpop.f32.mrb[0].mxu0
  %v1353 = vpop.f32.mrb[0].mxu0
  %v1354 = vadd.f32 %v189, %v1353
  %v1355 = vpop.f32.mrb[0].mxu0
  %1356 = vmatprep.mubr.bf16.mxu0 0
  %1357 = vmatmul.mubr.bf16.gmra.mrb[0].mxu0 %v769
  %v1358 = vpop.f32.mrb[0].mxu0
  %v1359 = vadd.f32 %v189, %v1358
  %v1360 = vpop.f32.mrb[0].mxu0
  %v1361 = vpop.f32.mrb[0].mxu0
  %v1362 = vadd.f32 %v189, %v1361
  %v1363 = vpop.f32.mrb[0].mxu0
  %1364 = vmatprep.mubr.bf16.mxu0 0
  %1365 = vmatmul.mubr.bf16.gmra.mrb[0].mxu0 %v772
  %v1366 = vpop.f32.mrb[0].mxu0
  %v1367 = vadd.f32 %v189, %v1366
  %v1368 = vpop.f32.mrb[0].mxu0
  %v1369 = vpop.f32.mrb[0].mxu0
  %v1370 = vadd.f32 %v189, %v1369
  %v1371 = vpop.f32.mrb[0].mxu0
  %1372 = vmatprep.mubr.bf16.mxu0 0
  %1373 = vmatmul.mubr.bf16.gmra.mrb[0].mxu0 %v775
  %v1374 = vpop.f32.mrb[0].mxu0
  %v1375 = vadd.f32 %v189, %v1374
  %v1376 = vpop.f32.mrb[0].mxu0
  %v1377 = vpop.f32.mrb[0].mxu0
  %v1378 = vadd.f32 %v189, %v1377
  %v1379 = vpop.f32.mrb[0].mxu0
  %1380 = vmatprep.mubr.bf16.mxu0 0
  %1381 = vmatmul.mubr.bf16.gmra.mrb[0].mxu0 %v778
  %v1382 = vpop.f32.mrb[0].mxu0
  %v1383 = vadd.f32 %v189, %v1382
  %v1384 = vpop.f32.mrb[0].mxu0
  %v1385 = vpop.f32.mrb[0].mxu0
  %v1386 = vadd.f32 %v189, %v1385
  %v1387 = vpop.f32.mrb[0].mxu0
  %1388 = vdwg.mxu0
  %v1389 = vmax.f32 %v815, 0.0
  %v1390 = vmax.f32 %v818, 0.0
  %v1391 = vmax.f32 %v823, 0.0
  %v1392 = vmax.f32 %v826, 0.0
  %v1393 = vmax.f32 %v831, 0.0
  %v1394 = vmax.f32 %v834, 0.0
  %v1395 = vmax.f32 %v839, 0.0
  %v1396 = vmax.f32 %v842, 0.0
  %v1397 = vmax.f32 %v847, 0.0
  %v1398 = vmax.f32 %v850, 0.0
  %v1399 = vmax.f32 %v855, 0.0
  %v1400 = vmax.f32 %v858, 0.0
  %v1401 = vmax.f32 %v863, 0.0
  %v1402 = vmax.f32 %v866, 0.0
  %v1403 = vmax.f32 %v871, 0.0
  %v1404 = vmax.f32 %v874, 0.0
  %v1405 = vmax.f32 %v879, 0.0
  %v1406 = vmax.f32 %v882, 0.0
  %v1407 = vmax.f32 %v887, 0.0
  %v1408 = vmax.f32 %v890, 0.0
  %v1409 = vmax.f32 %v895, 0.0
  %v1410 = vmax.f32 %v898, 0.0
  %v1411 = vmax.f32 %v903, 0.0
  %v1412 = vmax.f32 %v906, 0.0
  %v1413 = vmax.f32 %v911, 0.0
  %v1414 = vmax.f32 %v914, 0.0
  %v1415 = vmax.f32 %v919, 0.0
  %v1416 = vmax.f32 %v922, 0.0
  %v1417 = vmax.f32 %v927, 0.0
  %v1418 = vmax.f32 %v930, 0.0
  %v1419 = vmax.f32 %v935, 0.0
  %v1420 = vmax.f32 %v938, 0.0
  %v1421 = vmax.f32 %v943, 0.0
  %v1422 = vmax.f32 %v946, 0.0
  %v1423 = vmax.f32 %v951, 0.0
  %v1424 = vmax.f32 %v954, 0.0
  %v1425 = vmax.f32 %v959, 0.0
  %v1426 = vmax.f32 %v962, 0.0
  %v1427 = vmax.f32 %v967, 0.0
  %v1428 = vmax.f32 %v970, 0.0
  %v1429 = vmax.f32 %v975, 0.0
  %v1430 = vmax.f32 %v978, 0.0
  %v1431 = vmax.f32 %v983, 0.0
  %v1432 = vmax.f32 %v986, 0.0
  %v1433 = vmax.f32 %v991, 0.0
  %v1434 = vmax.f32 %v994, 0.0
  %v1435 = vmax.f32 %v999, 0.0
  %v1436 = vmax.f32 %v1002, 0.0
  %v1437 = vmax.f32 %v1007, 0.0
  %v1438 = vmax.f32 %v1010, 0.0
  %v1439 = vmax.f32 %v1015, 0.0
  %v1440 = vmax.f32 %v1018, 0.0
  %v1441 = vmax.f32 %v1023, 0.0
  %v1442 = vmax.f32 %v1026, 0.0
  %v1443 = vmax.f32 %v1031, 0.0
  %v1444 = vmax.f32 %v1034, 0.0
  %v1445 = vmax.f32 %v1039, 0.0
  %v1446 = vmax.f32 %v1042, 0.0
  %v1447 = vmax.f32 %v1047, 0.0
  %v1448 = vmax.f32 %v1050, 0.0
  %v1449 = vmax.f32 %v1055, 0.0
  %v1450 = vmax.f32 %v1058, 0.0
  %v1451 = vmax.f32 %v1063, 0.0
  %v1452 = vmax.f32 %v1066, 0.0
  %v1453 = vmax.f32 %v1071, 0.0
  %v1454 = vmax.f32 %v1074, 0.0
  %v1455 = vmax.f32 %v1079, 0.0
  %v1456 = vmax.f32 %v1082, 0.0
  %v1457 = vmax.f32 %v1087, 0.0
  %v1458 = vmax.f32 %v1090, 0.0
  %v1459 = vmax.f32 %v1095, 0.0
  %v1460 = vmax.f32 %v1098, 0.0
  %v1461 = vmax.f32 %v1103, 0.0
  %v1462 = vmax.f32 %v1106, 0.0
  %v1463 = vmax.f32 %v1111, 0.0
  %v1464 = vmax.f32 %v1114, 0.0
  %v1465 = vmax.f32 %v1119, 0.0
  %v1466 = vmax.f32 %v1122, 0.0
  %v1467 = vmax.f32 %v1127, 0.0
  %v1468 = vmax.f32 %v1130, 0.0
  %v1469 = vmax.f32 %v1135, 0.0
  %v1470 = vmax.f32 %v1138, 0.0
  %v1471 = vmax.f32 %v1143, 0.0
  %v1472 = vmax.f32 %v1146, 0.0
  %v1473 = vmax.f32 %v1151, 0.0
  %v1474 = vmax.f32 %v1154, 0.0
  %v1475 = vmax.f32 %v1159, 0.0
  %v1476 = vmax.f32 %v1162, 0.0
  %v1477 = vmax.f32 %v1167, 0.0
  %v1478 = vmax.f32 %v1170, 0.0
  %v1479 = vmax.f32 %v1175, 0.0
  %v1480 = vmax.f32 %v1178, 0.0
  %v1481 = vmax.f32 %v1183, 0.0
  %v1482 = vmax.f32 %v1186, 0.0
  %v1483 = vmax.f32 %v1191, 0.0
  %v1484 = vmax.f32 %v1194, 0.0
  %v1485 = vmax.f32 %v1199, 0.0
  %v1486 = vmax.f32 %v1202, 0.0
  %v1487 = vmax.f32 %v1207, 0.0
  %v1488 = vmax.f32 %v1210, 0.0
  %v1489 = vmax.f32 %v1215, 0.0
  %v1490 = vmax.f32 %v1218, 0.0
  %v1491 = vmax.f32 %v1223, 0.0
  %v1492 = vmax.f32 %v1226, 0.0
  %v1493 = vmax.f32 %v1231, 0.0
  %v1494 = vmax.f32 %v1234, 0.0
  %v1495 = vmax.f32 %v1239, 0.0
  %v1496 = vmax.f32 %v1242, 0.0
  %v1497 = vmax.f32 %v1247, 0.0
  %v1498 = vmax.f32 %v1250, 0.0
  %v1499 = vmax.f32 %v1255, 0.0
  %v1500 = vmax.f32 %v1258, 0.0
  %v1501 = vmax.f32 %v1263, 0.0
  %v1502 = vmax.f32 %v1266, 0.0
  %v1503 = vmax.f32 %v1271, 0.0
  %v1504 = vmax.f32 %v1274, 0.0
  %v1505 = vmax.f32 %v1279, 0.0
  %v1506 = vmax.f32 %v1282, 0.0
  %v1507 = vmax.f32 %v1287, 0.0
  %v1508 = vmax.f32 %v1290, 0.0
  %v1509 = vmax.f32 %v1295, 0.0
  %v1510 = vmax.f32 %v1298, 0.0
  %v1511 = vmax.f32 %v1303, 0.0
  %v1512 = vmax.f32 %v1306, 0.0
  %v1513 = vmax.f32 %v1311, 0.0
  %v1514 = vmax.f32 %v1314, 0.0
  %v1515 = vmax.f32 %v1319, 0.0
  %v1516 = vmax.f32 %v1322, 0.0
  %v1517 = vmax.f32 %v1327, 0.0
  %v1518 = vmax.f32 %v1330, 0.0
  %v1519 = vmax.f32 %v1335, 0.0
  %v1520 = vmax.f32 %v1338, 0.0
  %v1521 = vmax.f32 %v1343, 0.0
  %v1522 = vmax.f32 %v1346, 0.0
  %v1523 = vmax.f32 %v1351, 0.0
  %v1524 = vmax.f32 %v1354, 0.0
  %v1525 = vmax.f32 %v1359, 0.0
  %v1526 = vmax.f32 %v1362, 0.0
  %v1527 = vmax.f32 %v1367, 0.0
  %v1528 = vmax.f32 %v1370, 0.0
  %v1529 = vmax.f32 %v1375, 0.0
  %v1530 = vmax.f32 %v1378, 0.0
  %v1531 = vmax.f32 %v1383, 0.0
  %v1532 = vmax.f32 %v1386, 0.0
  %v1533 = vmax.f32 %v1389, %v1425
  %v1534 = vmax.f32 %v1390, %v1426
  %v1535 = vmax.f32 %v1391, %v1427
  %v1536 = vmax.f32 %v1392, %v1428
  %v1537 = vmax.f32 %v1393, %v1429
  %v1538 = vmax.f32 %v1394, %v1430
  %v1539 = vmax.f32 %v1395, %v1431
  %v1540 = vmax.f32 %v1396, %v1432
  %v1541 = vmax.f32 %v1397, %v1433
  %v1542 = vmax.f32 %v1398, %v1434
  %v1543 = vmax.f32 %v1399, %v1435
  %v1544 = vmax.f32 %v1400, %v1436
  %v1545 = vmax.f32 %v1401, %v1437
  %v1546 = vmax.f32 %v1402, %v1438
  %v1547 = vmax.f32 %v1403, %v1439
  %v1548 = vmax.f32 %v1404, %v1440
  %v1549 = vmax.f32 %v1405, %v1441
  %v1550 = vmax.f32 %v1406, %v1442
  %v1551 = vmax.f32 %v1407, %v1443
  %v1552 = vmax.f32 %v1408, %v1444
  %v1553 = vmax.f32 %v1409, %v1445
  %v1554 = vmax.f32 %v1410, %v1446
  %v1555 = vmax.f32 %v1411, %v1447
  %v1556 = vmax.f32 %v1412, %v1448
  %v1557 = vmax.f32 %v1413, %v1449
  %v1558 = vmax.f32 %v1414, %v1450
  %v1559 = vmax.f32 %v1415, %v1451
  %v1560 = vmax.f32 %v1416, %v1452
  %v1561 = vmax.f32 %v1417, %v1453
  %v1562 = vmax.f32 %v1418, %v1454
  %v1563 = vmax.f32 %v1419, %v1455
  %v1564 = vmax.f32 %v1420, %v1456
  %v1565 = vmax.f32 %v1421, %v1457
  %v1566 = vmax.f32 %v1422, %v1458
  %v1567 = vmax.f32 %v1423, %v1459
  %v1568 = vmax.f32 %v1424, %v1460
  %v1569 = vmax.f32 %v1461, %v1497
  %v1570 = vmax.f32 %v1462, %v1498
  %v1571 = vmax.f32 %v1463, %v1499
  %v1572 = vmax.f32 %v1464, %v1500
  %v1573 = vmax.f32 %v1465, %v1501
  %v1574 = vmax.f32 %v1466, %v1502
  %v1575 = vmax.f32 %v1467, %v1503
  %v1576 = vmax.f32 %v1468, %v1504
  %v1577 = vmax.f32 %v1469, %v1505
  %v1578 = vmax.f32 %v1470, %v1506
  %v1579 = vmax.f32 %v1471, %v1507
  %v1580 = vmax.f32 %v1472, %v1508
  %v1581 = vmax.f32 %v1473, %v1509
  %v1582 = vmax.f32 %v1474, %v1510
  %v1583 = vmax.f32 %v1475, %v1511
  %v1584 = vmax.f32 %v1476, %v1512
  %v1585 = vmax.f32 %v1477, %v1513
  %v1586 = vmax.f32 %v1478, %v1514
  %v1587 = vmax.f32 %v1479, %v1515
  %v1588 = vmax.f32 %v1480, %v1516
  %v1589 = vmax.f32 %v1481, %v1517
  %v1590 = vmax.f32 %v1482, %v1518
  %v1591 = vmax.f32 %v1483, %v1519
  %v1592 = vmax.f32 %v1484, %v1520
  %v1593 = vmax.f32 %v1485, %v1521
  %v1594 = vmax.f32 %v1486, %v1522
  %v1595 = vmax.f32 %v1487, %v1523
  %v1596 = vmax.f32 %v1488, %v1524
  %v1597 = vmax.f32 %v1489, %v1525
  %v1598 = vmax.f32 %v1490, %v1526
  %v1599 = vmax.f32 %v1491, %v1527
  %v1600 = vmax.f32 %v1492, %v1528
  %v1601 = vmax.f32 %v1493, %v1529
  %v1602 = vmax.f32 %v1494, %v1530
  %v1603 = vmax.f32 %v1495, %v1531
  %v1604 = vmax.f32 %v1496, %v1532
  %v1605 = vmax.f32 %v1533, %v1569
  %v1606 = vmax.f32 %v1534, %v1570
  %v1607 = vmax.f32 %v1535, %v1571
  %v1608 = vmax.f32 %v1536, %v1572
  %v1609 = vmax.f32 %v1537, %v1573
  %v1610 = vmax.f32 %v1538, %v1574
  %v1611 = vmax.f32 %v1539, %v1575
  %v1612 = vmax.f32 %v1540, %v1576
  %v1613 = vmax.f32 %v1541, %v1577
  %v1614 = vmax.f32 %v1542, %v1578
  %v1615 = vmax.f32 %v1543, %v1579
  %v1616 = vmax.f32 %v1544, %v1580
  %v1617 = vmax.f32 %v1545, %v1581
  %v1618 = vmax.f32 %v1546, %v1582
  %v1619 = vmax.f32 %v1547, %v1583
  %v1620 = vmax.f32 %v1548, %v1584
  %v1621 = vmax.f32 %v1549, %v1585
  %v1622 = vmax.f32 %v1550, %v1586
  %v1623 = vmax.f32 %v1551, %v1587
  %v1624 = vmax.f32 %v1552, %v1588
  %v1625 = vmax.f32 %v1553, %v1589
  %v1626 = vmax.f32 %v1554, %v1590
  %v1627 = vmax.f32 %v1555, %v1591
  %v1628 = vmax.f32 %v1556, %v1592
  %v1629 = vmax.f32 %v1557, %v1593
  %v1630 = vmax.f32 %v1558, %v1594
  %v1631 = vmax.f32 %v1559, %v1595
  %v1632 = vmax.f32 %v1560, %v1596
  %v1633 = vmax.f32 %v1561, %v1597
  %v1634 = vmax.f32 %v1562, %v1598
  %v1635 = vmax.f32 %v1563, %v1599
  %v1636 = vmax.f32 %v1564, %v1600
  %v1637 = vmax.f32 %v1565, %v1601
  %v1638 = vmax.f32 %v1566, %v1602
  %v1639 = vmax.f32 %v1567, %v1603
  %v1640 = vmax.f32 %v1568, %v1604
  %v1641 = vpack.c.bf16 %v1606, %v1605
  %v1642 = vpack.c.bf16 %v1608, %v1607
  %v1643 = vpack.c.bf16 %v1610, %v1609
  %v1644 = vpack.c.bf16 %v1612, %v1611
  %v1645 = vpack.c.bf16 %v1614, %v1613
  %v1646 = vpack.c.bf16 %v1616, %v1615
  %v1647 = vpack.c.bf16 %v1618, %v1617
  %v1648 = vpack.c.bf16 %v1620, %v1619
  %v1649 = vpack.c.bf16 %v1622, %v1621
  %v1650 = vpack.c.bf16 %v1624, %v1623
  %v1651 = vpack.c.bf16 %v1626, %v1625
  %v1652 = vpack.c.bf16 %v1628, %v1627
  %v1653 = vpack.c.bf16 %v1630, %v1629
  %v1654 = vpack.c.bf16 %v1632, %v1631
  %v1655 = vpack.c.bf16 %v1634, %v1633
  %v1656 = vpack.c.bf16 %v1636, %v1635
  %v1657 = vpack.c.bf16 %v1638, %v1637
  %v1658 = vpack.c.bf16 %v1640, %v1639
  %v1659 = vld [vmem:[%s3] sm:$0xf]
  %v1660 = vld [vmem:[%s3 + $0x4] sm:$0xf]
  %v1661 = vld [vmem:[%s3 + $0x8] sm:$0xf]
  %v1662 = vld [vmem:[%s3 + $0xc] sm:$0xf]
  %v1663 = vld [vmem:[%s4] sm:$0x1]
  %v1665 = vlaneseq
  %v1666 = vshrl.u32 %v1665, 7
  %v1667 = vsub.s32 0, %v1666
  %v1668 = vrot.slane %v1663, %v1667
  %v1674 = vunpack.c.l.b16 %v1659
  %v1675 = vunpack.c.l.b16 %v1660
  %v1676 = vunpack.c.l.b16 %v1661
  %v1677 = vunpack.c.l.b16 %v1662
  %v1678 = vpack.c.b16 %v1675, %v1674
  %v1679 = vpack.c.b16 %v1677, %v1676
  %v1683 = vsel %vm563, %v1641, 0
  %v1686 = vsel %vm563, %v1642, 0
  %v1689 = vsel %vm563, %v1643, 0
  %v1692 = vsel %vm563, %v1644, 0
  %v1695 = vsel %vm563, %v1645, 0
  %v1698 = vsel %vm563, %v1646, 0
  %v1701 = vsel %vm563, %v1647, 0
  %v1704 = vsel %vm563, %v1648, 0
  %v1707 = vsel %vm563, %v1649, 0
  %v1710 = vsel %vm563, %v1650, 0
  %v1713 = vsel %vm563, %v1651, 0
  %v1716 = vsel %vm563, %v1652, 0
  %v1719 = vsel %vm563, %v1653, 0
  %v1722 = vsel %vm563, %v1654, 0
  %v1725 = vsel %vm563, %v1655, 0
  %v1728 = vsel %vm563, %v1656, 0
  %v1731 = vsel %vm563, %v1657, 0
  %v1734 = vsel %vm563, %v1658, 0
  %1736 = vmatprep.subr.bf16.mxu0 0
  %1737 = vmatpush1.bf16.msra.mxu0 %v1678
  %1738 = vmatprep.subr.bf16.mxu0 0
  %1739 = vmatpush1.bf16.msra.mxu0 %v1679
  %1740 = vmatprep.subr.bf16.mxu0 0
  %1741 = vmatpush1.bf16.msra.mxu0 0
  %1742 = vmatprep.subr.bf16.mxu0 0
  %1743 = vmatpush1.bf16.msra.mxu0 0
  %1744 = vmatprep.subr.bf16.mxu0 0
  %1745 = vmatpush1.bf16.msra.mxu0 0
  %1746 = vmatprep.subr.bf16.mxu0 0
  %1747 = vmatpush1.bf16.msra.mxu0 0
  %1748 = vmatprep.subr.bf16.mxu0 0
  %1749 = vmatpush1.bf16.msra.mxu0 0
  %1750 = vmatprep.subr.bf16.mxu0 0
  %1751 = vmatpush1.bf16.msra.mxu0 0
  %1752 = vmatprep.subr.bf16.mxu0 0
  %1753 = vmatpush1.bf16.msra.mxu0 0
  %1754 = vmatprep.subr.bf16.mxu0 0
  %1755 = vmatpush1.bf16.msra.mxu0 0
  %1756 = vmatprep.subr.bf16.mxu0 0
  %1757 = vmatpush1.bf16.msra.mxu0 0
  %1758 = vmatprep.subr.bf16.mxu0 0
  %1759 = vmatpush1.bf16.msra.mxu0 0
  %1760 = vmatprep.subr.bf16.mxu0 0
  %1761 = vmatpush1.bf16.msra.mxu0 0
  %1762 = vmatprep.subr.bf16.mxu0 0
  %1763 = vmatpush1.bf16.msra.mxu0 0
  %1764 = vmatprep.subr.bf16.mxu0 0
  %1765 = vmatpush1.bf16.msra.mxu0 0
  %1766 = vmatprep.subr.bf16.mxu0 0
  %1767 = vmatpush1.bf16.msra.mxu0 0
  %1768 = vmatprep.mubr.bf16.mxu0 0
  %1769 = vmatmul.mubr.bf16.gmra.mrb[0].mxu0 %v1683
  %v1770 = vpop.f32.mrb[0].mxu0
  %v1771 = vadd.f32 %v1668, %v1770
  %v1772 = vpop.f32.mrb[0].mxu0
  %v1773 = vpop.f32.mrb[0].mxu0
  %v1774 = vadd.f32 %v1668, %v1773
  %v1775 = vpop.f32.mrb[0].mxu0
  %1776 = vmatprep.mubr.bf16.mxu0 0
  %1777 = vmatmul.mubr.bf16.gmra.mrb[0].mxu0 %v1686
  %v1778 = vpop.f32.mrb[0].mxu0
  %v1779 = vadd.f32 %v1668, %v1778
  %v1780 = vpop.f32.mrb[0].mxu0
  %v1781 = vpop.f32.mrb[0].mxu0
  %v1782 = vadd.f32 %v1668, %v1781
  %v1783 = vpop.f32.mrb[0].mxu0
  %1784 = vmatprep.mubr.bf16.mxu0 0
  %1785 = vmatmul.mubr.bf16.gmra.mrb[0].mxu0 %v1689
  %v1786 = vpop.f32.mrb[0].mxu0
  %v1787 = vadd.f32 %v1668, %v1786
  %v1788 = vpop.f32.mrb[0].mxu0
  %v1789 = vpop.f32.mrb[0].mxu0
  %v1790 = vadd.f32 %v1668, %v1789
  %v1791 = vpop.f32.mrb[0].mxu0
  %1792 = vmatprep.mubr.bf16.mxu0 0
  %1793 = vmatmul.mubr.bf16.gmra.mrb[0].mxu0 %v1692
  %v1794 = vpop.f32.mrb[0].mxu0
  %v1795 = vadd.f32 %v1668, %v1794
  %v1796 = vpop.f32.mrb[0].mxu0
  %v1797 = vpop.f32.mrb[0].mxu0
  %v1798 = vadd.f32 %v1668, %v1797
  %v1799 = vpop.f32.mrb[0].mxu0
  %1800 = vmatprep.mubr.bf16.mxu0 0
  %1801 = vmatmul.mubr.bf16.gmra.mrb[0].mxu0 %v1695
  %v1802 = vpop.f32.mrb[0].mxu0
  %v1803 = vadd.f32 %v1668, %v1802
  %v1804 = vpop.f32.mrb[0].mxu0
  %v1805 = vpop.f32.mrb[0].mxu0
  %v1806 = vadd.f32 %v1668, %v1805
  %v1807 = vpop.f32.mrb[0].mxu0
  %1808 = vmatprep.mubr.bf16.mxu0 0
  %1809 = vmatmul.mubr.bf16.gmra.mrb[0].mxu0 %v1698
  %v1810 = vpop.f32.mrb[0].mxu0
  %v1811 = vadd.f32 %v1668, %v1810
  %v1812 = vpop.f32.mrb[0].mxu0
  %v1813 = vpop.f32.mrb[0].mxu0
  %v1814 = vadd.f32 %v1668, %v1813
  %v1815 = vpop.f32.mrb[0].mxu0
  %1816 = vmatprep.mubr.bf16.mxu0 0
  %1817 = vmatmul.mubr.bf16.gmra.mrb[0].mxu0 %v1701
  %v1818 = vpop.f32.mrb[0].mxu0
  %v1819 = vadd.f32 %v1668, %v1818
  %v1820 = vpop.f32.mrb[0].mxu0
  %v1821 = vpop.f32.mrb[0].mxu0
  %v1822 = vadd.f32 %v1668, %v1821
  %v1823 = vpop.f32.mrb[0].mxu0
  %1824 = vmatprep.mubr.bf16.mxu0 0
  %1825 = vmatmul.mubr.bf16.gmra.mrb[0].mxu0 %v1704
  %v1826 = vpop.f32.mrb[0].mxu0
  %v1827 = vadd.f32 %v1668, %v1826
  %v1828 = vpop.f32.mrb[0].mxu0
  %v1829 = vpop.f32.mrb[0].mxu0
  %v1830 = vadd.f32 %v1668, %v1829
  %v1831 = vpop.f32.mrb[0].mxu0
  %1832 = vmatprep.mubr.bf16.mxu0 0
  %1833 = vmatmul.mubr.bf16.gmra.mrb[0].mxu0 %v1707
  %v1834 = vpop.f32.mrb[0].mxu0
  %v1835 = vadd.f32 %v1668, %v1834
  %v1836 = vpop.f32.mrb[0].mxu0
  %v1837 = vpop.f32.mrb[0].mxu0
  %v1838 = vadd.f32 %v1668, %v1837
  %v1839 = vpop.f32.mrb[0].mxu0
  %1840 = vmatprep.mubr.bf16.mxu0 0
  %1841 = vmatmul.mubr.bf16.gmra.mrb[0].mxu0 %v1710
  %v1842 = vpop.f32.mrb[0].mxu0
  %v1843 = vadd.f32 %v1668, %v1842
  %v1844 = vpop.f32.mrb[0].mxu0
  %v1845 = vpop.f32.mrb[0].mxu0
  %v1846 = vadd.f32 %v1668, %v1845
  %v1847 = vpop.f32.mrb[0].mxu0
  %1848 = vmatprep.mubr.bf16.mxu0 0
  %1849 = vmatmul.mubr.bf16.gmra.mrb[0].mxu0 %v1713
  %v1850 = vpop.f32.mrb[0].mxu0
  %v1851 = vadd.f32 %v1668, %v1850
  %v1852 = vpop.f32.mrb[0].mxu0
  %v1853 = vpop.f32.mrb[0].mxu0
  %v1854 = vadd.f32 %v1668, %v1853
  %v1855 = vpop.f32.mrb[0].mxu0
  %1856 = vmatprep.mubr.bf16.mxu0 0
  %1857 = vmatmul.mubr.bf16.gmra.mrb[0].mxu0 %v1716
  %v1858 = vpop.f32.mrb[0].mxu0
  %v1859 = vadd.f32 %v1668, %v1858
  %v1860 = vpop.f32.mrb[0].mxu0
  %v1861 = vpop.f32.mrb[0].mxu0
  %v1862 = vadd.f32 %v1668, %v1861
  %v1863 = vpop.f32.mrb[0].mxu0
  %1864 = vmatprep.mubr.bf16.mxu0 0
  %1865 = vmatmul.mubr.bf16.gmra.mrb[0].mxu0 %v1719
  %v1866 = vpop.f32.mrb[0].mxu0
  %v1867 = vadd.f32 %v1668, %v1866
  %v1868 = vpop.f32.mrb[0].mxu0
  %v1869 = vpop.f32.mrb[0].mxu0
  %v1870 = vadd.f32 %v1668, %v1869
  %v1871 = vpop.f32.mrb[0].mxu0
  %1872 = vmatprep.mubr.bf16.mxu0 0
  %1873 = vmatmul.mubr.bf16.gmra.mrb[0].mxu0 %v1722
  %v1874 = vpop.f32.mrb[0].mxu0
  %v1875 = vadd.f32 %v1668, %v1874
  %v1876 = vpop.f32.mrb[0].mxu0
  %v1877 = vpop.f32.mrb[0].mxu0
  %v1878 = vadd.f32 %v1668, %v1877
  %v1879 = vpop.f32.mrb[0].mxu0
  %1880 = vmatprep.mubr.bf16.mxu0 0
  %1881 = vmatmul.mubr.bf16.gmra.mrb[0].mxu0 %v1725
  %v1882 = vpop.f32.mrb[0].mxu0
  %v1883 = vadd.f32 %v1668, %v1882
  %v1884 = vpop.f32.mrb[0].mxu0
  %v1885 = vpop.f32.mrb[0].mxu0
  %v1886 = vadd.f32 %v1668, %v1885
  %v1887 = vpop.f32.mrb[0].mxu0
  %1888 = vmatprep.mubr.bf16.mxu0 0
  %1889 = vmatmul.mubr.bf16.gmra.mrb[0].mxu0 %v1728
  %v1890 = vpop.f32.mrb[0].mxu0
  %v1891 = vadd.f32 %v1668, %v1890
  %v1892 = vpop.f32.mrb[0].mxu0
  %v1893 = vpop.f32.mrb[0].mxu0
  %v1894 = vadd.f32 %v1668, %v1893
  %v1895 = vpop.f32.mrb[0].mxu0
  %1896 = vmatprep.mubr.bf16.mxu0 0
  %1897 = vmatmul.mubr.bf16.gmra.mrb[0].mxu0 %v1731
  %v1898 = vpop.f32.mrb[0].mxu0
  %v1899 = vadd.f32 %v1668, %v1898
  %v1900 = vpop.f32.mrb[0].mxu0
  %v1901 = vpop.f32.mrb[0].mxu0
  %v1902 = vadd.f32 %v1668, %v1901
  %v1903 = vpop.f32.mrb[0].mxu0
  %1904 = vmatprep.mubr.bf16.mxu0 0
  %1905 = vmatmul.mubr.bf16.gmra.mrb[0].mxu0 %v1734
  %v1906 = vpop.f32.mrb[0].mxu0
  %v1907 = vadd.f32 %v1668, %v1906
  %v1908 = vpop.f32.mrb[0].mxu0
  %v1909 = vpop.f32.mrb[0].mxu0
  %v1910 = vadd.f32 %v1668, %v1909
  %v1911 = vpop.f32.mrb[0].mxu0
  %1912 = vdwg.mxu0
  %v1913 = vmax.f32 %v1771, 0.0
  %v1914 = vmax.f32 %v1774, 0.0
  %v1915 = vmax.f32 %v1779, 0.0
  %v1916 = vmax.f32 %v1782, 0.0
  %v1917 = vmax.f32 %v1787, 0.0
  %v1918 = vmax.f32 %v1790, 0.0
  %v1919 = vmax.f32 %v1795, 0.0
  %v1920 = vmax.f32 %v1798, 0.0
  %v1921 = vmax.f32 %v1803, 0.0
  %v1922 = vmax.f32 %v1806, 0.0
  %v1923 = vmax.f32 %v1811, 0.0
  %v1924 = vmax.f32 %v1814, 0.0
  %v1925 = vmax.f32 %v1819, 0.0
  %v1926 = vmax.f32 %v1822, 0.0
  %v1927 = vmax.f32 %v1827, 0.0
  %v1928 = vmax.f32 %v1830, 0.0
  %v1929 = vmax.f32 %v1835, 0.0
  %v1930 = vmax.f32 %v1838, 0.0
  %v1931 = vmax.f32 %v1843, 0.0
  %v1932 = vmax.f32 %v1846, 0.0
  %v1933 = vmax.f32 %v1851, 0.0
  %v1934 = vmax.f32 %v1854, 0.0
  %v1935 = vmax.f32 %v1859, 0.0
  %v1936 = vmax.f32 %v1862, 0.0
  %v1937 = vmax.f32 %v1867, 0.0
  %v1938 = vmax.f32 %v1870, 0.0
  %v1939 = vmax.f32 %v1875, 0.0
  %v1940 = vmax.f32 %v1878, 0.0
  %v1941 = vmax.f32 %v1883, 0.0
  %v1942 = vmax.f32 %v1886, 0.0
  %v1943 = vmax.f32 %v1891, 0.0
  %v1944 = vmax.f32 %v1894, 0.0
  %v1945 = vmax.f32 %v1899, 0.0
  %v1946 = vmax.f32 %v1902, 0.0
  %v1947 = vmax.f32 %v1907, 0.0
  %v1948 = vmax.f32 %v1910, 0.0
  %v1949 = vrot.slane %v1913, 2
  %v1950 = vrot.slane %v1914, 2
  %v1951 = vrot.slane %v1915, 2
  %v1952 = vrot.slane %v1916, 2
  %v1953 = vrot.slane %v1917, 2
  %v1954 = vrot.slane %v1918, 2
  %v1955 = vrot.slane %v1919, 2
  %v1956 = vrot.slane %v1920, 2
  %v1957 = vrot.slane %v1921, 2
  %v1958 = vrot.slane %v1922, 2
  %v1959 = vrot.slane %v1923, 2
  %v1960 = vrot.slane %v1924, 2
  %v1961 = vrot.slane %v1925, 2
  %v1962 = vrot.slane %v1926, 2
  %v1963 = vrot.slane %v1927, 2
  %v1964 = vrot.slane %v1928, 2
  %v1965 = vrot.slane %v1929, 2
  %v1966 = vrot.slane %v1930, 2
  %v1967 = vrot.slane %v1931, 2
  %v1968 = vrot.slane %v1932, 2
  %v1969 = vrot.slane %v1933, 2
  %v1970 = vrot.slane %v1934, 2
  %v1971 = vrot.slane %v1935, 2
  %v1972 = vrot.slane %v1936, 2
  %v1973 = vrot.slane %v1937, 2
  %v1974 = vrot.slane %v1938, 2
  %v1975 = vrot.slane %v1939, 2
  %v1976 = vrot.slane %v1940, 2
  %v1977 = vrot.slane %v1941, 2
  %v1978 = vrot.slane %v1942, 2
  %v1979 = vrot.slane %v1943, 2
  %v1980 = vrot.slane %v1944, 2
  %v1981 = vrot.slane %v1945, 2
  %v1982 = vrot.slane %v1946, 2
  %v1983 = vrot.slane %v1947, 2
  %v1984 = vrot.slane %v1948, 2
  %v1985 = vlaneseq
  %v1986 = vshrl.u32 %v1985, 7
  %vm1987 = vcmp.lt.s32.totalorder %v1986, 6
  %v1988 = vsel %vm1987, %v1983, %v1984
  %v1989 = vsel %vm1987, %v1982, %v1983
  %v1990 = vsel %vm1987, %v1981, %v1982
  %v1991 = vsel %vm1987, %v1980, %v1981
  %v1992 = vsel %vm1987, %v1979, %v1980
  %v1993 = vsel %vm1987, %v1978, %v1979
  %v1994 = vsel %vm1987, %v1977, %v1978
  %v1995 = vsel %vm1987, %v1976, %v1977
  %v1996 = vsel %vm1987, %v1975, %v1976
  %v1997 = vsel %vm1987, %v1974, %v1975
  %v1998 = vsel %vm1987, %v1973, %v1974
  %v1999 = vsel %vm1987, %v1972, %v1973
  %v2000 = vsel %vm1987, %v1971, %v1972
  %v2001 = vsel %vm1987, %v1970, %v1971
  %v2002 = vsel %vm1987, %v1969, %v1970
  %v2003 = vsel %vm1987, %v1968, %v1969
  %v2004 = vsel %vm1987, %v1967, %v1968
  %v2005 = vsel %vm1987, %v1966, %v1967
  %v2006 = vsel %vm1987, %v1965, %v1966
  %v2007 = vsel %vm1987, %v1964, %v1965
  %v2008 = vsel %vm1987, %v1963, %v1964
  %v2009 = vsel %vm1987, %v1962, %v1963
  %v2010 = vsel %vm1987, %v1961, %v1962
  %v2011 = vsel %vm1987, %v1960, %v1961
  %v2012 = vsel %vm1987, %v1959, %v1960
  %v2013 = vsel %vm1987, %v1958, %v1959
  %v2014 = vsel %vm1987, %v1957, %v1958
  %v2015 = vsel %vm1987, %v1956, %v1957
  %v2016 = vsel %vm1987, %v1955, %v1956
  %v2017 = vsel %vm1987, %v1954, %v1955
  %v2018 = vsel %vm1987, %v1953, %v1954
  %v2019 = vsel %vm1987, %v1952, %v1953
  %v2020 = vsel %vm1987, %v1951, %v1952
  %v2021 = vsel %vm1987, %v1950, %v1951
  %v2022 = vsel %vm1987, %v1949, %v1950
  %v2023 = vsel %vm1987, %v1984, %v1949
  %v2024 = vpack.c.bf16 %v1988, %v1989
  %v2025 = vpack.c.bf16 %v2022, %v2023
  %v2026 = vpack.c.bf16 %v2020, %v2021
  %v2027 = vpack.c.bf16 %v2018, %v2019
  %v2028 = vpack.c.bf16 %v2016, %v2017
  %v2029 = vpack.c.bf16 %v2014, %v2015
  %v2030 = vpack.c.bf16 %v2012, %v2013
  %v2031 = vpack.c.bf16 %v2010, %v2011
  %v2032 = vpack.c.bf16 %v2008, %v2009
  %v2033 = vpack.c.bf16 %v2006, %v2007
  %v2034 = vpack.c.bf16 %v2004, %v2005
  %v2035 = vpack.c.bf16 %v2002, %v2003
  %v2036 = vpack.c.bf16 %v2000, %v2001
  %v2037 = vpack.c.bf16 %v1998, %v1999
  %v2038 = vpack.c.bf16 %v1996, %v1997
  %v2039 = vpack.c.bf16 %v1994, %v1995
  %v2040 = vpack.c.bf16 %v1992, %v1993
  %v2041 = vpack.c.bf16 %v1990, %v1991
  %v2042 = vld [vmem:[%s5] sm:$0xf]
  %v2043 = vld [vmem:[%s5 + $0x4] sm:$0xf]
  %v2044 = vld [vmem:[%s5 + $0x8] sm:$0xf]
  %v2045 = vld [vmem:[%s5 + $0xc] sm:$0xf]
  %v2046 = vld [vmem:[%s5 + $0x10] sm:$0xf]
  %v2047 = vld [vmem:[%s5 + $0x14] sm:$0xf]
  %v2048 = vld [vmem:[%s5 + $0x18] sm:$0xf]
  %v2049 = vld [vmem:[%s5 + $0x1c] sm:$0xf]
  %v2050 = vld [vmem:[%s5 + $0x20] sm:$0xf]
  %v2051 = vld [vmem:[%s5 + $0x24] sm:$0xf]
  %v2052 = vld [vmem:[%s5 + $0x28] sm:$0xf]
  %v2053 = vld [vmem:[%s5 + $0x2c] sm:$0xf]
  %v2054 = vld [vmem:[%s5 + $0x30] sm:$0xf]
  %v2055 = vld [vmem:[%s5 + $0x34] sm:$0xf]
  %v2056 = vld [vmem:[%s5 + $0x38] sm:$0xf]
  %v2057 = vld [vmem:[%s5 + $0x3c] sm:$0xf]
  %v2074 = vunpack.c.l.b16 %v2042
  %v2075 = vunpack.c.l.b16 %v2043
  %v2076 = vunpack.c.l.b16 %v2044
  %v2077 = vunpack.c.l.b16 %v2045
  %v2078 = vunpack.c.l.b16 %v2046
  %v2079 = vunpack.c.l.b16 %v2047
  %v2080 = vunpack.c.l.b16 %v2048
  %v2081 = vunpack.c.l.b16 %v2049
  %v2082 = vunpack.c.l.b16 %v2050
  %v2083 = vunpack.c.l.b16 %v2051
  %v2084 = vunpack.c.l.b16 %v2052
  %v2085 = vunpack.c.l.b16 %v2053
  %v2086 = vunpack.c.l.b16 %v2054
  %v2087 = vunpack.c.l.b16 %v2055
  %v2088 = vunpack.c.l.b16 %v2056
  %v2089 = vunpack.c.l.b16 %v2057
  %v2090 = vpack.c.b16 %v2075, %v2074
  %v2091 = vpack.c.b16 %v2077, %v2076
  %v2092 = vpack.c.b16 %v2079, %v2078
  %v2093 = vpack.c.b16 %v2081, %v2080
  %v2094 = vpack.c.b16 %v2083, %v2082
  %v2095 = vpack.c.b16 %v2085, %v2084
  %v2096 = vpack.c.b16 %v2087, %v2086
  %v2097 = vpack.c.b16 %v2089, %v2088
  %2106 = vmatprep.subr.bf16.mxu0 0
  %2107 = vmatpush1.bf16.msra.mxu0 %v2090
  %2108 = vmatprep.subr.bf16.mxu0 0
  %2109 = vmatpush1.bf16.msra.mxu0 %v2091
  %2110 = vmatprep.subr.bf16.mxu0 0
  %2111 = vmatpush1.bf16.msra.mxu0 %v2092
  %2112 = vmatprep.subr.bf16.mxu0 0
  %2113 = vmatpush1.bf16.msra.mxu0 %v2093
  %2114 = vmatprep.subr.bf16.mxu0 0
  %2115 = vmatpush1.bf16.msra.mxu0 %v2094
  %2116 = vmatprep.subr.bf16.mxu0 0
  %2117 = vmatpush1.bf16.msra.mxu0 %v2095
  %2118 = vmatprep.subr.bf16.mxu0 0
  %2119 = vmatpush1.bf16.msra.mxu0 %v2096
  %2120 = vmatprep.subr.bf16.mxu0 0
  %2121 = vmatpush1.bf16.msra.mxu0 %v2097
  %2122 = vmatprep.subr.bf16.mxu0 0
  %2123 = vmatpush1.bf16.msra.mxu0 0
  %2124 = vmatprep.subr.bf16.mxu0 0
  %2125 = vmatpush1.bf16.msra.mxu0 0
  %2126 = vmatprep.subr.bf16.mxu0 0
  %2127 = vmatpush1.bf16.msra.mxu0 0
  %2128 = vmatprep.subr.bf16.mxu0 0
  %2129 = vmatpush1.bf16.msra.mxu0 0
  %2130 = vmatprep.subr.bf16.mxu0 0
  %2131 = vmatpush1.bf16.msra.mxu0 0
  %2132 = vmatprep.subr.bf16.mxu0 0
  %2133 = vmatpush1.bf16.msra.mxu0 0
  %2134 = vmatprep.subr.bf16.mxu0 0
  %2135 = vmatpush1.bf16.msra.mxu0 0
  %2136 = vmatprep.subr.bf16.mxu0 0
  %2137 = vmatpush1.bf16.msra.mxu0 0
  %2138 = vmatprep.mubr.bf16.mxu0 0
  %2139 = vmatmul.mubr.bf16.gmra.mrb[0].mxu0 %v2024
  %v2140 = vpop.f32.mrb[0].mxu0
  %v2141 = vadd.f32 0.0, %v2140
  %v2142 = vpop.f32.mrb[0].mxu0
  %v2143 = vpop.f32.mrb[0].mxu0
  %v2144 = vadd.f32 0.0, %v2143
  %v2145 = vpop.f32.mrb[0].mxu0
  %2146 = vmatprep.mubr.bf16.mxu0 0
  %2147 = vmatmul.mubr.bf16.gmra.mrb[0].mxu0 %v2025
  %v2148 = vpop.f32.mrb[0].mxu0
  %v2149 = vadd.f32 0.0, %v2148
  %v2150 = vpop.f32.mrb[0].mxu0
  %v2151 = vpop.f32.mrb[0].mxu0
  %v2152 = vadd.f32 0.0, %v2151
  %v2153 = vpop.f32.mrb[0].mxu0
  %2154 = vmatprep.mubr.bf16.mxu0 0
  %2155 = vmatmul.mubr.bf16.gmra.mrb[0].mxu0 %v2026
  %v2156 = vpop.f32.mrb[0].mxu0
  %v2157 = vadd.f32 0.0, %v2156
  %v2158 = vpop.f32.mrb[0].mxu0
  %v2159 = vpop.f32.mrb[0].mxu0
  %v2160 = vadd.f32 0.0, %v2159
  %v2161 = vpop.f32.mrb[0].mxu0
  %2162 = vmatprep.mubr.bf16.mxu0 0
  %2163 = vmatmul.mubr.bf16.gmra.mrb[0].mxu0 %v2027
  %v2164 = vpop.f32.mrb[0].mxu0
  %v2165 = vadd.f32 0.0, %v2164
  %v2166 = vpop.f32.mrb[0].mxu0
  %v2167 = vpop.f32.mrb[0].mxu0
  %v2168 = vadd.f32 0.0, %v2167
  %v2169 = vpop.f32.mrb[0].mxu0
  %2170 = vmatprep.mubr.bf16.mxu0 0
  %2171 = vmatmul.mubr.bf16.gmra.mrb[0].mxu0 %v2028
  %v2172 = vpop.f32.mrb[0].mxu0
  %v2173 = vadd.f32 0.0, %v2172
  %v2174 = vpop.f32.mrb[0].mxu0
  %v2175 = vpop.f32.mrb[0].mxu0
  %v2176 = vadd.f32 0.0, %v2175
  %v2177 = vpop.f32.mrb[0].mxu0
  %2178 = vmatprep.mubr.bf16.mxu0 0
  %2179 = vmatmul.mubr.bf16.gmra.mrb[0].mxu0 %v2029
  %v2180 = vpop.f32.mrb[0].mxu0
  %v2181 = vadd.f32 0.0, %v2180
  %v2182 = vpop.f32.mrb[0].mxu0
  %v2183 = vpop.f32.mrb[0].mxu0
  %v2184 = vadd.f32 0.0, %v2183
  %v2185 = vpop.f32.mrb[0].mxu0
  %2186 = vmatprep.mubr.bf16.mxu0 0
  %2187 = vmatmul.mubr.bf16.gmra.mrb[0].mxu0 %v2030
  %v2188 = vpop.f32.mrb[0].mxu0
  %v2189 = vadd.f32 0.0, %v2188
  %v2190 = vpop.f32.mrb[0].mxu0
  %v2191 = vpop.f32.mrb[0].mxu0
  %v2192 = vadd.f32 0.0, %v2191
  %v2193 = vpop.f32.mrb[0].mxu0
  %2194 = vmatprep.mubr.bf16.mxu0 0
  %2195 = vmatmul.mubr.bf16.gmra.mrb[0].mxu0 %v2031
  %v2196 = vpop.f32.mrb[0].mxu0
  %v2197 = vadd.f32 0.0, %v2196
  %v2198 = vpop.f32.mrb[0].mxu0
  %v2199 = vpop.f32.mrb[0].mxu0
  %v2200 = vadd.f32 0.0, %v2199
  %v2201 = vpop.f32.mrb[0].mxu0
  %2202 = vmatprep.mubr.bf16.mxu0 0
  %2203 = vmatmul.mubr.bf16.gmra.mrb[0].mxu0 %v2032
  %v2204 = vpop.f32.mrb[0].mxu0
  %v2205 = vadd.f32 0.0, %v2204
  %v2206 = vpop.f32.mrb[0].mxu0
  %v2207 = vpop.f32.mrb[0].mxu0
  %v2208 = vadd.f32 0.0, %v2207
  %v2209 = vpop.f32.mrb[0].mxu0
  %2210 = vmatprep.mubr.bf16.mxu0 0
  %2211 = vmatmul.mubr.bf16.gmra.mrb[0].mxu0 %v2033
  %v2212 = vpop.f32.mrb[0].mxu0
  %v2213 = vadd.f32 0.0, %v2212
  %v2214 = vpop.f32.mrb[0].mxu0
  %v2215 = vpop.f32.mrb[0].mxu0
  %v2216 = vadd.f32 0.0, %v2215
  %v2217 = vpop.f32.mrb[0].mxu0
  %2218 = vmatprep.mubr.bf16.mxu0 0
  %2219 = vmatmul.mubr.bf16.gmra.mrb[0].mxu0 %v2034
  %v2220 = vpop.f32.mrb[0].mxu0
  %v2221 = vadd.f32 0.0, %v2220
  %v2222 = vpop.f32.mrb[0].mxu0
  %v2223 = vpop.f32.mrb[0].mxu0
  %v2224 = vadd.f32 0.0, %v2223
  %v2225 = vpop.f32.mrb[0].mxu0
  %2226 = vmatprep.mubr.bf16.mxu0 0
  %2227 = vmatmul.mubr.bf16.gmra.mrb[0].mxu0 %v2035
  %v2228 = vpop.f32.mrb[0].mxu0
  %v2229 = vadd.f32 0.0, %v2228
  %v2230 = vpop.f32.mrb[0].mxu0
  %v2231 = vpop.f32.mrb[0].mxu0
  %v2232 = vadd.f32 0.0, %v2231
  %v2233 = vpop.f32.mrb[0].mxu0
  %2234 = vmatprep.mubr.bf16.mxu0 0
  %2235 = vmatmul.mubr.bf16.gmra.mrb[0].mxu0 %v2036
  %v2236 = vpop.f32.mrb[0].mxu0
  %v2237 = vadd.f32 0.0, %v2236
  %v2238 = vpop.f32.mrb[0].mxu0
  %v2239 = vpop.f32.mrb[0].mxu0
  %v2240 = vadd.f32 0.0, %v2239
  %v2241 = vpop.f32.mrb[0].mxu0
  %2242 = vmatprep.mubr.bf16.mxu0 0
  %2243 = vmatmul.mubr.bf16.gmra.mrb[0].mxu0 %v2037
  %v2244 = vpop.f32.mrb[0].mxu0
  %v2245 = vadd.f32 0.0, %v2244
  %v2246 = vpop.f32.mrb[0].mxu0
  %v2247 = vpop.f32.mrb[0].mxu0
  %v2248 = vadd.f32 0.0, %v2247
  %v2249 = vpop.f32.mrb[0].mxu0
  %2250 = vmatprep.mubr.bf16.mxu0 0
  %2251 = vmatmul.mubr.bf16.gmra.mrb[0].mxu0 %v2038
  %v2252 = vpop.f32.mrb[0].mxu0
  %v2253 = vadd.f32 0.0, %v2252
  %v2254 = vpop.f32.mrb[0].mxu0
  %v2255 = vpop.f32.mrb[0].mxu0
  %v2256 = vadd.f32 0.0, %v2255
  %v2257 = vpop.f32.mrb[0].mxu0
  %2258 = vmatprep.mubr.bf16.mxu0 0
  %2259 = vmatmul.mubr.bf16.gmra.mrb[0].mxu0 %v2039
  %v2260 = vpop.f32.mrb[0].mxu0
  %v2261 = vadd.f32 0.0, %v2260
  %v2262 = vpop.f32.mrb[0].mxu0
  %v2263 = vpop.f32.mrb[0].mxu0
  %v2264 = vadd.f32 0.0, %v2263
  %v2265 = vpop.f32.mrb[0].mxu0
  %2266 = vmatprep.mubr.bf16.mxu0 0
  %2267 = vmatmul.mubr.bf16.gmra.mrb[0].mxu0 %v2040
  %v2268 = vpop.f32.mrb[0].mxu0
  %v2269 = vadd.f32 0.0, %v2268
  %v2270 = vpop.f32.mrb[0].mxu0
  %v2271 = vpop.f32.mrb[0].mxu0
  %v2272 = vadd.f32 0.0, %v2271
  %v2273 = vpop.f32.mrb[0].mxu0
  %2274 = vmatprep.mubr.bf16.mxu0 0
  %2275 = vmatmul.mubr.bf16.gmra.mrb[0].mxu0 %v2041
  %v2276 = vpop.f32.mrb[0].mxu0
  %v2277 = vadd.f32 0.0, %v2276
  %v2278 = vpop.f32.mrb[0].mxu0
  %v2279 = vpop.f32.mrb[0].mxu0
  %v2280 = vadd.f32 0.0, %v2279
  %v2281 = vpop.f32.mrb[0].mxu0
  %2282 = vdwg.mxu0
  %v2283 = vld [vmem:[%s9] sm:$0xff]
  %v2284 = vld [vmem:[%s9 + $0x8] sm:$0xff]
  %v2285 = vld [vmem:[%s9 + $0x10] sm:$0xff]
  %v2286 = vld [vmem:[%s9 + $0x18] sm:$0xff]
  %v2287 = vld [vmem:[%s9 + $0x20] sm:$0xff]
  %v2288 = vld [vmem:[%s9 + $0x28] sm:$0xff]
  %v2289 = vld [vmem:[%s9 + $0x30] sm:$0xff]
  %v2290 = vld [vmem:[%s9 + $0x38] sm:$0xff]
  %v2291 = vld [vmem:[%s9 + $0x40] sm:$0xff]
  %v2292 = vld [vmem:[%s9 + $0x48] sm:$0xff]
  %v2293 = vld [vmem:[%s9 + $0x50] sm:$0xff]
  %v2294 = vld [vmem:[%s9 + $0x58] sm:$0xff]
  %v2295 = vld [vmem:[%s9 + $0x60] sm:$0xff]
  %v2296 = vld [vmem:[%s9 + $0x68] sm:$0xff]
  %v2297 = vld [vmem:[%s9 + $0x70] sm:$0xff]
  %v2298 = vld [vmem:[%s9 + $0x78] sm:$0xff]
  %v2299 = vld [vmem:[%s9 + $0x80] sm:$0xff]
  %v2300 = vld [vmem:[%s9 + $0x88] sm:$0xff]
  %2302 = vset.pattern.permute.xlu0 0
  %2303 = vperm.xlu0 %2302, %v2283
  %v2304 = vpop.permute.xlu0 %2303
  %2307 = vset.pattern.permute.xlu0 0
  %2308 = vperm.xlu0 %2307, %v2284
  %v2309 = vpop.permute.xlu0 %2308
  %2312 = vset.pattern.permute.xlu0 0
  %2313 = vperm.xlu0 %2312, %v2285
  %v2314 = vpop.permute.xlu0 %2313
  %2317 = vset.pattern.permute.xlu0 0
  %2318 = vperm.xlu0 %2317, %v2286
  %v2319 = vpop.permute.xlu0 %2318
  %2322 = vset.pattern.permute.xlu0 0
  %2323 = vperm.xlu0 %2322, %v2287
  %v2324 = vpop.permute.xlu0 %2323
  %2327 = vset.pattern.permute.xlu0 0
  %2328 = vperm.xlu0 %2327, %v2288
  %v2329 = vpop.permute.xlu0 %2328
  %2332 = vset.pattern.permute.xlu0 0
  %2333 = vperm.xlu0 %2332, %v2289
  %v2334 = vpop.permute.xlu0 %2333
  %2337 = vset.pattern.permute.xlu0 0
  %2338 = vperm.xlu0 %2337, %v2290
  %v2339 = vpop.permute.xlu0 %2338
  %2342 = vset.pattern.permute.xlu0 0
  %2343 = vperm.xlu0 %2342, %v2291
  %v2344 = vpop.permute.xlu0 %2343
  %2347 = vset.pattern.permute.xlu0 0
  %2348 = vperm.xlu0 %2347, %v2292
  %v2349 = vpop.permute.xlu0 %2348
  %2352 = vset.pattern.permute.xlu0 0
  %2353 = vperm.xlu0 %2352, %v2293
  %v2354 = vpop.permute.xlu0 %2353
  %2357 = vset.pattern.permute.xlu0 0
  %2358 = vperm.xlu0 %2357, %v2294
  %v2359 = vpop.permute.xlu0 %2358
  %2362 = vset.pattern.permute.xlu0 0
  %2363 = vperm.xlu0 %2362, %v2295
  %v2364 = vpop.permute.xlu0 %2363
  %2367 = vset.pattern.permute.xlu0 0
  %2368 = vperm.xlu0 %2367, %v2296
  %v2369 = vpop.permute.xlu0 %2368
  %2372 = vset.pattern.permute.xlu0 0
  %2373 = vperm.xlu0 %2372, %v2297
  %v2374 = vpop.permute.xlu0 %2373
  %2377 = vset.pattern.permute.xlu0 0
  %2378 = vperm.xlu0 %2377, %v2298
  %v2379 = vpop.permute.xlu0 %2378
  %2382 = vset.pattern.permute.xlu0 0
  %2383 = vperm.xlu0 %2382, %v2299
  %v2384 = vpop.permute.xlu0 %2383
  %2387 = vset.pattern.permute.xlu0 0
  %2388 = vperm.xlu0 %2387, %v2300
  %v2389 = vpop.permute.xlu0 %2388
  %v2391 = vmul.f32 %v2141, %v2304
  %v2392 = vmul.f32 %v2144, %v2309
  %v2393 = vmul.f32 %v2149, %v2314
  %v2394 = vmul.f32 %v2152, %v2319
  %v2395 = vmul.f32 %v2157, %v2324
  %v2396 = vmul.f32 %v2160, %v2329
  %v2397 = vmul.f32 %v2165, %v2334
  %v2398 = vmul.f32 %v2168, %v2339
  %v2399 = vmul.f32 %v2173, %v2344
  %v2400 = vmul.f32 %v2176, %v2349
  %v2401 = vmul.f32 %v2181, %v2354
  %v2402 = vmul.f32 %v2184, %v2359
  %v2403 = vmul.f32 %v2189, %v2364
  %v2404 = vmul.f32 %v2192, %v2369
  %v2405 = vmul.f32 %v2197, %v2374
  %v2406 = vmul.f32 %v2200, %v2379
  %v2407 = vmul.f32 %v2205, %v2384
  %v2408 = vmul.f32 %v2208, %v2389
  %v2409 = vmul.f32 %v2213, %v2304
  %v2410 = vmul.f32 %v2216, %v2309
  %v2411 = vmul.f32 %v2221, %v2314
  %v2412 = vmul.f32 %v2224, %v2319
  %v2413 = vmul.f32 %v2229, %v2324
  %v2414 = vmul.f32 %v2232, %v2329
  %v2415 = vmul.f32 %v2237, %v2334
  %v2416 = vmul.f32 %v2240, %v2339
  %v2417 = vmul.f32 %v2245, %v2344
  %v2418 = vmul.f32 %v2248, %v2349
  %v2419 = vmul.f32 %v2253, %v2354
  %v2420 = vmul.f32 %v2256, %v2359
  %v2421 = vmul.f32 %v2261, %v2364
  %v2422 = vmul.f32 %v2264, %v2369
  %v2423 = vmul.f32 %v2269, %v2374
  %v2424 = vmul.f32 %v2272, %v2379
  %v2425 = vmul.f32 %v2277, %v2384
  %v2426 = vmul.f32 %v2280, %v2389
  %v2427 = vadd.f32 %v2391, 0.0
  %v2428 = vadd.f32 %v2392, 0.0
  %v2429 = vadd.f32 %v2393, 0.0
  %v2430 = vadd.f32 %v2394, 0.0
  %v2431 = vadd.f32 %v2395, 0.0
  %v2432 = vadd.f32 %v2396, 0.0
  %v2433 = vadd.f32 %v2397, 0.0
  %v2434 = vadd.f32 %v2398, 0.0
  %v2435 = vadd.f32 %v2399, 0.0
  %v2436 = vadd.f32 %v2400, 0.0
  %v2437 = vadd.f32 %v2401, 0.0
  %v2438 = vadd.f32 %v2402, 0.0
  %v2439 = vadd.f32 %v2403, 0.0
  %v2440 = vadd.f32 %v2404, 0.0
  %v2441 = vadd.f32 %v2405, 0.0
  %v2442 = vadd.f32 %v2406, 0.0
  %v2443 = vadd.f32 %v2407, 0.0
  %v2444 = vadd.f32 %v2408, 0.0
  %v2445 = vadd.f32 %v2409, 0.0
  %v2446 = vadd.f32 %v2410, 0.0
  %v2447 = vadd.f32 %v2411, 0.0
  %v2448 = vadd.f32 %v2412, 0.0
  %v2449 = vadd.f32 %v2413, 0.0
  %v2450 = vadd.f32 %v2414, 0.0
  %v2451 = vadd.f32 %v2415, 0.0
  %v2452 = vadd.f32 %v2416, 0.0
  %v2453 = vadd.f32 %v2417, 0.0
  %v2454 = vadd.f32 %v2418, 0.0
  %v2455 = vadd.f32 %v2419, 0.0
  %v2456 = vadd.f32 %v2420, 0.0
  %v2457 = vadd.f32 %v2421, 0.0
  %v2458 = vadd.f32 %v2422, 0.0
  %v2459 = vadd.f32 %v2423, 0.0
  %v2460 = vadd.f32 %v2424, 0.0
  %v2461 = vadd.f32 %v2425, 0.0
  %v2462 = vadd.f32 %v2426, 0.0
  %v2463 = vrot.slane %v1913, 5
  %v2464 = vrot.slane %v1914, 5
  %v2465 = vrot.slane %v1915, 5
  %v2466 = vrot.slane %v1916, 5
  %v2467 = vrot.slane %v1917, 5
  %v2468 = vrot.slane %v1918, 5
  %v2469 = vrot.slane %v1919, 5
  %v2470 = vrot.slane %v1920, 5
  %v2471 = vrot.slane %v1921, 5
  %v2472 = vrot.slane %v1922, 5
  %v2473 = vrot.slane %v1923, 5
  %v2474 = vrot.slane %v1924, 5
  %v2475 = vrot.slane %v1925, 5
  %v2476 = vrot.slane %v1926, 5
  %v2477 = vrot.slane %v1927, 5
  %v2478 = vrot.slane %v1928, 5
  %v2479 = vrot.slane %v1929, 5
  %v2480 = vrot.slane %v1930, 5
  %v2481 = vrot.slane %v1931, 5
  %v2482 = vrot.slane %v1932, 5
  %v2483 = vrot.slane %v1933, 5
  %v2484 = vrot.slane %v1934, 5
  %v2485 = vrot.slane %v1935, 5
  %v2486 = vrot.slane %v1936, 5
  %v2487 = vrot.slane %v1937, 5
  %v2488 = vrot.slane %v1938, 5
  %v2489 = vrot.slane %v1939, 5
  %v2490 = vrot.slane %v1940, 5
  %v2491 = vrot.slane %v1941, 5
  %v2492 = vrot.slane %v1942, 5
  %v2493 = vrot.slane %v1943, 5
  %v2494 = vrot.slane %v1944, 5
  %v2495 = vrot.slane %v1945, 5
  %v2496 = vrot.slane %v1946, 5
  %v2497 = vrot.slane %v1947, 5
  %v2498 = vrot.slane %v1948, 5
  %vm2499 = vcmp.lt.s32.totalorder %v1986, 3
  %v2500 = vsel %vm2499, %v2497, %v2498
  %v2501 = vsel %vm2499, %v2496, %v2497
  %v2502 = vsel %vm2499, %v2495, %v2496
  %v2503 = vsel %vm2499, %v2494, %v2495
  %v2504 = vsel %vm2499, %v2493, %v2494
  %v2505 = vsel %vm2499, %v2492, %v2493
  %v2506 = vsel %vm2499, %v2491, %v2492
  %v2507 = vsel %vm2499, %v2490, %v2491
  %v2508 = vsel %vm2499, %v2489, %v2490
  %v2509 = vsel %vm2499, %v2488, %v2489
  %v2510 = vsel %vm2499, %v2487, %v2488
  %v2511 = vsel %vm2499, %v2486, %v2487
  %v2512 = vsel %vm2499, %v2485, %v2486
  %v2513 = vsel %vm2499, %v2484, %v2485
  %v2514 = vsel %vm2499, %v2483, %v2484
  %v2515 = vsel %vm2499, %v2482, %v2483
  %v2516 = vsel %vm2499, %v2481, %v2482
  %v2517 = vsel %vm2499, %v2480, %v2481
  %v2518 = vsel %vm2499, %v2479, %v2480
  %v2519 = vsel %vm2499, %v2478, %v2479
  %v2520 = vsel %vm2499, %v2477, %v2478
  %v2521 = vsel %vm2499, %v2476, %v2477
  %v2522 = vsel %vm2499, %v2475, %v2476
  %v2523 = vsel %vm2499, %v2474, %v2475
  %v2524 = vsel %vm2499, %v2473, %v2474
  %v2525 = vsel %vm2499, %v2472, %v2473
  %v2526 = vsel %vm2499, %v2471, %v2472
  %v2527 = vsel %vm2499, %v2470, %v2471
  %v2528 = vsel %vm2499, %v2469, %v2470
  %v2529 = vsel %vm2499, %v2468, %v2469
  %v2530 = vsel %vm2499, %v2467, %v2468
  %v2531 = vsel %vm2499, %v2466, %v2467
  %v2532 = vsel %vm2499, %v2465, %v2466
  %v2533 = vsel %vm2499, %v2464, %v2465
  %v2534 = vsel %vm2499, %v2463, %v2464
  %v2535 = vsel %vm2499, %v2498, %v2463
  %v2536 = vpack.c.bf16 %v2532, %v2533
  %v2537 = vpack.c.bf16 %v2530, %v2531
  %v2538 = vpack.c.bf16 %v2528, %v2529
  %v2539 = vpack.c.bf16 %v2526, %v2527
  %v2540 = vpack.c.bf16 %v2524, %v2525
  %v2541 = vpack.c.bf16 %v2522, %v2523
  %v2542 = vpack.c.bf16 %v2520, %v2521
  %v2543 = vpack.c.bf16 %v2518, %v2519
  %v2544 = vpack.c.bf16 %v2516, %v2517
  %v2545 = vpack.c.bf16 %v2514, %v2515
  %v2546 = vpack.c.bf16 %v2512, %v2513
  %v2547 = vpack.c.bf16 %v2510, %v2511
  %v2548 = vpack.c.bf16 %v2508, %v2509
  %v2549 = vpack.c.bf16 %v2506, %v2507
  %v2550 = vpack.c.bf16 %v2504, %v2505
  %v2551 = vpack.c.bf16 %v2502, %v2503
  %v2552 = vpack.c.bf16 %v2500, %v2501
  %v2553 = vpack.c.bf16 %v2534, %v2535
  %s2554 = scalar_lea.vmem %s5, 64
  %v2555 = vld [vmem:[%s2554] sm:$0xf]
  %v2556 = vld [vmem:[%s2554 + $0x4] sm:$0xf]
  %v2557 = vld [vmem:[%s2554 + $0x8] sm:$0xf]
  %v2558 = vld [vmem:[%s2554 + $0xc] sm:$0xf]
  %v2559 = vld [vmem:[%s2554 + $0x10] sm:$0xf]
  %v2560 = vld [vmem:[%s2554 + $0x14] sm:$0xf]
  %v2561 = vld [vmem:[%s2554 + $0x18] sm:$0xf]
  %v2562 = vld [vmem:[%s2554 + $0x1c] sm:$0xf]
  %v2563 = vld [vmem:[%s2554 + $0x20] sm:$0xf]
  %v2564 = vld [vmem:[%s2554 + $0x24] sm:$0xf]
  %v2565 = vld [vmem:[%s2554 + $0x28] sm:$0xf]
  %v2566 = vld [vmem:[%s2554 + $0x2c] sm:$0xf]
  %v2567 = vld [vmem:[%s2554 + $0x30] sm:$0xf]
  %v2568 = vld [vmem:[%s2554 + $0x34] sm:$0xf]
  %v2569 = vld [vmem:[%s2554 + $0x38] sm:$0xf]
  %v2570 = vld [vmem:[%s2554 + $0x3c] sm:$0xf]
  %v2587 = vunpack.c.l.b16 %v2555
  %v2588 = vunpack.c.l.b16 %v2556
  %v2589 = vunpack.c.l.b16 %v2557
  %v2590 = vunpack.c.l.b16 %v2558
  %v2591 = vunpack.c.l.b16 %v2559
  %v2592 = vunpack.c.l.b16 %v2560
  %v2593 = vunpack.c.l.b16 %v2561
  %v2594 = vunpack.c.l.b16 %v2562
  %v2595 = vunpack.c.l.b16 %v2563
  %v2596 = vunpack.c.l.b16 %v2564
  %v2597 = vunpack.c.l.b16 %v2565
  %v2598 = vunpack.c.l.b16 %v2566
  %v2599 = vunpack.c.l.b16 %v2567
  %v2600 = vunpack.c.l.b16 %v2568
  %v2601 = vunpack.c.l.b16 %v2569
  %v2602 = vunpack.c.l.b16 %v2570
  %v2603 = vpack.c.b16 %v2588, %v2587
  %v2604 = vpack.c.b16 %v2590, %v2589
  %v2605 = vpack.c.b16 %v2592, %v2591
  %v2606 = vpack.c.b16 %v2594, %v2593
  %v2607 = vpack.c.b16 %v2596, %v2595
  %v2608 = vpack.c.b16 %v2598, %v2597
  %v2609 = vpack.c.b16 %v2600, %v2599
  %v2610 = vpack.c.b16 %v2602, %v2601
  %2619 = vmatprep.subr.bf16.mxu0 0
  %2620 = vmatpush1.bf16.msra.mxu0 %v2603
  %2621 = vmatprep.subr.bf16.mxu0 0
  %2622 = vmatpush1.bf16.msra.mxu0 %v2604
  %2623 = vmatprep.subr.bf16.mxu0 0
  %2624 = vmatpush1.bf16.msra.mxu0 %v2605
  %2625 = vmatprep.subr.bf16.mxu0 0
  %2626 = vmatpush1.bf16.msra.mxu0 %v2606
  %2627 = vmatprep.subr.bf16.mxu0 0
  %2628 = vmatpush1.bf16.msra.mxu0 %v2607
  %2629 = vmatprep.subr.bf16.mxu0 0
  %2630 = vmatpush1.bf16.msra.mxu0 %v2608
  %2631 = vmatprep.subr.bf16.mxu0 0
  %2632 = vmatpush1.bf16.msra.mxu0 %v2609
  %2633 = vmatprep.subr.bf16.mxu0 0
  %2634 = vmatpush1.bf16.msra.mxu0 %v2610
  %2635 = vmatprep.subr.bf16.mxu0 0
  %2636 = vmatpush1.bf16.msra.mxu0 0
  %2637 = vmatprep.subr.bf16.mxu0 0
  %2638 = vmatpush1.bf16.msra.mxu0 0
  %2639 = vmatprep.subr.bf16.mxu0 0
  %2640 = vmatpush1.bf16.msra.mxu0 0
  %2641 = vmatprep.subr.bf16.mxu0 0
  %2642 = vmatpush1.bf16.msra.mxu0 0
  %2643 = vmatprep.subr.bf16.mxu0 0
  %2644 = vmatpush1.bf16.msra.mxu0 0
  %2645 = vmatprep.subr.bf16.mxu0 0
  %2646 = vmatpush1.bf16.msra.mxu0 0
  %2647 = vmatprep.subr.bf16.mxu0 0
  %2648 = vmatpush1.bf16.msra.mxu0 0
  %2649 = vmatprep.subr.bf16.mxu0 0
  %2650 = vmatpush1.bf16.msra.mxu0 0
  %2651 = vmatprep.mubr.bf16.mxu0 0
  %2652 = vmatmul.mubr.bf16.gmra.mrb[0].mxu0 %v2536
  %v2653 = vpop.f32.mrb[0].mxu0
  %v2654 = vadd.f32 0.0, %v2653
  %v2655 = vpop.f32.mrb[0].mxu0
  %v2656 = vpop.f32.mrb[0].mxu0
  %v2657 = vadd.f32 0.0, %v2656
  %v2658 = vpop.f32.mrb[0].mxu0
  %2659 = vmatprep.mubr.bf16.mxu0 0
  %2660 = vmatmul.mubr.bf16.gmra.mrb[0].mxu0 %v2537
  %v2661 = vpop.f32.mrb[0].mxu0
  %v2662 = vadd.f32 0.0, %v2661
  %v2663 = vpop.f32.mrb[0].mxu0
  %v2664 = vpop.f32.mrb[0].mxu0
  %v2665 = vadd.f32 0.0, %v2664
  %v2666 = vpop.f32.mrb[0].mxu0
  %2667 = vmatprep.mubr.bf16.mxu0 0
  %2668 = vmatmul.mubr.bf16.gmra.mrb[0].mxu0 %v2538
  %v2669 = vpop.f32.mrb[0].mxu0
  %v2670 = vadd.f32 0.0, %v2669
  %v2671 = vpop.f32.mrb[0].mxu0
  %v2672 = vpop.f32.mrb[0].mxu0
  %v2673 = vadd.f32 0.0, %v2672
  %v2674 = vpop.f32.mrb[0].mxu0
  %2675 = vmatprep.mubr.bf16.mxu0 0
  %2676 = vmatmul.mubr.bf16.gmra.mrb[0].mxu0 %v2539
  %v2677 = vpop.f32.mrb[0].mxu0
  %v2678 = vadd.f32 0.0, %v2677
  %v2679 = vpop.f32.mrb[0].mxu0
  %v2680 = vpop.f32.mrb[0].mxu0
  %v2681 = vadd.f32 0.0, %v2680
  %v2682 = vpop.f32.mrb[0].mxu0
  %2683 = vmatprep.mubr.bf16.mxu0 0
  %2684 = vmatmul.mubr.bf16.gmra.mrb[0].mxu0 %v2540
  %v2685 = vpop.f32.mrb[0].mxu0
  %v2686 = vadd.f32 0.0, %v2685
  %v2687 = vpop.f32.mrb[0].mxu0
  %v2688 = vpop.f32.mrb[0].mxu0
  %v2689 = vadd.f32 0.0, %v2688
  %v2690 = vpop.f32.mrb[0].mxu0
  %2691 = vmatprep.mubr.bf16.mxu0 0
  %2692 = vmatmul.mubr.bf16.gmra.mrb[0].mxu0 %v2541
  %v2693 = vpop.f32.mrb[0].mxu0
  %v2694 = vadd.f32 0.0, %v2693
  %v2695 = vpop.f32.mrb[0].mxu0
  %v2696 = vpop.f32.mrb[0].mxu0
  %v2697 = vadd.f32 0.0, %v2696
  %v2698 = vpop.f32.mrb[0].mxu0
  %2699 = vmatprep.mubr.bf16.mxu0 0
  %2700 = vmatmul.mubr.bf16.gmra.mrb[0].mxu0 %v2542
  %v2701 = vpop.f32.mrb[0].mxu0
  %v2702 = vadd.f32 0.0, %v2701
  %v2703 = vpop.f32.mrb[0].mxu0
  %v2704 = vpop.f32.mrb[0].mxu0
  %v2705 = vadd.f32 0.0, %v2704
  %v2706 = vpop.f32.mrb[0].mxu0
  %2707 = vmatprep.mubr.bf16.mxu0 0
  %2708 = vmatmul.mubr.bf16.gmra.mrb[0].mxu0 %v2543
  %v2709 = vpop.f32.mrb[0].mxu0
  %v2710 = vadd.f32 0.0, %v2709
  %v2711 = vpop.f32.mrb[0].mxu0
  %v2712 = vpop.f32.mrb[0].mxu0
  %v2713 = vadd.f32 0.0, %v2712
  %v2714 = vpop.f32.mrb[0].mxu0
  %2715 = vmatprep.mubr.bf16.mxu0 0
  %2716 = vmatmul.mubr.bf16.gmra.mrb[0].mxu0 %v2544
  %v2717 = vpop.f32.mrb[0].mxu0
  %v2718 = vadd.f32 0.0, %v2717
  %v2719 = vpop.f32.mrb[0].mxu0
  %v2720 = vpop.f32.mrb[0].mxu0
  %v2721 = vadd.f32 0.0, %v2720
  %v2722 = vpop.f32.mrb[0].mxu0
  %2723 = vmatprep.mubr.bf16.mxu0 0
  %2724 = vmatmul.mubr.bf16.gmra.mrb[0].mxu0 %v2545
  %v2725 = vpop.f32.mrb[0].mxu0
  %v2726 = vadd.f32 0.0, %v2725
  %v2727 = vpop.f32.mrb[0].mxu0
  %v2728 = vpop.f32.mrb[0].mxu0
  %v2729 = vadd.f32 0.0, %v2728
  %v2730 = vpop.f32.mrb[0].mxu0
  %2731 = vmatprep.mubr.bf16.mxu0 0
  %2732 = vmatmul.mubr.bf16.gmra.mrb[0].mxu0 %v2546
  %v2733 = vpop.f32.mrb[0].mxu0
  %v2734 = vadd.f32 0.0, %v2733
  %v2735 = vpop.f32.mrb[0].mxu0
  %v2736 = vpop.f32.mrb[0].mxu0
  %v2737 = vadd.f32 0.0, %v2736
  %v2738 = vpop.f32.mrb[0].mxu0
  %2739 = vmatprep.mubr.bf16.mxu0 0
  %2740 = vmatmul.mubr.bf16.gmra.mrb[0].mxu0 %v2547
  %v2741 = vpop.f32.mrb[0].mxu0
  %v2742 = vadd.f32 0.0, %v2741
  %v2743 = vpop.f32.mrb[0].mxu0
  %v2744 = vpop.f32.mrb[0].mxu0
  %v2745 = vadd.f32 0.0, %v2744
  %v2746 = vpop.f32.mrb[0].mxu0
  %2747 = vmatprep.mubr.bf16.mxu0 0
  %2748 = vmatmul.mubr.bf16.gmra.mrb[0].mxu0 %v2548
  %v2749 = vpop.f32.mrb[0].mxu0
  %v2750 = vadd.f32 0.0, %v2749
  %v2751 = vpop.f32.mrb[0].mxu0
  %v2752 = vpop.f32.mrb[0].mxu0
  %v2753 = vadd.f32 0.0, %v2752
  %v2754 = vpop.f32.mrb[0].mxu0
  %2755 = vmatprep.mubr.bf16.mxu0 0
  %2756 = vmatmul.mubr.bf16.gmra.mrb[0].mxu0 %v2549
  %v2757 = vpop.f32.mrb[0].mxu0
  %v2758 = vadd.f32 0.0, %v2757
  %v2759 = vpop.f32.mrb[0].mxu0
  %v2760 = vpop.f32.mrb[0].mxu0
  %v2761 = vadd.f32 0.0, %v2760
  %v2762 = vpop.f32.mrb[0].mxu0
  %2763 = vmatprep.mubr.bf16.mxu0 0
  %2764 = vmatmul.mubr.bf16.gmra.mrb[0].mxu0 %v2550
  %v2765 = vpop.f32.mrb[0].mxu0
  %v2766 = vadd.f32 0.0, %v2765
  %v2767 = vpop.f32.mrb[0].mxu0
  %v2768 = vpop.f32.mrb[0].mxu0
  %v2769 = vadd.f32 0.0, %v2768
  %v2770 = vpop.f32.mrb[0].mxu0
  %2771 = vmatprep.mubr.bf16.mxu0 0
  %2772 = vmatmul.mubr.bf16.gmra.mrb[0].mxu0 %v2551
  %v2773 = vpop.f32.mrb[0].mxu0
  %v2774 = vadd.f32 0.0, %v2773
  %v2775 = vpop.f32.mrb[0].mxu0
  %v2776 = vpop.f32.mrb[0].mxu0
  %v2777 = vadd.f32 0.0, %v2776
  %v2778 = vpop.f32.mrb[0].mxu0
  %2779 = vmatprep.mubr.bf16.mxu0 0
  %2780 = vmatmul.mubr.bf16.gmra.mrb[0].mxu0 %v2552
  %v2781 = vpop.f32.mrb[0].mxu0
  %v2782 = vadd.f32 0.0, %v2781
  %v2783 = vpop.f32.mrb[0].mxu0
  %v2784 = vpop.f32.mrb[0].mxu0
  %v2785 = vadd.f32 0.0, %v2784
  %v2786 = vpop.f32.mrb[0].mxu0
  %2787 = vmatprep.mubr.bf16.mxu0 0
  %2788 = vmatmul.mubr.bf16.gmra.mrb[0].mxu0 %v2553
  %v2789 = vpop.f32.mrb[0].mxu0
  %v2790 = vadd.f32 0.0, %v2789
  %v2791 = vpop.f32.mrb[0].mxu0
  %v2792 = vpop.f32.mrb[0].mxu0
  %v2793 = vadd.f32 0.0, %v2792
  %v2794 = vpop.f32.mrb[0].mxu0
  %2795 = vdwg.mxu0
  %s2796 = scalar_lea.vmem %s9, 144
  %v2797 = vld [vmem:[%s2796] sm:$0xff]
  %v2798 = vld [vmem:[%s2796 + $0x8] sm:$0xff]
  %v2799 = vld [vmem:[%s2796 + $0x10] sm:$0xff]
  %v2800 = vld [vmem:[%s2796 + $0x18] sm:$0xff]
  %v2801 = vld [vmem:[%s2796 + $0x20] sm:$0xff]
  %v2802 = vld [vmem:[%s2796 + $0x28] sm:$0xff]
  %v2803 = vld [vmem:[%s2796 + $0x30] sm:$0xff]
  %v2804 = vld [vmem:[%s2796 + $0x38] sm:$0xff]
  %v2805 = vld [vmem:[%s2796 + $0x40] sm:$0xff]
  %v2806 = vld [vmem:[%s2796 + $0x48] sm:$0xff]
  %v2807 = vld [vmem:[%s2796 + $0x50] sm:$0xff]
  %v2808 = vld [vmem:[%s2796 + $0x58] sm:$0xff]
  %v2809 = vld [vmem:[%s2796 + $0x60] sm:$0xff]
  %v2810 = vld [vmem:[%s2796 + $0x68] sm:$0xff]
  %v2811 = vld [vmem:[%s2796 + $0x70] sm:$0xff]
  %v2812 = vld [vmem:[%s2796 + $0x78] sm:$0xff]
  %v2813 = vld [vmem:[%s2796 + $0x80] sm:$0xff]
  %v2814 = vld [vmem:[%s2796 + $0x88] sm:$0xff]
  %2816 = vset.pattern.permute.xlu0 0
  %2817 = vperm.xlu0 %2816, %v2797
  %v2818 = vpop.permute.xlu0 %2817
  %2821 = vset.pattern.permute.xlu0 0
  %2822 = vperm.xlu0 %2821, %v2798
  %v2823 = vpop.permute.xlu0 %2822
  %2826 = vset.pattern.permute.xlu0 0
  %2827 = vperm.xlu0 %2826, %v2799
  %v2828 = vpop.permute.xlu0 %2827
  %2831 = vset.pattern.permute.xlu0 0
  %2832 = vperm.xlu0 %2831, %v2800
  %v2833 = vpop.permute.xlu0 %2832
  %2836 = vset.pattern.permute.xlu0 0
  %2837 = vperm.xlu0 %2836, %v2801
  %v2838 = vpop.permute.xlu0 %2837
  %2841 = vset.pattern.permute.xlu0 0
  %2842 = vperm.xlu0 %2841, %v2802
  %v2843 = vpop.permute.xlu0 %2842
  %2846 = vset.pattern.permute.xlu0 0
  %2847 = vperm.xlu0 %2846, %v2803
  %v2848 = vpop.permute.xlu0 %2847
  %2851 = vset.pattern.permute.xlu0 0
  %2852 = vperm.xlu0 %2851, %v2804
  %v2853 = vpop.permute.xlu0 %2852
  %2856 = vset.pattern.permute.xlu0 0
  %2857 = vperm.xlu0 %2856, %v2805
  %v2858 = vpop.permute.xlu0 %2857
  %2861 = vset.pattern.permute.xlu0 0
  %2862 = vperm.xlu0 %2861, %v2806
  %v2863 = vpop.permute.xlu0 %2862
  %2866 = vset.pattern.permute.xlu0 0
  %2867 = vperm.xlu0 %2866, %v2807
  %v2868 = vpop.permute.xlu0 %2867
  %2871 = vset.pattern.permute.xlu0 0
  %2872 = vperm.xlu0 %2871, %v2808
  %v2873 = vpop.permute.xlu0 %2872
  %2876 = vset.pattern.permute.xlu0 0
  %2877 = vperm.xlu0 %2876, %v2809
  %v2878 = vpop.permute.xlu0 %2877
  %2881 = vset.pattern.permute.xlu0 0
  %2882 = vperm.xlu0 %2881, %v2810
  %v2883 = vpop.permute.xlu0 %2882
  %2886 = vset.pattern.permute.xlu0 0
  %2887 = vperm.xlu0 %2886, %v2811
  %v2888 = vpop.permute.xlu0 %2887
  %2891 = vset.pattern.permute.xlu0 0
  %2892 = vperm.xlu0 %2891, %v2812
  %v2893 = vpop.permute.xlu0 %2892
  %2896 = vset.pattern.permute.xlu0 0
  %2897 = vperm.xlu0 %2896, %v2813
  %v2898 = vpop.permute.xlu0 %2897
  %2901 = vset.pattern.permute.xlu0 0
  %2902 = vperm.xlu0 %2901, %v2814
  %v2903 = vpop.permute.xlu0 %2902
  %v2905 = vmul.f32 %v2654, %v2818
  %v2906 = vmul.f32 %v2657, %v2823
  %v2907 = vmul.f32 %v2662, %v2828
  %v2908 = vmul.f32 %v2665, %v2833
  %v2909 = vmul.f32 %v2670, %v2838
  %v2910 = vmul.f32 %v2673, %v2843
  %v2911 = vmul.f32 %v2678, %v2848
  %v2912 = vmul.f32 %v2681, %v2853
  %v2913 = vmul.f32 %v2686, %v2858
  %v2914 = vmul.f32 %v2689, %v2863
  %v2915 = vmul.f32 %v2694, %v2868
  %v2916 = vmul.f32 %v2697, %v2873
  %v2917 = vmul.f32 %v2702, %v2878
  %v2918 = vmul.f32 %v2705, %v2883
  %v2919 = vmul.f32 %v2710, %v2888
  %v2920 = vmul.f32 %v2713, %v2893
  %v2921 = vmul.f32 %v2718, %v2898
  %v2922 = vmul.f32 %v2721, %v2903
  %v2923 = vmul.f32 %v2726, %v2818
  %v2924 = vmul.f32 %v2729, %v2823
  %v2925 = vmul.f32 %v2734, %v2828
  %v2926 = vmul.f32 %v2737, %v2833
  %v2927 = vmul.f32 %v2742, %v2838
  %v2928 = vmul.f32 %v2745, %v2843
  %v2929 = vmul.f32 %v2750, %v2848
  %v2930 = vmul.f32 %v2753, %v2853
  %v2931 = vmul.f32 %v2758, %v2858
  %v2932 = vmul.f32 %v2761, %v2863
  %v2933 = vmul.f32 %v2766, %v2868
  %v2934 = vmul.f32 %v2769, %v2873
  %v2935 = vmul.f32 %v2774, %v2878
  %v2936 = vmul.f32 %v2777, %v2883
  %v2937 = vmul.f32 %v2782, %v2888
  %v2938 = vmul.f32 %v2785, %v2893
  %v2939 = vmul.f32 %v2790, %v2898
  %v2940 = vmul.f32 %v2793, %v2903
  %v2941 = vadd.f32 %v2427, %v2905
  %v2942 = vadd.f32 %v2428, %v2906
  %v2943 = vadd.f32 %v2429, %v2907
  %v2944 = vadd.f32 %v2430, %v2908
  %v2945 = vadd.f32 %v2431, %v2909
  %v2946 = vadd.f32 %v2432, %v2910
  %v2947 = vadd.f32 %v2433, %v2911
  %v2948 = vadd.f32 %v2434, %v2912
  %v2949 = vadd.f32 %v2435, %v2913
  %v2950 = vadd.f32 %v2436, %v2914
  %v2951 = vadd.f32 %v2437, %v2915
  %v2952 = vadd.f32 %v2438, %v2916
  %v2953 = vadd.f32 %v2439, %v2917
  %v2954 = vadd.f32 %v2440, %v2918
  %v2955 = vadd.f32 %v2441, %v2919
  %v2956 = vadd.f32 %v2442, %v2920
  %v2957 = vadd.f32 %v2443, %v2921
  %v2958 = vadd.f32 %v2444, %v2922
  %v2959 = vadd.f32 %v2445, %v2923
  %v2960 = vadd.f32 %v2446, %v2924
  %v2961 = vadd.f32 %v2447, %v2925
  %v2962 = vadd.f32 %v2448, %v2926
  %v2963 = vadd.f32 %v2449, %v2927
  %v2964 = vadd.f32 %v2450, %v2928
  %v2965 = vadd.f32 %v2451, %v2929
  %v2966 = vadd.f32 %v2452, %v2930
  %v2967 = vadd.f32 %v2453, %v2931
  %v2968 = vadd.f32 %v2454, %v2932
  %v2969 = vadd.f32 %v2455, %v2933
  %v2970 = vadd.f32 %v2456, %v2934
  %v2971 = vadd.f32 %v2457, %v2935
  %v2972 = vadd.f32 %v2458, %v2936
  %v2973 = vadd.f32 %v2459, %v2937
  %v2974 = vadd.f32 %v2460, %v2938
  %v2975 = vadd.f32 %v2461, %v2939
  %v2976 = vadd.f32 %v2462, %v2940
  %v2977 = vpack.c.bf16 %v2535, %v2500
  %v2978 = vpack.c.bf16 %v2533, %v2534
  %v2979 = vpack.c.bf16 %v2531, %v2532
  %v2980 = vpack.c.bf16 %v2529, %v2530
  %v2981 = vpack.c.bf16 %v2527, %v2528
  %v2982 = vpack.c.bf16 %v2525, %v2526
  %v2983 = vpack.c.bf16 %v2523, %v2524
  %v2984 = vpack.c.bf16 %v2521, %v2522
  %v2985 = vpack.c.bf16 %v2519, %v2520
  %v2986 = vpack.c.bf16 %v2517, %v2518
  %v2987 = vpack.c.bf16 %v2515, %v2516
  %v2988 = vpack.c.bf16 %v2513, %v2514
  %v2989 = vpack.c.bf16 %v2511, %v2512
  %v2990 = vpack.c.bf16 %v2509, %v2510
  %v2991 = vpack.c.bf16 %v2507, %v2508
  %v2992 = vpack.c.bf16 %v2505, %v2506
  %v2993 = vpack.c.bf16 %v2503, %v2504
  %v2994 = vpack.c.bf16 %v2501, %v2502
  %s2995 = scalar_lea.vmem %s5, 128
  %v2996 = vld [vmem:[%s2995] sm:$0xf]
  %v2997 = vld [vmem:[%s2995 + $0x4] sm:$0xf]
  %v2998 = vld [vmem:[%s2995 + $0x8] sm:$0xf]
  %v2999 = vld [vmem:[%s2995 + $0xc] sm:$0xf]
  %v3000 = vld [vmem:[%s2995 + $0x10] sm:$0xf]
  %v3001 = vld [vmem:[%s2995 + $0x14] sm:$0xf]
  %v3002 = vld [vmem:[%s2995 + $0x18] sm:$0xf]
  %v3003 = vld [vmem:[%s2995 + $0x1c] sm:$0xf]
  %v3004 = vld [vmem:[%s2995 + $0x20] sm:$0xf]
  %v3005 = vld [vmem:[%s2995 + $0x24] sm:$0xf]
  %v3006 = vld [vmem:[%s2995 + $0x28] sm:$0xf]
  %v3007 = vld [vmem:[%s2995 + $0x2c] sm:$0xf]
  %v3008 = vld [vmem:[%s2995 + $0x30] sm:$0xf]
  %v3009 = vld [vmem:[%s2995 + $0x34] sm:$0xf]
  %v3010 = vld [vmem:[%s2995 + $0x38] sm:$0xf]
  %v3011 = vld [vmem:[%s2995 + $0x3c] sm:$0xf]
  %v3028 = vunpack.c.l.b16 %v2996
  %v3029 = vunpack.c.l.b16 %v2997
  %v3030 = vunpack.c.l.b16 %v2998
  %v3031 = vunpack.c.l.b16 %v2999
  %v3032 = vunpack.c.l.b16 %v3000
  %v3033 = vunpack.c.l.b16 %v3001
  %v3034 = vunpack.c.l.b16 %v3002
  %v3035 = vunpack.c.l.b16 %v3003
  %v3036 = vunpack.c.l.b16 %v3004
  %v3037 = vunpack.c.l.b16 %v3005
  %v3038 = vunpack.c.l.b16 %v3006
  %v3039 = vunpack.c.l.b16 %v3007
  %v3040 = vunpack.c.l.b16 %v3008
  %v3041 = vunpack.c.l.b16 %v3009
  %v3042 = vunpack.c.l.b16 %v3010
  %v3043 = vunpack.c.l.b16 %v3011
  %v3044 = vpack.c.b16 %v3029, %v3028
  %v3045 = vpack.c.b16 %v3031, %v3030
  %v3046 = vpack.c.b16 %v3033, %v3032
  %v3047 = vpack.c.b16 %v3035, %v3034
  %v3048 = vpack.c.b16 %v3037, %v3036
  %v3049 = vpack.c.b16 %v3039, %v3038
  %v3050 = vpack.c.b16 %v3041, %v3040
  %v3051 = vpack.c.b16 %v3043, %v3042
  %3060 = vmatprep.subr.bf16.mxu0 0
  %3061 = vmatpush1.bf16.msra.mxu0 %v3044
  %3062 = vmatprep.subr.bf16.mxu0 0
  %3063 = vmatpush1.bf16.msra.mxu0 %v3045
  %3064 = vmatprep.subr.bf16.mxu0 0
  %3065 = vmatpush1.bf16.msra.mxu0 %v3046
  %3066 = vmatprep.subr.bf16.mxu0 0
  %3067 = vmatpush1.bf16.msra.mxu0 %v3047
  %3068 = vmatprep.subr.bf16.mxu0 0
  %3069 = vmatpush1.bf16.msra.mxu0 %v3048
  %3070 = vmatprep.subr.bf16.mxu0 0
  %3071 = vmatpush1.bf16.msra.mxu0 %v3049
  %3072 = vmatprep.subr.bf16.mxu0 0
  %3073 = vmatpush1.bf16.msra.mxu0 %v3050
  %3074 = vmatprep.subr.bf16.mxu0 0
  %3075 = vmatpush1.bf16.msra.mxu0 %v3051
  %3076 = vmatprep.subr.bf16.mxu0 0
  %3077 = vmatpush1.bf16.msra.mxu0 0
  %3078 = vmatprep.subr.bf16.mxu0 0
  %3079 = vmatpush1.bf16.msra.mxu0 0
  %3080 = vmatprep.subr.bf16.mxu0 0
  %3081 = vmatpush1.bf16.msra.mxu0 0
  %3082 = vmatprep.subr.bf16.mxu0 0
  %3083 = vmatpush1.bf16.msra.mxu0 0
  %3084 = vmatprep.subr.bf16.mxu0 0
  %3085 = vmatpush1.bf16.msra.mxu0 0
  %3086 = vmatprep.subr.bf16.mxu0 0
  %3087 = vmatpush1.bf16.msra.mxu0 0
  %3088 = vmatprep.subr.bf16.mxu0 0
  %3089 = vmatpush1.bf16.msra.mxu0 0
  %3090 = vmatprep.subr.bf16.mxu0 0
  %3091 = vmatpush1.bf16.msra.mxu0 0
  %3092 = vmatprep.mubr.bf16.mxu0 0
  %3093 = vmatmul.mubr.bf16.gmra.mrb[0].mxu0 %v2977
  %v3094 = vpop.f32.mrb[0].mxu0
  %v3095 = vadd.f32 0.0, %v3094
  %v3096 = vpop.f32.mrb[0].mxu0
  %v3097 = vpop.f32.mrb[0].mxu0
  %v3098 = vadd.f32 0.0, %v3097
  %v3099 = vpop.f32.mrb[0].mxu0
  %3100 = vmatprep.mubr.bf16.mxu0 0
  %3101 = vmatmul.mubr.bf16.gmra.mrb[0].mxu0 %v2978
  %v3102 = vpop.f32.mrb[0].mxu0
  %v3103 = vadd.f32 0.0, %v3102
  %v3104 = vpop.f32.mrb[0].mxu0
  %v3105 = vpop.f32.mrb[0].mxu0
  %v3106 = vadd.f32 0.0, %v3105
  %v3107 = vpop.f32.mrb[0].mxu0
  %3108 = vmatprep.mubr.bf16.mxu0 0
  %3109 = vmatmul.mubr.bf16.gmra.mrb[0].mxu0 %v2979
  %v3110 = vpop.f32.mrb[0].mxu0
  %v3111 = vadd.f32 0.0, %v3110
  %v3112 = vpop.f32.mrb[0].mxu0
  %v3113 = vpop.f32.mrb[0].mxu0
  %v3114 = vadd.f32 0.0, %v3113
  %v3115 = vpop.f32.mrb[0].mxu0
  %3116 = vmatprep.mubr.bf16.mxu0 0
  %3117 = vmatmul.mubr.bf16.gmra.mrb[0].mxu0 %v2980
  %v3118 = vpop.f32.mrb[0].mxu0
  %v3119 = vadd.f32 0.0, %v3118
  %v3120 = vpop.f32.mrb[0].mxu0
  %v3121 = vpop.f32.mrb[0].mxu0
  %v3122 = vadd.f32 0.0, %v3121
  %v3123 = vpop.f32.mrb[0].mxu0
  %3124 = vmatprep.mubr.bf16.mxu0 0
  %3125 = vmatmul.mubr.bf16.gmra.mrb[0].mxu0 %v2981
  %v3126 = vpop.f32.mrb[0].mxu0
  %v3127 = vadd.f32 0.0, %v3126
  %v3128 = vpop.f32.mrb[0].mxu0
  %v3129 = vpop.f32.mrb[0].mxu0
  %v3130 = vadd.f32 0.0, %v3129
  %v3131 = vpop.f32.mrb[0].mxu0
  %3132 = vmatprep.mubr.bf16.mxu0 0
  %3133 = vmatmul.mubr.bf16.gmra.mrb[0].mxu0 %v2982
  %v3134 = vpop.f32.mrb[0].mxu0
  %v3135 = vadd.f32 0.0, %v3134
  %v3136 = vpop.f32.mrb[0].mxu0
  %v3137 = vpop.f32.mrb[0].mxu0
  %v3138 = vadd.f32 0.0, %v3137
  %v3139 = vpop.f32.mrb[0].mxu0
  %3140 = vmatprep.mubr.bf16.mxu0 0
  %3141 = vmatmul.mubr.bf16.gmra.mrb[0].mxu0 %v2983
  %v3142 = vpop.f32.mrb[0].mxu0
  %v3143 = vadd.f32 0.0, %v3142
  %v3144 = vpop.f32.mrb[0].mxu0
  %v3145 = vpop.f32.mrb[0].mxu0
  %v3146 = vadd.f32 0.0, %v3145
  %v3147 = vpop.f32.mrb[0].mxu0
  %3148 = vmatprep.mubr.bf16.mxu0 0
  %3149 = vmatmul.mubr.bf16.gmra.mrb[0].mxu0 %v2984
  %v3150 = vpop.f32.mrb[0].mxu0
  %v3151 = vadd.f32 0.0, %v3150
  %v3152 = vpop.f32.mrb[0].mxu0
  %v3153 = vpop.f32.mrb[0].mxu0
  %v3154 = vadd.f32 0.0, %v3153
  %v3155 = vpop.f32.mrb[0].mxu0
  %3156 = vmatprep.mubr.bf16.mxu0 0
  %3157 = vmatmul.mubr.bf16.gmra.mrb[0].mxu0 %v2985
  %v3158 = vpop.f32.mrb[0].mxu0
  %v3159 = vadd.f32 0.0, %v3158
  %v3160 = vpop.f32.mrb[0].mxu0
  %v3161 = vpop.f32.mrb[0].mxu0
  %v3162 = vadd.f32 0.0, %v3161
  %v3163 = vpop.f32.mrb[0].mxu0
  %3164 = vmatprep.mubr.bf16.mxu0 0
  %3165 = vmatmul.mubr.bf16.gmra.mrb[0].mxu0 %v2986
  %v3166 = vpop.f32.mrb[0].mxu0
  %v3167 = vadd.f32 0.0, %v3166
  %v3168 = vpop.f32.mrb[0].mxu0
  %v3169 = vpop.f32.mrb[0].mxu0
  %v3170 = vadd.f32 0.0, %v3169
  %v3171 = vpop.f32.mrb[0].mxu0
  %3172 = vmatprep.mubr.bf16.mxu0 0
  %3173 = vmatmul.mubr.bf16.gmra.mrb[0].mxu0 %v2987
  %v3174 = vpop.f32.mrb[0].mxu0
  %v3175 = vadd.f32 0.0, %v3174
  %v3176 = vpop.f32.mrb[0].mxu0
  %v3177 = vpop.f32.mrb[0].mxu0
  %v3178 = vadd.f32 0.0, %v3177
  %v3179 = vpop.f32.mrb[0].mxu0
  %3180 = vmatprep.mubr.bf16.mxu0 0
  %3181 = vmatmul.mubr.bf16.gmra.mrb[0].mxu0 %v2988
  %v3182 = vpop.f32.mrb[0].mxu0
  %v3183 = vadd.f32 0.0, %v3182
  %v3184 = vpop.f32.mrb[0].mxu0
  %v3185 = vpop.f32.mrb[0].mxu0
  %v3186 = vadd.f32 0.0, %v3185
  %v3187 = vpop.f32.mrb[0].mxu0
  %3188 = vmatprep.mubr.bf16.mxu0 0
  %3189 = vmatmul.mubr.bf16.gmra.mrb[0].mxu0 %v2989
  %v3190 = vpop.f32.mrb[0].mxu0
  %v3191 = vadd.f32 0.0, %v3190
  %v3192 = vpop.f32.mrb[0].mxu0
  %v3193 = vpop.f32.mrb[0].mxu0
  %v3194 = vadd.f32 0.0, %v3193
  %v3195 = vpop.f32.mrb[0].mxu0
  %3196 = vmatprep.mubr.bf16.mxu0 0
  %3197 = vmatmul.mubr.bf16.gmra.mrb[0].mxu0 %v2990
  %v3198 = vpop.f32.mrb[0].mxu0
  %v3199 = vadd.f32 0.0, %v3198
  %v3200 = vpop.f32.mrb[0].mxu0
  %v3201 = vpop.f32.mrb[0].mxu0
  %v3202 = vadd.f32 0.0, %v3201
  %v3203 = vpop.f32.mrb[0].mxu0
  %3204 = vmatprep.mubr.bf16.mxu0 0
  %3205 = vmatmul.mubr.bf16.gmra.mrb[0].mxu0 %v2991
  %v3206 = vpop.f32.mrb[0].mxu0
  %v3207 = vadd.f32 0.0, %v3206
  %v3208 = vpop.f32.mrb[0].mxu0
  %v3209 = vpop.f32.mrb[0].mxu0
  %v3210 = vadd.f32 0.0, %v3209
  %v3211 = vpop.f32.mrb[0].mxu0
  %3212 = vmatprep.mubr.bf16.mxu0 0
  %3213 = vmatmul.mubr.bf16.gmra.mrb[0].mxu0 %v2992
  %v3214 = vpop.f32.mrb[0].mxu0
  %v3215 = vadd.f32 0.0, %v3214
  %v3216 = vpop.f32.mrb[0].mxu0
  %v3217 = vpop.f32.mrb[0].mxu0
  %v3218 = vadd.f32 0.0, %v3217
  %v3219 = vpop.f32.mrb[0].mxu0
  %3220 = vmatprep.mubr.bf16.mxu0 0
  %3221 = vmatmul.mubr.bf16.gmra.mrb[0].mxu0 %v2993
  %v3222 = vpop.f32.mrb[0].mxu0
  %v3223 = vadd.f32 0.0, %v3222
  %v3224 = vpop.f32.mrb[0].mxu0
  %v3225 = vpop.f32.mrb[0].mxu0
  %v3226 = vadd.f32 0.0, %v3225
  %v3227 = vpop.f32.mrb[0].mxu0
  %3228 = vmatprep.mubr.bf16.mxu0 0
  %3229 = vmatmul.mubr.bf16.gmra.mrb[0].mxu0 %v2994
  %v3230 = vpop.f32.mrb[0].mxu0
  %v3231 = vadd.f32 0.0, %v3230
  %v3232 = vpop.f32.mrb[0].mxu0
  %v3233 = vpop.f32.mrb[0].mxu0
  %v3234 = vadd.f32 0.0, %v3233
  %v3235 = vpop.f32.mrb[0].mxu0
  %3236 = vdwg.mxu0
  %s3237 = scalar_lea.vmem %s9, 288
  %v3238 = vld [vmem:[%s3237] sm:$0xff]
  %v3239 = vld [vmem:[%s3237 + $0x8] sm:$0xff]
  %v3240 = vld [vmem:[%s3237 + $0x10] sm:$0xff]
  %v3241 = vld [vmem:[%s3237 + $0x18] sm:$0xff]
  %v3242 = vld [vmem:[%s3237 + $0x20] sm:$0xff]
  %v3243 = vld [vmem:[%s3237 + $0x28] sm:$0xff]
  %v3244 = vld [vmem:[%s3237 + $0x30] sm:$0xff]
  %v3245 = vld [vmem:[%s3237 + $0x38] sm:$0xff]
  %v3246 = vld [vmem:[%s3237 + $0x40] sm:$0xff]
  %v3247 = vld [vmem:[%s3237 + $0x48] sm:$0xff]
  %v3248 = vld [vmem:[%s3237 + $0x50] sm:$0xff]
  %v3249 = vld [vmem:[%s3237 + $0x58] sm:$0xff]
  %v3250 = vld [vmem:[%s3237 + $0x60] sm:$0xff]
  %v3251 = vld [vmem:[%s3237 + $0x68] sm:$0xff]
  %v3252 = vld [vmem:[%s3237 + $0x70] sm:$0xff]
  %v3253 = vld [vmem:[%s3237 + $0x78] sm:$0xff]
  %v3254 = vld [vmem:[%s3237 + $0x80] sm:$0xff]
  %v3255 = vld [vmem:[%s3237 + $0x88] sm:$0xff]
  %3257 = vset.pattern.permute.xlu0 0
  %3258 = vperm.xlu0 %3257, %v3238
  %v3259 = vpop.permute.xlu0 %3258
  %3262 = vset.pattern.permute.xlu0 0
  %3263 = vperm.xlu0 %3262, %v3239
  %v3264 = vpop.permute.xlu0 %3263
  %3267 = vset.pattern.permute.xlu0 0
  %3268 = vperm.xlu0 %3267, %v3240
  %v3269 = vpop.permute.xlu0 %3268
  %3272 = vset.pattern.permute.xlu0 0
  %3273 = vperm.xlu0 %3272, %v3241
  %v3274 = vpop.permute.xlu0 %3273
  %3277 = vset.pattern.permute.xlu0 0
  %3278 = vperm.xlu0 %3277, %v3242
  %v3279 = vpop.permute.xlu0 %3278
  %3282 = vset.pattern.permute.xlu0 0
  %3283 = vperm.xlu0 %3282, %v3243
  %v3284 = vpop.permute.xlu0 %3283
  %3287 = vset.pattern.permute.xlu0 0
  %3288 = vperm.xlu0 %3287, %v3244
  %v3289 = vpop.permute.xlu0 %3288
  %3292 = vset.pattern.permute.xlu0 0
  %3293 = vperm.xlu0 %3292, %v3245
  %v3294 = vpop.permute.xlu0 %3293
  %3297 = vset.pattern.permute.xlu0 0
  %3298 = vperm.xlu0 %3297, %v3246
  %v3299 = vpop.permute.xlu0 %3298
  %3302 = vset.pattern.permute.xlu0 0
  %3303 = vperm.xlu0 %3302, %v3247
  %v3304 = vpop.permute.xlu0 %3303
  %3307 = vset.pattern.permute.xlu0 0
  %3308 = vperm.xlu0 %3307, %v3248
  %v3309 = vpop.permute.xlu0 %3308
  %3312 = vset.pattern.permute.xlu0 0
  %3313 = vperm.xlu0 %3312, %v3249
  %v3314 = vpop.permute.xlu0 %3313
  %3317 = vset.pattern.permute.xlu0 0
  %3318 = vperm.xlu0 %3317, %v3250
  %v3319 = vpop.permute.xlu0 %3318
  %3322 = vset.pattern.permute.xlu0 0
  %3323 = vperm.xlu0 %3322, %v3251
  %v3324 = vpop.permute.xlu0 %3323
  %3327 = vset.pattern.permute.xlu0 0
  %3328 = vperm.xlu0 %3327, %v3252
  %v3329 = vpop.permute.xlu0 %3328
  %3332 = vset.pattern.permute.xlu0 0
  %3333 = vperm.xlu0 %3332, %v3253
  %v3334 = vpop.permute.xlu0 %3333
  %3337 = vset.pattern.permute.xlu0 0
  %3338 = vperm.xlu0 %3337, %v3254
  %v3339 = vpop.permute.xlu0 %3338
  %3342 = vset.pattern.permute.xlu0 0
  %3343 = vperm.xlu0 %3342, %v3255
  %v3344 = vpop.permute.xlu0 %3343
  %v3346 = vmul.f32 %v3095, %v3259
  %v3347 = vmul.f32 %v3098, %v3264
  %v3348 = vmul.f32 %v3103, %v3269
  %v3349 = vmul.f32 %v3106, %v3274
  %v3350 = vmul.f32 %v3111, %v3279
  %v3351 = vmul.f32 %v3114, %v3284
  %v3352 = vmul.f32 %v3119, %v3289
  %v3353 = vmul.f32 %v3122, %v3294
  %v3354 = vmul.f32 %v3127, %v3299
  %v3355 = vmul.f32 %v3130, %v3304
  %v3356 = vmul.f32 %v3135, %v3309
  %v3357 = vmul.f32 %v3138, %v3314
  %v3358 = vmul.f32 %v3143, %v3319
  %v3359 = vmul.f32 %v3146, %v3324
  %v3360 = vmul.f32 %v3151, %v3329
  %v3361 = vmul.f32 %v3154, %v3334
  %v3362 = vmul.f32 %v3159, %v3339
  %v3363 = vmul.f32 %v3162, %v3344
  %v3364 = vmul.f32 %v3167, %v3259
  %v3365 = vmul.f32 %v3170, %v3264
  %v3366 = vmul.f32 %v3175, %v3269
  %v3367 = vmul.f32 %v3178, %v3274
  %v3368 = vmul.f32 %v3183, %v3279
  %v3369 = vmul.f32 %v3186, %v3284
  %v3370 = vmul.f32 %v3191, %v3289
  %v3371 = vmul.f32 %v3194, %v3294
  %v3372 = vmul.f32 %v3199, %v3299
  %v3373 = vmul.f32 %v3202, %v3304
  %v3374 = vmul.f32 %v3207, %v3309
  %v3375 = vmul.f32 %v3210, %v3314
  %v3376 = vmul.f32 %v3215, %v3319
  %v3377 = vmul.f32 %v3218, %v3324
  %v3378 = vmul.f32 %v3223, %v3329
  %v3379 = vmul.f32 %v3226, %v3334
  %v3380 = vmul.f32 %v3231, %v3339
  %v3381 = vmul.f32 %v3234, %v3344
  %v3382 = vadd.f32 %v2941, %v3346
  %v3383 = vadd.f32 %v2942, %v3347
  %v3384 = vadd.f32 %v2943, %v3348
  %v3385 = vadd.f32 %v2944, %v3349
  %v3386 = vadd.f32 %v2945, %v3350
  %v3387 = vadd.f32 %v2946, %v3351
  %v3388 = vadd.f32 %v2947, %v3352
  %v3389 = vadd.f32 %v2948, %v3353
  %v3390 = vadd.f32 %v2949, %v3354
  %v3391 = vadd.f32 %v2950, %v3355
  %v3392 = vadd.f32 %v2951, %v3356
  %v3393 = vadd.f32 %v2952, %v3357
  %v3394 = vadd.f32 %v2953, %v3358
  %v3395 = vadd.f32 %v2954, %v3359
  %v3396 = vadd.f32 %v2955, %v3360
  %v3397 = vadd.f32 %v2956, %v3361
  %v3398 = vadd.f32 %v2957, %v3362
  %v3399 = vadd.f32 %v2958, %v3363
  %v3400 = vadd.f32 %v2959, %v3364
  %v3401 = vadd.f32 %v2960, %v3365
  %v3402 = vadd.f32 %v2961, %v3366
  %v3403 = vadd.f32 %v2962, %v3367
  %v3404 = vadd.f32 %v2963, %v3368
  %v3405 = vadd.f32 %v2964, %v3369
  %v3406 = vadd.f32 %v2965, %v3370
  %v3407 = vadd.f32 %v2966, %v3371
  %v3408 = vadd.f32 %v2967, %v3372
  %v3409 = vadd.f32 %v2968, %v3373
  %v3410 = vadd.f32 %v2969, %v3374
  %v3411 = vadd.f32 %v2970, %v3375
  %v3412 = vadd.f32 %v2971, %v3376
  %v3413 = vadd.f32 %v2972, %v3377
  %v3414 = vadd.f32 %v2973, %v3378
  %v3415 = vadd.f32 %v2974, %v3379
  %v3416 = vadd.f32 %v2975, %v3380
  %v3417 = vadd.f32 %v2976, %v3381
  %v3418 = vrot.slane %v1913, 1
  %v3419 = vrot.slane %v1914, 1
  %v3420 = vrot.slane %v1915, 1
  %v3421 = vrot.slane %v1916, 1
  %v3422 = vrot.slane %v1917, 1
  %v3423 = vrot.slane %v1918, 1
  %v3424 = vrot.slane %v1919, 1
  %v3425 = vrot.slane %v1920, 1
  %v3426 = vrot.slane %v1921, 1
  %v3427 = vrot.slane %v1922, 1
  %v3428 = vrot.slane %v1923, 1
  %v3429 = vrot.slane %v1924, 1
  %v3430 = vrot.slane %v1925, 1
  %v3431 = vrot.slane %v1926, 1
  %v3432 = vrot.slane %v1927, 1
  %v3433 = vrot.slane %v1928, 1
  %v3434 = vrot.slane %v1929, 1
  %v3435 = vrot.slane %v1930, 1
  %v3436 = vrot.slane %v1931, 1
  %v3437 = vrot.slane %v1932, 1
  %v3438 = vrot.slane %v1933, 1
  %v3439 = vrot.slane %v1934, 1
  %v3440 = vrot.slane %v1935, 1
  %v3441 = vrot.slane %v1936, 1
  %v3442 = vrot.slane %v1937, 1
  %v3443 = vrot.slane %v1938, 1
  %v3444 = vrot.slane %v1939, 1
  %v3445 = vrot.slane %v1940, 1
  %v3446 = vrot.slane %v1941, 1
  %v3447 = vrot.slane %v1942, 1
  %v3448 = vrot.slane %v1943, 1
  %v3449 = vrot.slane %v1944, 1
  %v3450 = vrot.slane %v1945, 1
  %v3451 = vrot.slane %v1946, 1
  %v3452 = vrot.slane %v1947, 1
  %v3453 = vrot.slane %v1948, 1
  %vm3454 = vcmp.lt.s32.totalorder %v1986, 7
  %v3455 = vsel %vm3454, %v3452, %v3453
  %v3456 = vsel %vm3454, %v3451, %v3452
  %v3457 = vsel %vm3454, %v3450, %v3451
  %v3458 = vsel %vm3454, %v3449, %v3450
  %v3459 = vsel %vm3454, %v3448, %v3449
  %v3460 = vsel %vm3454, %v3447, %v3448
  %v3461 = vsel %vm3454, %v3446, %v3447
  %v3462 = vsel %vm3454, %v3445, %v3446
  %v3463 = vsel %vm3454, %v3444, %v3445
  %v3464 = vsel %vm3454, %v3443, %v3444
  %v3465 = vsel %vm3454, %v3442, %v3443
  %v3466 = vsel %vm3454, %v3441, %v3442
  %v3467 = vsel %vm3454, %v3440, %v3441
  %v3468 = vsel %vm3454, %v3439, %v3440
  %v3469 = vsel %vm3454, %v3438, %v3439
  %v3470 = vsel %vm3454, %v3437, %v3438
  %v3471 = vsel %vm3454, %v3436, %v3437
  %v3472 = vsel %vm3454, %v3435, %v3436
  %v3473 = vsel %vm3454, %v3434, %v3435
  %v3474 = vsel %vm3454, %v3433, %v3434
  %v3475 = vsel %vm3454, %v3432, %v3433
  %v3476 = vsel %vm3454, %v3431, %v3432
  %v3477 = vsel %vm3454, %v3430, %v3431
  %v3478 = vsel %vm3454, %v3429, %v3430
  %v3479 = vsel %vm3454, %v3428, %v3429
  %v3480 = vsel %vm3454, %v3427, %v3428
  %v3481 = vsel %vm3454, %v3426, %v3427
  %v3482 = vsel %vm3454, %v3425, %v3426
  %v3483 = vsel %vm3454, %v3424, %v3425
  %v3484 = vsel %vm3454, %v3423, %v3424
  %v3485 = vsel %vm3454, %v3422, %v3423
  %v3486 = vsel %vm3454, %v3421, %v3422
  %v3487 = vsel %vm3454, %v3420, %v3421
  %v3488 = vsel %vm3454, %v3419, %v3420
  %v3489 = vsel %vm3454, %v3418, %v3419
  %v3490 = vsel %vm3454, %v3453, %v3418
  %v3491 = vpack.c.bf16 %v3488, %v3489
  %v3492 = vpack.c.bf16 %v3486, %v3487
  %v3493 = vpack.c.bf16 %v3484, %v3485
  %v3494 = vpack.c.bf16 %v3482, %v3483
  %v3495 = vpack.c.bf16 %v3480, %v3481
  %v3496 = vpack.c.bf16 %v3478, %v3479
  %v3497 = vpack.c.bf16 %v3476, %v3477
  %v3498 = vpack.c.bf16 %v3474, %v3475
  %v3499 = vpack.c.bf16 %v3472, %v3473
  %v3500 = vpack.c.bf16 %v3470, %v3471
  %v3501 = vpack.c.bf16 %v3468, %v3469
  %v3502 = vpack.c.bf16 %v3466, %v3467
  %v3503 = vpack.c.bf16 %v3464, %v3465
  %v3504 = vpack.c.bf16 %v3462, %v3463
  %v3505 = vpack.c.bf16 %v3460, %v3461
  %v3506 = vpack.c.bf16 %v3458, %v3459
  %v3507 = vpack.c.bf16 %v3456, %v3457
  %v3508 = vpack.c.bf16 %v3490, %v3455
  %s3509 = scalar_lea.vmem %s5, 192
  %v3510 = vld [vmem:[%s3509] sm:$0xf]
  %v3511 = vld [vmem:[%s3509 + $0x4] sm:$0xf]
  %v3512 = vld [vmem:[%s3509 + $0x8] sm:$0xf]
  %v3513 = vld [vmem:[%s3509 + $0xc] sm:$0xf]
  %v3514 = vld [vmem:[%s3509 + $0x10] sm:$0xf]
  %v3515 = vld [vmem:[%s3509 + $0x14] sm:$0xf]
  %v3516 = vld [vmem:[%s3509 + $0x18] sm:$0xf]
  %v3517 = vld [vmem:[%s3509 + $0x1c] sm:$0xf]
  %v3518 = vld [vmem:[%s3509 + $0x20] sm:$0xf]
  %v3519 = vld [vmem:[%s3509 + $0x24] sm:$0xf]
  %v3520 = vld [vmem:[%s3509 + $0x28] sm:$0xf]
  %v3521 = vld [vmem:[%s3509 + $0x2c] sm:$0xf]
  %v3522 = vld [vmem:[%s3509 + $0x30] sm:$0xf]
  %v3523 = vld [vmem:[%s3509 + $0x34] sm:$0xf]
  %v3524 = vld [vmem:[%s3509 + $0x38] sm:$0xf]
  %v3525 = vld [vmem:[%s3509 + $0x3c] sm:$0xf]
  %v3542 = vunpack.c.l.b16 %v3510
  %v3543 = vunpack.c.l.b16 %v3511
  %v3544 = vunpack.c.l.b16 %v3512
  %v3545 = vunpack.c.l.b16 %v3513
  %v3546 = vunpack.c.l.b16 %v3514
  %v3547 = vunpack.c.l.b16 %v3515
  %v3548 = vunpack.c.l.b16 %v3516
  %v3549 = vunpack.c.l.b16 %v3517
  %v3550 = vunpack.c.l.b16 %v3518
  %v3551 = vunpack.c.l.b16 %v3519
  %v3552 = vunpack.c.l.b16 %v3520
  %v3553 = vunpack.c.l.b16 %v3521
  %v3554 = vunpack.c.l.b16 %v3522
  %v3555 = vunpack.c.l.b16 %v3523
  %v3556 = vunpack.c.l.b16 %v3524
  %v3557 = vunpack.c.l.b16 %v3525
  %v3558 = vpack.c.b16 %v3543, %v3542
  %v3559 = vpack.c.b16 %v3545, %v3544
  %v3560 = vpack.c.b16 %v3547, %v3546
  %v3561 = vpack.c.b16 %v3549, %v3548
  %v3562 = vpack.c.b16 %v3551, %v3550
  %v3563 = vpack.c.b16 %v3553, %v3552
  %v3564 = vpack.c.b16 %v3555, %v3554
  %v3565 = vpack.c.b16 %v3557, %v3556
  %3574 = vmatprep.subr.bf16.mxu0 0
  %3575 = vmatpush1.bf16.msra.mxu0 %v3558
  %3576 = vmatprep.subr.bf16.mxu0 0
  %3577 = vmatpush1.bf16.msra.mxu0 %v3559
  %3578 = vmatprep.subr.bf16.mxu0 0
  %3579 = vmatpush1.bf16.msra.mxu0 %v3560
  %3580 = vmatprep.subr.bf16.mxu0 0
  %3581 = vmatpush1.bf16.msra.mxu0 %v3561
  %3582 = vmatprep.subr.bf16.mxu0 0
  %3583 = vmatpush1.bf16.msra.mxu0 %v3562
  %3584 = vmatprep.subr.bf16.mxu0 0
  %3585 = vmatpush1.bf16.msra.mxu0 %v3563
  %3586 = vmatprep.subr.bf16.mxu0 0
  %3587 = vmatpush1.bf16.msra.mxu0 %v3564
  %3588 = vmatprep.subr.bf16.mxu0 0
  %3589 = vmatpush1.bf16.msra.mxu0 %v3565
  %3590 = vmatprep.subr.bf16.mxu0 0
  %3591 = vmatpush1.bf16.msra.mxu0 0
  %3592 = vmatprep.subr.bf16.mxu0 0
  %3593 = vmatpush1.bf16.msra.mxu0 0
  %3594 = vmatprep.subr.bf16.mxu0 0
  %3595 = vmatpush1.bf16.msra.mxu0 0
  %3596 = vmatprep.subr.bf16.mxu0 0
  %3597 = vmatpush1.bf16.msra.mxu0 0
  %3598 = vmatprep.subr.bf16.mxu0 0
  %3599 = vmatpush1.bf16.msra.mxu0 0
  %3600 = vmatprep.subr.bf16.mxu0 0
  %3601 = vmatpush1.bf16.msra.mxu0 0
  %3602 = vmatprep.subr.bf16.mxu0 0
  %3603 = vmatpush1.bf16.msra.mxu0 0
  %3604 = vmatprep.subr.bf16.mxu0 0
  %3605 = vmatpush1.bf16.msra.mxu0 0
  %3606 = vmatprep.mubr.bf16.mxu0 0
  %3607 = vmatmul.mubr.bf16.gmra.mrb[0].mxu0 %v3491
  %v3608 = vpop.f32.mrb[0].mxu0
  %v3609 = vadd.f32 0.0, %v3608
  %v3610 = vpop.f32.mrb[0].mxu0
  %v3611 = vpop.f32.mrb[0].mxu0
  %v3612 = vadd.f32 0.0, %v3611
  %v3613 = vpop.f32.mrb[0].mxu0
  %3614 = vmatprep.mubr.bf16.mxu0 0
  %3615 = vmatmul.mubr.bf16.gmra.mrb[0].mxu0 %v3492
  %v3616 = vpop.f32.mrb[0].mxu0
  %v3617 = vadd.f32 0.0, %v3616
  %v3618 = vpop.f32.mrb[0].mxu0
  %v3619 = vpop.f32.mrb[0].mxu0
  %v3620 = vadd.f32 0.0, %v3619
  %v3621 = vpop.f32.mrb[0].mxu0
  %3622 = vmatprep.mubr.bf16.mxu0 0
  %3623 = vmatmul.mubr.bf16.gmra.mrb[0].mxu0 %v3493
  %v3624 = vpop.f32.mrb[0].mxu0
  %v3625 = vadd.f32 0.0, %v3624
  %v3626 = vpop.f32.mrb[0].mxu0
  %v3627 = vpop.f32.mrb[0].mxu0
  %v3628 = vadd.f32 0.0, %v3627
  %v3629 = vpop.f32.mrb[0].mxu0
  %3630 = vmatprep.mubr.bf16.mxu0 0
  %3631 = vmatmul.mubr.bf16.gmra.mrb[0].mxu0 %v3494
  %v3632 = vpop.f32.mrb[0].mxu0
  %v3633 = vadd.f32 0.0, %v3632
  %v3634 = vpop.f32.mrb[0].mxu0
  %v3635 = vpop.f32.mrb[0].mxu0
  %v3636 = vadd.f32 0.0, %v3635
  %v3637 = vpop.f32.mrb[0].mxu0
  %3638 = vmatprep.mubr.bf16.mxu0 0
  %3639 = vmatmul.mubr.bf16.gmra.mrb[0].mxu0 %v3495
  %v3640 = vpop.f32.mrb[0].mxu0
  %v3641 = vadd.f32 0.0, %v3640
  %v3642 = vpop.f32.mrb[0].mxu0
  %v3643 = vpop.f32.mrb[0].mxu0
  %v3644 = vadd.f32 0.0, %v3643
  %v3645 = vpop.f32.mrb[0].mxu0
  %3646 = vmatprep.mubr.bf16.mxu0 0
  %3647 = vmatmul.mubr.bf16.gmra.mrb[0].mxu0 %v3496
  %v3648 = vpop.f32.mrb[0].mxu0
  %v3649 = vadd.f32 0.0, %v3648
  %v3650 = vpop.f32.mrb[0].mxu0
  %v3651 = vpop.f32.mrb[0].mxu0
  %v3652 = vadd.f32 0.0, %v3651
  %v3653 = vpop.f32.mrb[0].mxu0
  %3654 = vmatprep.mubr.bf16.mxu0 0
  %3655 = vmatmul.mubr.bf16.gmra.mrb[0].mxu0 %v3497
  %v3656 = vpop.f32.mrb[0].mxu0
  %v3657 = vadd.f32 0.0, %v3656
  %v3658 = vpop.f32.mrb[0].mxu0
  %v3659 = vpop.f32.mrb[0].mxu0
  %v3660 = vadd.f32 0.0, %v3659
  %v3661 = vpop.f32.mrb[0].mxu0
  %3662 = vmatprep.mubr.bf16.mxu0 0
  %3663 = vmatmul.mubr.bf16.gmra.mrb[0].mxu0 %v3498
  %v3664 = vpop.f32.mrb[0].mxu0
  %v3665 = vadd.f32 0.0, %v3664
  %v3666 = vpop.f32.mrb[0].mxu0
  %v3667 = vpop.f32.mrb[0].mxu0
  %v3668 = vadd.f32 0.0, %v3667
  %v3669 = vpop.f32.mrb[0].mxu0
  %3670 = vmatprep.mubr.bf16.mxu0 0
  %3671 = vmatmul.mubr.bf16.gmra.mrb[0].mxu0 %v3499
  %v3672 = vpop.f32.mrb[0].mxu0
  %v3673 = vadd.f32 0.0, %v3672
  %v3674 = vpop.f32.mrb[0].mxu0
  %v3675 = vpop.f32.mrb[0].mxu0
  %v3676 = vadd.f32 0.0, %v3675
  %v3677 = vpop.f32.mrb[0].mxu0
  %3678 = vmatprep.mubr.bf16.mxu0 0
  %3679 = vmatmul.mubr.bf16.gmra.mrb[0].mxu0 %v3500
  %v3680 = vpop.f32.mrb[0].mxu0
  %v3681 = vadd.f32 0.0, %v3680
  %v3682 = vpop.f32.mrb[0].mxu0
  %v3683 = vpop.f32.mrb[0].mxu0
  %v3684 = vadd.f32 0.0, %v3683
  %v3685 = vpop.f32.mrb[0].mxu0
  %3686 = vmatprep.mubr.bf16.mxu0 0
  %3687 = vmatmul.mubr.bf16.gmra.mrb[0].mxu0 %v3501
  %v3688 = vpop.f32.mrb[0].mxu0
  %v3689 = vadd.f32 0.0, %v3688
  %v3690 = vpop.f32.mrb[0].mxu0
  %v3691 = vpop.f32.mrb[0].mxu0
  %v3692 = vadd.f32 0.0, %v3691
  %v3693 = vpop.f32.mrb[0].mxu0
  %3694 = vmatprep.mubr.bf16.mxu0 0
  %3695 = vmatmul.mubr.bf16.gmra.mrb[0].mxu0 %v3502
  %v3696 = vpop.f32.mrb[0].mxu0
  %v3697 = vadd.f32 0.0, %v3696
  %v3698 = vpop.f32.mrb[0].mxu0
  %v3699 = vpop.f32.mrb[0].mxu0
  %v3700 = vadd.f32 0.0, %v3699
  %v3701 = vpop.f32.mrb[0].mxu0
  %3702 = vmatprep.mubr.bf16.mxu0 0
  %3703 = vmatmul.mubr.bf16.gmra.mrb[0].mxu0 %v3503
  %v3704 = vpop.f32.mrb[0].mxu0
  %v3705 = vadd.f32 0.0, %v3704
  %v3706 = vpop.f32.mrb[0].mxu0
  %v3707 = vpop.f32.mrb[0].mxu0
  %v3708 = vadd.f32 0.0, %v3707
  %v3709 = vpop.f32.mrb[0].mxu0
  %3710 = vmatprep.mubr.bf16.mxu0 0
  %3711 = vmatmul.mubr.bf16.gmra.mrb[0].mxu0 %v3504
  %v3712 = vpop.f32.mrb[0].mxu0
  %v3713 = vadd.f32 0.0, %v3712
  %v3714 = vpop.f32.mrb[0].mxu0
  %v3715 = vpop.f32.mrb[0].mxu0
  %v3716 = vadd.f32 0.0, %v3715
  %v3717 = vpop.f32.mrb[0].mxu0
  %3718 = vmatprep.mubr.bf16.mxu0 0
  %3719 = vmatmul.mubr.bf16.gmra.mrb[0].mxu0 %v3505
  %v3720 = vpop.f32.mrb[0].mxu0
  %v3721 = vadd.f32 0.0, %v3720
  %v3722 = vpop.f32.mrb[0].mxu0
  %v3723 = vpop.f32.mrb[0].mxu0
  %v3724 = vadd.f32 0.0, %v3723
  %v3725 = vpop.f32.mrb[0].mxu0
  %3726 = vmatprep.mubr.bf16.mxu0 0
  %3727 = vmatmul.mubr.bf16.gmra.mrb[0].mxu0 %v3506
  %v3728 = vpop.f32.mrb[0].mxu0
  %v3729 = vadd.f32 0.0, %v3728
  %v3730 = vpop.f32.mrb[0].mxu0
  %v3731 = vpop.f32.mrb[0].mxu0
  %v3732 = vadd.f32 0.0, %v3731
  %v3733 = vpop.f32.mrb[0].mxu0
  %3734 = vmatprep.mubr.bf16.mxu0 0
  %3735 = vmatmul.mubr.bf16.gmra.mrb[0].mxu0 %v3507
  %v3736 = vpop.f32.mrb[0].mxu0
  %v3737 = vadd.f32 0.0, %v3736
  %v3738 = vpop.f32.mrb[0].mxu0
  %v3739 = vpop.f32.mrb[0].mxu0
  %v3740 = vadd.f32 0.0, %v3739
  %v3741 = vpop.f32.mrb[0].mxu0
  %3742 = vmatprep.mubr.bf16.mxu0 0
  %3743 = vmatmul.mubr.bf16.gmra.mrb[0].mxu0 %v3508
  %v3744 = vpop.f32.mrb[0].mxu0
  %v3745 = vadd.f32 0.0, %v3744
  %v3746 = vpop.f32.mrb[0].mxu0
  %v3747 = vpop.f32.mrb[0].mxu0
  %v3748 = vadd.f32 0.0, %v3747
  %v3749 = vpop.f32.mrb[0].mxu0
  %3750 = vdwg.mxu0
  %s3751 = scalar_lea.vmem %s9, 432
  %v3752 = vld [vmem:[%s3751] sm:$0xff]
  %v3753 = vld [vmem:[%s3751 + $0x8] sm:$0xff]
  %v3754 = vld [vmem:[%s3751 + $0x10] sm:$0xff]
  %v3755 = vld [vmem:[%s3751 + $0x18] sm:$0xff]
  %v3756 = vld [vmem:[%s3751 + $0x20] sm:$0xff]
  %v3757 = vld [vmem:[%s3751 + $0x28] sm:$0xff]
  %v3758 = vld [vmem:[%s3751 + $0x30] sm:$0xff]
  %v3759 = vld [vmem:[%s3751 + $0x38] sm:$0xff]
  %v3760 = vld [vmem:[%s3751 + $0x40] sm:$0xff]
  %v3761 = vld [vmem:[%s3751 + $0x48] sm:$0xff]
  %v3762 = vld [vmem:[%s3751 + $0x50] sm:$0xff]
  %v3763 = vld [vmem:[%s3751 + $0x58] sm:$0xff]
  %v3764 = vld [vmem:[%s3751 + $0x60] sm:$0xff]
  %v3765 = vld [vmem:[%s3751 + $0x68] sm:$0xff]
  %v3766 = vld [vmem:[%s3751 + $0x70] sm:$0xff]
  %v3767 = vld [vmem:[%s3751 + $0x78] sm:$0xff]
  %v3768 = vld [vmem:[%s3751 + $0x80] sm:$0xff]
  %v3769 = vld [vmem:[%s3751 + $0x88] sm:$0xff]
  %3771 = vset.pattern.permute.xlu0 0
  %3772 = vperm.xlu0 %3771, %v3752
  %v3773 = vpop.permute.xlu0 %3772
  %3776 = vset.pattern.permute.xlu0 0
  %3777 = vperm.xlu0 %3776, %v3753
  %v3778 = vpop.permute.xlu0 %3777
  %3781 = vset.pattern.permute.xlu0 0
  %3782 = vperm.xlu0 %3781, %v3754
  %v3783 = vpop.permute.xlu0 %3782
  %3786 = vset.pattern.permute.xlu0 0
  %3787 = vperm.xlu0 %3786, %v3755
  %v3788 = vpop.permute.xlu0 %3787
  %3791 = vset.pattern.permute.xlu0 0
  %3792 = vperm.xlu0 %3791, %v3756
  %v3793 = vpop.permute.xlu0 %3792
  %3796 = vset.pattern.permute.xlu0 0
  %3797 = vperm.xlu0 %3796, %v3757
  %v3798 = vpop.permute.xlu0 %3797
  %3801 = vset.pattern.permute.xlu0 0
  %3802 = vperm.xlu0 %3801, %v3758
  %v3803 = vpop.permute.xlu0 %3802
  %3806 = vset.pattern.permute.xlu0 0
  %3807 = vperm.xlu0 %3806, %v3759
  %v3808 = vpop.permute.xlu0 %3807
  %3811 = vset.pattern.permute.xlu0 0
  %3812 = vperm.xlu0 %3811, %v3760
  %v3813 = vpop.permute.xlu0 %3812
  %3816 = vset.pattern.permute.xlu0 0
  %3817 = vperm.xlu0 %3816, %v3761
  %v3818 = vpop.permute.xlu0 %3817
  %3821 = vset.pattern.permute.xlu0 0
  %3822 = vperm.xlu0 %3821, %v3762
  %v3823 = vpop.permute.xlu0 %3822
  %3826 = vset.pattern.permute.xlu0 0
  %3827 = vperm.xlu0 %3826, %v3763
  %v3828 = vpop.permute.xlu0 %3827
  %3831 = vset.pattern.permute.xlu0 0
  %3832 = vperm.xlu0 %3831, %v3764
  %v3833 = vpop.permute.xlu0 %3832
  %3836 = vset.pattern.permute.xlu0 0
  %3837 = vperm.xlu0 %3836, %v3765
  %v3838 = vpop.permute.xlu0 %3837
  %3841 = vset.pattern.permute.xlu0 0
  %3842 = vperm.xlu0 %3841, %v3766
  %v3843 = vpop.permute.xlu0 %3842
  %3846 = vset.pattern.permute.xlu0 0
  %3847 = vperm.xlu0 %3846, %v3767
  %v3848 = vpop.permute.xlu0 %3847
  %3851 = vset.pattern.permute.xlu0 0
  %3852 = vperm.xlu0 %3851, %v3768
  %v3853 = vpop.permute.xlu0 %3852
  %3856 = vset.pattern.permute.xlu0 0
  %3857 = vperm.xlu0 %3856, %v3769
  %v3858 = vpop.permute.xlu0 %3857
  %v3860 = vmul.f32 %v3609, %v3773
  %v3861 = vmul.f32 %v3612, %v3778
  %v3862 = vmul.f32 %v3617, %v3783
  %v3863 = vmul.f32 %v3620, %v3788
  %v3864 = vmul.f32 %v3625, %v3793
  %v3865 = vmul.f32 %v3628, %v3798
  %v3866 = vmul.f32 %v3633, %v3803
  %v3867 = vmul.f32 %v3636, %v3808
  %v3868 = vmul.f32 %v3641, %v3813
  %v3869 = vmul.f32 %v3644, %v3818
  %v3870 = vmul.f32 %v3649, %v3823
  %v3871 = vmul.f32 %v3652, %v3828
  %v3872 = vmul.f32 %v3657, %v3833
  %v3873 = vmul.f32 %v3660, %v3838
  %v3874 = vmul.f32 %v3665, %v3843
  %v3875 = vmul.f32 %v3668, %v3848
  %v3876 = vmul.f32 %v3673, %v3853
  %v3877 = vmul.f32 %v3676, %v3858
  %v3878 = vmul.f32 %v3681, %v3773
  %v3879 = vmul.f32 %v3684, %v3778
  %v3880 = vmul.f32 %v3689, %v3783
  %v3881 = vmul.f32 %v3692, %v3788
  %v3882 = vmul.f32 %v3697, %v3793
  %v3883 = vmul.f32 %v3700, %v3798
  %v3884 = vmul.f32 %v3705, %v3803
  %v3885 = vmul.f32 %v3708, %v3808
  %v3886 = vmul.f32 %v3713, %v3813
  %v3887 = vmul.f32 %v3716, %v3818
  %v3888 = vmul.f32 %v3721, %v3823
  %v3889 = vmul.f32 %v3724, %v3828
  %v3890 = vmul.f32 %v3729, %v3833
  %v3891 = vmul.f32 %v3732, %v3838
  %v3892 = vmul.f32 %v3737, %v3843
  %v3893 = vmul.f32 %v3740, %v3848
  %v3894 = vmul.f32 %v3745, %v3853
  %v3895 = vmul.f32 %v3748, %v3858
  %v3896 = vadd.f32 %v3382, %v3860
  %v3897 = vadd.f32 %v3383, %v3861
  %v3898 = vadd.f32 %v3384, %v3862
  %v3899 = vadd.f32 %v3385, %v3863
  %v3900 = vadd.f32 %v3386, %v3864
  %v3901 = vadd.f32 %v3387, %v3865
  %v3902 = vadd.f32 %v3388, %v3866
  %v3903 = vadd.f32 %v3389, %v3867
  %v3904 = vadd.f32 %v3390, %v3868
  %v3905 = vadd.f32 %v3391, %v3869
  %v3906 = vadd.f32 %v3392, %v3870
  %v3907 = vadd.f32 %v3393, %v3871
  %v3908 = vadd.f32 %v3394, %v3872
  %v3909 = vadd.f32 %v3395, %v3873
  %v3910 = vadd.f32 %v3396, %v3874
  %v3911 = vadd.f32 %v3397, %v3875
  %v3912 = vadd.f32 %v3398, %v3876
  %v3913 = vadd.f32 %v3399, %v3877
  %v3914 = vadd.f32 %v3400, %v3878
  %v3915 = vadd.f32 %v3401, %v3879
  %v3916 = vadd.f32 %v3402, %v3880
  %v3917 = vadd.f32 %v3403, %v3881
  %v3918 = vadd.f32 %v3404, %v3882
  %v3919 = vadd.f32 %v3405, %v3883
  %v3920 = vadd.f32 %v3406, %v3884
  %v3921 = vadd.f32 %v3407, %v3885
  %v3922 = vadd.f32 %v3408, %v3886
  %v3923 = vadd.f32 %v3409, %v3887
  %v3924 = vadd.f32 %v3410, %v3888
  %v3925 = vadd.f32 %v3411, %v3889
  %v3926 = vadd.f32 %v3412, %v3890
  %v3927 = vadd.f32 %v3413, %v3891
  %v3928 = vadd.f32 %v3414, %v3892
  %v3929 = vadd.f32 %v3415, %v3893
  %v3930 = vadd.f32 %v3416, %v3894
  %v3931 = vadd.f32 %v3417, %v3895
  %v3932 = vpack.c.bf16 %v1914, %v1913
  %v3933 = vpack.c.bf16 %v1916, %v1915
  %v3934 = vpack.c.bf16 %v1918, %v1917
  %v3935 = vpack.c.bf16 %v1920, %v1919
  %v3936 = vpack.c.bf16 %v1922, %v1921
  %v3937 = vpack.c.bf16 %v1924, %v1923
  %v3938 = vpack.c.bf16 %v1926, %v1925
  %v3939 = vpack.c.bf16 %v1928, %v1927
  %v3940 = vpack.c.bf16 %v1930, %v1929
  %v3941 = vpack.c.bf16 %v1932, %v1931
  %v3942 = vpack.c.bf16 %v1934, %v1933
  %v3943 = vpack.c.bf16 %v1936, %v1935
  %v3944 = vpack.c.bf16 %v1938, %v1937
  %v3945 = vpack.c.bf16 %v1940, %v1939
  %v3946 = vpack.c.bf16 %v1942, %v1941
  %v3947 = vpack.c.bf16 %v1944, %v1943
  %v3948 = vpack.c.bf16 %v1946, %v1945
  %v3949 = vpack.c.bf16 %v1948, %v1947
  %s3950 = scalar_lea.vmem %s5, 256
  %v3951 = vld [vmem:[%s3950] sm:$0xf]
  %v3952 = vld [vmem:[%s3950 + $0x4] sm:$0xf]
  %v3953 = vld [vmem:[%s3950 + $0x8] sm:$0xf]
  %v3954 = vld [vmem:[%s3950 + $0xc] sm:$0xf]
  %v3955 = vld [vmem:[%s3950 + $0x10] sm:$0xf]
  %v3956 = vld [vmem:[%s3950 + $0x14] sm:$0xf]
  %v3957 = vld [vmem:[%s3950 + $0x18] sm:$0xf]
  %v3958 = vld [vmem:[%s3950 + $0x1c] sm:$0xf]
  %v3959 = vld [vmem:[%s3950 + $0x20] sm:$0xf]
  %v3960 = vld [vmem:[%s3950 + $0x24] sm:$0xf]
  %v3961 = vld [vmem:[%s3950 + $0x28] sm:$0xf]
  %v3962 = vld [vmem:[%s3950 + $0x2c] sm:$0xf]
  %v3963 = vld [vmem:[%s3950 + $0x30] sm:$0xf]
  %v3964 = vld [vmem:[%s3950 + $0x34] sm:$0xf]
  %v3965 = vld [vmem:[%s3950 + $0x38] sm:$0xf]
  %v3966 = vld [vmem:[%s3950 + $0x3c] sm:$0xf]
  %v3983 = vunpack.c.l.b16 %v3951
  %v3984 = vunpack.c.l.b16 %v3952
  %v3985 = vunpack.c.l.b16 %v3953
  %v3986 = vunpack.c.l.b16 %v3954
  %v3987 = vunpack.c.l.b16 %v3955
  %v3988 = vunpack.c.l.b16 %v3956
  %v3989 = vunpack.c.l.b16 %v3957
  %v3990 = vunpack.c.l.b16 %v3958
  %v3991 = vunpack.c.l.b16 %v3959
  %v3992 = vunpack.c.l.b16 %v3960
  %v3993 = vunpack.c.l.b16 %v3961
  %v3994 = vunpack.c.l.b16 %v3962
  %v3995 = vunpack.c.l.b16 %v3963
  %v3996 = vunpack.c.l.b16 %v3964
  %v3997 = vunpack.c.l.b16 %v3965
  %v3998 = vunpack.c.l.b16 %v3966
  %v3999 = vpack.c.b16 %v3984, %v3983
  %v4000 = vpack.c.b16 %v3986, %v3985
  %v4001 = vpack.c.b16 %v3988, %v3987
  %v4002 = vpack.c.b16 %v3990, %v3989
  %v4003 = vpack.c.b16 %v3992, %v3991
  %v4004 = vpack.c.b16 %v3994, %v3993
  %v4005 = vpack.c.b16 %v3996, %v3995
  %v4006 = vpack.c.b16 %v3998, %v3997
  %4015 = vmatprep.subr.bf16.mxu0 0
  %4016 = vmatpush1.bf16.msra.mxu0 %v3999
  %4017 = vmatprep.subr.bf16.mxu0 0
  %4018 = vmatpush1.bf16.msra.mxu0 %v4000
  %4019 = vmatprep.subr.bf16.mxu0 0
  %4020 = vmatpush1.bf16.msra.mxu0 %v4001
  %4021 = vmatprep.subr.bf16.mxu0 0
  %4022 = vmatpush1.bf16.msra.mxu0 %v4002
  %4023 = vmatprep.subr.bf16.mxu0 0
  %4024 = vmatpush1.bf16.msra.mxu0 %v4003
  %4025 = vmatprep.subr.bf16.mxu0 0
  %4026 = vmatpush1.bf16.msra.mxu0 %v4004
  %4027 = vmatprep.subr.bf16.mxu0 0
  %4028 = vmatpush1.bf16.msra.mxu0 %v4005
  %4029 = vmatprep.subr.bf16.mxu0 0
  %4030 = vmatpush1.bf16.msra.mxu0 %v4006
  %4031 = vmatprep.subr.bf16.mxu0 0
  %4032 = vmatpush1.bf16.msra.mxu0 0
  %4033 = vmatprep.subr.bf16.mxu0 0
  %4034 = vmatpush1.bf16.msra.mxu0 0
  %4035 = vmatprep.subr.bf16.mxu0 0
  %4036 = vmatpush1.bf16.msra.mxu0 0
  %4037 = vmatprep.subr.bf16.mxu0 0
  %4038 = vmatpush1.bf16.msra.mxu0 0
  %4039 = vmatprep.subr.bf16.mxu0 0
  %4040 = vmatpush1.bf16.msra.mxu0 0
  %4041 = vmatprep.subr.bf16.mxu0 0
  %4042 = vmatpush1.bf16.msra.mxu0 0
  %4043 = vmatprep.subr.bf16.mxu0 0
  %4044 = vmatpush1.bf16.msra.mxu0 0
  %4045 = vmatprep.subr.bf16.mxu0 0
  %4046 = vmatpush1.bf16.msra.mxu0 0
  %4047 = vmatprep.mubr.bf16.mxu0 0
  %4048 = vmatmul.mubr.bf16.gmra.mrb[0].mxu0 %v3932
  %v4049 = vpop.f32.mrb[0].mxu0
  %v4050 = vadd.f32 0.0, %v4049
  %v4051 = vpop.f32.mrb[0].mxu0
  %v4052 = vpop.f32.mrb[0].mxu0
  %v4053 = vadd.f32 0.0, %v4052
  %v4054 = vpop.f32.mrb[0].mxu0
  %4055 = vmatprep.mubr.bf16.mxu0 0
  %4056 = vmatmul.mubr.bf16.gmra.mrb[0].mxu0 %v3933
  %v4057 = vpop.f32.mrb[0].mxu0
  %v4058 = vadd.f32 0.0, %v4057
  %v4059 = vpop.f32.mrb[0].mxu0
  %v4060 = vpop.f32.mrb[0].mxu0
  %v4061 = vadd.f32 0.0, %v4060
  %v4062 = vpop.f32.mrb[0].mxu0
  %4063 = vmatprep.mubr.bf16.mxu0 0
  %4064 = vmatmul.mubr.bf16.gmra.mrb[0].mxu0 %v3934
  %v4065 = vpop.f32.mrb[0].mxu0
  %v4066 = vadd.f32 0.0, %v4065
  %v4067 = vpop.f32.mrb[0].mxu0
  %v4068 = vpop.f32.mrb[0].mxu0
  %v4069 = vadd.f32 0.0, %v4068
  %v4070 = vpop.f32.mrb[0].mxu0
  %4071 = vmatprep.mubr.bf16.mxu0 0
  %4072 = vmatmul.mubr.bf16.gmra.mrb[0].mxu0 %v3935
  %v4073 = vpop.f32.mrb[0].mxu0
  %v4074 = vadd.f32 0.0, %v4073
  %v4075 = vpop.f32.mrb[0].mxu0
  %v4076 = vpop.f32.mrb[0].mxu0
  %v4077 = vadd.f32 0.0, %v4076
  %v4078 = vpop.f32.mrb[0].mxu0
  %4079 = vmatprep.mubr.bf16.mxu0 0
  %4080 = vmatmul.mubr.bf16.gmra.mrb[0].mxu0 %v3936
  %v4081 = vpop.f32.mrb[0].mxu0
  %v4082 = vadd.f32 0.0, %v4081
  %v4083 = vpop.f32.mrb[0].mxu0
  %v4084 = vpop.f32.mrb[0].mxu0
  %v4085 = vadd.f32 0.0, %v4084
  %v4086 = vpop.f32.mrb[0].mxu0
  %4087 = vmatprep.mubr.bf16.mxu0 0
  %4088 = vmatmul.mubr.bf16.gmra.mrb[0].mxu0 %v3937
  %v4089 = vpop.f32.mrb[0].mxu0
  %v4090 = vadd.f32 0.0, %v4089
  %v4091 = vpop.f32.mrb[0].mxu0
  %v4092 = vpop.f32.mrb[0].mxu0
  %v4093 = vadd.f32 0.0, %v4092
  %v4094 = vpop.f32.mrb[0].mxu0
  %4095 = vmatprep.mubr.bf16.mxu0 0
  %4096 = vmatmul.mubr.bf16.gmra.mrb[0].mxu0 %v3938
  %v4097 = vpop.f32.mrb[0].mxu0
  %v4098 = vadd.f32 0.0, %v4097
  %v4099 = vpop.f32.mrb[0].mxu0
  %v4100 = vpop.f32.mrb[0].mxu0
  %v4101 = vadd.f32 0.0, %v4100
  %v4102 = vpop.f32.mrb[0].mxu0
  %4103 = vmatprep.mubr.bf16.mxu0 0
  %4104 = vmatmul.mubr.bf16.gmra.mrb[0].mxu0 %v3939
  %v4105 = vpop.f32.mrb[0].mxu0
  %v4106 = vadd.f32 0.0, %v4105
  %v4107 = vpop.f32.mrb[0].mxu0
  %v4108 = vpop.f32.mrb[0].mxu0
  %v4109 = vadd.f32 0.0, %v4108
  %v4110 = vpop.f32.mrb[0].mxu0
  %4111 = vmatprep.mubr.bf16.mxu0 0
  %4112 = vmatmul.mubr.bf16.gmra.mrb[0].mxu0 %v3940
  %v4113 = vpop.f32.mrb[0].mxu0
  %v4114 = vadd.f32 0.0, %v4113
  %v4115 = vpop.f32.mrb[0].mxu0
  %v4116 = vpop.f32.mrb[0].mxu0
  %v4117 = vadd.f32 0.0, %v4116
  %v4118 = vpop.f32.mrb[0].mxu0
  %4119 = vmatprep.mubr.bf16.mxu0 0
  %4120 = vmatmul.mubr.bf16.gmra.mrb[0].mxu0 %v3941
  %v4121 = vpop.f32.mrb[0].mxu0
  %v4122 = vadd.f32 0.0, %v4121
  %v4123 = vpop.f32.mrb[0].mxu0
  %v4124 = vpop.f32.mrb[0].mxu0
  %v4125 = vadd.f32 0.0, %v4124
  %v4126 = vpop.f32.mrb[0].mxu0
  %4127 = vmatprep.mubr.bf16.mxu0 0
  %4128 = vmatmul.mubr.bf16.gmra.mrb[0].mxu0 %v3942
  %v4129 = vpop.f32.mrb[0].mxu0
  %v4130 = vadd.f32 0.0, %v4129
  %v4131 = vpop.f32.mrb[0].mxu0
  %v4132 = vpop.f32.mrb[0].mxu0
  %v4133 = vadd.f32 0.0, %v4132
  %v4134 = vpop.f32.mrb[0].mxu0
  %4135 = vmatprep.mubr.bf16.mxu0 0
  %4136 = vmatmul.mubr.bf16.gmra.mrb[0].mxu0 %v3943
  %v4137 = vpop.f32.mrb[0].mxu0
  %v4138 = vadd.f32 0.0, %v4137
  %v4139 = vpop.f32.mrb[0].mxu0
  %v4140 = vpop.f32.mrb[0].mxu0
  %v4141 = vadd.f32 0.0, %v4140
  %v4142 = vpop.f32.mrb[0].mxu0
  %4143 = vmatprep.mubr.bf16.mxu0 0
  %4144 = vmatmul.mubr.bf16.gmra.mrb[0].mxu0 %v3944
  %v4145 = vpop.f32.mrb[0].mxu0
  %v4146 = vadd.f32 0.0, %v4145
  %v4147 = vpop.f32.mrb[0].mxu0
  %v4148 = vpop.f32.mrb[0].mxu0
  %v4149 = vadd.f32 0.0, %v4148
  %v4150 = vpop.f32.mrb[0].mxu0
  %4151 = vmatprep.mubr.bf16.mxu0 0
  %4152 = vmatmul.mubr.bf16.gmra.mrb[0].mxu0 %v3945
  %v4153 = vpop.f32.mrb[0].mxu0
  %v4154 = vadd.f32 0.0, %v4153
  %v4155 = vpop.f32.mrb[0].mxu0
  %v4156 = vpop.f32.mrb[0].mxu0
  %v4157 = vadd.f32 0.0, %v4156
  %v4158 = vpop.f32.mrb[0].mxu0
  %4159 = vmatprep.mubr.bf16.mxu0 0
  %4160 = vmatmul.mubr.bf16.gmra.mrb[0].mxu0 %v3946
  %v4161 = vpop.f32.mrb[0].mxu0
  %v4162 = vadd.f32 0.0, %v4161
  %v4163 = vpop.f32.mrb[0].mxu0
  %v4164 = vpop.f32.mrb[0].mxu0
  %v4165 = vadd.f32 0.0, %v4164
  %v4166 = vpop.f32.mrb[0].mxu0
  %4167 = vmatprep.mubr.bf16.mxu0 0
  %4168 = vmatmul.mubr.bf16.gmra.mrb[0].mxu0 %v3947
  %v4169 = vpop.f32.mrb[0].mxu0
  %v4170 = vadd.f32 0.0, %v4169
  %v4171 = vpop.f32.mrb[0].mxu0
  %v4172 = vpop.f32.mrb[0].mxu0
  %v4173 = vadd.f32 0.0, %v4172
  %v4174 = vpop.f32.mrb[0].mxu0
  %4175 = vmatprep.mubr.bf16.mxu0 0
  %4176 = vmatmul.mubr.bf16.gmra.mrb[0].mxu0 %v3948
  %v4177 = vpop.f32.mrb[0].mxu0
  %v4178 = vadd.f32 0.0, %v4177
  %v4179 = vpop.f32.mrb[0].mxu0
  %v4180 = vpop.f32.mrb[0].mxu0
  %v4181 = vadd.f32 0.0, %v4180
  %v4182 = vpop.f32.mrb[0].mxu0
  %4183 = vmatprep.mubr.bf16.mxu0 0
  %4184 = vmatmul.mubr.bf16.gmra.mrb[0].mxu0 %v3949
  %v4185 = vpop.f32.mrb[0].mxu0
  %v4186 = vadd.f32 0.0, %v4185
  %v4187 = vpop.f32.mrb[0].mxu0
  %v4188 = vpop.f32.mrb[0].mxu0
  %v4189 = vadd.f32 0.0, %v4188
  %v4190 = vpop.f32.mrb[0].mxu0
  %4191 = vdwg.mxu0
  %s4192 = scalar_lea.vmem %s9, 576
  %v4193 = vld [vmem:[%s4192] sm:$0xff]
  %v4194 = vld [vmem:[%s4192 + $0x8] sm:$0xff]
  %v4195 = vld [vmem:[%s4192 + $0x10] sm:$0xff]
  %v4196 = vld [vmem:[%s4192 + $0x18] sm:$0xff]
  %v4197 = vld [vmem:[%s4192 + $0x20] sm:$0xff]
  %v4198 = vld [vmem:[%s4192 + $0x28] sm:$0xff]
  %v4199 = vld [vmem:[%s4192 + $0x30] sm:$0xff]
  %v4200 = vld [vmem:[%s4192 + $0x38] sm:$0xff]
  %v4201 = vld [vmem:[%s4192 + $0x40] sm:$0xff]
  %v4202 = vld [vmem:[%s4192 + $0x48] sm:$0xff]
  %v4203 = vld [vmem:[%s4192 + $0x50] sm:$0xff]
  %v4204 = vld [vmem:[%s4192 + $0x58] sm:$0xff]
  %v4205 = vld [vmem:[%s4192 + $0x60] sm:$0xff]
  %v4206 = vld [vmem:[%s4192 + $0x68] sm:$0xff]
  %v4207 = vld [vmem:[%s4192 + $0x70] sm:$0xff]
  %v4208 = vld [vmem:[%s4192 + $0x78] sm:$0xff]
  %v4209 = vld [vmem:[%s4192 + $0x80] sm:$0xff]
  %v4210 = vld [vmem:[%s4192 + $0x88] sm:$0xff]
  %4212 = vset.pattern.permute.xlu0 0
  %4213 = vperm.xlu0 %4212, %v4193
  %v4214 = vpop.permute.xlu0 %4213
  %4217 = vset.pattern.permute.xlu0 0
  %4218 = vperm.xlu0 %4217, %v4194
  %v4219 = vpop.permute.xlu0 %4218
  %4222 = vset.pattern.permute.xlu0 0
  %4223 = vperm.xlu0 %4222, %v4195
  %v4224 = vpop.permute.xlu0 %4223
  %4227 = vset.pattern.permute.xlu0 0
  %4228 = vperm.xlu0 %4227, %v4196
  %v4229 = vpop.permute.xlu0 %4228
  %4232 = vset.pattern.permute.xlu0 0
  %4233 = vperm.xlu0 %4232, %v4197
  %v4234 = vpop.permute.xlu0 %4233
  %4237 = vset.pattern.permute.xlu0 0
  %4238 = vperm.xlu0 %4237, %v4198
  %v4239 = vpop.permute.xlu0 %4238
  %4242 = vset.pattern.permute.xlu0 0
  %4243 = vperm.xlu0 %4242, %v4199
  %v4244 = vpop.permute.xlu0 %4243
  %4247 = vset.pattern.permute.xlu0 0
  %4248 = vperm.xlu0 %4247, %v4200
  %v4249 = vpop.permute.xlu0 %4248
  %4252 = vset.pattern.permute.xlu0 0
  %4253 = vperm.xlu0 %4252, %v4201
  %v4254 = vpop.permute.xlu0 %4253
  %4257 = vset.pattern.permute.xlu0 0
  %4258 = vperm.xlu0 %4257, %v4202
  %v4259 = vpop.permute.xlu0 %4258
  %4262 = vset.pattern.permute.xlu0 0
  %4263 = vperm.xlu0 %4262, %v4203
  %v4264 = vpop.permute.xlu0 %4263
  %4267 = vset.pattern.permute.xlu0 0
  %4268 = vperm.xlu0 %4267, %v4204
  %v4269 = vpop.permute.xlu0 %4268
  %4272 = vset.pattern.permute.xlu0 0
  %4273 = vperm.xlu0 %4272, %v4205
  %v4274 = vpop.permute.xlu0 %4273
  %4277 = vset.pattern.permute.xlu0 0
  %4278 = vperm.xlu0 %4277, %v4206
  %v4279 = vpop.permute.xlu0 %4278
  %4282 = vset.pattern.permute.xlu0 0
  %4283 = vperm.xlu0 %4282, %v4207
  %v4284 = vpop.permute.xlu0 %4283
  %4287 = vset.pattern.permute.xlu0 0
  %4288 = vperm.xlu0 %4287, %v4208
  %v4289 = vpop.permute.xlu0 %4288
  %4292 = vset.pattern.permute.xlu0 0
  %4293 = vperm.xlu0 %4292, %v4209
  %v4294 = vpop.permute.xlu0 %4293
  %4297 = vset.pattern.permute.xlu0 0
  %4298 = vperm.xlu0 %4297, %v4210
  %v4299 = vpop.permute.xlu0 %4298
  %v4301 = vmul.f32 %v4050, %v4214
  %v4302 = vmul.f32 %v4053, %v4219
  %v4303 = vmul.f32 %v4058, %v4224
  %v4304 = vmul.f32 %v4061, %v4229
  %v4305 = vmul.f32 %v4066, %v4234
  %v4306 = vmul.f32 %v4069, %v4239
  %v4307 = vmul.f32 %v4074, %v4244
  %v4308 = vmul.f32 %v4077, %v4249
  %v4309 = vmul.f32 %v4082, %v4254
  %v4310 = vmul.f32 %v4085, %v4259
  %v4311 = vmul.f32 %v4090, %v4264
  %v4312 = vmul.f32 %v4093, %v4269
  %v4313 = vmul.f32 %v4098, %v4274
  %v4314 = vmul.f32 %v4101, %v4279
  %v4315 = vmul.f32 %v4106, %v4284
  %v4316 = vmul.f32 %v4109, %v4289
  %v4317 = vmul.f32 %v4114, %v4294
  %v4318 = vmul.f32 %v4117, %v4299
  %v4319 = vmul.f32 %v4122, %v4214
  %v4320 = vmul.f32 %v4125, %v4219
  %v4321 = vmul.f32 %v4130, %v4224
  %v4322 = vmul.f32 %v4133, %v4229
  %v4323 = vmul.f32 %v4138, %v4234
  %v4324 = vmul.f32 %v4141, %v4239
  %v4325 = vmul.f32 %v4146, %v4244
  %v4326 = vmul.f32 %v4149, %v4249
  %v4327 = vmul.f32 %v4154, %v4254
  %v4328 = vmul.f32 %v4157, %v4259
  %v4329 = vmul.f32 %v4162, %v4264
  %v4330 = vmul.f32 %v4165, %v4269
  %v4331 = vmul.f32 %v4170, %v4274
  %v4332 = vmul.f32 %v4173, %v4279
  %v4333 = vmul.f32 %v4178, %v4284
  %v4334 = vmul.f32 %v4181, %v4289
  %v4335 = vmul.f32 %v4186, %v4294
  %v4336 = vmul.f32 %v4189, %v4299
  %v4337 = vadd.f32 %v3896, %v4301
  %v4338 = vadd.f32 %v3897, %v4302
  %v4339 = vadd.f32 %v3898, %v4303
  %v4340 = vadd.f32 %v3899, %v4304
  %v4341 = vadd.f32 %v3900, %v4305
  %v4342 = vadd.f32 %v3901, %v4306
  %v4343 = vadd.f32 %v3902, %v4307
  %v4344 = vadd.f32 %v3903, %v4308
  %v4345 = vadd.f32 %v3904, %v4309
  %v4346 = vadd.f32 %v3905, %v4310
  %v4347 = vadd.f32 %v3906, %v4311
  %v4348 = vadd.f32 %v3907, %v4312
  %v4349 = vadd.f32 %v3908, %v4313
  %v4350 = vadd.f32 %v3909, %v4314
  %v4351 = vadd.f32 %v3910, %v4315
  %v4352 = vadd.f32 %v3911, %v4316
  %v4353 = vadd.f32 %v3912, %v4317
  %v4354 = vadd.f32 %v3913, %v4318
  %v4355 = vadd.f32 %v3914, %v4319
  %v4356 = vadd.f32 %v3915, %v4320
  %v4357 = vadd.f32 %v3916, %v4321
  %v4358 = vadd.f32 %v3917, %v4322
  %v4359 = vadd.f32 %v3918, %v4323
  %v4360 = vadd.f32 %v3919, %v4324
  %v4361 = vadd.f32 %v3920, %v4325
  %v4362 = vadd.f32 %v3921, %v4326
  %v4363 = vadd.f32 %v3922, %v4327
  %v4364 = vadd.f32 %v3923, %v4328
  %v4365 = vadd.f32 %v3924, %v4329
  %v4366 = vadd.f32 %v3925, %v4330
  %v4367 = vadd.f32 %v3926, %v4331
  %v4368 = vadd.f32 %v3927, %v4332
  %v4369 = vadd.f32 %v3928, %v4333
  %v4370 = vadd.f32 %v3929, %v4334
  %v4371 = vadd.f32 %v3930, %v4335
  %v4372 = vadd.f32 %v3931, %v4336
  %v4373 = vld [vmem:[%s6] sm:$0x1]
  %v4375 = vlaneseq
  %v4376 = vshrl.u32 %v4375, 7
  %v4377 = vsub.s32 0, %v4376
  %v4378 = vrot.slane %v4373, %v4377
  %v4380 = vadd.f32 %v4337, %v4378
  %v4381 = vadd.f32 %v4338, %v4378
  %v4382 = vadd.f32 %v4339, %v4378
  %v4383 = vadd.f32 %v4340, %v4378
  %v4384 = vadd.f32 %v4341, %v4378
  %v4385 = vadd.f32 %v4342, %v4378
  %v4386 = vadd.f32 %v4343, %v4378
  %v4387 = vadd.f32 %v4344, %v4378
  %v4388 = vadd.f32 %v4345, %v4378
  %v4389 = vadd.f32 %v4346, %v4378
  %v4390 = vadd.f32 %v4347, %v4378
  %v4391 = vadd.f32 %v4348, %v4378
  %v4392 = vadd.f32 %v4349, %v4378
  %v4393 = vadd.f32 %v4350, %v4378
  %v4394 = vadd.f32 %v4351, %v4378
  %v4395 = vadd.f32 %v4352, %v4378
  %v4396 = vadd.f32 %v4353, %v4378
  %v4397 = vadd.f32 %v4354, %v4378
  %v4398 = vadd.f32 %v4355, %v4378
  %v4399 = vadd.f32 %v4356, %v4378
  %v4400 = vadd.f32 %v4357, %v4378
  %v4401 = vadd.f32 %v4358, %v4378
  %v4402 = vadd.f32 %v4359, %v4378
  %v4403 = vadd.f32 %v4360, %v4378
  %v4404 = vadd.f32 %v4361, %v4378
  %v4405 = vadd.f32 %v4362, %v4378
  %v4406 = vadd.f32 %v4363, %v4378
  %v4407 = vadd.f32 %v4364, %v4378
  %v4408 = vadd.f32 %v4365, %v4378
  %v4409 = vadd.f32 %v4366, %v4378
  %v4410 = vadd.f32 %v4367, %v4378
  %v4411 = vadd.f32 %v4368, %v4378
  %v4412 = vadd.f32 %v4369, %v4378
  %v4413 = vadd.f32 %v4370, %v4378
  %v4414 = vadd.f32 %v4371, %v4378
  %v4415 = vadd.f32 %v4372, %v4378
  %v4416 = vmax.f32 %v4380, 0.0
  %v4417 = vmax.f32 %v4381, 0.0
  %v4418 = vmax.f32 %v4382, 0.0
  %v4419 = vmax.f32 %v4383, 0.0
  %v4420 = vmax.f32 %v4384, 0.0
  %v4421 = vmax.f32 %v4385, 0.0
  %v4422 = vmax.f32 %v4386, 0.0
  %v4423 = vmax.f32 %v4387, 0.0
  %v4424 = vmax.f32 %v4388, 0.0
  %v4425 = vmax.f32 %v4389, 0.0
  %v4426 = vmax.f32 %v4390, 0.0
  %v4427 = vmax.f32 %v4391, 0.0
  %v4428 = vmax.f32 %v4392, 0.0
  %v4429 = vmax.f32 %v4393, 0.0
  %v4430 = vmax.f32 %v4394, 0.0
  %v4431 = vmax.f32 %v4395, 0.0
  %v4432 = vmax.f32 %v4396, 0.0
  %v4433 = vmax.f32 %v4397, 0.0
  %v4434 = vmax.f32 %v4398, 0.0
  %v4435 = vmax.f32 %v4399, 0.0
  %v4436 = vmax.f32 %v4400, 0.0
  %v4437 = vmax.f32 %v4401, 0.0
  %v4438 = vmax.f32 %v4402, 0.0
  %v4439 = vmax.f32 %v4403, 0.0
  %v4440 = vmax.f32 %v4404, 0.0
  %v4441 = vmax.f32 %v4405, 0.0
  %v4442 = vmax.f32 %v4406, 0.0
  %v4443 = vmax.f32 %v4407, 0.0
  %v4444 = vmax.f32 %v4408, 0.0
  %v4445 = vmax.f32 %v4409, 0.0
  %v4446 = vmax.f32 %v4410, 0.0
  %v4447 = vmax.f32 %v4411, 0.0
  %v4448 = vmax.f32 %v4412, 0.0
  %v4449 = vmax.f32 %v4413, 0.0
  %v4450 = vmax.f32 %v4414, 0.0
  %v4451 = vmax.f32 %v4415, 0.0
  %v4452 = vld [vmem:[%s7] sm:$0xf]
  %v4453 = vld [vmem:[%s7 + $0x4] sm:$0xf]
  %v4454 = vld [vmem:[%s7 + $0x8] sm:$0xf]
  %v4455 = vld [vmem:[%s7 + $0xc] sm:$0xf]
  %v4456 = vld [vmem:[%s8] sm:$0x1]
  %v4458 = vlaneseq
  %v4459 = vshrl.u32 %v4458, 7
  %v4460 = vsub.s32 0, %v4459
  %v4461 = vrot.slane %v4456, %v4460
  %v4467 = vunpack.c.l.b16 %v4452
  %v4468 = vunpack.c.l.b16 %v4453
  %v4469 = vunpack.c.l.b16 %v4454
  %v4470 = vunpack.c.l.b16 %v4455
  %v4471 = vpack.c.b16 %v4468, %v4467
  %v4472 = vpack.c.b16 %v4470, %v4469
  %4475 = vmatprep.subr.bf16.mxu0 0
  %4476 = vmatpush1.bf16.msra.mxu0 %v4471
  %4477 = vmatprep.subr.bf16.mxu0 0
  %4478 = vmatpush1.bf16.msra.mxu0 %v4472
  %4479 = vmatprep.subr.bf16.mxu0 0
  %4480 = vmatpush1.bf16.msra.mxu0 0
  %4481 = vmatprep.subr.bf16.mxu0 0
  %4482 = vmatpush1.bf16.msra.mxu0 0
  %4483 = vmatprep.subr.bf16.mxu0 0
  %4484 = vmatpush1.bf16.msra.mxu0 0
  %4485 = vmatprep.subr.bf16.mxu0 0
  %4486 = vmatpush1.bf16.msra.mxu0 0
  %4487 = vmatprep.subr.bf16.mxu0 0
  %4488 = vmatpush1.bf16.msra.mxu0 0
  %4489 = vmatprep.subr.bf16.mxu0 0
  %4490 = vmatpush1.bf16.msra.mxu0 0
  %4491 = vmatprep.subr.bf16.mxu0 0
  %4492 = vmatpush1.bf16.msra.mxu0 0
  %4493 = vmatprep.subr.bf16.mxu0 0
  %4494 = vmatpush1.bf16.msra.mxu0 0
  %4495 = vmatprep.subr.bf16.mxu0 0
  %4496 = vmatpush1.bf16.msra.mxu0 0
  %4497 = vmatprep.subr.bf16.mxu0 0
  %4498 = vmatpush1.bf16.msra.mxu0 0
  %4499 = vmatprep.subr.bf16.mxu0 0
  %4500 = vmatpush1.bf16.msra.mxu0 0
  %4501 = vmatprep.subr.bf16.mxu0 0
  %4502 = vmatpush1.bf16.msra.mxu0 0
  %4503 = vmatprep.subr.bf16.mxu0 0
  %4504 = vmatpush1.bf16.msra.mxu0 0
  %4505 = vmatprep.subr.bf16.mxu0 0
  %4506 = vmatpush1.bf16.msra.mxu0 0
  %4507 = vmatprep.mubr.bf16.mxu0 0
  %4508 = vmatmul.mubr.bf16.gmra.mrb[0].mxu0 %v1683
  %v4509 = vpop.f32.mrb[0].mxu0
  %v4510 = vadd.f32 %v4461, %v4509
  %v4511 = vpop.f32.mrb[0].mxu0
  %v4512 = vpop.f32.mrb[0].mxu0
  %v4513 = vadd.f32 %v4461, %v4512
  %v4514 = vpop.f32.mrb[0].mxu0
  %4515 = vmatprep.mubr.bf16.mxu0 0
  %4516 = vmatmul.mubr.bf16.gmra.mrb[0].mxu0 %v1686
  %v4517 = vpop.f32.mrb[0].mxu0
  %v4518 = vadd.f32 %v4461, %v4517
  %v4519 = vpop.f32.mrb[0].mxu0
  %v4520 = vpop.f32.mrb[0].mxu0
  %v4521 = vadd.f32 %v4461, %v4520
  %v4522 = vpop.f32.mrb[0].mxu0
  %4523 = vmatprep.mubr.bf16.mxu0 0
  %4524 = vmatmul.mubr.bf16.gmra.mrb[0].mxu0 %v1689
  %v4525 = vpop.f32.mrb[0].mxu0
  %v4526 = vadd.f32 %v4461, %v4525
  %v4527 = vpop.f32.mrb[0].mxu0
  %v4528 = vpop.f32.mrb[0].mxu0
  %v4529 = vadd.f32 %v4461, %v4528
  %v4530 = vpop.f32.mrb[0].mxu0
  %4531 = vmatprep.mubr.bf16.mxu0 0
  %4532 = vmatmul.mubr.bf16.gmra.mrb[0].mxu0 %v1692
  %v4533 = vpop.f32.mrb[0].mxu0
  %v4534 = vadd.f32 %v4461, %v4533
  %v4535 = vpop.f32.mrb[0].mxu0
  %v4536 = vpop.f32.mrb[0].mxu0
  %v4537 = vadd.f32 %v4461, %v4536
  %v4538 = vpop.f32.mrb[0].mxu0
  %4539 = vmatprep.mubr.bf16.mxu0 0
  %4540 = vmatmul.mubr.bf16.gmra.mrb[0].mxu0 %v1695
  %v4541 = vpop.f32.mrb[0].mxu0
  %v4542 = vadd.f32 %v4461, %v4541
  %v4543 = vpop.f32.mrb[0].mxu0
  %v4544 = vpop.f32.mrb[0].mxu0
  %v4545 = vadd.f32 %v4461, %v4544
  %v4546 = vpop.f32.mrb[0].mxu0
  %4547 = vmatprep.mubr.bf16.mxu0 0
  %4548 = vmatmul.mubr.bf16.gmra.mrb[0].mxu0 %v1698
  %v4549 = vpop.f32.mrb[0].mxu0
  %v4550 = vadd.f32 %v4461, %v4549
  %v4551 = vpop.f32.mrb[0].mxu0
  %v4552 = vpop.f32.mrb[0].mxu0
  %v4553 = vadd.f32 %v4461, %v4552
  %v4554 = vpop.f32.mrb[0].mxu0
  %4555 = vmatprep.mubr.bf16.mxu0 0
  %4556 = vmatmul.mubr.bf16.gmra.mrb[0].mxu0 %v1701
  %v4557 = vpop.f32.mrb[0].mxu0
  %v4558 = vadd.f32 %v4461, %v4557
  %v4559 = vpop.f32.mrb[0].mxu0
  %v4560 = vpop.f32.mrb[0].mxu0
  %v4561 = vadd.f32 %v4461, %v4560
  %v4562 = vpop.f32.mrb[0].mxu0
  %4563 = vmatprep.mubr.bf16.mxu0 0
  %4564 = vmatmul.mubr.bf16.gmra.mrb[0].mxu0 %v1704
  %v4565 = vpop.f32.mrb[0].mxu0
  %v4566 = vadd.f32 %v4461, %v4565
  %v4567 = vpop.f32.mrb[0].mxu0
  %v4568 = vpop.f32.mrb[0].mxu0
  %v4569 = vadd.f32 %v4461, %v4568
  %v4570 = vpop.f32.mrb[0].mxu0
  %4571 = vmatprep.mubr.bf16.mxu0 0
  %4572 = vmatmul.mubr.bf16.gmra.mrb[0].mxu0 %v1707
  %v4573 = vpop.f32.mrb[0].mxu0
  %v4574 = vadd.f32 %v4461, %v4573
  %v4575 = vpop.f32.mrb[0].mxu0
  %v4576 = vpop.f32.mrb[0].mxu0
  %v4577 = vadd.f32 %v4461, %v4576
  %v4578 = vpop.f32.mrb[0].mxu0
  %4579 = vmatprep.mubr.bf16.mxu0 0
  %4580 = vmatmul.mubr.bf16.gmra.mrb[0].mxu0 %v1710
  %v4581 = vpop.f32.mrb[0].mxu0
  %v4582 = vadd.f32 %v4461, %v4581
  %v4583 = vpop.f32.mrb[0].mxu0
  %v4584 = vpop.f32.mrb[0].mxu0
  %v4585 = vadd.f32 %v4461, %v4584
  %v4586 = vpop.f32.mrb[0].mxu0
  %4587 = vmatprep.mubr.bf16.mxu0 0
  %4588 = vmatmul.mubr.bf16.gmra.mrb[0].mxu0 %v1713
  %v4589 = vpop.f32.mrb[0].mxu0
  %v4590 = vadd.f32 %v4461, %v4589
  %v4591 = vpop.f32.mrb[0].mxu0
  %v4592 = vpop.f32.mrb[0].mxu0
  %v4593 = vadd.f32 %v4461, %v4592
  %v4594 = vpop.f32.mrb[0].mxu0
  %4595 = vmatprep.mubr.bf16.mxu0 0
  %4596 = vmatmul.mubr.bf16.gmra.mrb[0].mxu0 %v1716
  %v4597 = vpop.f32.mrb[0].mxu0
  %v4598 = vadd.f32 %v4461, %v4597
  %v4599 = vpop.f32.mrb[0].mxu0
  %v4600 = vpop.f32.mrb[0].mxu0
  %v4601 = vadd.f32 %v4461, %v4600
  %v4602 = vpop.f32.mrb[0].mxu0
  %4603 = vmatprep.mubr.bf16.mxu0 0
  %4604 = vmatmul.mubr.bf16.gmra.mrb[0].mxu0 %v1719
  %v4605 = vpop.f32.mrb[0].mxu0
  %v4606 = vadd.f32 %v4461, %v4605
  %v4607 = vpop.f32.mrb[0].mxu0
  %v4608 = vpop.f32.mrb[0].mxu0
  %v4609 = vadd.f32 %v4461, %v4608
  %v4610 = vpop.f32.mrb[0].mxu0
  %4611 = vmatprep.mubr.bf16.mxu0 0
  %4612 = vmatmul.mubr.bf16.gmra.mrb[0].mxu0 %v1722
  %v4613 = vpop.f32.mrb[0].mxu0
  %v4614 = vadd.f32 %v4461, %v4613
  %v4615 = vpop.f32.mrb[0].mxu0
  %v4616 = vpop.f32.mrb[0].mxu0
  %v4617 = vadd.f32 %v4461, %v4616
  %v4618 = vpop.f32.mrb[0].mxu0
  %4619 = vmatprep.mubr.bf16.mxu0 0
  %4620 = vmatmul.mubr.bf16.gmra.mrb[0].mxu0 %v1725
  %v4621 = vpop.f32.mrb[0].mxu0
  %v4622 = vadd.f32 %v4461, %v4621
  %v4623 = vpop.f32.mrb[0].mxu0
  %v4624 = vpop.f32.mrb[0].mxu0
  %v4625 = vadd.f32 %v4461, %v4624
  %v4626 = vpop.f32.mrb[0].mxu0
  %4627 = vmatprep.mubr.bf16.mxu0 0
  %4628 = vmatmul.mubr.bf16.gmra.mrb[0].mxu0 %v1728
  %v4629 = vpop.f32.mrb[0].mxu0
  %v4630 = vadd.f32 %v4461, %v4629
  %v4631 = vpop.f32.mrb[0].mxu0
  %v4632 = vpop.f32.mrb[0].mxu0
  %v4633 = vadd.f32 %v4461, %v4632
  %v4634 = vpop.f32.mrb[0].mxu0
  %4635 = vmatprep.mubr.bf16.mxu0 0
  %4636 = vmatmul.mubr.bf16.gmra.mrb[0].mxu0 %v1731
  %v4637 = vpop.f32.mrb[0].mxu0
  %v4638 = vadd.f32 %v4461, %v4637
  %v4639 = vpop.f32.mrb[0].mxu0
  %v4640 = vpop.f32.mrb[0].mxu0
  %v4641 = vadd.f32 %v4461, %v4640
  %v4642 = vpop.f32.mrb[0].mxu0
  %4643 = vmatprep.mubr.bf16.mxu0 0
  %4644 = vmatmul.mubr.bf16.gmra.mrb[0].mxu0 %v1734
  %v4645 = vpop.f32.mrb[0].mxu0
  %v4646 = vadd.f32 %v4461, %v4645
  %v4647 = vpop.f32.mrb[0].mxu0
  %v4648 = vpop.f32.mrb[0].mxu0
  %v4649 = vadd.f32 %v4461, %v4648
  %v4650 = vpop.f32.mrb[0].mxu0
  %4651 = vdwg.mxu0
  %v4652 = vadd.f32 %v4416, %v4510
  %v4653 = vadd.f32 %v4417, %v4513
  %v4654 = vadd.f32 %v4418, %v4518
  %v4655 = vadd.f32 %v4419, %v4521
  %v4656 = vadd.f32 %v4420, %v4526
  %v4657 = vadd.f32 %v4421, %v4529
  %v4658 = vadd.f32 %v4422, %v4534
  %v4659 = vadd.f32 %v4423, %v4537
  %v4660 = vadd.f32 %v4424, %v4542
  %v4661 = vadd.f32 %v4425, %v4545
  %v4662 = vadd.f32 %v4426, %v4550
  %v4663 = vadd.f32 %v4427, %v4553
  %v4664 = vadd.f32 %v4428, %v4558
  %v4665 = vadd.f32 %v4429, %v4561
  %v4666 = vadd.f32 %v4430, %v4566
  %v4667 = vadd.f32 %v4431, %v4569
  %v4668 = vadd.f32 %v4432, %v4574
  %v4669 = vadd.f32 %v4433, %v4577
  %v4670 = vadd.f32 %v4434, %v4582
  %v4671 = vadd.f32 %v4435, %v4585
  %v4672 = vadd.f32 %v4436, %v4590
  %v4673 = vadd.f32 %v4437, %v4593
  %v4674 = vadd.f32 %v4438, %v4598
  %v4675 = vadd.f32 %v4439, %v4601
  %v4676 = vadd.f32 %v4440, %v4606
  %v4677 = vadd.f32 %v4441, %v4609
  %v4678 = vadd.f32 %v4442, %v4614
  %v4679 = vadd.f32 %v4443, %v4617
  %v4680 = vadd.f32 %v4444, %v4622
  %v4681 = vadd.f32 %v4445, %v4625
  %v4682 = vadd.f32 %v4446, %v4630
  %v4683 = vadd.f32 %v4447, %v4633
  %v4684 = vadd.f32 %v4448, %v4638
  %v4685 = vadd.f32 %v4449, %v4641
  %v4686 = vadd.f32 %v4450, %v4646
  %v4687 = vadd.f32 %v4451, %v4649
  %vm4688 = vcmask 523264
  %4689 = vst.msk [vmem:[%s10] sm:$0xff] %vm4688, %v4652
  %4690 = vst.msk [vmem:[%s10 + $0x8] sm:$0xff] %vm4688, %v4653
  %4691 = vst.msk [vmem:[%s10 + $0x10] sm:$0xff] %vm4688, %v4654
  %4692 = vst.msk [vmem:[%s10 + $0x18] sm:$0xff] %vm4688, %v4655
  %4693 = vst.msk [vmem:[%s10 + $0x20] sm:$0xff] %vm4688, %v4656
  %4694 = vst.msk [vmem:[%s10 + $0x28] sm:$0xff] %vm4688, %v4657
  %4695 = vst.msk [vmem:[%s10 + $0x30] sm:$0xff] %vm4688, %v4658
  %4696 = vst.msk [vmem:[%s10 + $0x38] sm:$0xff] %vm4688, %v4659
  %4697 = vst.msk [vmem:[%s10 + $0x40] sm:$0xff] %vm4688, %v4660
  %4698 = vst.msk [vmem:[%s10 + $0x48] sm:$0xff] %vm4688, %v4661
  %4699 = vst.msk [vmem:[%s10 + $0x50] sm:$0xff] %vm4688, %v4662
  %4700 = vst.msk [vmem:[%s10 + $0x58] sm:$0xff] %vm4688, %v4663
  %4701 = vst.msk [vmem:[%s10 + $0x60] sm:$0xff] %vm4688, %v4664
  %4702 = vst.msk [vmem:[%s10 + $0x68] sm:$0xff] %vm4688, %v4665
  %4703 = vst.msk [vmem:[%s10 + $0x70] sm:$0xff] %vm4688, %v4666
  %4704 = vst.msk [vmem:[%s10 + $0x78] sm:$0xff] %vm4688, %v4667
  %4705 = vst.msk [vmem:[%s10 + $0x80] sm:$0xff] %vm4688, %v4668
  %4706 = vst.msk [vmem:[%s10 + $0x88] sm:$0xff] %vm4688, %v4669
  %4707 = vst.msk [vmem:[%s10 + $0x90] sm:$0xff] %vm4688, %v4670
  %4708 = vst.msk [vmem:[%s10 + $0x98] sm:$0xff] %vm4688, %v4671
  %4709 = vst.msk [vmem:[%s10 + $0xa0] sm:$0xff] %vm4688, %v4672
  %4710 = vst.msk [vmem:[%s10 + $0xa8] sm:$0xff] %vm4688, %v4673
  %4711 = vst.msk [vmem:[%s10 + $0xb0] sm:$0xff] %vm4688, %v4674
  %4712 = vst.msk [vmem:[%s10 + $0xb8] sm:$0xff] %vm4688, %v4675
  %4713 = vst.msk [vmem:[%s10 + $0xc0] sm:$0xff] %vm4688, %v4676
  %4714 = vst.msk [vmem:[%s10 + $0xc8] sm:$0xff] %vm4688, %v4677
  %4715 = vst.msk [vmem:[%s10 + $0xd0] sm:$0xff] %vm4688, %v4678
  %4716 = vst.msk [vmem:[%s10 + $0xd8] sm:$0xff] %vm4688, %v4679
  %4717 = vst.msk [vmem:[%s10 + $0xe0] sm:$0xff] %vm4688, %v4680
  %4718 = vst.msk [vmem:[%s10 + $0xe8] sm:$0xff] %vm4688, %v4681
  %4719 = vst.msk [vmem:[%s10 + $0xf0] sm:$0xff] %vm4688, %v4682
  %4720 = vst.msk [vmem:[%s10 + $0xf8] sm:$0xff] %vm4688, %v4683
  %4721 = vst.msk [vmem:[%s10 + $0x100] sm:$0xff] %vm4688, %v4684
  %4722 = vst.msk [vmem:[%s10 + $0x108] sm:$0xff] %vm4688, %v4685
  %4723 = vst.msk [vmem:[%s10 + $0x110] sm:$0xff] %vm4688, %v4686
  %4724 = vst.msk [vmem:[%s10 + $0x118] sm:$0xff] %vm4688, %v4687
  // Predicated region
  $region42: #{shiftnet_forward.2} parent=0 // pred_check
    _
  $region43: #{shiftnet_forward.2} parent=0 // pred_check_branch
    %4726 = sbr.rel (0) target = $region45
  $region44: #{shiftnet_forward.2} parent=0 // pred_region
    _
  $region45: #{shiftnet_forward.2} parent=0 // pred_fallthru
    _
  // Predicated region
  $region46: #{shiftnet_forward.2} parent=0 // pred_check
    _
  $region47: #{shiftnet_forward.2} parent=0 // pred_check_branch
    %4728 = sbr.rel (0) target = $region49
  $region48: #{shiftnet_forward.2} parent=0 // pred_region
    _
  $region49: #{shiftnet_forward.2} parent=0 // pred_fallthru
    _

</llo_original>
